<compile_context>
chip_gen: v6e
topology: v6e:2x2x1
jax: 0.10.0
libtpu: 0.0.40
codegen_flags: <defaults>
</compile_context>

<pallas_src>
import numpy as np
import jax
import jax.numpy as jnp
from jax.experimental import pallas as pl
from jax.experimental.pallas import tpu as pltpu


# ------------------------- geometry / resample helpers ---------------------- #

def _ext_geom(h, w):
    """Padded-flat geometry for an (h, w) feature map."""
    hp, wp = h + 2, w + 2
    m = wp + 1                       # extra margin so every tap shift is in-bounds
    return hp, wp, m, hp * wp + 2 * m


def _resample_matrix(h, w, stride, mode):
    """0/1 matrix mapping the conv accumulator over the padded (h+2, w+2) grid
    of an (h, w) input to either the next padded-flat layout ('ext') or the
    dense NCHW-flat output ('out'), selecting the stride-s valid positions."""
    hp, wp = h + 2, w + 2
    ho = (h - 1) // stride + 1
    wo = (w - 1) // stride + 1
    if mode == "out":
        s = np.zeros((hp * wp, ho * wo), np.float32)
        for i in range(ho):
            for j in range(wo):
                s[(1 + stride * i) * wp + (1 + stride * j), i * wo + j] = 1.0
    else:
        hpo, wpo, mo, lo = _ext_geom(ho, wo)
        s = np.zeros((hp * wp, lo), np.float32)
        for i in range(ho):
            for j in range(wo):
                s[(1 + stride * i) * wp + (1 + stride * j),
                  mo + (i + 1) * wpo + (j + 1)] = 1.0
    return s, ho, wo


def _w_to_kernel(w_hwio):
    """HWIO (3,3,Cin,Cout) -> (9, Cout, Cin) per-tap matrices."""
    _, _, cin, cout = w_hwio.shape
    return jnp.transpose(w_hwio.reshape(9, cin, cout), (0, 2, 1))


# ------------------------------ fused forward ------------------------------- #

def build_feature_pyramid_forward(hidden_layers, input_dim=3, k=3, H=16, W=16):
    dims = [input_dim] + list(hidden_layers[:k])

    # Static per-conv plan + resample matrices (built once, host-side).
    plan = []        # per conv: dict(Hp, Wp, s_chain, s_out, out_idx)
    s_mats = []
    out_hw = []
    h, w = H, W
    for b in range(k):
        # conv1 of the block (stride 1 for block 0, stride 2 otherwise)
        stride = 1 if b == 0 else 2
        hp, wp = h + 2, w + 2
        s_ext, ho, wo = _resample_matrix(h, w, stride, "ext")
        s_mats.append(s_ext)
        plan.append(dict(Hp=hp, Wp=wp, s_chain=len(s_mats) - 1,
                         s_out=None, out_idx=None))
        h, w = ho, wo
        # conv2 of the block (always stride 1, same spatial size)
        hp, wp = h + 2, w + 2
        s_out, _, _ = _resample_matrix(h, w, 1, "out")
        s_mats.append(s_out)
        s_out_idx = len(s_mats) - 1
        if b < k - 1:
            s_chain, _, _ = _resample_matrix(h, w, 1, "ext")
            s_mats.append(s_chain)
            s_chain_idx = len(s_mats) - 1
        else:
            s_chain_idx = None
        plan.append(dict(Hp=hp, Wp=wp, s_chain=s_chain_idx,
                         s_out=s_out_idx, out_idx=b))
        out_hw.append((h, w))

    n_convs = 2 * k
    n_s = len(s_mats)
    hp0, wp0, m0, l0 = _ext_geom(H, W)

    def kernel(*refs):
        alphas_ref = refs[0]                              # SMEM (2k,)
        x_ref = refs[1]                                   # (1, Cin0, L0)
        w_refs = refs[2:2 + n_convs]                      # (9, Cout, Cin) each
        s_refs = refs[2 + n_convs:2 + n_convs + n_s]      # resample matrices
        o_refs = refs[2 + n_convs + n_s:]                 # (1, C_b, H_b*W_b)

        cur = x_ref[0]                                    # (Cin, L_ext) in VMEM
        for ci, cfg in enumerate(plan):
            hp, wp = cfg["Hp"], cfg["Wp"]
            l, m = hp * wp, wp + 1
            wr = w_refs[ci]
            acc = None
            # 9 taps = contiguous lane slices of the padded-flat map; each tap
            # contributes a (Cout,Cin)@(Cin,L) matmul accumulated in f32.
            for dh in range(3):
                for dw in range(3):
                    start = m + (dh - 1) * wp + (dw - 1)
                    tap = cur[:, start:start + l]
                    part = jnp.dot(wr[dh * 3 + dw], tap,
                                   preferred_element_type=jnp.float32)
                    acc = part if acc is None else acc + part
            alpha = alphas_ref[ci]                        # PReLU (scalar alpha)
            act = jnp.where(acc >= 0, acc, alpha * acc)   # (Cout, Hp*Wp)
            if cfg["s_out"] is not None:                  # write pyramid scale
                o_ref = o_refs[cfg["out_idx"]]
                o_ref[0] = jnp.dot(act, s_refs[cfg["s_out"]][...],
                                   preferred_element_type=jnp.float32
                                   ).astype(o_ref.dtype)
            if cfg["s_chain"] is not None:                # chain to next conv
                cur = jnp.dot(act, s_refs[cfg["s_chain"]][...],
                              preferred_element_type=jnp.float32)

    def forward(x_nchw, params):
        n = x_nchw.shape[0]
        x = x_nchw.astype(jnp.float32)

        # Embed the NCHW input into the padded-flat layout (cheap one-time glue).
        xp = jnp.pad(x, ((0, 0), (0, 0), (1, 1), (1, 1)))             # (N,C,Hp,Wp)
        x_ext = jnp.pad(xp.reshape(n, dims[0], hp0 * wp0),
                        ((0, 0), (0, 0), (m0, m0)))                   # (N,C,L0)

        w_list, a_list = [], []
        for p in params[:k]:
            w_list.append(_w_to_kernel(p["w1"])); a_list.append(p["a1"])
            w_list.append(_w_to_kernel(p["w2"])); a_list.append(p["a2"])
        alphas = jnp.asarray(a_list, jnp.float32)
        s_list = [jnp.asarray(s) for s in s_mats]

        in_specs = [
            pl.BlockSpec(memory_space=pltpu.MemorySpace.SMEM),          # alphas
            pl.BlockSpec((1, dims[0], l0), lambda i: (i, 0, 0)),        # x_ext
        ]
        for wk in w_list:                                               # weights
            in_specs.append(pl.BlockSpec(wk.shape, lambda i: (0, 0, 0)))
        for s in s_list:                                                # resample
            in_specs.append(pl.BlockSpec(s.shape, lambda i: (0, 0)))

        out_shape = [jax.ShapeDtypeStruct((n, dims[b + 1], hh * ww), jnp.float32)
                     for b, (hh, ww) in enumerate(out_hw)]
        out_specs = [pl.BlockSpec((1, dims[b + 1], hh * ww), lambda i: (i, 0, 0))
                     for b, (hh, ww) in enumerate(out_hw)]

        # Advisory cost estimate (helps XLA schedule surrounding glue ops).
        flops = 0
        bytes_accessed = x_ext.size * 4
        for ci, cfg in enumerate(plan):
            cout, cin = w_list[ci].shape[1], w_list[ci].shape[2]
            l = cfg["Hp"] * cfg["Wp"]
            flops += 2 * 9 * cin * cout * l * n
            for s_idx in (cfg["s_out"], cfg["s_chain"]):
                if s_idx is not None:
                    flops += 2 * cout * s_list[s_idx].shape[0] * s_list[s_idx].shape[1] * n
            bytes_accessed += w_list[ci].size * 4
        for s in s_list:
            bytes_accessed += s.size * 4
        for sh in out_shape:
            bytes_accessed += int(np.prod(sh.shape)) * 4

        outs = pl.pallas_call(
            kernel,
            out_shape=out_shape,
            grid=(n,),
            in_specs=in_specs,
            out_specs=out_specs,
            compiler_params=pltpu.CompilerParams(
                dimension_semantics=("parallel",)),
            cost_estimate=pl.CostEstimate(
                flops=int(flops), transcendentals=0,
                bytes_accessed=int(bytes_accessed)),
        )(alphas, x_ext, *w_list, *s_list)

        # Outputs are already NCHW-flat: just reshape (no transpose).
        return [outs[b].reshape(n, dims[b + 1], hh, ww)
                for b, (hh, ww) in enumerate(out_hw)]

    return forward


# ------------------------------- parameters --------------------------------- #

def init_params(key, hidden_layers, input_dim=3, k=3):
    """Deterministic synthetic params. Conv weights stored HWIO (3,3,Cin,Cout)."""
    dims = [input_dim] + list(hidden_layers[:k])
    params = []
    for b in range(k):
        cin, cout = dims[b], dims[b + 1]
        key, k1, k2 = jax.random.split(key, 3)
        params.append(dict(
            w1=jax.random.normal(k1, (3, 3, cin, cout), jnp.float32) * 0.1,
            a1=0.25,  # nn.PReLU() default init
            w2=jax.random.normal(k2, (3, 3, cout, cout), jnp.float32) * 0.1,
            a2=0.25,
        ))
    return params


# -------------------------------- reference --------------------------------- #

def _ref_conv_prelu(x_nchw, w_hwio, alpha, stride):
    w_oihw = jnp.transpose(w_hwio, (3, 2, 0, 1))
    y = jax.lax.conv_general_dilated(
        x_nchw, w_oihw, (stride, stride), ((1, 1), (1, 1)),
        dimension_numbers=("NCHW", "OIHW", "NCHW"))
    return jnp.where(y >= 0, y, alpha * y)


def ref_forward(x_nchw, params, k=3):
    x = x_nchw
    scales = []
    for b, p in enumerate(params[:k]):
        first_stride = 1 if b == 0 else 2
        x = _ref_conv_prelu(x, p["w1"], p["a1"], first_stride)
        x = _ref_conv_prelu(x, p["w2"], p["a2"], 1)
        scales.append(x)
    return scales


# ---------------------------------- main ------------------------------------ #

if __name__ == "__main__":
    key = jax.random.PRNGKey(0)
    kx, kp = jax.random.split(key)

    hidden_layers = [8, 16, 32]   # k = 3 pyramid levels
    x = jax.random.normal(kx, (2, 3, 16, 16), jnp.float32)  # NCHW, input_dim=3
    params = init_params(kp, hidden_layers, input_dim=3, k=3)

    forward = build_feature_pyramid_forward(hidden_layers, input_dim=3, k=3, H=16, W=16)
    outs = jax.block_until_ready(forward(x, params))

    refs = ref_forward(x, params, k=3)
    expected_shapes = [(2, 8, 16, 16), (2, 16, 8, 8), (2, 32, 4, 4)]
    for o, r, s in zip(outs, refs, expected_shapes):
        assert o.shape == s, (o.shape, s)
        assert o.dtype == jnp.float32
        assert jnp.allclose(o, r, atol=1e-4, rtol=1e-4)

    print("KERNEL_OK")
</pallas_src>

<mosaic_0001>
module attributes {stable_mosaic.version = 11 : i64} {
  func.func @kernel(%arg0: i32, %arg1: memref<6xf32, #tpu.memory_space<smem>>, %arg2: memref<1x3x362xf32, #tpu.memory_space<vmem>>, %arg3: memref<9x8x3xf32, #tpu.memory_space<vmem>>, %arg4: memref<9x8x8xf32, #tpu.memory_space<vmem>>, %arg5: memref<9x16x8xf32, #tpu.memory_space<vmem>>, %arg6: memref<9x16x16xf32, #tpu.memory_space<vmem>>, %arg7: memref<9x32x16xf32, #tpu.memory_space<vmem>>, %arg8: memref<9x32x32xf32, #tpu.memory_space<vmem>>, %arg9: memref<324x362xf32, #tpu.memory_space<vmem>>, %arg10: memref<324x256xf32, #tpu.memory_space<vmem>>, %arg11: memref<324x362xf32, #tpu.memory_space<vmem>>, %arg12: memref<324x122xf32, #tpu.memory_space<vmem>>, %arg13: memref<100x64xf32, #tpu.memory_space<vmem>>, %arg14: memref<100x122xf32, #tpu.memory_space<vmem>>, %arg15: memref<100x50xf32, #tpu.memory_space<vmem>>, %arg16: memref<36x16xf32, #tpu.memory_space<vmem>>, %arg17: memref<1x8x256xf32, #tpu.memory_space<vmem>>, %arg18: memref<1x16x64xf32, #tpu.memory_space<vmem>>, %arg19: memref<1x32x16xf32, #tpu.memory_space<vmem>>) attributes {dimension_semantics = [#tpu.dimension_semantics<parallel>], iteration_bounds = array<i64: 2>, scalar_prefetch = 0 : i64, scratch_operands = 0 : i64, tpu.core_type = #tpu.core_type<tc>, window_params = [{transform_indices = @transform_0, window_bounds = array<i64: 6>}, {transform_indices = @transform_1, window_bounds = array<i64: 1, 3, 362>}, {pipeline_mode = #tpu.pipeline_mode<synchronous>, transform_indices = @transform_2, window_bounds = array<i64: 9, 8, 3>}, {pipeline_mode = #tpu.pipeline_mode<synchronous>, transform_indices = @transform_3, window_bounds = array<i64: 9, 8, 8>}, {pipeline_mode = #tpu.pipeline_mode<synchronous>, transform_indices = @transform_4, window_bounds = array<i64: 9, 16, 8>}, {pipeline_mode = #tpu.pipeline_mode<synchronous>, transform_indices = @transform_5, window_bounds = array<i64: 9, 16, 16>}, {pipeline_mode = #tpu.pipeline_mode<synchronous>, transform_indices = @transform_6, window_bounds = array<i64: 9, 32, 16>}, {pipeline_mode = #tpu.pipeline_mode<synchronous>, transform_indices = @transform_7, window_bounds = array<i64: 9, 32, 32>}, {pipeline_mode = #tpu.pipeline_mode<synchronous>, transform_indices = @transform_8, window_bounds = array<i64: 324, 362>}, {pipeline_mode = #tpu.pipeline_mode<synchronous>, transform_indices = @transform_9, window_bounds = array<i64: 324, 256>}, {pipeline_mode = #tpu.pipeline_mode<synchronous>, transform_indices = @transform_10, window_bounds = array<i64: 324, 362>}, {pipeline_mode = #tpu.pipeline_mode<synchronous>, transform_indices = @transform_11, window_bounds = array<i64: 324, 122>}, {pipeline_mode = #tpu.pipeline_mode<synchronous>, transform_indices = @transform_12, window_bounds = array<i64: 100, 64>}, {pipeline_mode = #tpu.pipeline_mode<synchronous>, transform_indices = @transform_13, window_bounds = array<i64: 100, 122>}, {pipeline_mode = #tpu.pipeline_mode<synchronous>, transform_indices = @transform_14, window_bounds = array<i64: 100, 50>}, {pipeline_mode = #tpu.pipeline_mode<synchronous>, transform_indices = @transform_15, window_bounds = array<i64: 36, 16>}, {transform_indices = @transform_16, window_bounds = array<i64: 1, 8, 256>}, {transform_indices = @transform_17, window_bounds = array<i64: 1, 16, 64>}, {transform_indices = @transform_18, window_bounds = array<i64: 1, 32, 16>}]} {
    %c0 = arith.constant 0 : index
    %c0_0 = arith.constant 0 : index
    %c0_1 = arith.constant 0 : index
    %0 = vector.load %arg2[%c0, %c0_0, %c0_1] : memref<1x3x362xf32, #tpu.memory_space<vmem>>, vector<1x3x362xf32>
    %1 = vector.shape_cast %0 : vector<1x3x362xf32> to vector<3x362xf32>
    %2 = vector.extract_strided_slice %1 {offsets = [0, 0], sizes = [3, 324], strides = [1, 1]} : vector<3x362xf32> to vector<3x324xf32>
    %c0_2 = arith.constant 0 : index
    %c0_3 = arith.constant 0 : index
    %c0_4 = arith.constant 0 : index
    %3 = vector.load %arg3[%c0_2, %c0_3, %c0_4] : memref<9x8x3xf32, #tpu.memory_space<vmem>>, vector<1x8x3xf32>
    %4 = vector.shape_cast %3 : vector<1x8x3xf32> to vector<8x3xf32>
    %cst = arith.constant dense<0.000000e+00> : vector<8x324xf32>
    %5 = tpu.matmul %4, %2, %cst {dimension_numbers = #tpu.dot_dimension_numbers<[1], [0], [0], [1], [0, 0, 1, 1], [], []>} : vector<8x3xf32>, vector<3x324xf32>, vector<8x324xf32> -> vector<8x324xf32>
    %6 = vector.extract_strided_slice %1 {offsets = [0, 1], sizes = [3, 324], strides = [1, 1]} : vector<3x362xf32> to vector<3x324xf32>
    %c1 = arith.constant 1 : index
    %c0_5 = arith.constant 0 : index
    %c0_6 = arith.constant 0 : index
    %7 = vector.load %arg3[%c1, %c0_5, %c0_6] : memref<9x8x3xf32, #tpu.memory_space<vmem>>, vector<1x8x3xf32>
    %8 = vector.shape_cast %7 : vector<1x8x3xf32> to vector<8x3xf32>
    %cst_7 = arith.constant dense<0.000000e+00> : vector<8x324xf32>
    %9 = tpu.matmul %8, %6, %cst_7 {dimension_numbers = #tpu.dot_dimension_numbers<[1], [0], [0], [1], [0, 0, 1, 1], [], []>} : vector<8x3xf32>, vector<3x324xf32>, vector<8x324xf32> -> vector<8x324xf32>
    %10 = arith.addf %5, %9 : vector<8x324xf32>
    %11 = vector.extract_strided_slice %1 {offsets = [0, 2], sizes = [3, 324], strides = [1, 1]} : vector<3x362xf32> to vector<3x324xf32>
    %c2 = arith.constant 2 : index
    %c0_8 = arith.constant 0 : index
    %c0_9 = arith.constant 0 : index
    %12 = vector.load %arg3[%c2, %c0_8, %c0_9] : memref<9x8x3xf32, #tpu.memory_space<vmem>>, vector<1x8x3xf32>
    %13 = vector.shape_cast %12 : vector<1x8x3xf32> to vector<8x3xf32>
    %cst_10 = arith.constant dense<0.000000e+00> : vector<8x324xf32>
    %14 = tpu.matmul %13, %11, %cst_10 {dimension_numbers = #tpu.dot_dimension_numbers<[1], [0], [0], [1], [0, 0, 1, 1], [], []>} : vector<8x3xf32>, vector<3x324xf32>, vector<8x324xf32> -> vector<8x324xf32>
    %15 = arith.addf %10, %14 : vector<8x324xf32>
    %16 = vector.extract_strided_slice %1 {offsets = [0, 18], sizes = [3, 324], strides = [1, 1]} : vector<3x362xf32> to vector<3x324xf32>
    %c3 = arith.constant 3 : index
    %c0_11 = arith.constant 0 : index
    %c0_12 = arith.constant 0 : index
    %17 = vector.load %arg3[%c3, %c0_11, %c0_12] : memref<9x8x3xf32, #tpu.memory_space<vmem>>, vector<1x8x3xf32>
    %18 = vector.shape_cast %17 : vector<1x8x3xf32> to vector<8x3xf32>
    %cst_13 = arith.constant dense<0.000000e+00> : vector<8x324xf32>
    %19 = tpu.matmul %18, %16, %cst_13 {dimension_numbers = #tpu.dot_dimension_numbers<[1], [0], [0], [1], [0, 0, 1, 1], [], []>} : vector<8x3xf32>, vector<3x324xf32>, vector<8x324xf32> -> vector<8x324xf32>
    %20 = arith.addf %15, %19 : vector<8x324xf32>
    %21 = vector.extract_strided_slice %1 {offsets = [0, 19], sizes = [3, 324], strides = [1, 1]} : vector<3x362xf32> to vector<3x324xf32>
    %c4 = arith.constant 4 : index
    %c0_14 = arith.constant 0 : index
    %c0_15 = arith.constant 0 : index
    %22 = vector.load %arg3[%c4, %c0_14, %c0_15] : memref<9x8x3xf32, #tpu.memory_space<vmem>>, vector<1x8x3xf32>
    %23 = vector.shape_cast %22 : vector<1x8x3xf32> to vector<8x3xf32>
    %cst_16 = arith.constant dense<0.000000e+00> : vector<8x324xf32>
    %24 = tpu.matmul %23, %21, %cst_16 {dimension_numbers = #tpu.dot_dimension_numbers<[1], [0], [0], [1], [0, 0, 1, 1], [], []>} : vector<8x3xf32>, vector<3x324xf32>, vector<8x324xf32> -> vector<8x324xf32>
    %25 = arith.addf %20, %24 : vector<8x324xf32>
    %26 = vector.extract_strided_slice %1 {offsets = [0, 20], sizes = [3, 324], strides = [1, 1]} : vector<3x362xf32> to vector<3x324xf32>
    %c5 = arith.constant 5 : index
    %c0_17 = arith.constant 0 : index
    %c0_18 = arith.constant 0 : index
    %27 = vector.load %arg3[%c5, %c0_17, %c0_18] : memref<9x8x3xf32, #tpu.memory_space<vmem>>, vector<1x8x3xf32>
    %28 = vector.shape_cast %27 : vector<1x8x3xf32> to vector<8x3xf32>
    %cst_19 = arith.constant dense<0.000000e+00> : vector<8x324xf32>
    %29 = tpu.matmul %28, %26, %cst_19 {dimension_numbers = #tpu.dot_dimension_numbers<[1], [0], [0], [1], [0, 0, 1, 1], [], []>} : vector<8x3xf32>, vector<3x324xf32>, vector<8x324xf32> -> vector<8x324xf32>
    %30 = arith.addf %25, %29 : vector<8x324xf32>
    %31 = vector.extract_strided_slice %1 {offsets = [0, 36], sizes = [3, 324], strides = [1, 1]} : vector<3x362xf32> to vector<3x324xf32>
    %c6 = arith.constant 6 : index
    %c0_20 = arith.constant 0 : index
    %c0_21 = arith.constant 0 : index
    %32 = vector.load %arg3[%c6, %c0_20, %c0_21] : memref<9x8x3xf32, #tpu.memory_space<vmem>>, vector<1x8x3xf32>
    %33 = vector.shape_cast %32 : vector<1x8x3xf32> to vector<8x3xf32>
    %cst_22 = arith.constant dense<0.000000e+00> : vector<8x324xf32>
    %34 = tpu.matmul %33, %31, %cst_22 {dimension_numbers = #tpu.dot_dimension_numbers<[1], [0], [0], [1], [0, 0, 1, 1], [], []>} : vector<8x3xf32>, vector<3x324xf32>, vector<8x324xf32> -> vector<8x324xf32>
    %35 = arith.addf %30, %34 : vector<8x324xf32>
    %36 = vector.extract_strided_slice %1 {offsets = [0, 37], sizes = [3, 324], strides = [1, 1]} : vector<3x362xf32> to vector<3x324xf32>
    %c7 = arith.constant 7 : index
    %c0_23 = arith.constant 0 : index
    %c0_24 = arith.constant 0 : index
    %37 = vector.load %arg3[%c7, %c0_23, %c0_24] : memref<9x8x3xf32, #tpu.memory_space<vmem>>, vector<1x8x3xf32>
    %38 = vector.shape_cast %37 : vector<1x8x3xf32> to vector<8x3xf32>
    %cst_25 = arith.constant dense<0.000000e+00> : vector<8x324xf32>
    %39 = tpu.matmul %38, %36, %cst_25 {dimension_numbers = #tpu.dot_dimension_numbers<[1], [0], [0], [1], [0, 0, 1, 1], [], []>} : vector<8x3xf32>, vector<3x324xf32>, vector<8x324xf32> -> vector<8x324xf32>
    %40 = arith.addf %35, %39 : vector<8x324xf32>
    %41 = vector.extract_strided_slice %1 {offsets = [0, 38], sizes = [3, 324], strides = [1, 1]} : vector<3x362xf32> to vector<3x324xf32>
    %c8 = arith.constant 8 : index
    %c0_26 = arith.constant 0 : index
    %c0_27 = arith.constant 0 : index
    %42 = vector.load %arg3[%c8, %c0_26, %c0_27] : memref<9x8x3xf32, #tpu.memory_space<vmem>>, vector<1x8x3xf32>
    %43 = vector.shape_cast %42 : vector<1x8x3xf32> to vector<8x3xf32>
    %cst_28 = arith.constant dense<0.000000e+00> : vector<8x324xf32>
    %44 = tpu.matmul %43, %41, %cst_28 {dimension_numbers = #tpu.dot_dimension_numbers<[1], [0], [0], [1], [0, 0, 1, 1], [], []>} : vector<8x3xf32>, vector<3x324xf32>, vector<8x324xf32> -> vector<8x324xf32>
    %45 = arith.addf %40, %44 : vector<8x324xf32>
    %c0_29 = arith.constant 0 : index
    %46 = memref.load %arg1[%c0_29] : memref<6xf32, #tpu.memory_space<smem>>
    %cst_30 = arith.constant 0.000000e+00 : f32
    %47 = vector.broadcast %cst_30 : f32 to vector<8x324xf32>
    %48 = arith.cmpf oge, %45, %47 : vector<8x324xf32>
    %49 = vector.broadcast %46 : f32 to vector<8x324xf32>
    %50 = arith.mulf %49, %45 : vector<8x324xf32>
    %51 = arith.select %48, %45, %50 : vector<8x324xi1>, vector<8x324xf32>
    %c0_31 = arith.constant 0 : index
    %c0_32 = arith.constant 0 : index
    %52 = vector.load %arg9[%c0_31, %c0_32] : memref<324x362xf32, #tpu.memory_space<vmem>>, vector<324x362xf32>
    %cst_33 = arith.constant dense<0.000000e+00> : vector<8x362xf32>
    %53 = tpu.matmul %51, %52, %cst_33 {dimension_numbers = #tpu.dot_dimension_numbers<[1], [0], [0], [1], [0, 0, 1, 1], [], []>} : vector<8x324xf32>, vector<324x362xf32>, vector<8x362xf32> -> vector<8x362xf32>
    %54 = vector.extract_strided_slice %53 {offsets = [0, 0], sizes = [8, 324], strides = [1, 1]} : vector<8x362xf32> to vector<8x324xf32>
    %c0_34 = arith.constant 0 : index
    %c0_35 = arith.constant 0 : index
    %c0_36 = arith.constant 0 : index
    %55 = vector.load %arg4[%c0_34, %c0_35, %c0_36] : memref<9x8x8xf32, #tpu.memory_space<vmem>>, vector<1x8x8xf32>
    %56 = vector.shape_cast %55 : vector<1x8x8xf32> to vector<8x8xf32>
    %cst_37 = arith.constant dense<0.000000e+00> : vector<8x324xf32>
    %57 = tpu.matmul %56, %54, %cst_37 {dimension_numbers = #tpu.dot_dimension_numbers<[1], [0], [0], [1], [0, 0, 1, 1], [], []>} : vector<8x8xf32>, vector<8x324xf32>, vector<8x324xf32> -> vector<8x324xf32>
    %58 = vector.extract_strided_slice %53 {offsets = [0, 1], sizes = [8, 324], strides = [1, 1]} : vector<8x362xf32> to vector<8x324xf32>
    %c1_38 = arith.constant 1 : index
    %c0_39 = arith.constant 0 : index
    %c0_40 = arith.constant 0 : index
    %59 = vector.load %arg4[%c1_38, %c0_39, %c0_40] : memref<9x8x8xf32, #tpu.memory_space<vmem>>, vector<1x8x8xf32>
    %60 = vector.shape_cast %59 : vector<1x8x8xf32> to vector<8x8xf32>
    %cst_41 = arith.constant dense<0.000000e+00> : vector<8x324xf32>
    %61 = tpu.matmul %60, %58, %cst_41 {dimension_numbers = #tpu.dot_dimension_numbers<[1], [0], [0], [1], [0, 0, 1, 1], [], []>} : vector<8x8xf32>, vector<8x324xf32>, vector<8x324xf32> -> vector<8x324xf32>
    %62 = arith.addf %57, %61 : vector<8x324xf32>
    %63 = vector.extract_strided_slice %53 {offsets = [0, 2], sizes = [8, 324], strides = [1, 1]} : vector<8x362xf32> to vector<8x324xf32>
    %c2_42 = arith.constant 2 : index
    %c0_43 = arith.constant 0 : index
    %c0_44 = arith.constant 0 : index
    %64 = vector.load %arg4[%c2_42, %c0_43, %c0_44] : memref<9x8x8xf32, #tpu.memory_space<vmem>>, vector<1x8x8xf32>
    %65 = vector.shape_cast %64 : vector<1x8x8xf32> to vector<8x8xf32>
    %cst_45 = arith.constant dense<0.000000e+00> : vector<8x324xf32>
    %66 = tpu.matmul %65, %63, %cst_45 {dimension_numbers = #tpu.dot_dimension_numbers<[1], [0], [0], [1], [0, 0, 1, 1], [], []>} : vector<8x8xf32>, vector<8x324xf32>, vector<8x324xf32> -> vector<8x324xf32>
    %67 = arith.addf %62, %66 : vector<8x324xf32>
    %68 = vector.extract_strided_slice %53 {offsets = [0, 18], sizes = [8, 324], strides = [1, 1]} : vector<8x362xf32> to vector<8x324xf32>
    %c3_46 = arith.constant 3 : index
    %c0_47 = arith.constant 0 : index
    %c0_48 = arith.constant 0 : index
    %69 = vector.load %arg4[%c3_46, %c0_47, %c0_48] : memref<9x8x8xf32, #tpu.memory_space<vmem>>, vector<1x8x8xf32>
    %70 = vector.shape_cast %69 : vector<1x8x8xf32> to vector<8x8xf32>
    %cst_49 = arith.constant dense<0.000000e+00> : vector<8x324xf32>
    %71 = tpu.matmul %70, %68, %cst_49 {dimension_numbers = #tpu.dot_dimension_numbers<[1], [0], [0], [1], [0, 0, 1, 1], [], []>} : vector<8x8xf32>, vector<8x324xf32>, vector<8x324xf32> -> vector<8x324xf32>
    %72 = arith.addf %67, %71 : vector<8x324xf32>
    %73 = vector.extract_strided_slice %53 {offsets = [0, 19], sizes = [8, 324], strides = [1, 1]} : vector<8x362xf32> to vector<8x324xf32>
    %c4_50 = arith.constant 4 : index
    %c0_51 = arith.constant 0 : index
    %c0_52 = arith.constant 0 : index
    %74 = vector.load %arg4[%c4_50, %c0_51, %c0_52] : memref<9x8x8xf32, #tpu.memory_space<vmem>>, vector<1x8x8xf32>
    %75 = vector.shape_cast %74 : vector<1x8x8xf32> to vector<8x8xf32>
    %cst_53 = arith.constant dense<0.000000e+00> : vector<8x324xf32>
    %76 = tpu.matmul %75, %73, %cst_53 {dimension_numbers = #tpu.dot_dimension_numbers<[1], [0], [0], [1], [0, 0, 1, 1], [], []>} : vector<8x8xf32>, vector<8x324xf32>, vector<8x324xf32> -> vector<8x324xf32>
    %77 = arith.addf %72, %76 : vector<8x324xf32>
    %78 = vector.extract_strided_slice %53 {offsets = [0, 20], sizes = [8, 324], strides = [1, 1]} : vector<8x362xf32> to vector<8x324xf32>
    %c5_54 = arith.constant 5 : index
    %c0_55 = arith.constant 0 : index
    %c0_56 = arith.constant 0 : index
    %79 = vector.load %arg4[%c5_54, %c0_55, %c0_56] : memref<9x8x8xf32, #tpu.memory_space<vmem>>, vector<1x8x8xf32>
    %80 = vector.shape_cast %79 : vector<1x8x8xf32> to vector<8x8xf32>
    %cst_57 = arith.constant dense<0.000000e+00> : vector<8x324xf32>
    %81 = tpu.matmul %80, %78, %cst_57 {dimension_numbers = #tpu.dot_dimension_numbers<[1], [0], [0], [1], [0, 0, 1, 1], [], []>} : vector<8x8xf32>, vector<8x324xf32>, vector<8x324xf32> -> vector<8x324xf32>
    %82 = arith.addf %77, %81 : vector<8x324xf32>
    %83 = vector.extract_strided_slice %53 {offsets = [0, 36], sizes = [8, 324], strides = [1, 1]} : vector<8x362xf32> to vector<8x324xf32>
    %c6_58 = arith.constant 6 : index
    %c0_59 = arith.constant 0 : index
    %c0_60 = arith.constant 0 : index
    %84 = vector.load %arg4[%c6_58, %c0_59, %c0_60] : memref<9x8x8xf32, #tpu.memory_space<vmem>>, vector<1x8x8xf32>
    %85 = vector.shape_cast %84 : vector<1x8x8xf32> to vector<8x8xf32>
    %cst_61 = arith.constant dense<0.000000e+00> : vector<8x324xf32>
    %86 = tpu.matmul %85, %83, %cst_61 {dimension_numbers = #tpu.dot_dimension_numbers<[1], [0], [0], [1], [0, 0, 1, 1], [], []>} : vector<8x8xf32>, vector<8x324xf32>, vector<8x324xf32> -> vector<8x324xf32>
    %87 = arith.addf %82, %86 : vector<8x324xf32>
    %88 = vector.extract_strided_slice %53 {offsets = [0, 37], sizes = [8, 324], strides = [1, 1]} : vector<8x362xf32> to vector<8x324xf32>
    %c7_62 = arith.constant 7 : index
    %c0_63 = arith.constant 0 : index
    %c0_64 = arith.constant 0 : index
    %89 = vector.load %arg4[%c7_62, %c0_63, %c0_64] : memref<9x8x8xf32, #tpu.memory_space<vmem>>, vector<1x8x8xf32>
    %90 = vector.shape_cast %89 : vector<1x8x8xf32> to vector<8x8xf32>
    %cst_65 = arith.constant dense<0.000000e+00> : vector<8x324xf32>
    %91 = tpu.matmul %90, %88, %cst_65 {dimension_numbers = #tpu.dot_dimension_numbers<[1], [0], [0], [1], [0, 0, 1, 1], [], []>} : vector<8x8xf32>, vector<8x324xf32>, vector<8x324xf32> -> vector<8x324xf32>
    %92 = arith.addf %87, %91 : vector<8x324xf32>
    %93 = vector.extract_strided_slice %53 {offsets = [0, 38], sizes = [8, 324], strides = [1, 1]} : vector<8x362xf32> to vector<8x324xf32>
    %c8_66 = arith.constant 8 : index
    %c0_67 = arith.constant 0 : index
    %c0_68 = arith.constant 0 : index
    %94 = vector.load %arg4[%c8_66, %c0_67, %c0_68] : memref<9x8x8xf32, #tpu.memory_space<vmem>>, vector<1x8x8xf32>
    %95 = vector.shape_cast %94 : vector<1x8x8xf32> to vector<8x8xf32>
    %cst_69 = arith.constant dense<0.000000e+00> : vector<8x324xf32>
    %96 = tpu.matmul %95, %93, %cst_69 {dimension_numbers = #tpu.dot_dimension_numbers<[1], [0], [0], [1], [0, 0, 1, 1], [], []>} : vector<8x8xf32>, vector<8x324xf32>, vector<8x324xf32> -> vector<8x324xf32>
    %97 = arith.addf %92, %96 : vector<8x324xf32>
    %c1_70 = arith.constant 1 : index
    %98 = memref.load %arg1[%c1_70] : memref<6xf32, #tpu.memory_space<smem>>
    %cst_71 = arith.constant 0.000000e+00 : f32
    %99 = vector.broadcast %cst_71 : f32 to vector<8x324xf32>
    %100 = arith.cmpf oge, %97, %99 : vector<8x324xf32>
    %101 = vector.broadcast %98 : f32 to vector<8x324xf32>
    %102 = arith.mulf %101, %97 : vector<8x324xf32>
    %103 = arith.select %100, %97, %102 : vector<8x324xi1>, vector<8x324xf32>
    %c0_72 = arith.constant 0 : index
    %c0_73 = arith.constant 0 : index
    %104 = vector.load %arg10[%c0_72, %c0_73] : memref<324x256xf32, #tpu.memory_space<vmem>>, vector<324x256xf32>
    %cst_74 = arith.constant dense<0.000000e+00> : vector<8x256xf32>
    %105 = tpu.matmul %103, %104, %cst_74 {dimension_numbers = #tpu.dot_dimension_numbers<[1], [0], [0], [1], [0, 0, 1, 1], [], []>} : vector<8x324xf32>, vector<324x256xf32>, vector<8x256xf32> -> vector<8x256xf32>
    %c0_75 = arith.constant 0 : index
    %c0_76 = arith.constant 0 : index
    %c0_77 = arith.constant 0 : index
    %106 = vector.load %arg17[%c0_75, %c0_76, %c0_77] : memref<1x8x256xf32, #tpu.memory_space<vmem>>, vector<1x8x256xf32>
    %107 = vector.shape_cast %106 : vector<1x8x256xf32> to vector<8x256xf32>
    %108 = vector.shape_cast %105 : vector<8x256xf32> to vector<1x8x256xf32>
    tpu.vector_store %arg17[%c0_75, %c0_76, %c0_77], %108 {strides = array<i32>} : memref<1x8x256xf32, #tpu.memory_space<vmem>>, vector<1x8x256xf32>,
    %c0_78 = arith.constant 0 : index
    %c0_79 = arith.constant 0 : index
    %109 = vector.load %arg11[%c0_78, %c0_79] : memref<324x362xf32, #tpu.memory_space<vmem>>, vector<324x362xf32>
    %cst_80 = arith.constant dense<0.000000e+00> : vector<8x362xf32>
    %110 = tpu.matmul %103, %109, %cst_80 {dimension_numbers = #tpu.dot_dimension_numbers<[1], [0], [0], [1], [0, 0, 1, 1], [], []>} : vector<8x324xf32>, vector<324x362xf32>, vector<8x362xf32> -> vector<8x362xf32>
    %111 = vector.extract_strided_slice %110 {offsets = [0, 0], sizes = [8, 324], strides = [1, 1]} : vector<8x362xf32> to vector<8x324xf32>
    %c0_81 = arith.constant 0 : index
    %c0_82 = arith.constant 0 : index
    %c0_83 = arith.constant 0 : index
    %112 = vector.load %arg5[%c0_81, %c0_82, %c0_83] : memref<9x16x8xf32, #tpu.memory_space<vmem>>, vector<1x16x8xf32>
    %113 = vector.shape_cast %112 : vector<1x16x8xf32> to vector<16x8xf32>
    %cst_84 = arith.constant dense<0.000000e+00> : vector<16x324xf32>
    %114 = tpu.matmul %113, %111, %cst_84 {dimension_numbers = #tpu.dot_dimension_numbers<[1], [0], [0], [1], [0, 0, 1, 1], [], []>} : vector<16x8xf32>, vector<8x324xf32>, vector<16x324xf32> -> vector<16x324xf32>
    %115 = vector.extract_strided_slice %110 {offsets = [0, 1], sizes = [8, 324], strides = [1, 1]} : vector<8x362xf32> to vector<8x324xf32>
    %c1_85 = arith.constant 1 : index
    %c0_86 = arith.constant 0 : index
    %c0_87 = arith.constant 0 : index
    %116 = vector.load %arg5[%c1_85, %c0_86, %c0_87] : memref<9x16x8xf32, #tpu.memory_space<vmem>>, vector<1x16x8xf32>
    %117 = vector.shape_cast %116 : vector<1x16x8xf32> to vector<16x8xf32>
    %cst_88 = arith.constant dense<0.000000e+00> : vector<16x324xf32>
    %118 = tpu.matmul %117, %115, %cst_88 {dimension_numbers = #tpu.dot_dimension_numbers<[1], [0], [0], [1], [0, 0, 1, 1], [], []>} : vector<16x8xf32>, vector<8x324xf32>, vector<16x324xf32> -> vector<16x324xf32>
    %119 = arith.addf %114, %118 : vector<16x324xf32>
    %120 = vector.extract_strided_slice %110 {offsets = [0, 2], sizes = [8, 324], strides = [1, 1]} : vector<8x362xf32> to vector<8x324xf32>
    %c2_89 = arith.constant 2 : index
    %c0_90 = arith.constant 0 : index
    %c0_91 = arith.constant 0 : index
    %121 = vector.load %arg5[%c2_89, %c0_90, %c0_91] : memref<9x16x8xf32, #tpu.memory_space<vmem>>, vector<1x16x8xf32>
    %122 = vector.shape_cast %121 : vector<1x16x8xf32> to vector<16x8xf32>
    %cst_92 = arith.constant dense<0.000000e+00> : vector<16x324xf32>
    %123 = tpu.matmul %122, %120, %cst_92 {dimension_numbers = #tpu.dot_dimension_numbers<[1], [0], [0], [1], [0, 0, 1, 1], [], []>} : vector<16x8xf32>, vector<8x324xf32>, vector<16x324xf32> -> vector<16x324xf32>
    %124 = arith.addf %119, %123 : vector<16x324xf32>
    %125 = vector.extract_strided_slice %110 {offsets = [0, 18], sizes = [8, 324], strides = [1, 1]} : vector<8x362xf32> to vector<8x324xf32>
    %c3_93 = arith.constant 3 : index
    %c0_94 = arith.constant 0 : index
    %c0_95 = arith.constant 0 : index
    %126 = vector.load %arg5[%c3_93, %c0_94, %c0_95] : memref<9x16x8xf32, #tpu.memory_space<vmem>>, vector<1x16x8xf32>
    %127 = vector.shape_cast %126 : vector<1x16x8xf32> to vector<16x8xf32>
    %cst_96 = arith.constant dense<0.000000e+00> : vector<16x324xf32>
    %128 = tpu.matmul %127, %125, %cst_96 {dimension_numbers = #tpu.dot_dimension_numbers<[1], [0], [0], [1], [0, 0, 1, 1], [], []>} : vector<16x8xf32>, vector<8x324xf32>, vector<16x324xf32> -> vector<16x324xf32>
    %129 = arith.addf %124, %128 : vector<16x324xf32>
    %130 = vector.extract_strided_slice %110 {offsets = [0, 19], sizes = [8, 324], strides = [1, 1]} : vector<8x362xf32> to vector<8x324xf32>
    %c4_97 = arith.constant 4 : index
    %c0_98 = arith.constant 0 : index
    %c0_99 = arith.constant 0 : index
    %131 = vector.load %arg5[%c4_97, %c0_98, %c0_99] : memref<9x16x8xf32, #tpu.memory_space<vmem>>, vector<1x16x8xf32>
    %132 = vector.shape_cast %131 : vector<1x16x8xf32> to vector<16x8xf32>
    %cst_100 = arith.constant dense<0.000000e+00> : vector<16x324xf32>
    %133 = tpu.matmul %132, %130, %cst_100 {dimension_numbers = #tpu.dot_dimension_numbers<[1], [0], [0], [1], [0, 0, 1, 1], [], []>} : vector<16x8xf32>, vector<8x324xf32>, vector<16x324xf32> -> vector<16x324xf32>
    %134 = arith.addf %129, %133 : vector<16x324xf32>
    %135 = vector.extract_strided_slice %110 {offsets = [0, 20], sizes = [8, 324], strides = [1, 1]} : vector<8x362xf32> to vector<8x324xf32>
    %c5_101 = arith.constant 5 : index
    %c0_102 = arith.constant 0 : index
    %c0_103 = arith.constant 0 : index
    %136 = vector.load %arg5[%c5_101, %c0_102, %c0_103] : memref<9x16x8xf32, #tpu.memory_space<vmem>>, vector<1x16x8xf32>
    %137 = vector.shape_cast %136 : vector<1x16x8xf32> to vector<16x8xf32>
    %cst_104 = arith.constant dense<0.000000e+00> : vector<16x324xf32>
    %138 = tpu.matmul %137, %135, %cst_104 {dimension_numbers = #tpu.dot_dimension_numbers<[1], [0], [0], [1], [0, 0, 1, 1], [], []>} : vector<16x8xf32>, vector<8x324xf32>, vector<16x324xf32> -> vector<16x324xf32>
    %139 = arith.addf %134, %138 : vector<16x324xf32>
    %140 = vector.extract_strided_slice %110 {offsets = [0, 36], sizes = [8, 324], strides = [1, 1]} : vector<8x362xf32> to vector<8x324xf32>
    %c6_105 = arith.constant 6 : index
    %c0_106 = arith.constant 0 : index
    %c0_107 = arith.constant 0 : index
    %141 = vector.load %arg5[%c6_105, %c0_106, %c0_107] : memref<9x16x8xf32, #tpu.memory_space<vmem>>, vector<1x16x8xf32>
    %142 = vector.shape_cast %141 : vector<1x16x8xf32> to vector<16x8xf32>
    %cst_108 = arith.constant dense<0.000000e+00> : vector<16x324xf32>
    %143 = tpu.matmul %142, %140, %cst_108 {dimension_numbers = #tpu.dot_dimension_numbers<[1], [0], [0], [1], [0, 0, 1, 1], [], []>} : vector<16x8xf32>, vector<8x324xf32>, vector<16x324xf32> -> vector<16x324xf32>
    %144 = arith.addf %139, %143 : vector<16x324xf32>
    %145 = vector.extract_strided_slice %110 {offsets = [0, 37], sizes = [8, 324], strides = [1, 1]} : vector<8x362xf32> to vector<8x324xf32>
    %c7_109 = arith.constant 7 : index
    %c0_110 = arith.constant 0 : index
    %c0_111 = arith.constant 0 : index
    %146 = vector.load %arg5[%c7_109, %c0_110, %c0_111] : memref<9x16x8xf32, #tpu.memory_space<vmem>>, vector<1x16x8xf32>
    %147 = vector.shape_cast %146 : vector<1x16x8xf32> to vector<16x8xf32>
    %cst_112 = arith.constant dense<0.000000e+00> : vector<16x324xf32>
    %148 = tpu.matmul %147, %145, %cst_112 {dimension_numbers = #tpu.dot_dimension_numbers<[1], [0], [0], [1], [0, 0, 1, 1], [], []>} : vector<16x8xf32>, vector<8x324xf32>, vector<16x324xf32> -> vector<16x324xf32>
    %149 = arith.addf %144, %148 : vector<16x324xf32>
    %150 = vector.extract_strided_slice %110 {offsets = [0, 38], sizes = [8, 324], strides = [1, 1]} : vector<8x362xf32> to vector<8x324xf32>
    %c8_113 = arith.constant 8 : index
    %c0_114 = arith.constant 0 : index
    %c0_115 = arith.constant 0 : index
    %151 = vector.load %arg5[%c8_113, %c0_114, %c0_115] : memref<9x16x8xf32, #tpu.memory_space<vmem>>, vector<1x16x8xf32>
    %152 = vector.shape_cast %151 : vector<1x16x8xf32> to vector<16x8xf32>
    %cst_116 = arith.constant dense<0.000000e+00> : vector<16x324xf32>
    %153 = tpu.matmul %152, %150, %cst_116 {dimension_numbers = #tpu.dot_dimension_numbers<[1], [0], [0], [1], [0, 0, 1, 1], [], []>} : vector<16x8xf32>, vector<8x324xf32>, vector<16x324xf32> -> vector<16x324xf32>
    %154 = arith.addf %149, %153 : vector<16x324xf32>
    %c2_117 = arith.constant 2 : index
    %155 = memref.load %arg1[%c2_117] : memref<6xf32, #tpu.memory_space<smem>>
    %cst_118 = arith.constant 0.000000e+00 : f32
    %156 = vector.broadcast %cst_118 : f32 to vector<16x324xf32>
    %157 = arith.cmpf oge, %154, %156 : vector<16x324xf32>
    %158 = vector.broadcast %155 : f32 to vector<16x324xf32>
    %159 = arith.mulf %158, %154 : vector<16x324xf32>
    %160 = arith.select %157, %154, %159 : vector<16x324xi1>, vector<16x324xf32>
    %c0_119 = arith.constant 0 : index
    %c0_120 = arith.constant 0 : index
    %161 = vector.load %arg12[%c0_119, %c0_120] : memref<324x122xf32, #tpu.memory_space<vmem>>, vector<324x122xf32>
    %cst_121 = arith.constant dense<0.000000e+00> : vector<16x122xf32>
    %162 = tpu.matmul %160, %161, %cst_121 {dimension_numbers = #tpu.dot_dimension_numbers<[1], [0], [0], [1], [0, 0, 1, 1], [], []>} : vector<16x324xf32>, vector<324x122xf32>, vector<16x122xf32> -> vector<16x122xf32>
    %163 = vector.extract_strided_slice %162 {offsets = [0, 0], sizes = [16, 100], strides = [1, 1]} : vector<16x122xf32> to vector<16x100xf32>
    %c0_122 = arith.constant 0 : index
    %c0_123 = arith.constant 0 : index
    %c0_124 = arith.constant 0 : index
    %164 = vector.load %arg6[%c0_122, %c0_123, %c0_124] : memref<9x16x16xf32, #tpu.memory_space<vmem>>, vector<1x16x16xf32>
    %165 = vector.shape_cast %164 : vector<1x16x16xf32> to vector<16x16xf32>
    %cst_125 = arith.constant dense<0.000000e+00> : vector<16x100xf32>
    %166 = tpu.matmul %165, %163, %cst_125 {dimension_numbers = #tpu.dot_dimension_numbers<[1], [0], [0], [1], [0, 0, 1, 1], [], []>} : vector<16x16xf32>, vector<16x100xf32>, vector<16x100xf32> -> vector<16x100xf32>
    %167 = vector.extract_strided_slice %162 {offsets = [0, 1], sizes = [16, 100], strides = [1, 1]} : vector<16x122xf32> to vector<16x100xf32>
    %c1_126 = arith.constant 1 : index
    %c0_127 = arith.constant 0 : index
    %c0_128 = arith.constant 0 : index
    %168 = vector.load %arg6[%c1_126, %c0_127, %c0_128] : memref<9x16x16xf32, #tpu.memory_space<vmem>>, vector<1x16x16xf32>
    %169 = vector.shape_cast %168 : vector<1x16x16xf32> to vector<16x16xf32>
    %cst_129 = arith.constant dense<0.000000e+00> : vector<16x100xf32>
    %170 = tpu.matmul %169, %167, %cst_129 {dimension_numbers = #tpu.dot_dimension_numbers<[1], [0], [0], [1], [0, 0, 1, 1], [], []>} : vector<16x16xf32>, vector<16x100xf32>, vector<16x100xf32> -> vector<16x100xf32>
    %171 = arith.addf %166, %170 : vector<16x100xf32>
    %172 = vector.extract_strided_slice %162 {offsets = [0, 2], sizes = [16, 100], strides = [1, 1]} : vector<16x122xf32> to vector<16x100xf32>
    %c2_130 = arith.constant 2 : index
    %c0_131 = arith.constant 0 : index
    %c0_132 = arith.constant 0 : index
    %173 = vector.load %arg6[%c2_130, %c0_131, %c0_132] : memref<9x16x16xf32, #tpu.memory_space<vmem>>, vector<1x16x16xf32>
    %174 = vector.shape_cast %173 : vector<1x16x16xf32> to vector<16x16xf32>
    %cst_133 = arith.constant dense<0.000000e+00> : vector<16x100xf32>
    %175 = tpu.matmul %174, %172, %cst_133 {dimension_numbers = #tpu.dot_dimension_numbers<[1], [0], [0], [1], [0, 0, 1, 1], [], []>} : vector<16x16xf32>, vector<16x100xf32>, vector<16x100xf32> -> vector<16x100xf32>
    %176 = arith.addf %171, %175 : vector<16x100xf32>
    %177 = vector.extract_strided_slice %162 {offsets = [0, 10], sizes = [16, 100], strides = [1, 1]} : vector<16x122xf32> to vector<16x100xf32>
    %c3_134 = arith.constant 3 : index
    %c0_135 = arith.constant 0 : index
    %c0_136 = arith.constant 0 : index
    %178 = vector.load %arg6[%c3_134, %c0_135, %c0_136] : memref<9x16x16xf32, #tpu.memory_space<vmem>>, vector<1x16x16xf32>
    %179 = vector.shape_cast %178 : vector<1x16x16xf32> to vector<16x16xf32>
    %cst_137 = arith.constant dense<0.000000e+00> : vector<16x100xf32>
    %180 = tpu.matmul %179, %177, %cst_137 {dimension_numbers = #tpu.dot_dimension_numbers<[1], [0], [0], [1], [0, 0, 1, 1], [], []>} : vector<16x16xf32>, vector<16x100xf32>, vector<16x100xf32> -> vector<16x100xf32>
    %181 = arith.addf %176, %180 : vector<16x100xf32>
    %182 = vector.extract_strided_slice %162 {offsets = [0, 11], sizes = [16, 100], strides = [1, 1]} : vector<16x122xf32> to vector<16x100xf32>
    %c4_138 = arith.constant 4 : index
    %c0_139 = arith.constant 0 : index
    %c0_140 = arith.constant 0 : index
    %183 = vector.load %arg6[%c4_138, %c0_139, %c0_140] : memref<9x16x16xf32, #tpu.memory_space<vmem>>, vector<1x16x16xf32>
    %184 = vector.shape_cast %183 : vector<1x16x16xf32> to vector<16x16xf32>
    %cst_141 = arith.constant dense<0.000000e+00> : vector<16x100xf32>
    %185 = tpu.matmul %184, %182, %cst_141 {dimension_numbers = #tpu.dot_dimension_numbers<[1], [0], [0], [1], [0, 0, 1, 1], [], []>} : vector<16x16xf32>, vector<16x100xf32>, vector<16x100xf32> -> vector<16x100xf32>
    %186 = arith.addf %181, %185 : vector<16x100xf32>
    %187 = vector.extract_strided_slice %162 {offsets = [0, 12], sizes = [16, 100], strides = [1, 1]} : vector<16x122xf32> to vector<16x100xf32>
    %c5_142 = arith.constant 5 : index
    %c0_143 = arith.constant 0 : index
    %c0_144 = arith.constant 0 : index
    %188 = vector.load %arg6[%c5_142, %c0_143, %c0_144] : memref<9x16x16xf32, #tpu.memory_space<vmem>>, vector<1x16x16xf32>
    %189 = vector.shape_cast %188 : vector<1x16x16xf32> to vector<16x16xf32>
    %cst_145 = arith.constant dense<0.000000e+00> : vector<16x100xf32>
    %190 = tpu.matmul %189, %187, %cst_145 {dimension_numbers = #tpu.dot_dimension_numbers<[1], [0], [0], [1], [0, 0, 1, 1], [], []>} : vector<16x16xf32>, vector<16x100xf32>, vector<16x100xf32> -> vector<16x100xf32>
    %191 = arith.addf %186, %190 : vector<16x100xf32>
    %192 = vector.extract_strided_slice %162 {offsets = [0, 20], sizes = [16, 100], strides = [1, 1]} : vector<16x122xf32> to vector<16x100xf32>
    %c6_146 = arith.constant 6 : index
    %c0_147 = arith.constant 0 : index
    %c0_148 = arith.constant 0 : index
    %193 = vector.load %arg6[%c6_146, %c0_147, %c0_148] : memref<9x16x16xf32, #tpu.memory_space<vmem>>, vector<1x16x16xf32>
    %194 = vector.shape_cast %193 : vector<1x16x16xf32> to vector<16x16xf32>
    %cst_149 = arith.constant dense<0.000000e+00> : vector<16x100xf32>
    %195 = tpu.matmul %194, %192, %cst_149 {dimension_numbers = #tpu.dot_dimension_numbers<[1], [0], [0], [1], [0, 0, 1, 1], [], []>} : vector<16x16xf32>, vector<16x100xf32>, vector<16x100xf32> -> vector<16x100xf32>
    %196 = arith.addf %191, %195 : vector<16x100xf32>
    %197 = vector.extract_strided_slice %162 {offsets = [0, 21], sizes = [16, 100], strides = [1, 1]} : vector<16x122xf32> to vector<16x100xf32>
    %c7_150 = arith.constant 7 : index
    %c0_151 = arith.constant 0 : index
    %c0_152 = arith.constant 0 : index
    %198 = vector.load %arg6[%c7_150, %c0_151, %c0_152] : memref<9x16x16xf32, #tpu.memory_space<vmem>>, vector<1x16x16xf32>
    %199 = vector.shape_cast %198 : vector<1x16x16xf32> to vector<16x16xf32>
    %cst_153 = arith.constant dense<0.000000e+00> : vector<16x100xf32>
    %200 = tpu.matmul %199, %197, %cst_153 {dimension_numbers = #tpu.dot_dimension_numbers<[1], [0], [0], [1], [0, 0, 1, 1], [], []>} : vector<16x16xf32>, vector<16x100xf32>, vector<16x100xf32> -> vector<16x100xf32>
    %201 = arith.addf %196, %200 : vector<16x100xf32>
    %202 = vector.extract_strided_slice %162 {offsets = [0, 22], sizes = [16, 100], strides = [1, 1]} : vector<16x122xf32> to vector<16x100xf32>
    %c8_154 = arith.constant 8 : index
    %c0_155 = arith.constant 0 : index
    %c0_156 = arith.constant 0 : index
    %203 = vector.load %arg6[%c8_154, %c0_155, %c0_156] : memref<9x16x16xf32, #tpu.memory_space<vmem>>, vector<1x16x16xf32>
    %204 = vector.shape_cast %203 : vector<1x16x16xf32> to vector<16x16xf32>
    %cst_157 = arith.constant dense<0.000000e+00> : vector<16x100xf32>
    %205 = tpu.matmul %204, %202, %cst_157 {dimension_numbers = #tpu.dot_dimension_numbers<[1], [0], [0], [1], [0, 0, 1, 1], [], []>} : vector<16x16xf32>, vector<16x100xf32>, vector<16x100xf32> -> vector<16x100xf32>
    %206 = arith.addf %201, %205 : vector<16x100xf32>
    %c3_158 = arith.constant 3 : index
    %207 = memref.load %arg1[%c3_158] : memref<6xf32, #tpu.memory_space<smem>>
    %cst_159 = arith.constant 0.000000e+00 : f32
    %208 = vector.broadcast %cst_159 : f32 to vector<16x100xf32>
    %209 = arith.cmpf oge, %206, %208 : vector<16x100xf32>
    %210 = vector.broadcast %207 : f32 to vector<16x100xf32>
    %211 = arith.mulf %210, %206 : vector<16x100xf32>
    %212 = arith.select %209, %206, %211 : vector<16x100xi1>, vector<16x100xf32>
    %c0_160 = arith.constant 0 : index
    %c0_161 = arith.constant 0 : index
    %213 = vector.load %arg13[%c0_160, %c0_161] : memref<100x64xf32, #tpu.memory_space<vmem>>, vector<100x64xf32>
    %cst_162 = arith.constant dense<0.000000e+00> : vector<16x64xf32>
    %214 = tpu.matmul %212, %213, %cst_162 {dimension_numbers = #tpu.dot_dimension_numbers<[1], [0], [0], [1], [0, 0, 1, 1], [], []>} : vector<16x100xf32>, vector<100x64xf32>, vector<16x64xf32> -> vector<16x64xf32>
    %c0_163 = arith.constant 0 : index
    %c0_164 = arith.constant 0 : index
    %c0_165 = arith.constant 0 : index
    %215 = vector.load %arg18[%c0_163, %c0_164, %c0_165] : memref<1x16x64xf32, #tpu.memory_space<vmem>>, vector<1x16x64xf32>
    %216 = vector.shape_cast %215 : vector<1x16x64xf32> to vector<16x64xf32>
    %217 = vector.shape_cast %214 : vector<16x64xf32> to vector<1x16x64xf32>
    tpu.vector_store %arg18[%c0_163, %c0_164, %c0_165], %217 {strides = array<i32>} : memref<1x16x64xf32, #tpu.memory_space<vmem>>, vector<1x16x64xf32>,
    %c0_166 = arith.constant 0 : index
    %c0_167 = arith.constant 0 : index
    %218 = vector.load %arg14[%c0_166, %c0_167] : memref<100x122xf32, #tpu.memory_space<vmem>>, vector<100x122xf32>
    %cst_168 = arith.constant dense<0.000000e+00> : vector<16x122xf32>
    %219 = tpu.matmul %212, %218, %cst_168 {dimension_numbers = #tpu.dot_dimension_numbers<[1], [0], [0], [1], [0, 0, 1, 1], [], []>} : vector<16x100xf32>, vector<100x122xf32>, vector<16x122xf32> -> vector<16x122xf32>
    %220 = vector.extract_strided_slice %219 {offsets = [0, 0], sizes = [16, 100], strides = [1, 1]} : vector<16x122xf32> to vector<16x100xf32>
    %c0_169 = arith.constant 0 : index
    %c0_170 = arith.constant 0 : index
    %c0_171 = arith.constant 0 : index
    %221 = vector.load %arg7[%c0_169, %c0_170, %c0_171] : memref<9x32x16xf32, #tpu.memory_space<vmem>>, vector<1x32x16xf32>
    %222 = vector.shape_cast %221 : vector<1x32x16xf32> to vector<32x16xf32>
    %cst_172 = arith.constant dense<0.000000e+00> : vector<32x100xf32>
    %223 = tpu.matmul %222, %220, %cst_172 {dimension_numbers = #tpu.dot_dimension_numbers<[1], [0], [0], [1], [0, 0, 1, 1], [], []>} : vector<32x16xf32>, vector<16x100xf32>, vector<32x100xf32> -> vector<32x100xf32>
    %224 = vector.extract_strided_slice %219 {offsets = [0, 1], sizes = [16, 100], strides = [1, 1]} : vector<16x122xf32> to vector<16x100xf32>
    %c1_173 = arith.constant 1 : index
    %c0_174 = arith.constant 0 : index
    %c0_175 = arith.constant 0 : index
    %225 = vector.load %arg7[%c1_173, %c0_174, %c0_175] : memref<9x32x16xf32, #tpu.memory_space<vmem>>, vector<1x32x16xf32>
    %226 = vector.shape_cast %225 : vector<1x32x16xf32> to vector<32x16xf32>
    %cst_176 = arith.constant dense<0.000000e+00> : vector<32x100xf32>
    %227 = tpu.matmul %226, %224, %cst_176 {dimension_numbers = #tpu.dot_dimension_numbers<[1], [0], [0], [1], [0, 0, 1, 1], [], []>} : vector<32x16xf32>, vector<16x100xf32>, vector<32x100xf32> -> vector<32x100xf32>
    %228 = arith.addf %223, %227 : vector<32x100xf32>
    %229 = vector.extract_strided_slice %219 {offsets = [0, 2], sizes = [16, 100], strides = [1, 1]} : vector<16x122xf32> to vector<16x100xf32>
    %c2_177 = arith.constant 2 : index
    %c0_178 = arith.constant 0 : index
    %c0_179 = arith.constant 0 : index
    %230 = vector.load %arg7[%c2_177, %c0_178, %c0_179] : memref<9x32x16xf32, #tpu.memory_space<vmem>>, vector<1x32x16xf32>
    %231 = vector.shape_cast %230 : vector<1x32x16xf32> to vector<32x16xf32>
    %cst_180 = arith.constant dense<0.000000e+00> : vector<32x100xf32>
    %232 = tpu.matmul %231, %229, %cst_180 {dimension_numbers = #tpu.dot_dimension_numbers<[1], [0], [0], [1], [0, 0, 1, 1], [], []>} : vector<32x16xf32>, vector<16x100xf32>, vector<32x100xf32> -> vector<32x100xf32>
    %233 = arith.addf %228, %232 : vector<32x100xf32>
    %234 = vector.extract_strided_slice %219 {offsets = [0, 10], sizes = [16, 100], strides = [1, 1]} : vector<16x122xf32> to vector<16x100xf32>
    %c3_181 = arith.constant 3 : index
    %c0_182 = arith.constant 0 : index
    %c0_183 = arith.constant 0 : index
    %235 = vector.load %arg7[%c3_181, %c0_182, %c0_183] : memref<9x32x16xf32, #tpu.memory_space<vmem>>, vector<1x32x16xf32>
    %236 = vector.shape_cast %235 : vector<1x32x16xf32> to vector<32x16xf32>
    %cst_184 = arith.constant dense<0.000000e+00> : vector<32x100xf32>
    %237 = tpu.matmul %236, %234, %cst_184 {dimension_numbers = #tpu.dot_dimension_numbers<[1], [0], [0], [1], [0, 0, 1, 1], [], []>} : vector<32x16xf32>, vector<16x100xf32>, vector<32x100xf32> -> vector<32x100xf32>
    %238 = arith.addf %233, %237 : vector<32x100xf32>
    %239 = vector.extract_strided_slice %219 {offsets = [0, 11], sizes = [16, 100], strides = [1, 1]} : vector<16x122xf32> to vector<16x100xf32>
    %c4_185 = arith.constant 4 : index
    %c0_186 = arith.constant 0 : index
    %c0_187 = arith.constant 0 : index
    %240 = vector.load %arg7[%c4_185, %c0_186, %c0_187] : memref<9x32x16xf32, #tpu.memory_space<vmem>>, vector<1x32x16xf32>
    %241 = vector.shape_cast %240 : vector<1x32x16xf32> to vector<32x16xf32>
    %cst_188 = arith.constant dense<0.000000e+00> : vector<32x100xf32>
    %242 = tpu.matmul %241, %239, %cst_188 {dimension_numbers = #tpu.dot_dimension_numbers<[1], [0], [0], [1], [0, 0, 1, 1], [], []>} : vector<32x16xf32>, vector<16x100xf32>, vector<32x100xf32> -> vector<32x100xf32>
    %243 = arith.addf %238, %242 : vector<32x100xf32>
    %244 = vector.extract_strided_slice %219 {offsets = [0, 12], sizes = [16, 100], strides = [1, 1]} : vector<16x122xf32> to vector<16x100xf32>
    %c5_189 = arith.constant 5 : index
    %c0_190 = arith.constant 0 : index
    %c0_191 = arith.constant 0 : index
    %245 = vector.load %arg7[%c5_189, %c0_190, %c0_191] : memref<9x32x16xf32, #tpu.memory_space<vmem>>, vector<1x32x16xf32>
    %246 = vector.shape_cast %245 : vector<1x32x16xf32> to vector<32x16xf32>
    %cst_192 = arith.constant dense<0.000000e+00> : vector<32x100xf32>
    %247 = tpu.matmul %246, %244, %cst_192 {dimension_numbers = #tpu.dot_dimension_numbers<[1], [0], [0], [1], [0, 0, 1, 1], [], []>} : vector<32x16xf32>, vector<16x100xf32>, vector<32x100xf32> -> vector<32x100xf32>
    %248 = arith.addf %243, %247 : vector<32x100xf32>
    %249 = vector.extract_strided_slice %219 {offsets = [0, 20], sizes = [16, 100], strides = [1, 1]} : vector<16x122xf32> to vector<16x100xf32>
    %c6_193 = arith.constant 6 : index
    %c0_194 = arith.constant 0 : index
    %c0_195 = arith.constant 0 : index
    %250 = vector.load %arg7[%c6_193, %c0_194, %c0_195] : memref<9x32x16xf32, #tpu.memory_space<vmem>>, vector<1x32x16xf32>
    %251 = vector.shape_cast %250 : vector<1x32x16xf32> to vector<32x16xf32>
    %cst_196 = arith.constant dense<0.000000e+00> : vector<32x100xf32>
    %252 = tpu.matmul %251, %249, %cst_196 {dimension_numbers = #tpu.dot_dimension_numbers<[1], [0], [0], [1], [0, 0, 1, 1], [], []>} : vector<32x16xf32>, vector<16x100xf32>, vector<32x100xf32> -> vector<32x100xf32>
    %253 = arith.addf %248, %252 : vector<32x100xf32>
    %254 = vector.extract_strided_slice %219 {offsets = [0, 21], sizes = [16, 100], strides = [1, 1]} : vector<16x122xf32> to vector<16x100xf32>
    %c7_197 = arith.constant 7 : index
    %c0_198 = arith.constant 0 : index
    %c0_199 = arith.constant 0 : index
    %255 = vector.load %arg7[%c7_197, %c0_198, %c0_199] : memref<9x32x16xf32, #tpu.memory_space<vmem>>, vector<1x32x16xf32>
    %256 = vector.shape_cast %255 : vector<1x32x16xf32> to vector<32x16xf32>
    %cst_200 = arith.constant dense<0.000000e+00> : vector<32x100xf32>
    %257 = tpu.matmul %256, %254, %cst_200 {dimension_numbers = #tpu.dot_dimension_numbers<[1], [0], [0], [1], [0, 0, 1, 1], [], []>} : vector<32x16xf32>, vector<16x100xf32>, vector<32x100xf32> -> vector<32x100xf32>
    %258 = arith.addf %253, %257 : vector<32x100xf32>
    %259 = vector.extract_strided_slice %219 {offsets = [0, 22], sizes = [16, 100], strides = [1, 1]} : vector<16x122xf32> to vector<16x100xf32>
    %c8_201 = arith.constant 8 : index
    %c0_202 = arith.constant 0 : index
    %c0_203 = arith.constant 0 : index
    %260 = vector.load %arg7[%c8_201, %c0_202, %c0_203] : memref<9x32x16xf32, #tpu.memory_space<vmem>>, vector<1x32x16xf32>
    %261 = vector.shape_cast %260 : vector<1x32x16xf32> to vector<32x16xf32>
    %cst_204 = arith.constant dense<0.000000e+00> : vector<32x100xf32>
    %262 = tpu.matmul %261, %259, %cst_204 {dimension_numbers = #tpu.dot_dimension_numbers<[1], [0], [0], [1], [0, 0, 1, 1], [], []>} : vector<32x16xf32>, vector<16x100xf32>, vector<32x100xf32> -> vector<32x100xf32>
    %263 = arith.addf %258, %262 : vector<32x100xf32>
    %c4_205 = arith.constant 4 : index
    %264 = memref.load %arg1[%c4_205] : memref<6xf32, #tpu.memory_space<smem>>
    %cst_206 = arith.constant 0.000000e+00 : f32
    %265 = vector.broadcast %cst_206 : f32 to vector<32x100xf32>
    %266 = arith.cmpf oge, %263, %265 : vector<32x100xf32>
    %267 = vector.broadcast %264 : f32 to vector<32x100xf32>
    %268 = arith.mulf %267, %263 : vector<32x100xf32>
    %269 = arith.select %266, %263, %268 : vector<32x100xi1>, vector<32x100xf32>
    %c0_207 = arith.constant 0 : index
    %c0_208 = arith.constant 0 : index
    %270 = vector.load %arg15[%c0_207, %c0_208] : memref<100x50xf32, #tpu.memory_space<vmem>>, vector<100x50xf32>
    %cst_209 = arith.constant dense<0.000000e+00> : vector<32x50xf32>
    %271 = tpu.matmul %269, %270, %cst_209 {dimension_numbers = #tpu.dot_dimension_numbers<[1], [0], [0], [1], [0, 0, 1, 1], [], []>} : vector<32x100xf32>, vector<100x50xf32>, vector<32x50xf32> -> vector<32x50xf32>
    %272 = vector.extract_strided_slice %271 {offsets = [0, 0], sizes = [32, 36], strides = [1, 1]} : vector<32x50xf32> to vector<32x36xf32>
    %c0_210 = arith.constant 0 : index
    %c0_211 = arith.constant 0 : index
    %c0_212 = arith.constant 0 : index
    %273 = vector.load %arg8[%c0_210, %c0_211, %c0_212] : memref<9x32x32xf32, #tpu.memory_space<vmem>>, vector<1x32x32xf32>
    %274 = vector.shape_cast %273 : vector<1x32x32xf32> to vector<32x32xf32>
    %cst_213 = arith.constant dense<0.000000e+00> : vector<32x36xf32>
    %275 = tpu.matmul %274, %272, %cst_213 {dimension_numbers = #tpu.dot_dimension_numbers<[1], [0], [0], [1], [0, 0, 1, 1], [], []>} : vector<32x32xf32>, vector<32x36xf32>, vector<32x36xf32> -> vector<32x36xf32>
    %276 = vector.extract_strided_slice %271 {offsets = [0, 1], sizes = [32, 36], strides = [1, 1]} : vector<32x50xf32> to vector<32x36xf32>
    %c1_214 = arith.constant 1 : index
    %c0_215 = arith.constant 0 : index
    %c0_216 = arith.constant 0 : index
    %277 = vector.load %arg8[%c1_214, %c0_215, %c0_216] : memref<9x32x32xf32, #tpu.memory_space<vmem>>, vector<1x32x32xf32>
    %278 = vector.shape_cast %277 : vector<1x32x32xf32> to vector<32x32xf32>
    %cst_217 = arith.constant dense<0.000000e+00> : vector<32x36xf32>
    %279 = tpu.matmul %278, %276, %cst_217 {dimension_numbers = #tpu.dot_dimension_numbers<[1], [0], [0], [1], [0, 0, 1, 1], [], []>} : vector<32x32xf32>, vector<32x36xf32>, vector<32x36xf32> -> vector<32x36xf32>
    %280 = arith.addf %275, %279 : vector<32x36xf32>
    %281 = vector.extract_strided_slice %271 {offsets = [0, 2], sizes = [32, 36], strides = [1, 1]} : vector<32x50xf32> to vector<32x36xf32>
    %c2_218 = arith.constant 2 : index
    %c0_219 = arith.constant 0 : index
    %c0_220 = arith.constant 0 : index
    %282 = vector.load %arg8[%c2_218, %c0_219, %c0_220] : memref<9x32x32xf32, #tpu.memory_space<vmem>>, vector<1x32x32xf32>
    %283 = vector.shape_cast %282 : vector<1x32x32xf32> to vector<32x32xf32>
    %cst_221 = arith.constant dense<0.000000e+00> : vector<32x36xf32>
    %284 = tpu.matmul %283, %281, %cst_221 {dimension_numbers = #tpu.dot_dimension_numbers<[1], [0], [0], [1], [0, 0, 1, 1], [], []>} : vector<32x32xf32>, vector<32x36xf32>, vector<32x36xf32> -> vector<32x36xf32>
    %285 = arith.addf %280, %284 : vector<32x36xf32>
    %286 = vector.extract_strided_slice %271 {offsets = [0, 6], sizes = [32, 36], strides = [1, 1]} : vector<32x50xf32> to vector<32x36xf32>
    %c3_222 = arith.constant 3 : index
    %c0_223 = arith.constant 0 : index
    %c0_224 = arith.constant 0 : index
    %287 = vector.load %arg8[%c3_222, %c0_223, %c0_224] : memref<9x32x32xf32, #tpu.memory_space<vmem>>, vector<1x32x32xf32>
    %288 = vector.shape_cast %287 : vector<1x32x32xf32> to vector<32x32xf32>
    %cst_225 = arith.constant dense<0.000000e+00> : vector<32x36xf32>
    %289 = tpu.matmul %288, %286, %cst_225 {dimension_numbers = #tpu.dot_dimension_numbers<[1], [0], [0], [1], [0, 0, 1, 1], [], []>} : vector<32x32xf32>, vector<32x36xf32>, vector<32x36xf32> -> vector<32x36xf32>
    %290 = arith.addf %285, %289 : vector<32x36xf32>
    %291 = vector.extract_strided_slice %271 {offsets = [0, 7], sizes = [32, 36], strides = [1, 1]} : vector<32x50xf32> to vector<32x36xf32>
    %c4_226 = arith.constant 4 : index
    %c0_227 = arith.constant 0 : index
    %c0_228 = arith.constant 0 : index
    %292 = vector.load %arg8[%c4_226, %c0_227, %c0_228] : memref<9x32x32xf32, #tpu.memory_space<vmem>>, vector<1x32x32xf32>
    %293 = vector.shape_cast %292 : vector<1x32x32xf32> to vector<32x32xf32>
    %cst_229 = arith.constant dense<0.000000e+00> : vector<32x36xf32>
    %294 = tpu.matmul %293, %291, %cst_229 {dimension_numbers = #tpu.dot_dimension_numbers<[1], [0], [0], [1], [0, 0, 1, 1], [], []>} : vector<32x32xf32>, vector<32x36xf32>, vector<32x36xf32> -> vector<32x36xf32>
    %295 = arith.addf %290, %294 : vector<32x36xf32>
    %296 = vector.extract_strided_slice %271 {offsets = [0, 8], sizes = [32, 36], strides = [1, 1]} : vector<32x50xf32> to vector<32x36xf32>
    %c5_230 = arith.constant 5 : index
    %c0_231 = arith.constant 0 : index
    %c0_232 = arith.constant 0 : index
    %297 = vector.load %arg8[%c5_230, %c0_231, %c0_232] : memref<9x32x32xf32, #tpu.memory_space<vmem>>, vector<1x32x32xf32>
    %298 = vector.shape_cast %297 : vector<1x32x32xf32> to vector<32x32xf32>
    %cst_233 = arith.constant dense<0.000000e+00> : vector<32x36xf32>
    %299 = tpu.matmul %298, %296, %cst_233 {dimension_numbers = #tpu.dot_dimension_numbers<[1], [0], [0], [1], [0, 0, 1, 1], [], []>} : vector<32x32xf32>, vector<32x36xf32>, vector<32x36xf32> -> vector<32x36xf32>
    %300 = arith.addf %295, %299 : vector<32x36xf32>
    %301 = vector.extract_strided_slice %271 {offsets = [0, 12], sizes = [32, 36], strides = [1, 1]} : vector<32x50xf32> to vector<32x36xf32>
    %c6_234 = arith.constant 6 : index
    %c0_235 = arith.constant 0 : index
    %c0_236 = arith.constant 0 : index
    %302 = vector.load %arg8[%c6_234, %c0_235, %c0_236] : memref<9x32x32xf32, #tpu.memory_space<vmem>>, vector<1x32x32xf32>
    %303 = vector.shape_cast %302 : vector<1x32x32xf32> to vector<32x32xf32>
    %cst_237 = arith.constant dense<0.000000e+00> : vector<32x36xf32>
    %304 = tpu.matmul %303, %301, %cst_237 {dimension_numbers = #tpu.dot_dimension_numbers<[1], [0], [0], [1], [0, 0, 1, 1], [], []>} : vector<32x32xf32>, vector<32x36xf32>, vector<32x36xf32> -> vector<32x36xf32>
    %305 = arith.addf %300, %304 : vector<32x36xf32>
    %306 = vector.extract_strided_slice %271 {offsets = [0, 13], sizes = [32, 36], strides = [1, 1]} : vector<32x50xf32> to vector<32x36xf32>
    %c7_238 = arith.constant 7 : index
    %c0_239 = arith.constant 0 : index
    %c0_240 = arith.constant 0 : index
    %307 = vector.load %arg8[%c7_238, %c0_239, %c0_240] : memref<9x32x32xf32, #tpu.memory_space<vmem>>, vector<1x32x32xf32>
    %308 = vector.shape_cast %307 : vector<1x32x32xf32> to vector<32x32xf32>
    %cst_241 = arith.constant dense<0.000000e+00> : vector<32x36xf32>
    %309 = tpu.matmul %308, %306, %cst_241 {dimension_numbers = #tpu.dot_dimension_numbers<[1], [0], [0], [1], [0, 0, 1, 1], [], []>} : vector<32x32xf32>, vector<32x36xf32>, vector<32x36xf32> -> vector<32x36xf32>
    %310 = arith.addf %305, %309 : vector<32x36xf32>
    %311 = vector.extract_strided_slice %271 {offsets = [0, 14], sizes = [32, 36], strides = [1, 1]} : vector<32x50xf32> to vector<32x36xf32>
    %c8_242 = arith.constant 8 : index
    %c0_243 = arith.constant 0 : index
    %c0_244 = arith.constant 0 : index
    %312 = vector.load %arg8[%c8_242, %c0_243, %c0_244] : memref<9x32x32xf32, #tpu.memory_space<vmem>>, vector<1x32x32xf32>
    %313 = vector.shape_cast %312 : vector<1x32x32xf32> to vector<32x32xf32>
    %cst_245 = arith.constant dense<0.000000e+00> : vector<32x36xf32>
    %314 = tpu.matmul %313, %311, %cst_245 {dimension_numbers = #tpu.dot_dimension_numbers<[1], [0], [0], [1], [0, 0, 1, 1], [], []>} : vector<32x32xf32>, vector<32x36xf32>, vector<32x36xf32> -> vector<32x36xf32>
    %315 = arith.addf %310, %314 : vector<32x36xf32>
    %c5_246 = arith.constant 5 : index
    %316 = memref.load %arg1[%c5_246] : memref<6xf32, #tpu.memory_space<smem>>
    %cst_247 = arith.constant 0.000000e+00 : f32
    %317 = vector.broadcast %cst_247 : f32 to vector<32x36xf32>
    %318 = arith.cmpf oge, %315, %317 : vector<32x36xf32>
    %319 = vector.broadcast %316 : f32 to vector<32x36xf32>
    %320 = arith.mulf %319, %315 : vector<32x36xf32>
    %321 = arith.select %318, %315, %320 : vector<32x36xi1>, vector<32x36xf32>
    %c0_248 = arith.constant 0 : index
    %c0_249 = arith.constant 0 : index
    %322 = vector.load %arg16[%c0_248, %c0_249] : memref<36x16xf32, #tpu.memory_space<vmem>>, vector<36x16xf32>
    %cst_250 = arith.constant dense<0.000000e+00> : vector<32x16xf32>
    %323 = tpu.matmul %321, %322, %cst_250 {dimension_numbers = #tpu.dot_dimension_numbers<[1], [0], [0], [1], [0, 0, 1, 1], [], []>} : vector<32x36xf32>, vector<36x16xf32>, vector<32x16xf32> -> vector<32x16xf32>
    %c0_251 = arith.constant 0 : index
    %c0_252 = arith.constant 0 : index
    %c0_253 = arith.constant 0 : index
    %324 = vector.load %arg19[%c0_251, %c0_252, %c0_253] : memref<1x32x16xf32, #tpu.memory_space<vmem>>, vector<1x32x16xf32>
    %325 = vector.shape_cast %324 : vector<1x32x16xf32> to vector<32x16xf32>
    %326 = vector.shape_cast %323 : vector<32x16xf32> to vector<1x32x16xf32>
    tpu.vector_store %arg19[%c0_251, %c0_252, %c0_253], %326 {strides = array<i32>} : memref<1x32x16xf32, #tpu.memory_space<vmem>>, vector<1x32x16xf32>,
    return
  }
  func.func @transform_0(%arg0: i32) -> i32 {
    %c0_i32 = arith.constant 0 : i32
    %c0_i32_0 = arith.constant 0 : i32
    return %c0_i32 : i32
  }
  func.func @transform_1(%arg0: i32) -> (i32, i32, i32) {
    %c0_i32 = arith.constant 0 : i32
    %c0_i32_0 = arith.constant 0 : i32
    %c0_i32_1 = arith.constant 0 : i32
    return %arg0, %c0_i32, %c0_i32_0 : i32, i32, i32
  }
  func.func @transform_2(%arg0: i32) -> (i32, i32, i32) {
    %c0_i32 = arith.constant 0 : i32
    %c0_i32_0 = arith.constant 0 : i32
    %c0_i32_1 = arith.constant 0 : i32
    %c0_i32_2 = arith.constant 0 : i32
    return %c0_i32, %c0_i32_0, %c0_i32_1 : i32, i32, i32
  }
  func.func @transform_3(%arg0: i32) -> (i32, i32, i32) {
    %c0_i32 = arith.constant 0 : i32
    %c0_i32_0 = arith.constant 0 : i32
    %c0_i32_1 = arith.constant 0 : i32
    %c0_i32_2 = arith.constant 0 : i32
    return %c0_i32, %c0_i32_0, %c0_i32_1 : i32, i32, i32
  }
  func.func @transform_4(%arg0: i32) -> (i32, i32, i32) {
    %c0_i32 = arith.constant 0 : i32
    %c0_i32_0 = arith.constant 0 : i32
    %c0_i32_1 = arith.constant 0 : i32
    %c0_i32_2 = arith.constant 0 : i32
    return %c0_i32, %c0_i32_0, %c0_i32_1 : i32, i32, i32
  }
  func.func @transform_5(%arg0: i32) -> (i32, i32, i32) {
    %c0_i32 = arith.constant 0 : i32
    %c0_i32_0 = arith.constant 0 : i32
    %c0_i32_1 = arith.constant 0 : i32
    %c0_i32_2 = arith.constant 0 : i32
    return %c0_i32, %c0_i32_0, %c0_i32_1 : i32, i32, i32
  }
  func.func @transform_6(%arg0: i32) -> (i32, i32, i32) {
    %c0_i32 = arith.constant 0 : i32
    %c0_i32_0 = arith.constant 0 : i32
    %c0_i32_1 = arith.constant 0 : i32
    %c0_i32_2 = arith.constant 0 : i32
    return %c0_i32, %c0_i32_0, %c0_i32_1 : i32, i32, i32
  }
  func.func @transform_7(%arg0: i32) -> (i32, i32, i32) {
    %c0_i32 = arith.constant 0 : i32
    %c0_i32_0 = arith.constant 0 : i32
    %c0_i32_1 = arith.constant 0 : i32
    %c0_i32_2 = arith.constant 0 : i32
    return %c0_i32, %c0_i32_0, %c0_i32_1 : i32, i32, i32
  }
  func.func @transform_8(%arg0: i32) -> (i32, i32) {
    %c0_i32 = arith.constant 0 : i32
    %c0_i32_0 = arith.constant 0 : i32
    %c0_i32_1 = arith.constant 0 : i32
    return %c0_i32, %c0_i32_0 : i32, i32
  }
  func.func @transform_9(%arg0: i32) -> (i32, i32) {
    %c0_i32 = arith.constant 0 : i32
    %c0_i32_0 = arith.constant 0 : i32
    %c0_i32_1 = arith.constant 0 : i32
    return %c0_i32, %c0_i32_0 : i32, i32
  }
  func.func @transform_10(%arg0: i32) -> (i32, i32) {
    %c0_i32 = arith.constant 0 : i32
    %c0_i32_0 = arith.constant 0 : i32
    %c0_i32_1 = arith.constant 0 : i32
    return %c0_i32, %c0_i32_0 : i32, i32
  }
  func.func @transform_11(%arg0: i32) -> (i32, i32) {
    %c0_i32 = arith.constant 0 : i32
    %c0_i32_0 = arith.constant 0 : i32
    %c0_i32_1 = arith.constant 0 : i32
    return %c0_i32, %c0_i32_0 : i32, i32
  }
  func.func @transform_12(%arg0: i32) -> (i32, i32) {
    %c0_i32 = arith.constant 0 : i32
    %c0_i32_0 = arith.constant 0 : i32
    %c0_i32_1 = arith.constant 0 : i32
    return %c0_i32, %c0_i32_0 : i32, i32
  }
  func.func @transform_13(%arg0: i32) -> (i32, i32) {
    %c0_i32 = arith.constant 0 : i32
    %c0_i32_0 = arith.constant 0 : i32
    %c0_i32_1 = arith.constant 0 : i32
    return %c0_i32, %c0_i32_0 : i32, i32
  }
  func.func @transform_14(%arg0: i32) -> (i32, i32) {
    %c0_i32 = arith.constant 0 : i32
    %c0_i32_0 = arith.constant 0 : i32
    %c0_i32_1 = arith.constant 0 : i32
    return %c0_i32, %c0_i32_0 : i32, i32
  }
  func.func @transform_15(%arg0: i32) -> (i32, i32) {
    %c0_i32 = arith.constant 0 : i32
    %c0_i32_0 = arith.constant 0 : i32
    %c0_i32_1 = arith.constant 0 : i32
    return %c0_i32, %c0_i32_0 : i32, i32
  }
  func.func @transform_16(%arg0: i32) -> (i32, i32, i32) {
    %c0_i32 = arith.constant 0 : i32
    %c0_i32_0 = arith.constant 0 : i32
    %c0_i32_1 = arith.constant 0 : i32
    return %arg0, %c0_i32, %c0_i32_0 : i32, i32, i32
  }
  func.func @transform_17(%arg0: i32) -> (i32, i32, i32) {
    %c0_i32 = arith.constant 0 : i32
    %c0_i32_0 = arith.constant 0 : i32
    %c0_i32_1 = arith.constant 0 : i32
    return %arg0, %c0_i32, %c0_i32_0 : i32, i32, i32
  }
  func.func @transform_18(%arg0: i32) -> (i32, i32, i32) {
    %c0_i32 = arith.constant 0 : i32
    %c0_i32_0 = arith.constant 0 : i32
    %c0_i32_1 = arith.constant 0 : i32
    return %arg0, %c0_i32, %c0_i32_0 : i32, i32, i32
  }
}

</mosaic_0001>

<llo_original>
// kernel: tpu_custom_call.1
$region0: #{tpu_custom_call.1}
  #allocation0 [shape = 'u32[]', space=smem, size = 0x4, offset = 0x4, fixed_abs, tag = 'smem constant byte address 0x4 - core index']
  #allocation1 [shape = 'u32[144,128]{1,0:T(1,128)}', space=vmem, size = 0x12000, scoped, tag = 'internal scratch']
  %s0 = inlined_call_operand.vmem [shape: f32[6], index: 0, kind: input, shape index: {}]
  %s1 = inlined_call_operand.vmem [shape: f32[2,3,362], index: 1, kind: input, shape index: {}]
  %s2 = inlined_call_operand.vmem [shape: f32[9,8,3], index: 2, kind: input, shape index: {}]
  %s3 = inlined_call_operand.vmem [shape: f32[9,8,8], index: 3, kind: input, shape index: {}]
  %s4 = inlined_call_operand.vmem [shape: f32[9,16,8], index: 4, kind: input, shape index: {}]
  %s5 = inlined_call_operand.hbm [shape: f32[9,16,16], index: 5, kind: input, shape index: {}]
  %s6 = inlined_call_operand.vmem [shape: f32[9,32,16], index: 6, kind: input, shape index: {}]
  %s7 = inlined_call_operand.hbm [shape: f32[9,32,32], index: 7, kind: input, shape index: {}]
  %s8 = inlined_call_operand.vmem [shape: f32[324,362], index: 8, kind: input, shape index: {}]
  %s9 = inlined_call_operand.hbm [shape: f32[324,256], index: 9, kind: input, shape index: {}]
  %s10 = inlined_call_operand.hbm [shape: f32[324,362], index: 10, kind: input, shape index: {}]
  %s11 = inlined_call_operand.vmem [shape: f32[324,122], index: 11, kind: input, shape index: {}]
  %s12 = inlined_call_operand.vmem [shape: f32[100,64], index: 12, kind: input, shape index: {}]
  %s13 = inlined_call_operand.hbm [shape: f32[100,122], index: 13, kind: input, shape index: {}]
  %s14 = inlined_call_operand.vmem [shape: f32[100,50], index: 14, kind: input, shape index: {}]
  %s15 = inlined_call_operand.vmem [shape: f32[36,16], index: 15, kind: input, shape index: {}]
  %s16 = inlined_call_operand.hbm [shape: f32[2,8,256], index: 16, kind: output, shape index: {0}]
  %s17 = inlined_call_operand.hbm [shape: f32[2,16,64], index: 17, kind: output, shape index: {1}]
  %s18 = inlined_call_operand.vmem [shape: f32[2,32,16], index: 18, kind: output, shape index: {2}]
  %19 = xla_tuple %s16, %s17, %s18
  %s20 = sld [smem:[#allocation0]]
  $region137: #{tpu_custom_call.1} parent=0
    _
  %s22 = ssub.s32 1, %s20
  %s23 = scalar_select 0, %s22, %s20
  $region1: #{tpu_custom_call.1} parent=0
    #allocation2 [shape = 'u8[512]{0}', space=smem, size = 0x200, scoped, tag = 'input window, operand 0, single buffered']
    #allocation3 [shape = 's32[2]{0}', space=sflag, size = 0x8, scoped, tag = 'scoped memory for tpu_custom_call.1']
    #allocation4 [shape = 's32[2]{0}', space=sflag, size = 0x8, scoped, tag = 'scoped memory for tpu_custom_call.1']
    #allocation5 [shape = 's32[2]{0}', space=sflag, size = 0x8, scoped, tag = 'scoped memory for tpu_custom_call.1']
    #allocation6 [shape = 'u8[73728]{0}', space=vmem, size = 0x12000, scoped, tag = 'input window, operand 5, single buffered']
    #allocation7 [shape = 'u8[147456]{0}', space=vmem, size = 0x24000, scoped, tag = 'input window, operand 7, single buffered']
    #allocation8 [shape = 's32[1]{0}', space=sflag, size = 0x4, scoped, tag = 'scoped memory for tpu_custom_call.1']
    #allocation9 [shape = 'u8[335872]{0}', space=vmem, size = 0x52000, scoped, tag = 'input window, operand 9, single buffered']
    #allocation10 [shape = 'u8[503808]{0}', space=vmem, size = 0x7b000, scoped, tag = 'input window, operand 10, single buffered']
    #allocation11 [shape = 's32[1]{0}', space=sflag, size = 0x4, scoped, tag = 'scoped memory for tpu_custom_call.1']
    #allocation12 [shape = 'u8[53248]{0}', space=vmem, size = 0xd000, scoped, tag = 'input window, operand 13, single buffered']
    #allocation13 [shape = 'u8[16384]{0}', space=vmem, size = 0x4000, scoped, tag = 'output window, operand 0']
    #allocation14 [shape = 'u8[16384]{0}', space=vmem, size = 0x4000, scoped, tag = 'output window, operand 1']
    #allocation15 [shape = 's32[2]{0}', space=sflag, size = 0x8, scoped, tag = 'scoped memory for tpu_custom_call.1']
    %24 = vsyncpa [#allocation5], 0
    %25 = vsyncpa [#allocation3], 0
    %26 = vsyncpa [#allocation8], 0
    %27 = vsyncpa [#allocation11], 0
    %28 = vsyncpa [#allocation4], 0
    %s29 = scalar_lea.sflag [#allocation4], 1
    %30 = vsyncpa %s29, 0
    %31 = vsyncpa [#allocation15], 0
    %s32 = scalar_lea.sflag [#allocation15], 1
    %33 = vsyncpa %s32, 0
    loop: start=0, step=1, limit=4
    $region2: #{tpu_custom_call.1} parent=1 // loop_pre_header
      _
    $region3: #{tpu_custom_call.1} parent=1 // loop_header
      %s35 = sphi 0, %s39
      %p36 = scmp.ge.s32.totalorder %s35, 4
      %s43 = sphi 0, %s43
      %s45 = sphi 0, %s43
      %s46 = sphi 0, %s45
      %s60 = sphi 0, %s46
      %s66 = sphi 0, %s68
      %s69 = sphi 0, %s66
      %s70 = sphi 0, %s69
      %s86 = sphi 0, %s70
      %s90 = sphi 0, %s90
      %s92 = sphi 0, %s90
      %s93 = sphi 0, %s92
      %s107 = sphi 0, %s93
      %s111 = sphi 0, %s111
      %s113 = sphi 0, %s111
      %s114 = sphi 0, %s113
      %s128 = sphi 0, %s114
      %s132 = sphi 0, %s132
      %s134 = sphi 0, %s132
      %s135 = sphi 0, %s134
      %s149 = sphi 0, %s135
      %s153 = sphi 0, %s153
      %s155 = sphi 0, %s153
      %s156 = sphi 0, %s155
      %s170 = sphi 0, %s156
      %s174 = sphi 0, %s174
      %s176 = sphi 0, %s174
      %s177 = sphi 0, %s176
      %s191 = sphi 0, %s177
      %s195 = sphi 0, %s195
      %s197 = sphi 0, %s195
      %s198 = sphi 0, %s197
      %s212 = sphi 0, %s198
      %s216 = sphi 0, %s216
      %s218 = sphi 0, %s216
      %s219 = sphi 0, %s218
      %s233 = sphi 0, %s219
      %s237 = sphi 0, %s237
      %s239 = sphi 0, %s237
      %s240 = sphi 0, %s239
      %s254 = sphi 0, %s240
      %s258 = sphi 0, %s258
      %s260 = sphi 0, %s258
      %s261 = sphi 0, %s260
      %s275 = sphi 0, %s261
      %s279 = sphi 0, %s279
      %s281 = sphi 0, %s279
      %s282 = sphi 0, %s281
      %s296 = sphi 0, %s282
      %s300 = sphi 0, %s300
      %s302 = sphi 0, %s300
      %s303 = sphi 0, %s302
      %s317 = sphi 0, %s303
      %s321 = sphi 0, %s321
      %s323 = sphi 0, %s321
      %s324 = sphi 0, %s323
      %s338 = sphi 0, %s324
      %s342 = sphi 0, %s342
      %s344 = sphi 0, %s342
      %s345 = sphi 0, %s344
      %s359 = sphi 0, %s345
      %s363 = sphi 0, %s363
      %s365 = sphi 0, %s363
      %s366 = sphi 0, %s365
      %s380 = sphi 0, %s366
      %s386 = sphi 0, %s388
      %s389 = sphi 0, %s386
      %s390 = sphi 0, %s389
      %s406 = sphi 0, %s390
      %s412 = sphi 0, %s414
      %s415 = sphi 0, %s412
      %s416 = sphi 0, %s415
      %s432 = sphi 0, %s416
      %s438 = sphi 0, %s440
      %s441 = sphi 0, %s438
      %s442 = sphi 0, %s441
      %s458 = sphi 0, %s442
    $region4: #{tpu_custom_call.1} parent=1 // loop_header_branch
      %38 = sbr.rel (%p36) target = $region8
    $region5: #{tpu_custom_call.1} parent=1 // loop_body
      %s40 = ssub.s32 %s35, 1
      %s41 = ssub.s32 %s35, 2
      %s42 = sadd.s32 %s35, 1
      %s44 = sadd.s32 %s43, 1
      %p47 = scmp.eq.s32.totalorder %s35, 1
      %p48 = scmp.ne.s32.totalorder %s43, %s45
      %p49 = scmp.eq.s32.totalorder %s35, 0
      %p50 = por %p48, %p49
      %p51 = scmp.ne.s32.totalorder %s43, %s45
      %p52 = scmp.eq.s32.totalorder %s40, 1
      %p53 = por %p51, %p52
      %p54 = scmp.ne.s32.totalorder %s45, %s46
      %p55 = scmp.eq.s32.totalorder %s40, 0
      %p56 = por %p54, %p55
      %p57 = scmp.ne.s32.totalorder %s45, %s46
      %p58 = scmp.eq.s32.totalorder %s41, 1
      %p59 = por %p57, %p58
      %p61 = scmp.ne.s32.totalorder %s46, %s60
      %p62 = scmp.eq.s32.totalorder %s41, 0
      %p63 = por %p61, %p62
      %s64 = ssub.s32 %s35, %s42
      %p65 = scmp.eq.s32.totalorder %s64, 0
      %s67 = sadd.s32 %s66, 1
      %s68 = scalar_select %p65, %s66, %s67
      %p71 = pneg %p65
      %p72 = scmp.eq.s32.totalorder %s35, 1
      %p73 = por %p71, %p72
      %p74 = scmp.ne.s32.totalorder %s66, %s69
      %p75 = scmp.eq.s32.totalorder %s35, 0
      %p76 = por %p74, %p75
      %p77 = scmp.ne.s32.totalorder %s66, %s69
      %p78 = scmp.eq.s32.totalorder %s40, 1
      %p79 = por %p77, %p78
      %p80 = scmp.ne.s32.totalorder %s69, %s70
      %p81 = scmp.eq.s32.totalorder %s40, 0
      %p82 = por %p80, %p81
      %p83 = scmp.ne.s32.totalorder %s69, %s70
      %p84 = scmp.eq.s32.totalorder %s41, 1
      %p85 = por %p83, %p84
      %p87 = scmp.ne.s32.totalorder %s70, %s86
      %p88 = scmp.eq.s32.totalorder %s41, 0
      %p89 = por %p87, %p88
      %s91 = sadd.s32 %s90, 1
      %p94 = scmp.eq.s32.totalorder %s35, 1
      %p95 = scmp.ne.s32.totalorder %s90, %s92
      %p96 = scmp.eq.s32.totalorder %s35, 0
      %p97 = por %p95, %p96
      %p98 = scmp.ne.s32.totalorder %s90, %s92
      %p99 = scmp.eq.s32.totalorder %s40, 1
      %p100 = por %p98, %p99
      %p101 = scmp.ne.s32.totalorder %s92, %s93
      %p102 = scmp.eq.s32.totalorder %s40, 0
      %p103 = por %p101, %p102
      %p104 = scmp.ne.s32.totalorder %s92, %s93
      %p105 = scmp.eq.s32.totalorder %s41, 1
      %p106 = por %p104, %p105
      %p108 = scmp.ne.s32.totalorder %s93, %s107
      %p109 = scmp.eq.s32.totalorder %s41, 0
      %p110 = por %p108, %p109
      %s112 = sadd.s32 %s111, 1
      %p115 = scmp.eq.s32.totalorder %s35, 1
      %p116 = scmp.ne.s32.totalorder %s111, %s113
      %p117 = scmp.eq.s32.totalorder %s35, 0
      %p118 = por %p116, %p117
      %p119 = scmp.ne.s32.totalorder %s111, %s113
      %p120 = scmp.eq.s32.totalorder %s40, 1
      %p121 = por %p119, %p120
      %p122 = scmp.ne.s32.totalorder %s113, %s114
      %p123 = scmp.eq.s32.totalorder %s40, 0
      %p124 = por %p122, %p123
      %p125 = scmp.ne.s32.totalorder %s113, %s114
      %p126 = scmp.eq.s32.totalorder %s41, 1
      %p127 = por %p125, %p126
      %p129 = scmp.ne.s32.totalorder %s114, %s128
      %p130 = scmp.eq.s32.totalorder %s41, 0
      %p131 = por %p129, %p130
      %s133 = sadd.s32 %s132, 1
      %p136 = scmp.eq.s32.totalorder %s35, 1
      %p137 = scmp.ne.s32.totalorder %s132, %s134
      %p138 = scmp.eq.s32.totalorder %s35, 0
      %p139 = por %p137, %p138
      %p140 = scmp.ne.s32.totalorder %s132, %s134
      %p141 = scmp.eq.s32.totalorder %s40, 1
      %p142 = por %p140, %p141
      %p143 = scmp.ne.s32.totalorder %s134, %s135
      %p144 = scmp.eq.s32.totalorder %s40, 0
      %p145 = por %p143, %p144
      %p146 = scmp.ne.s32.totalorder %s134, %s135
      %p147 = scmp.eq.s32.totalorder %s41, 1
      %p148 = por %p146, %p147
      %p150 = scmp.ne.s32.totalorder %s135, %s149
      %p151 = scmp.eq.s32.totalorder %s41, 0
      %p152 = por %p150, %p151
      %s154 = sadd.s32 %s153, 1
      %p157 = scmp.eq.s32.totalorder %s35, 1
      %p158 = scmp.ne.s32.totalorder %s153, %s155
      %p159 = scmp.eq.s32.totalorder %s35, 0
      %p160 = por %p158, %p159
      %p161 = scmp.ne.s32.totalorder %s153, %s155
      %p162 = scmp.eq.s32.totalorder %s40, 1
      %p163 = por %p161, %p162
      %p164 = scmp.ne.s32.totalorder %s155, %s156
      %p165 = scmp.eq.s32.totalorder %s40, 0
      %p166 = por %p164, %p165
      %p167 = scmp.ne.s32.totalorder %s155, %s156
      %p168 = scmp.eq.s32.totalorder %s41, 1
      %p169 = por %p167, %p168
      %p171 = scmp.ne.s32.totalorder %s156, %s170
      %p172 = scmp.eq.s32.totalorder %s41, 0
      %p173 = por %p171, %p172
      %s175 = sadd.s32 %s174, 1
      %p178 = scmp.eq.s32.totalorder %s35, 1
      %p179 = scmp.ne.s32.totalorder %s174, %s176
      %p180 = scmp.eq.s32.totalorder %s35, 0
      %p181 = por %p179, %p180
      %p182 = scmp.ne.s32.totalorder %s174, %s176
      %p183 = scmp.eq.s32.totalorder %s40, 1
      %p184 = por %p182, %p183
      %p185 = scmp.ne.s32.totalorder %s176, %s177
      %p186 = scmp.eq.s32.totalorder %s40, 0
      %p187 = por %p185, %p186
      %p188 = scmp.ne.s32.totalorder %s176, %s177
      %p189 = scmp.eq.s32.totalorder %s41, 1
      %p190 = por %p188, %p189
      %p192 = scmp.ne.s32.totalorder %s177, %s191
      %p193 = scmp.eq.s32.totalorder %s41, 0
      %p194 = por %p192, %p193
      %s196 = sadd.s32 %s195, 1
      %p199 = scmp.eq.s32.totalorder %s35, 1
      %p200 = scmp.ne.s32.totalorder %s195, %s197
      %p201 = scmp.eq.s32.totalorder %s35, 0
      %p202 = por %p200, %p201
      %p203 = scmp.ne.s32.totalorder %s195, %s197
      %p204 = scmp.eq.s32.totalorder %s40, 1
      %p205 = por %p203, %p204
      %p206 = scmp.ne.s32.totalorder %s197, %s198
      %p207 = scmp.eq.s32.totalorder %s40, 0
      %p208 = por %p206, %p207
      %p209 = scmp.ne.s32.totalorder %s197, %s198
      %p210 = scmp.eq.s32.totalorder %s41, 1
      %p211 = por %p209, %p210
      %p213 = scmp.ne.s32.totalorder %s198, %s212
      %p214 = scmp.eq.s32.totalorder %s41, 0
      %p215 = por %p213, %p214
      %s217 = sadd.s32 %s216, 1
      %p220 = scmp.eq.s32.totalorder %s35, 1
      %p221 = scmp.ne.s32.totalorder %s216, %s218
      %p222 = scmp.eq.s32.totalorder %s35, 0
      %p223 = por %p221, %p222
      %p224 = scmp.ne.s32.totalorder %s216, %s218
      %p225 = scmp.eq.s32.totalorder %s40, 1
      %p226 = por %p224, %p225
      %p227 = scmp.ne.s32.totalorder %s218, %s219
      %p228 = scmp.eq.s32.totalorder %s40, 0
      %p229 = por %p227, %p228
      %p230 = scmp.ne.s32.totalorder %s218, %s219
      %p231 = scmp.eq.s32.totalorder %s41, 1
      %p232 = por %p230, %p231
      %p234 = scmp.ne.s32.totalorder %s219, %s233
      %p235 = scmp.eq.s32.totalorder %s41, 0
      %p236 = por %p234, %p235
      %s238 = sadd.s32 %s237, 1
      %p241 = scmp.eq.s32.totalorder %s35, 1
      %p242 = scmp.ne.s32.totalorder %s237, %s239
      %p243 = scmp.eq.s32.totalorder %s35, 0
      %p244 = por %p242, %p243
      %p245 = scmp.ne.s32.totalorder %s237, %s239
      %p246 = scmp.eq.s32.totalorder %s40, 1
      %p247 = por %p245, %p246
      %p248 = scmp.ne.s32.totalorder %s239, %s240
      %p249 = scmp.eq.s32.totalorder %s40, 0
      %p250 = por %p248, %p249
      %p251 = scmp.ne.s32.totalorder %s239, %s240
      %p252 = scmp.eq.s32.totalorder %s41, 1
      %p253 = por %p251, %p252
      %p255 = scmp.ne.s32.totalorder %s240, %s254
      %p256 = scmp.eq.s32.totalorder %s41, 0
      %p257 = por %p255, %p256
      %s259 = sadd.s32 %s258, 1
      %p262 = scmp.eq.s32.totalorder %s35, 1
      %p263 = scmp.ne.s32.totalorder %s258, %s260
      %p264 = scmp.eq.s32.totalorder %s35, 0
      %p265 = por %p263, %p264
      %p266 = scmp.ne.s32.totalorder %s258, %s260
      %p267 = scmp.eq.s32.totalorder %s40, 1
      %p268 = por %p266, %p267
      %p269 = scmp.ne.s32.totalorder %s260, %s261
      %p270 = scmp.eq.s32.totalorder %s40, 0
      %p271 = por %p269, %p270
      %p272 = scmp.ne.s32.totalorder %s260, %s261
      %p273 = scmp.eq.s32.totalorder %s41, 1
      %p274 = por %p272, %p273
      %p276 = scmp.ne.s32.totalorder %s261, %s275
      %p277 = scmp.eq.s32.totalorder %s41, 0
      %p278 = por %p276, %p277
      %s280 = sadd.s32 %s279, 1
      %p283 = scmp.eq.s32.totalorder %s35, 1
      %p284 = scmp.ne.s32.totalorder %s279, %s281
      %p285 = scmp.eq.s32.totalorder %s35, 0
      %p286 = por %p284, %p285
      %p287 = scmp.ne.s32.totalorder %s279, %s281
      %p288 = scmp.eq.s32.totalorder %s40, 1
      %p289 = por %p287, %p288
      %p290 = scmp.ne.s32.totalorder %s281, %s282
      %p291 = scmp.eq.s32.totalorder %s40, 0
      %p292 = por %p290, %p291
      %p293 = scmp.ne.s32.totalorder %s281, %s282
      %p294 = scmp.eq.s32.totalorder %s41, 1
      %p295 = por %p293, %p294
      %p297 = scmp.ne.s32.totalorder %s282, %s296
      %p298 = scmp.eq.s32.totalorder %s41, 0
      %p299 = por %p297, %p298
      %s301 = sadd.s32 %s300, 1
      %p304 = scmp.eq.s32.totalorder %s35, 1
      %p305 = scmp.ne.s32.totalorder %s300, %s302
      %p306 = scmp.eq.s32.totalorder %s35, 0
      %p307 = por %p305, %p306
      %p308 = scmp.ne.s32.totalorder %s300, %s302
      %p309 = scmp.eq.s32.totalorder %s40, 1
      %p310 = por %p308, %p309
      %p311 = scmp.ne.s32.totalorder %s302, %s303
      %p312 = scmp.eq.s32.totalorder %s40, 0
      %p313 = por %p311, %p312
      %p314 = scmp.ne.s32.totalorder %s302, %s303
      %p315 = scmp.eq.s32.totalorder %s41, 1
      %p316 = por %p314, %p315
      %p318 = scmp.ne.s32.totalorder %s303, %s317
      %p319 = scmp.eq.s32.totalorder %s41, 0
      %p320 = por %p318, %p319
      %s322 = sadd.s32 %s321, 1
      %p325 = scmp.eq.s32.totalorder %s35, 1
      %p326 = scmp.ne.s32.totalorder %s321, %s323
      %p327 = scmp.eq.s32.totalorder %s35, 0
      %p328 = por %p326, %p327
      %p329 = scmp.ne.s32.totalorder %s321, %s323
      %p330 = scmp.eq.s32.totalorder %s40, 1
      %p331 = por %p329, %p330
      %p332 = scmp.ne.s32.totalorder %s323, %s324
      %p333 = scmp.eq.s32.totalorder %s40, 0
      %p334 = por %p332, %p333
      %p335 = scmp.ne.s32.totalorder %s323, %s324
      %p336 = scmp.eq.s32.totalorder %s41, 1
      %p337 = por %p335, %p336
      %p339 = scmp.ne.s32.totalorder %s324, %s338
      %p340 = scmp.eq.s32.totalorder %s41, 0
      %p341 = por %p339, %p340
      %s343 = sadd.s32 %s342, 1
      %p346 = scmp.eq.s32.totalorder %s35, 1
      %p347 = scmp.ne.s32.totalorder %s342, %s344
      %p348 = scmp.eq.s32.totalorder %s35, 0
      %p349 = por %p347, %p348
      %p350 = scmp.ne.s32.totalorder %s342, %s344
      %p351 = scmp.eq.s32.totalorder %s40, 1
      %p352 = por %p350, %p351
      %p353 = scmp.ne.s32.totalorder %s344, %s345
      %p354 = scmp.eq.s32.totalorder %s40, 0
      %p355 = por %p353, %p354
      %p356 = scmp.ne.s32.totalorder %s344, %s345
      %p357 = scmp.eq.s32.totalorder %s41, 1
      %p358 = por %p356, %p357
      %p360 = scmp.ne.s32.totalorder %s345, %s359
      %p361 = scmp.eq.s32.totalorder %s41, 0
      %p362 = por %p360, %p361
      %s364 = sadd.s32 %s363, 1
      %p367 = scmp.eq.s32.totalorder %s35, 1
      %p368 = scmp.ne.s32.totalorder %s363, %s365
      %p369 = scmp.eq.s32.totalorder %s35, 0
      %p370 = por %p368, %p369
      %p371 = scmp.ne.s32.totalorder %s363, %s365
      %p372 = scmp.eq.s32.totalorder %s40, 1
      %p373 = por %p371, %p372
      %p374 = scmp.ne.s32.totalorder %s365, %s366
      %p375 = scmp.eq.s32.totalorder %s40, 0
      %p376 = por %p374, %p375
      %p377 = scmp.ne.s32.totalorder %s365, %s366
      %p378 = scmp.eq.s32.totalorder %s41, 1
      %p379 = por %p377, %p378
      %p381 = scmp.ne.s32.totalorder %s366, %s380
      %p382 = scmp.eq.s32.totalorder %s41, 0
      %p383 = por %p381, %p382
      %s384 = ssub.s32 %s35, %s42
      %p385 = scmp.eq.s32.totalorder %s384, 0
      %s387 = sadd.s32 %s386, 1
      %s388 = scalar_select %p385, %s386, %s387
      %p391 = pneg %p385
      %p392 = scmp.eq.s32.totalorder %s35, 1
      %p393 = por %p391, %p392
      %p394 = scmp.ne.s32.totalorder %s386, %s389
      %p395 = scmp.eq.s32.totalorder %s35, 0
      %p396 = por %p394, %p395
      %p397 = scmp.ne.s32.totalorder %s386, %s389
      %p398 = scmp.eq.s32.totalorder %s40, 1
      %p399 = por %p397, %p398
      %p400 = scmp.ne.s32.totalorder %s389, %s390
      %p401 = scmp.eq.s32.totalorder %s40, 0
      %p402 = por %p400, %p401
      %p403 = scmp.ne.s32.totalorder %s389, %s390
      %p404 = scmp.eq.s32.totalorder %s41, 1
      %p405 = por %p403, %p404
      %p407 = scmp.ne.s32.totalorder %s390, %s406
      %p408 = scmp.eq.s32.totalorder %s41, 0
      %p409 = por %p407, %p408
      %s410 = ssub.s32 %s35, %s42
      %p411 = scmp.eq.s32.totalorder %s410, 0
      %s413 = sadd.s32 %s412, 1
      %s414 = scalar_select %p411, %s412, %s413
      %p417 = pneg %p411
      %p418 = scmp.eq.s32.totalorder %s35, 1
      %p419 = por %p417, %p418
      %p420 = scmp.ne.s32.totalorder %s412, %s415
      %p421 = scmp.eq.s32.totalorder %s35, 0
      %p422 = por %p420, %p421
      %p423 = scmp.ne.s32.totalorder %s412, %s415
      %p424 = scmp.eq.s32.totalorder %s40, 1
      %p425 = por %p423, %p424
      %p426 = scmp.ne.s32.totalorder %s415, %s416
      %p427 = scmp.eq.s32.totalorder %s40, 0
      %p428 = por %p426, %p427
      %p429 = scmp.ne.s32.totalorder %s415, %s416
      %p430 = scmp.eq.s32.totalorder %s41, 1
      %p431 = por %p429, %p430
      %p433 = scmp.ne.s32.totalorder %s416, %s432
      %p434 = scmp.eq.s32.totalorder %s41, 0
      %p435 = por %p433, %p434
      %s436 = ssub.s32 %s35, %s42
      %p437 = scmp.eq.s32.totalorder %s436, 0
      %s439 = sadd.s32 %s438, 1
      %s440 = scalar_select %p437, %s438, %s439
      %p443 = pneg %p437
      %p444 = scmp.eq.s32.totalorder %s35, 1
      %p445 = por %p443, %p444
      %p446 = scmp.ne.s32.totalorder %s438, %s441
      %p447 = scmp.eq.s32.totalorder %s35, 0
      %p448 = por %p446, %p447
      %p449 = scmp.ne.s32.totalorder %s438, %s441
      %p450 = scmp.eq.s32.totalorder %s40, 1
      %p451 = por %p449, %p450
      %p452 = scmp.ne.s32.totalorder %s441, %s442
      %p453 = scmp.eq.s32.totalorder %s40, 0
      %p454 = por %p452, %p453
      %p455 = scmp.ne.s32.totalorder %s441, %s442
      %p456 = scmp.eq.s32.totalorder %s41, 1
      %p457 = por %p455, %p456
      %p459 = scmp.ne.s32.totalorder %s442, %s458
      %p460 = scmp.eq.s32.totalorder %s41, 0
      %p461 = por %p459, %p460
      %p462 = scmp.le.s32.totalorder 1, %s35
      %p463 = scmp.lt.s32.totalorder %s35, 3
      %p464 = pnand %p462, %p463
      %p465 = pneg %p464
      // Predicated region
      $region9: #{tpu_custom_call.1} parent=5 // pred_check
        _
      $region10: #{tpu_custom_call.1} parent=5 // pred_check_branch
        %467 = sbr.rel (%p464) target = $region12
      $region11: #{tpu_custom_call.1} parent=5 // pred_region
        %s468 = ssub.s32 %s35, 1
        // Predicated region
        $region13: #{tpu_custom_call.1} parent=11 // pred_check
          %p469 = pneg %p56
        $region14: #{tpu_custom_call.1} parent=11 // pred_check_branch
          %471 = sbr.rel (%p469) target = $region16
        $region15: #{tpu_custom_call.1} parent=11 // pred_region
          %s473 = ssub.s32 16, 16
          %474 = vsyncadd [#allocation5], %s473
          %s476 = sshll.u32 %s0, 4
          %s477 = int_to_ptr.vmem [resolvable:$true] %s476
          %479 = dma.vmem_to_smem %s477, 16, [#allocation2], [#allocation5]
        $region16: #{tpu_custom_call.1} parent=11 // pred_fallthru
          _
        // Predicated region
        $region17: #{tpu_custom_call.1} parent=11 // pred_check
          %p480 = pneg %p103
        $region18: #{tpu_custom_call.1} parent=11 // pred_check_branch
          %482 = sbr.rel (%p480) target = $region20
        $region19: #{tpu_custom_call.1} parent=11 // pred_region
          _
        $region20: #{tpu_custom_call.1} parent=11 // pred_fallthru
          _
        // Predicated region
        $region21: #{tpu_custom_call.1} parent=11 // pred_check
          %p483 = pneg %p124
        $region22: #{tpu_custom_call.1} parent=11 // pred_check_branch
          %485 = sbr.rel (%p483) target = $region24
        $region23: #{tpu_custom_call.1} parent=11 // pred_region
          _
        $region24: #{tpu_custom_call.1} parent=11 // pred_fallthru
          _
        // Predicated region
        $region25: #{tpu_custom_call.1} parent=11 // pred_check
          %p486 = pneg %p145
        $region26: #{tpu_custom_call.1} parent=11 // pred_check_branch
          %488 = sbr.rel (%p486) target = $region28
        $region27: #{tpu_custom_call.1} parent=11 // pred_region
          _
        $region28: #{tpu_custom_call.1} parent=11 // pred_fallthru
          _
        // Predicated region
        $region29: #{tpu_custom_call.1} parent=11 // pred_check
          %p489 = pneg %p166
        $region30: #{tpu_custom_call.1} parent=11 // pred_check_branch
          %491 = sbr.rel (%p489) target = $region32
        $region31: #{tpu_custom_call.1} parent=11 // pred_region
          %s493 = ssub.s32 2304, 2304
          %494 = vsyncadd [#allocation3], %s493
          %s495 = sshll.u32 [#allocation6], 4
          %s496 = int_to_ptr.vmem [resolvable:$true] %s495
          %501 = dma.hbm_to_vmem [thread:$0]  %s5, 2304, %s496, [#allocation3], 128, 128, 8
        $region32: #{tpu_custom_call.1} parent=11 // pred_fallthru
          _
        // Predicated region
        $region33: #{tpu_custom_call.1} parent=11 // pred_check
          %p502 = pneg %p187
        $region34: #{tpu_custom_call.1} parent=11 // pred_check_branch
          %504 = sbr.rel (%p502) target = $region36
        $region35: #{tpu_custom_call.1} parent=11 // pred_region
          _
        $region36: #{tpu_custom_call.1} parent=11 // pred_fallthru
          _
        // Predicated region
        $region37: #{tpu_custom_call.1} parent=11 // pred_check
          %p505 = pneg %p208
        $region38: #{tpu_custom_call.1} parent=11 // pred_check_branch
          %507 = sbr.rel (%p505) target = $region40
        $region39: #{tpu_custom_call.1} parent=11 // pred_region
          %s509 = ssub.s32 4608, 4608
          %510 = vsyncadd [#allocation8], %s509
          %s511 = sshll.u32 [#allocation7], 4
          %s512 = int_to_ptr.vmem [resolvable:$true] %s511
          %517 = dma.hbm_to_vmem [thread:$0]  %s7, 4608, %s512, [#allocation8], 128, 128, 8
        $region40: #{tpu_custom_call.1} parent=11 // pred_fallthru
          _
        // Predicated region
        $region41: #{tpu_custom_call.1} parent=11 // pred_check
          %p518 = pneg %p229
        $region42: #{tpu_custom_call.1} parent=11 // pred_check_branch
          %520 = sbr.rel (%p518) target = $region44
        $region43: #{tpu_custom_call.1} parent=11 // pred_region
          _
        $region44: #{tpu_custom_call.1} parent=11 // pred_fallthru
          _
        // Predicated region
        $region45: #{tpu_custom_call.1} parent=11 // pred_check
          %p521 = pneg %p250
        $region46: #{tpu_custom_call.1} parent=11 // pred_check_branch
          %523 = sbr.rel (%p521) target = $region48
        $region47: #{tpu_custom_call.1} parent=11 // pred_region
          %s525 = ssub.s32 10496, 10496
          %526 = vsyncadd [#allocation8], %s525
          %s527 = sshll.u32 [#allocation9], 4
          %s528 = int_to_ptr.vmem [resolvable:$true] %s527
          %533 = dma.hbm_to_vmem [thread:$0]  %s9, 10496, %s528, [#allocation8], 256, 256, 16
        $region48: #{tpu_custom_call.1} parent=11 // pred_fallthru
          _
        // Predicated region
        $region49: #{tpu_custom_call.1} parent=11 // pred_check
          %p534 = pneg %p271
        $region50: #{tpu_custom_call.1} parent=11 // pred_check_branch
          %536 = sbr.rel (%p534) target = $region52
        $region51: #{tpu_custom_call.1} parent=11 // pred_region
          %s538 = ssub.s32 15744, 15744
          %539 = vsyncadd [#allocation11], %s538
          %s540 = sshll.u32 [#allocation10], 4
          %s541 = int_to_ptr.vmem [resolvable:$true] %s540
          %546 = dma.hbm_to_vmem [thread:$0]  %s10, 15744, %s541, [#allocation11], 384, 384, 24
        $region52: #{tpu_custom_call.1} parent=11 // pred_fallthru
          _
        // Predicated region
        $region53: #{tpu_custom_call.1} parent=11 // pred_check
          %p547 = pneg %p292
        $region54: #{tpu_custom_call.1} parent=11 // pred_check_branch
          %549 = sbr.rel (%p547) target = $region56
        $region55: #{tpu_custom_call.1} parent=11 // pred_region
          _
        $region56: #{tpu_custom_call.1} parent=11 // pred_fallthru
          _
        // Predicated region
        $region57: #{tpu_custom_call.1} parent=11 // pred_check
          %p550 = pneg %p313
        $region58: #{tpu_custom_call.1} parent=11 // pred_check_branch
          %552 = sbr.rel (%p550) target = $region60
        $region59: #{tpu_custom_call.1} parent=11 // pred_region
          _
        $region60: #{tpu_custom_call.1} parent=11 // pred_fallthru
          _
        // Predicated region
        $region61: #{tpu_custom_call.1} parent=11 // pred_check
          %p553 = pneg %p334
        $region62: #{tpu_custom_call.1} parent=11 // pred_check_branch
          %555 = sbr.rel (%p553) target = $region64
        $region63: #{tpu_custom_call.1} parent=11 // pred_region
          %s557 = ssub.s32 1664, 1664
          %558 = vsyncadd [#allocation11], %s557
          %s559 = sshll.u32 [#allocation12], 4
          %s560 = int_to_ptr.vmem [resolvable:$true] %s559
          %565 = dma.hbm_to_vmem [thread:$0]  %s13, 1664, %s560, [#allocation11], 128, 128, 8
        $region64: #{tpu_custom_call.1} parent=11 // pred_fallthru
          _
        // Predicated region
        $region65: #{tpu_custom_call.1} parent=11 // pred_check
          %p566 = pneg %p355
        $region66: #{tpu_custom_call.1} parent=11 // pred_check_branch
          %568 = sbr.rel (%p566) target = $region68
        $region67: #{tpu_custom_call.1} parent=11 // pred_region
          _
        $region68: #{tpu_custom_call.1} parent=11 // pred_fallthru
          _
        // Predicated region
        $region69: #{tpu_custom_call.1} parent=11 // pred_check
          %p569 = pneg %p376
        $region70: #{tpu_custom_call.1} parent=11 // pred_check_branch
          %571 = sbr.rel (%p569) target = $region72
        $region71: #{tpu_custom_call.1} parent=11 // pred_region
          _
        $region72: #{tpu_custom_call.1} parent=11 // pred_fallthru
          _
      $region12: #{tpu_custom_call.1} parent=5 // pred_fallthru
        _
      %p572 = scmp.lt.s32.totalorder %s35, 2
      // Predicated region
      $region73: #{tpu_custom_call.1} parent=5 // pred_check
        %p573 = pneg %p572
      $region74: #{tpu_custom_call.1} parent=5 // pred_check_branch
        %575 = sbr.rel (%p573) target = $region76
      $region75: #{tpu_custom_call.1} parent=5 // pred_region
        // Predicated region
        $region77: #{tpu_custom_call.1} parent=75 // pred_check
          %p576 = pneg %p76
        $region78: #{tpu_custom_call.1} parent=75 // pred_check_branch
          %578 = sbr.rel (%p576) target = $region80
        $region79: #{tpu_custom_call.1} parent=75 // pred_region
          %p579 = scmp.lt.s32.totalorder %s35, 1
          %s580 = scalar_select %p579, %s35, 1
          %s581 = smul.addr %s580, 3
          %s582 = smul.addr %s581, 4
          %s583 = scalar_lea.vmem %s1, %s582
        $region80: #{tpu_custom_call.1} parent=75 // pred_fallthru
          _
      $region76: #{tpu_custom_call.1} parent=5 // pred_fallthru
        _
      %p584 = scmp.le.s32.totalorder 1, %s35
      %p585 = scmp.lt.s32.totalorder %s35, 3
      %p586 = pnand %p584, %p585
      %p587 = pneg %p586
      // Predicated region
      $region81: #{tpu_custom_call.1} parent=5 // pred_check
        _
      $region82: #{tpu_custom_call.1} parent=5 // pred_check_branch
        %589 = sbr.rel (%p586) target = $region84
      $region83: #{tpu_custom_call.1} parent=5 // pred_region
        %s590 = ssub.s32 %s35, 1
        // Predicated region
        $region85: #{tpu_custom_call.1} parent=83 // pred_check
          %p591 = pneg %p56
        $region86: #{tpu_custom_call.1} parent=83 // pred_check_branch
          %593 = sbr.rel (%p591) target = $region88
        $region87: #{tpu_custom_call.1} parent=83 // pred_region
          %594 = dma.done [#allocation5], 16
        $region88: #{tpu_custom_call.1} parent=83 // pred_fallthru
          _
        // Predicated region
        $region89: #{tpu_custom_call.1} parent=83 // pred_check
          %p595 = pneg %p166
        $region90: #{tpu_custom_call.1} parent=83 // pred_check_branch
          %597 = sbr.rel (%p595) target = $region92
        $region91: #{tpu_custom_call.1} parent=83 // pred_region
          %598 = dma.done [#allocation3], 2304
        $region92: #{tpu_custom_call.1} parent=83 // pred_fallthru
          _
        // Predicated region
        $region93: #{tpu_custom_call.1} parent=83 // pred_check
          %p599 = pneg %p208
        $region94: #{tpu_custom_call.1} parent=83 // pred_check_branch
          %601 = sbr.rel (%p599) target = $region96
        $region95: #{tpu_custom_call.1} parent=83 // pred_region
          %602 = dma.done [#allocation8], 4608
        $region96: #{tpu_custom_call.1} parent=83 // pred_fallthru
          _
        // Predicated region
        $region97: #{tpu_custom_call.1} parent=83 // pred_check
          %p603 = pneg %p250
        $region98: #{tpu_custom_call.1} parent=83 // pred_check_branch
          %605 = sbr.rel (%p603) target = $region100
        $region99: #{tpu_custom_call.1} parent=83 // pred_region
          %606 = dma.done [#allocation8], 10496
        $region100: #{tpu_custom_call.1} parent=83 // pred_fallthru
          _
        // Predicated region
        $region101: #{tpu_custom_call.1} parent=83 // pred_check
          %p607 = pneg %p271
        $region102: #{tpu_custom_call.1} parent=83 // pred_check_branch
          %609 = sbr.rel (%p607) target = $region104
        $region103: #{tpu_custom_call.1} parent=83 // pred_region
          %610 = dma.done [#allocation11], 15744
        $region104: #{tpu_custom_call.1} parent=83 // pred_fallthru
          _
        // Predicated region
        $region105: #{tpu_custom_call.1} parent=83 // pred_check
          %p611 = pneg %p334
        $region106: #{tpu_custom_call.1} parent=83 // pred_check_branch
          %613 = sbr.rel (%p611) target = $region108
        $region107: #{tpu_custom_call.1} parent=83 // pred_region
          %614 = dma.done [#allocation11], 1664
        $region108: #{tpu_custom_call.1} parent=83 // pred_fallthru
          _
        %615 = sfence
        %p616 = pneg %p56
        %p617 = pneg %p53
        %p618 = scmp.lt.s32.totalorder %s40, 1
        %s619 = scalar_select %p618, %s40, 1
        %s620 = smul.addr %s619, 3
        %s621 = smul.addr %s620, 4
        %s622 = scalar_lea.vmem %s1, %s621
        %p623 = pneg %p82
        %p624 = pneg %p79
        %p625 = pneg %p103
        %p626 = pneg %p100
        %p627 = pneg %p124
        %p628 = pneg %p121
        %p629 = pneg %p145
        %p630 = pneg %p142
        %p631 = pneg %p166
        %p632 = pneg %p163
        %p633 = pneg %p187
        %p634 = pneg %p184
        %p635 = pneg %p208
        %p636 = pneg %p205
        %p637 = pneg %p229
        %p638 = pneg %p226
        %p639 = pneg %p250
        %p640 = pneg %p247
        %p641 = pneg %p271
        %p642 = pneg %p268
        %p643 = pneg %p292
        %p644 = pneg %p289
        %p645 = pneg %p313
        %p646 = pneg %p310
        %p647 = pneg %p334
        %p648 = pneg %p331
        %p649 = pneg %p355
        %p650 = pneg %p352
        %p651 = pneg %p376
        %p652 = pneg %p373
        %p653 = pneg %p402
        %p654 = pneg %p399
        %s655 = sand.u32 %s389, 1
        %s656 = scalar_lea.sflag [#allocation4], %s655
        %s657 = sand.u32 %s389, 1
        %s658 = smul.addr %s657, 16
        %s659 = scalar_lea.vmem [#allocation13], %s658
        %p660 = pneg %p428
        %p661 = pneg %p425
        %s662 = sand.u32 %s415, 1
        %s663 = scalar_lea.sflag [#allocation15], %s662
        %s664 = sand.u32 %s415, 1
        %s665 = smul.addr %s664, 16
        %s666 = scalar_lea.vmem [#allocation14], %s665
        %p667 = pneg %p454
        %p668 = pneg %p451
        %p669 = scmp.lt.s32.totalorder %s40, 1
        %s670 = scalar_select %p669, %s40, 1
        %s671 = smul.addr %s670, 4
        %s672 = smul.addr %s671, 8
        %s673 = scalar_lea.vmem %s18, %s672
        %p674 = scmp.lt.s32.totalorder %s40, 1
        %s675 = scalar_select %p674, %s40, 1
        %s676 = smul.addr %s675, 3
        %s677 = smul.addr %s676, 4
        %s678 = scalar_lea.vmem %s1, %s677
        %p679 = scmp.lt.s32.totalorder %s40, 1
        %s680 = scalar_select %p679, %s40, 1
        %s681 = smul.addr %s680, 4
        %s682 = smul.addr %s681, 8
        %s683 = scalar_lea.vmem %s18, %s682
        %v684 = vld [vmem:[%s678] sm:$0x77]
        %v685 = vld [vmem:[%s678 + $0x8] sm:$0x7]
        %v686 = vld [vmem:[%s2] sm:$0xff]
        %s687 = scalar_lea.vmem %s2, 8
        %v688 = vld [vmem:[%s687] sm:$0xff]
        %v691 = vcombine.high %v684, %v684
        %692 = vrot.lane.b32.xlu0 %v684, 127
        %v693 = vpop.permute.xlu0 %692
        %694 = vrot.lane.b32.xlu0 %v691, 127
        %v695 = vpop.permute.xlu0 %694
        %696 = vrot.lane.b32.xlu0 %v685, 127
        %v697 = vpop.permute.xlu0 %696
        %vm698 = vcmask 1039360
        %v699 = vsel %vm698, %v693, %v695
        %v700 = vsel %vm698, %v695, %v697
        %vm701 = vcmask 23552
        %v703 = vsel %vm701, %v688, 0
        %vm705 = vcmask 1042432
        %v706 = vsel %vm705, %v699, 0
        %v708 = vsel %vm705, %v700, 0
        %v710 = vsel %vm705, %v697, 0
        %712 = vmatprep.subr.mxu0 0.0
        %713 = vmatpush1.msra.mxu0 0.0
        %714 = vmatprep.subr.mxu0 0.0
        %715 = vmatpush1.msra.mxu0 0.0
        %716 = vmatprep.subr.mxu0 0.0
        %717 = vmatpush1.msra.mxu0 0.0
        %718 = vmatprep.subr.mxu0 0.0
        %719 = vmatpush1.msra.mxu0 0.0
        %720 = vmatprep.subr.mxu0 0.0
        %721 = vmatpush1.msra.mxu0 0.0
        %722 = vmatprep.subr.mxu0 0.0
        %723 = vmatpush1.msra.mxu0 0.0
        %724 = vmatprep.subr.mxu0 0.0
        %725 = vmatpush1.msra.mxu0 0.0
        %726 = vmatprep.subr.mxu0 0.0
        %727 = vmatpush1.msra.mxu0 0.0
        %728 = vmatprep.subr.mxu0 0.0
        %729 = vmatpush1.msra.mxu0 0.0
        %730 = vmatprep.subr.mxu0 0.0
        %731 = vmatpush1.msra.mxu0 0.0
        %732 = vmatprep.subr.mxu0 0.0
        %733 = vmatpush1.msra.mxu0 0.0
        %734 = vmatprep.subr.mxu0 0.0
        %735 = vmatpush1.msra.mxu0 0.0
        %736 = vmatprep.subr.mxu0 0.0
        %737 = vmatpush1.msra.mxu0 0.0
        %738 = vmatprep.subr.mxu0 0.0
        %739 = vmatpush1.msra.mxu0 0.0
        %740 = vmatprep.subr.mxu0 0.0
        %741 = vmatpush1.msra.mxu0 0.0
        %742 = vmatprep.subr.mxu0 %v708
        %743 = vmatpush1.msra.mxu0 %v706
        %744 = vmatprep.subr.mxu0 0.0
        %745 = vmatpush2.msra.mxu0 0.0
        %746 = vmatprep.subr.mxu0 0.0
        %747 = vmatpush2.msra.mxu0 0.0
        %748 = vmatprep.subr.mxu0 0.0
        %749 = vmatpush2.msra.mxu0 0.0
        %750 = vmatprep.subr.mxu0 0.0
        %751 = vmatpush2.msra.mxu0 0.0
        %752 = vmatprep.subr.mxu0 0.0
        %753 = vmatpush2.msra.mxu0 0.0
        %754 = vmatprep.subr.mxu0 0.0
        %755 = vmatpush2.msra.mxu0 0.0
        %756 = vmatprep.subr.mxu0 0.0
        %757 = vmatpush2.msra.mxu0 0.0
        %758 = vmatprep.subr.mxu0 0.0
        %759 = vmatpush2.msra.mxu0 0.0
        %760 = vmatprep.subr.mxu0 0.0
        %761 = vmatpush2.msra.mxu0 0.0
        %762 = vmatprep.subr.mxu0 0.0
        %763 = vmatpush2.msra.mxu0 0.0
        %764 = vmatprep.subr.mxu0 0.0
        %765 = vmatpush2.msra.mxu0 0.0
        %766 = vmatprep.subr.mxu0 0.0
        %767 = vmatpush2.msra.mxu0 0.0
        %768 = vmatprep.subr.mxu0 0.0
        %769 = vmatpush2.msra.mxu0 0.0
        %770 = vmatprep.subr.mxu0 0.0
        %771 = vmatpush2.msra.mxu0 0.0
        %772 = vmatprep.subr.mxu0 0.0
        %773 = vmatpush2.msra.mxu0 0.0
        %774 = vmatprep.subr.mxu0 0.0
        %775 = vmatpush2.msra.mxu0 0.0
        %776 = vmatprep.mubr.f32.mxu0 0.0
        %777 = vmatmul.mubr.f32.gmra.mxu0 %v703
        %v778 = vpop.f32.mrf.mxu0
        %v779 = vadd.f32 0.0, %v778
        %v780 = vpop.f32.mrf.mxu0
        %v781 = vadd.f32 0.0, %v780
        %782 = vdwg.mxu0
        %783 = vmatprep.subr.mxu0 0.0
        %784 = vmatpush1.msra.mxu0 0.0
        %785 = vmatprep.subr.mxu0 0.0
        %786 = vmatpush1.msra.mxu0 0.0
        %787 = vmatprep.subr.mxu0 0.0
        %788 = vmatpush1.msra.mxu0 0.0
        %789 = vmatprep.subr.mxu0 0.0
        %790 = vmatpush1.msra.mxu0 0.0
        %791 = vmatprep.subr.mxu0 0.0
        %792 = vmatpush1.msra.mxu0 0.0
        %793 = vmatprep.subr.mxu0 0.0
        %794 = vmatpush1.msra.mxu0 0.0
        %795 = vmatprep.subr.mxu0 0.0
        %796 = vmatpush1.msra.mxu0 0.0
        %797 = vmatprep.subr.mxu0 0.0
        %798 = vmatpush1.msra.mxu0 0.0
        %799 = vmatprep.subr.mxu0 0.0
        %800 = vmatpush1.msra.mxu0 0.0
        %801 = vmatprep.subr.mxu0 0.0
        %802 = vmatpush1.msra.mxu0 0.0
        %803 = vmatprep.subr.mxu0 0.0
        %804 = vmatpush1.msra.mxu0 0.0
        %805 = vmatprep.subr.mxu0 0.0
        %806 = vmatpush1.msra.mxu0 0.0
        %807 = vmatprep.subr.mxu0 0.0
        %808 = vmatpush1.msra.mxu0 0.0
        %809 = vmatprep.subr.mxu0 0.0
        %810 = vmatpush1.msra.mxu0 0.0
        %811 = vmatprep.subr.mxu0 0.0
        %812 = vmatpush1.msra.mxu0 0.0
        %813 = vmatprep.subr.mxu0 0.0
        %814 = vmatpush1.msra.mxu0 %v710
        %815 = vmatprep.subr.mxu0 0.0
        %816 = vmatpush2.msra.mxu0 0.0
        %817 = vmatprep.subr.mxu0 0.0
        %818 = vmatpush2.msra.mxu0 0.0
        %819 = vmatprep.subr.mxu0 0.0
        %820 = vmatpush2.msra.mxu0 0.0
        %821 = vmatprep.subr.mxu0 0.0
        %822 = vmatpush2.msra.mxu0 0.0
        %823 = vmatprep.subr.mxu0 0.0
        %824 = vmatpush2.msra.mxu0 0.0
        %825 = vmatprep.subr.mxu0 0.0
        %826 = vmatpush2.msra.mxu0 0.0
        %827 = vmatprep.subr.mxu0 0.0
        %828 = vmatpush2.msra.mxu0 0.0
        %829 = vmatprep.subr.mxu0 0.0
        %830 = vmatpush2.msra.mxu0 0.0
        %831 = vmatprep.subr.mxu0 0.0
        %832 = vmatpush2.msra.mxu0 0.0
        %833 = vmatprep.subr.mxu0 0.0
        %834 = vmatpush2.msra.mxu0 0.0
        %835 = vmatprep.subr.mxu0 0.0
        %836 = vmatpush2.msra.mxu0 0.0
        %837 = vmatprep.subr.mxu0 0.0
        %838 = vmatpush2.msra.mxu0 0.0
        %839 = vmatprep.subr.mxu0 0.0
        %840 = vmatpush2.msra.mxu0 0.0
        %841 = vmatprep.subr.mxu0 0.0
        %842 = vmatpush2.msra.mxu0 0.0
        %843 = vmatprep.subr.mxu0 0.0
        %844 = vmatpush2.msra.mxu0 0.0
        %845 = vmatprep.subr.mxu0 0.0
        %846 = vmatpush2.msra.mxu0 0.0
        %847 = vmatprep.mubr.f32.mxu0 0.0
        %848 = vmatmul.mubr.f32.gmra.mxu0 %v703
        %v849 = vpop.f32.mrf.mxu0
        %v850 = vadd.f32 0.0, %v849
        %v851 = vpop.f32.mrf.mxu0
        %852 = vdwg.mxu0
        %v854 = vsel %vm701, %v686, 0
        %v856 = vsel %vm705, %v684, 0
        %v858 = vsel %vm705, %v691, 0
        %v860 = vsel %vm705, %v685, 0
        %862 = vmatprep.subr.mxu0 0.0
        %863 = vmatpush1.msra.mxu0 0.0
        %864 = vmatprep.subr.mxu0 0.0
        %865 = vmatpush1.msra.mxu0 0.0
        %866 = vmatprep.subr.mxu0 0.0
        %867 = vmatpush1.msra.mxu0 0.0
        %868 = vmatprep.subr.mxu0 0.0
        %869 = vmatpush1.msra.mxu0 0.0
        %870 = vmatprep.subr.mxu0 0.0
        %871 = vmatpush1.msra.mxu0 0.0
        %872 = vmatprep.subr.mxu0 0.0
        %873 = vmatpush1.msra.mxu0 0.0
        %874 = vmatprep.subr.mxu0 0.0
        %875 = vmatpush1.msra.mxu0 0.0
        %876 = vmatprep.subr.mxu0 0.0
        %877 = vmatpush1.msra.mxu0 0.0
        %878 = vmatprep.subr.mxu0 0.0
        %879 = vmatpush1.msra.mxu0 0.0
        %880 = vmatprep.subr.mxu0 0.0
        %881 = vmatpush1.msra.mxu0 0.0
        %882 = vmatprep.subr.mxu0 0.0
        %883 = vmatpush1.msra.mxu0 0.0
        %884 = vmatprep.subr.mxu0 0.0
        %885 = vmatpush1.msra.mxu0 0.0
        %886 = vmatprep.subr.mxu0 0.0
        %887 = vmatpush1.msra.mxu0 0.0
        %888 = vmatprep.subr.mxu0 0.0
        %889 = vmatpush1.msra.mxu0 0.0
        %890 = vmatprep.subr.mxu0 0.0
        %891 = vmatpush1.msra.mxu0 0.0
        %892 = vmatprep.subr.mxu0 %v858
        %893 = vmatpush1.msra.mxu0 %v856
        %894 = vmatprep.subr.mxu0 0.0
        %895 = vmatpush2.msra.mxu0 0.0
        %896 = vmatprep.subr.mxu0 0.0
        %897 = vmatpush2.msra.mxu0 0.0
        %898 = vmatprep.subr.mxu0 0.0
        %899 = vmatpush2.msra.mxu0 0.0
        %900 = vmatprep.subr.mxu0 0.0
        %901 = vmatpush2.msra.mxu0 0.0
        %902 = vmatprep.subr.mxu0 0.0
        %903 = vmatpush2.msra.mxu0 0.0
        %904 = vmatprep.subr.mxu0 0.0
        %905 = vmatpush2.msra.mxu0 0.0
        %906 = vmatprep.subr.mxu0 0.0
        %907 = vmatpush2.msra.mxu0 0.0
        %908 = vmatprep.subr.mxu0 0.0
        %909 = vmatpush2.msra.mxu0 0.0
        %910 = vmatprep.subr.mxu0 0.0
        %911 = vmatpush2.msra.mxu0 0.0
        %912 = vmatprep.subr.mxu0 0.0
        %913 = vmatpush2.msra.mxu0 0.0
        %914 = vmatprep.subr.mxu0 0.0
        %915 = vmatpush2.msra.mxu0 0.0
        %916 = vmatprep.subr.mxu0 0.0
        %917 = vmatpush2.msra.mxu0 0.0
        %918 = vmatprep.subr.mxu0 0.0
        %919 = vmatpush2.msra.mxu0 0.0
        %920 = vmatprep.subr.mxu0 0.0
        %921 = vmatpush2.msra.mxu0 0.0
        %922 = vmatprep.subr.mxu0 0.0
        %923 = vmatpush2.msra.mxu0 0.0
        %924 = vmatprep.subr.mxu0 0.0
        %925 = vmatpush2.msra.mxu0 0.0
        %926 = vmatprep.mubr.f32.mxu0 0.0
        %927 = vmatmul.mubr.f32.gmra.mxu0 %v854
        %v928 = vpop.f32.mrf.mxu0
        %v929 = vadd.f32 %v779, %v928
        %v930 = vpop.f32.mrf.mxu0
        %v931 = vadd.f32 %v781, %v930
        %932 = vdwg.mxu0
        %933 = vmatprep.subr.mxu0 0.0
        %934 = vmatpush1.msra.mxu0 0.0
        %935 = vmatprep.subr.mxu0 0.0
        %936 = vmatpush1.msra.mxu0 0.0
        %937 = vmatprep.subr.mxu0 0.0
        %938 = vmatpush1.msra.mxu0 0.0
        %939 = vmatprep.subr.mxu0 0.0
        %940 = vmatpush1.msra.mxu0 0.0
        %941 = vmatprep.subr.mxu0 0.0
        %942 = vmatpush1.msra.mxu0 0.0
        %943 = vmatprep.subr.mxu0 0.0
        %944 = vmatpush1.msra.mxu0 0.0
        %945 = vmatprep.subr.mxu0 0.0
        %946 = vmatpush1.msra.mxu0 0.0
        %947 = vmatprep.subr.mxu0 0.0
        %948 = vmatpush1.msra.mxu0 0.0
        %949 = vmatprep.subr.mxu0 0.0
        %950 = vmatpush1.msra.mxu0 0.0
        %951 = vmatprep.subr.mxu0 0.0
        %952 = vmatpush1.msra.mxu0 0.0
        %953 = vmatprep.subr.mxu0 0.0
        %954 = vmatpush1.msra.mxu0 0.0
        %955 = vmatprep.subr.mxu0 0.0
        %956 = vmatpush1.msra.mxu0 0.0
        %957 = vmatprep.subr.mxu0 0.0
        %958 = vmatpush1.msra.mxu0 0.0
        %959 = vmatprep.subr.mxu0 0.0
        %960 = vmatpush1.msra.mxu0 0.0
        %961 = vmatprep.subr.mxu0 0.0
        %962 = vmatpush1.msra.mxu0 0.0
        %963 = vmatprep.subr.mxu0 0.0
        %964 = vmatpush1.msra.mxu0 %v860
        %965 = vmatprep.subr.mxu0 0.0
        %966 = vmatpush2.msra.mxu0 0.0
        %967 = vmatprep.subr.mxu0 0.0
        %968 = vmatpush2.msra.mxu0 0.0
        %969 = vmatprep.subr.mxu0 0.0
        %970 = vmatpush2.msra.mxu0 0.0
        %971 = vmatprep.subr.mxu0 0.0
        %972 = vmatpush2.msra.mxu0 0.0
        %973 = vmatprep.subr.mxu0 0.0
        %974 = vmatpush2.msra.mxu0 0.0
        %975 = vmatprep.subr.mxu0 0.0
        %976 = vmatpush2.msra.mxu0 0.0
        %977 = vmatprep.subr.mxu0 0.0
        %978 = vmatpush2.msra.mxu0 0.0
        %979 = vmatprep.subr.mxu0 0.0
        %980 = vmatpush2.msra.mxu0 0.0
        %981 = vmatprep.subr.mxu0 0.0
        %982 = vmatpush2.msra.mxu0 0.0
        %983 = vmatprep.subr.mxu0 0.0
        %984 = vmatpush2.msra.mxu0 0.0
        %985 = vmatprep.subr.mxu0 0.0
        %986 = vmatpush2.msra.mxu0 0.0
        %987 = vmatprep.subr.mxu0 0.0
        %988 = vmatpush2.msra.mxu0 0.0
        %989 = vmatprep.subr.mxu0 0.0
        %990 = vmatpush2.msra.mxu0 0.0
        %991 = vmatprep.subr.mxu0 0.0
        %992 = vmatpush2.msra.mxu0 0.0
        %993 = vmatprep.subr.mxu0 0.0
        %994 = vmatpush2.msra.mxu0 0.0
        %995 = vmatprep.subr.mxu0 0.0
        %996 = vmatpush2.msra.mxu0 0.0
        %997 = vmatprep.mubr.f32.mxu0 0.0
        %998 = vmatmul.mubr.f32.gmra.mxu0 %v854
        %v999 = vpop.f32.mrf.mxu0
        %v1000 = vadd.f32 %v850, %v999
        %v1001 = vpop.f32.mrf.mxu0
        %1002 = vdwg.mxu0
        %s1003 = scalar_lea.vmem %s2, 16
        %v1004 = vld [vmem:[%s1003] sm:$0xff]
        %1005 = vrot.lane.b32.xlu0 %v684, 126
        %v1006 = vpop.permute.xlu0 %1005
        %1007 = vrot.lane.b32.xlu0 %v691, 126
        %v1008 = vpop.permute.xlu0 %1007
        %1009 = vrot.lane.b32.xlu0 %v685, 126
        %v1010 = vpop.permute.xlu0 %1009
        %vm1011 = vcmask 1031168
        %v1012 = vsel %vm1011, %v1006, %v1008
        %v1013 = vsel %vm1011, %v1008, %v1010
        %v1015 = vsel %vm701, %v1004, 0
        %v1017 = vsel %vm705, %v1012, 0
        %v1019 = vsel %vm705, %v1013, 0
        %v1021 = vsel %vm705, %v1010, 0
        %1023 = vmatprep.subr.mxu0 0.0
        %1024 = vmatpush1.msra.mxu0 0.0
        %1025 = vmatprep.subr.mxu0 0.0
        %1026 = vmatpush1.msra.mxu0 0.0
        %1027 = vmatprep.subr.mxu0 0.0
        %1028 = vmatpush1.msra.mxu0 0.0
        %1029 = vmatprep.subr.mxu0 0.0
        %1030 = vmatpush1.msra.mxu0 0.0
        %1031 = vmatprep.subr.mxu0 0.0
        %1032 = vmatpush1.msra.mxu0 0.0
        %1033 = vmatprep.subr.mxu0 0.0
        %1034 = vmatpush1.msra.mxu0 0.0
        %1035 = vmatprep.subr.mxu0 0.0
        %1036 = vmatpush1.msra.mxu0 0.0
        %1037 = vmatprep.subr.mxu0 0.0
        %1038 = vmatpush1.msra.mxu0 0.0
        %1039 = vmatprep.subr.mxu0 0.0
        %1040 = vmatpush1.msra.mxu0 0.0
        %1041 = vmatprep.subr.mxu0 0.0
        %1042 = vmatpush1.msra.mxu0 0.0
        %1043 = vmatprep.subr.mxu0 0.0
        %1044 = vmatpush1.msra.mxu0 0.0
        %1045 = vmatprep.subr.mxu0 0.0
        %1046 = vmatpush1.msra.mxu0 0.0
        %1047 = vmatprep.subr.mxu0 0.0
        %1048 = vmatpush1.msra.mxu0 0.0
        %1049 = vmatprep.subr.mxu0 0.0
        %1050 = vmatpush1.msra.mxu0 0.0
        %1051 = vmatprep.subr.mxu0 0.0
        %1052 = vmatpush1.msra.mxu0 0.0
        %1053 = vmatprep.subr.mxu0 %v1019
        %1054 = vmatpush1.msra.mxu0 %v1017
        %1055 = vmatprep.subr.mxu0 0.0
        %1056 = vmatpush2.msra.mxu0 0.0
        %1057 = vmatprep.subr.mxu0 0.0
        %1058 = vmatpush2.msra.mxu0 0.0
        %1059 = vmatprep.subr.mxu0 0.0
        %1060 = vmatpush2.msra.mxu0 0.0
        %1061 = vmatprep.subr.mxu0 0.0
        %1062 = vmatpush2.msra.mxu0 0.0
        %1063 = vmatprep.subr.mxu0 0.0
        %1064 = vmatpush2.msra.mxu0 0.0
        %1065 = vmatprep.subr.mxu0 0.0
        %1066 = vmatpush2.msra.mxu0 0.0
        %1067 = vmatprep.subr.mxu0 0.0
        %1068 = vmatpush2.msra.mxu0 0.0
        %1069 = vmatprep.subr.mxu0 0.0
        %1070 = vmatpush2.msra.mxu0 0.0
        %1071 = vmatprep.subr.mxu0 0.0
        %1072 = vmatpush2.msra.mxu0 0.0
        %1073 = vmatprep.subr.mxu0 0.0
        %1074 = vmatpush2.msra.mxu0 0.0
        %1075 = vmatprep.subr.mxu0 0.0
        %1076 = vmatpush2.msra.mxu0 0.0
        %1077 = vmatprep.subr.mxu0 0.0
        %1078 = vmatpush2.msra.mxu0 0.0
        %1079 = vmatprep.subr.mxu0 0.0
        %1080 = vmatpush2.msra.mxu0 0.0
        %1081 = vmatprep.subr.mxu0 0.0
        %1082 = vmatpush2.msra.mxu0 0.0
        %1083 = vmatprep.subr.mxu0 0.0
        %1084 = vmatpush2.msra.mxu0 0.0
        %1085 = vmatprep.subr.mxu0 0.0
        %1086 = vmatpush2.msra.mxu0 0.0
        %1087 = vmatprep.mubr.f32.mxu0 0.0
        %1088 = vmatmul.mubr.f32.gmra.mxu0 %v1015
        %v1089 = vpop.f32.mrf.mxu0
        %v1090 = vadd.f32 0.0, %v1089
        %v1091 = vpop.f32.mrf.mxu0
        %v1092 = vadd.f32 0.0, %v1091
        %1093 = vdwg.mxu0
        %1094 = vmatprep.subr.mxu0 0.0
        %1095 = vmatpush1.msra.mxu0 0.0
        %1096 = vmatprep.subr.mxu0 0.0
        %1097 = vmatpush1.msra.mxu0 0.0
        %1098 = vmatprep.subr.mxu0 0.0
        %1099 = vmatpush1.msra.mxu0 0.0
        %1100 = vmatprep.subr.mxu0 0.0
        %1101 = vmatpush1.msra.mxu0 0.0
        %1102 = vmatprep.subr.mxu0 0.0
        %1103 = vmatpush1.msra.mxu0 0.0
        %1104 = vmatprep.subr.mxu0 0.0
        %1105 = vmatpush1.msra.mxu0 0.0
        %1106 = vmatprep.subr.mxu0 0.0
        %1107 = vmatpush1.msra.mxu0 0.0
        %1108 = vmatprep.subr.mxu0 0.0
        %1109 = vmatpush1.msra.mxu0 0.0
        %1110 = vmatprep.subr.mxu0 0.0
        %1111 = vmatpush1.msra.mxu0 0.0
        %1112 = vmatprep.subr.mxu0 0.0
        %1113 = vmatpush1.msra.mxu0 0.0
        %1114 = vmatprep.subr.mxu0 0.0
        %1115 = vmatpush1.msra.mxu0 0.0
        %1116 = vmatprep.subr.mxu0 0.0
        %1117 = vmatpush1.msra.mxu0 0.0
        %1118 = vmatprep.subr.mxu0 0.0
        %1119 = vmatpush1.msra.mxu0 0.0
        %1120 = vmatprep.subr.mxu0 0.0
        %1121 = vmatpush1.msra.mxu0 0.0
        %1122 = vmatprep.subr.mxu0 0.0
        %1123 = vmatpush1.msra.mxu0 0.0
        %1124 = vmatprep.subr.mxu0 0.0
        %1125 = vmatpush1.msra.mxu0 %v1021
        %1126 = vmatprep.subr.mxu0 0.0
        %1127 = vmatpush2.msra.mxu0 0.0
        %1128 = vmatprep.subr.mxu0 0.0
        %1129 = vmatpush2.msra.mxu0 0.0
        %1130 = vmatprep.subr.mxu0 0.0
        %1131 = vmatpush2.msra.mxu0 0.0
        %1132 = vmatprep.subr.mxu0 0.0
        %1133 = vmatpush2.msra.mxu0 0.0
        %1134 = vmatprep.subr.mxu0 0.0
        %1135 = vmatpush2.msra.mxu0 0.0
        %1136 = vmatprep.subr.mxu0 0.0
        %1137 = vmatpush2.msra.mxu0 0.0
        %1138 = vmatprep.subr.mxu0 0.0
        %1139 = vmatpush2.msra.mxu0 0.0
        %1140 = vmatprep.subr.mxu0 0.0
        %1141 = vmatpush2.msra.mxu0 0.0
        %1142 = vmatprep.subr.mxu0 0.0
        %1143 = vmatpush2.msra.mxu0 0.0
        %1144 = vmatprep.subr.mxu0 0.0
        %1145 = vmatpush2.msra.mxu0 0.0
        %1146 = vmatprep.subr.mxu0 0.0
        %1147 = vmatpush2.msra.mxu0 0.0
        %1148 = vmatprep.subr.mxu0 0.0
        %1149 = vmatpush2.msra.mxu0 0.0
        %1150 = vmatprep.subr.mxu0 0.0
        %1151 = vmatpush2.msra.mxu0 0.0
        %1152 = vmatprep.subr.mxu0 0.0
        %1153 = vmatpush2.msra.mxu0 0.0
        %1154 = vmatprep.subr.mxu0 0.0
        %1155 = vmatpush2.msra.mxu0 0.0
        %1156 = vmatprep.subr.mxu0 0.0
        %1157 = vmatpush2.msra.mxu0 0.0
        %1158 = vmatprep.mubr.f32.mxu0 0.0
        %1159 = vmatmul.mubr.f32.gmra.mxu0 %v1015
        %v1160 = vpop.f32.mrf.mxu0
        %v1161 = vadd.f32 0.0, %v1160
        %v1162 = vpop.f32.mrf.mxu0
        %1163 = vdwg.mxu0
        %v1164 = vadd.f32 %v929, %v1090
        %v1165 = vadd.f32 %v931, %v1092
        %v1166 = vadd.f32 %v1000, %v1161
        %s1167 = scalar_lea.vmem %s2, 24
        %v1168 = vld [vmem:[%s1167] sm:$0xff]
        %1169 = vrot.lane.b32.xlu0 %v684, 110
        %v1170 = vpop.permute.xlu0 %1169
        %1171 = vrot.lane.b32.xlu0 %v691, 110
        %v1172 = vpop.permute.xlu0 %1171
        %1173 = vrot.lane.b32.xlu0 %v685, 110
        %v1174 = vpop.permute.xlu0 %1173
        %vm1175 = vcmask 900096
        %v1176 = vsel %vm1175, %v1170, %v1172
        %v1177 = vsel %vm1175, %v1172, %v1174
        %v1179 = vsel %vm701, %v1168, 0
        %v1181 = vsel %vm705, %v1176, 0
        %v1183 = vsel %vm705, %v1177, 0
        %v1185 = vsel %vm705, %v1174, 0
        %1187 = vmatprep.subr.mxu0 0.0
        %1188 = vmatpush1.msra.mxu0 0.0
        %1189 = vmatprep.subr.mxu0 0.0
        %1190 = vmatpush1.msra.mxu0 0.0
        %1191 = vmatprep.subr.mxu0 0.0
        %1192 = vmatpush1.msra.mxu0 0.0
        %1193 = vmatprep.subr.mxu0 0.0
        %1194 = vmatpush1.msra.mxu0 0.0
        %1195 = vmatprep.subr.mxu0 0.0
        %1196 = vmatpush1.msra.mxu0 0.0
        %1197 = vmatprep.subr.mxu0 0.0
        %1198 = vmatpush1.msra.mxu0 0.0
        %1199 = vmatprep.subr.mxu0 0.0
        %1200 = vmatpush1.msra.mxu0 0.0
        %1201 = vmatprep.subr.mxu0 0.0
        %1202 = vmatpush1.msra.mxu0 0.0
        %1203 = vmatprep.subr.mxu0 0.0
        %1204 = vmatpush1.msra.mxu0 0.0
        %1205 = vmatprep.subr.mxu0 0.0
        %1206 = vmatpush1.msra.mxu0 0.0
        %1207 = vmatprep.subr.mxu0 0.0
        %1208 = vmatpush1.msra.mxu0 0.0
        %1209 = vmatprep.subr.mxu0 0.0
        %1210 = vmatpush1.msra.mxu0 0.0
        %1211 = vmatprep.subr.mxu0 0.0
        %1212 = vmatpush1.msra.mxu0 0.0
        %1213 = vmatprep.subr.mxu0 0.0
        %1214 = vmatpush1.msra.mxu0 0.0
        %1215 = vmatprep.subr.mxu0 0.0
        %1216 = vmatpush1.msra.mxu0 0.0
        %1217 = vmatprep.subr.mxu0 %v1183
        %1218 = vmatpush1.msra.mxu0 %v1181
        %1219 = vmatprep.subr.mxu0 0.0
        %1220 = vmatpush2.msra.mxu0 0.0
        %1221 = vmatprep.subr.mxu0 0.0
        %1222 = vmatpush2.msra.mxu0 0.0
        %1223 = vmatprep.subr.mxu0 0.0
        %1224 = vmatpush2.msra.mxu0 0.0
        %1225 = vmatprep.subr.mxu0 0.0
        %1226 = vmatpush2.msra.mxu0 0.0
        %1227 = vmatprep.subr.mxu0 0.0
        %1228 = vmatpush2.msra.mxu0 0.0
        %1229 = vmatprep.subr.mxu0 0.0
        %1230 = vmatpush2.msra.mxu0 0.0
        %1231 = vmatprep.subr.mxu0 0.0
        %1232 = vmatpush2.msra.mxu0 0.0
        %1233 = vmatprep.subr.mxu0 0.0
        %1234 = vmatpush2.msra.mxu0 0.0
        %1235 = vmatprep.subr.mxu0 0.0
        %1236 = vmatpush2.msra.mxu0 0.0
        %1237 = vmatprep.subr.mxu0 0.0
        %1238 = vmatpush2.msra.mxu0 0.0
        %1239 = vmatprep.subr.mxu0 0.0
        %1240 = vmatpush2.msra.mxu0 0.0
        %1241 = vmatprep.subr.mxu0 0.0
        %1242 = vmatpush2.msra.mxu0 0.0
        %1243 = vmatprep.subr.mxu0 0.0
        %1244 = vmatpush2.msra.mxu0 0.0
        %1245 = vmatprep.subr.mxu0 0.0
        %1246 = vmatpush2.msra.mxu0 0.0
        %1247 = vmatprep.subr.mxu0 0.0
        %1248 = vmatpush2.msra.mxu0 0.0
        %1249 = vmatprep.subr.mxu0 0.0
        %1250 = vmatpush2.msra.mxu0 0.0
        %1251 = vmatprep.mubr.f32.mxu0 0.0
        %1252 = vmatmul.mubr.f32.gmra.mxu0 %v1179
        %v1253 = vpop.f32.mrf.mxu0
        %v1254 = vadd.f32 0.0, %v1253
        %v1255 = vpop.f32.mrf.mxu0
        %v1256 = vadd.f32 0.0, %v1255
        %1257 = vdwg.mxu0
        %1258 = vmatprep.subr.mxu0 0.0
        %1259 = vmatpush1.msra.mxu0 0.0
        %1260 = vmatprep.subr.mxu0 0.0
        %1261 = vmatpush1.msra.mxu0 0.0
        %1262 = vmatprep.subr.mxu0 0.0
        %1263 = vmatpush1.msra.mxu0 0.0
        %1264 = vmatprep.subr.mxu0 0.0
        %1265 = vmatpush1.msra.mxu0 0.0
        %1266 = vmatprep.subr.mxu0 0.0
        %1267 = vmatpush1.msra.mxu0 0.0
        %1268 = vmatprep.subr.mxu0 0.0
        %1269 = vmatpush1.msra.mxu0 0.0
        %1270 = vmatprep.subr.mxu0 0.0
        %1271 = vmatpush1.msra.mxu0 0.0
        %1272 = vmatprep.subr.mxu0 0.0
        %1273 = vmatpush1.msra.mxu0 0.0
        %1274 = vmatprep.subr.mxu0 0.0
        %1275 = vmatpush1.msra.mxu0 0.0
        %1276 = vmatprep.subr.mxu0 0.0
        %1277 = vmatpush1.msra.mxu0 0.0
        %1278 = vmatprep.subr.mxu0 0.0
        %1279 = vmatpush1.msra.mxu0 0.0
        %1280 = vmatprep.subr.mxu0 0.0
        %1281 = vmatpush1.msra.mxu0 0.0
        %1282 = vmatprep.subr.mxu0 0.0
        %1283 = vmatpush1.msra.mxu0 0.0
        %1284 = vmatprep.subr.mxu0 0.0
        %1285 = vmatpush1.msra.mxu0 0.0
        %1286 = vmatprep.subr.mxu0 0.0
        %1287 = vmatpush1.msra.mxu0 0.0
        %1288 = vmatprep.subr.mxu0 0.0
        %1289 = vmatpush1.msra.mxu0 %v1185
        %1290 = vmatprep.subr.mxu0 0.0
        %1291 = vmatpush2.msra.mxu0 0.0
        %1292 = vmatprep.subr.mxu0 0.0
        %1293 = vmatpush2.msra.mxu0 0.0
        %1294 = vmatprep.subr.mxu0 0.0
        %1295 = vmatpush2.msra.mxu0 0.0
        %1296 = vmatprep.subr.mxu0 0.0
        %1297 = vmatpush2.msra.mxu0 0.0
        %1298 = vmatprep.subr.mxu0 0.0
        %1299 = vmatpush2.msra.mxu0 0.0
        %1300 = vmatprep.subr.mxu0 0.0
        %1301 = vmatpush2.msra.mxu0 0.0
        %1302 = vmatprep.subr.mxu0 0.0
        %1303 = vmatpush2.msra.mxu0 0.0
        %1304 = vmatprep.subr.mxu0 0.0
        %1305 = vmatpush2.msra.mxu0 0.0
        %1306 = vmatprep.subr.mxu0 0.0
        %1307 = vmatpush2.msra.mxu0 0.0
        %1308 = vmatprep.subr.mxu0 0.0
        %1309 = vmatpush2.msra.mxu0 0.0
        %1310 = vmatprep.subr.mxu0 0.0
        %1311 = vmatpush2.msra.mxu0 0.0
        %1312 = vmatprep.subr.mxu0 0.0
        %1313 = vmatpush2.msra.mxu0 0.0
        %1314 = vmatprep.subr.mxu0 0.0
        %1315 = vmatpush2.msra.mxu0 0.0
        %1316 = vmatprep.subr.mxu0 0.0
        %1317 = vmatpush2.msra.mxu0 0.0
        %1318 = vmatprep.subr.mxu0 0.0
        %1319 = vmatpush2.msra.mxu0 0.0
        %1320 = vmatprep.subr.mxu0 0.0
        %1321 = vmatpush2.msra.mxu0 0.0
        %1322 = vmatprep.mubr.f32.mxu0 0.0
        %1323 = vmatmul.mubr.f32.gmra.mxu0 %v1179
        %v1324 = vpop.f32.mrf.mxu0
        %v1325 = vadd.f32 0.0, %v1324
        %v1326 = vpop.f32.mrf.mxu0
        %1327 = vdwg.mxu0
        %v1328 = vadd.f32 %v1164, %v1254
        %v1329 = vadd.f32 %v1165, %v1256
        %v1330 = vadd.f32 %v1166, %v1325
        %s1331 = scalar_lea.vmem %s2, 32
        %v1332 = vld [vmem:[%s1331] sm:$0xff]
        %1333 = vrot.lane.b32.xlu0 %v684, 109
        %v1334 = vpop.permute.xlu0 %1333
        %1335 = vrot.lane.b32.xlu0 %v691, 109
        %v1336 = vpop.permute.xlu0 %1335
        %1337 = vrot.lane.b32.xlu0 %v685, 109
        %v1338 = vpop.permute.xlu0 %1337
        %vm1339 = vcmask 891904
        %v1340 = vsel %vm1339, %v1334, %v1336
        %v1341 = vsel %vm1339, %v1336, %v1338
        %v1343 = vsel %vm701, %v1332, 0
        %v1345 = vsel %vm705, %v1340, 0
        %v1347 = vsel %vm705, %v1341, 0
        %v1349 = vsel %vm705, %v1338, 0
        %1351 = vmatprep.subr.mxu0 0.0
        %1352 = vmatpush1.msra.mxu0 0.0
        %1353 = vmatprep.subr.mxu0 0.0
        %1354 = vmatpush1.msra.mxu0 0.0
        %1355 = vmatprep.subr.mxu0 0.0
        %1356 = vmatpush1.msra.mxu0 0.0
        %1357 = vmatprep.subr.mxu0 0.0
        %1358 = vmatpush1.msra.mxu0 0.0
        %1359 = vmatprep.subr.mxu0 0.0
        %1360 = vmatpush1.msra.mxu0 0.0
        %1361 = vmatprep.subr.mxu0 0.0
        %1362 = vmatpush1.msra.mxu0 0.0
        %1363 = vmatprep.subr.mxu0 0.0
        %1364 = vmatpush1.msra.mxu0 0.0
        %1365 = vmatprep.subr.mxu0 0.0
        %1366 = vmatpush1.msra.mxu0 0.0
        %1367 = vmatprep.subr.mxu0 0.0
        %1368 = vmatpush1.msra.mxu0 0.0
        %1369 = vmatprep.subr.mxu0 0.0
        %1370 = vmatpush1.msra.mxu0 0.0
        %1371 = vmatprep.subr.mxu0 0.0
        %1372 = vmatpush1.msra.mxu0 0.0
        %1373 = vmatprep.subr.mxu0 0.0
        %1374 = vmatpush1.msra.mxu0 0.0
        %1375 = vmatprep.subr.mxu0 0.0
        %1376 = vmatpush1.msra.mxu0 0.0
        %1377 = vmatprep.subr.mxu0 0.0
        %1378 = vmatpush1.msra.mxu0 0.0
        %1379 = vmatprep.subr.mxu0 0.0
        %1380 = vmatpush1.msra.mxu0 0.0
        %1381 = vmatprep.subr.mxu0 %v1347
        %1382 = vmatpush1.msra.mxu0 %v1345
        %1383 = vmatprep.subr.mxu0 0.0
        %1384 = vmatpush2.msra.mxu0 0.0
        %1385 = vmatprep.subr.mxu0 0.0
        %1386 = vmatpush2.msra.mxu0 0.0
        %1387 = vmatprep.subr.mxu0 0.0
        %1388 = vmatpush2.msra.mxu0 0.0
        %1389 = vmatprep.subr.mxu0 0.0
        %1390 = vmatpush2.msra.mxu0 0.0
        %1391 = vmatprep.subr.mxu0 0.0
        %1392 = vmatpush2.msra.mxu0 0.0
        %1393 = vmatprep.subr.mxu0 0.0
        %1394 = vmatpush2.msra.mxu0 0.0
        %1395 = vmatprep.subr.mxu0 0.0
        %1396 = vmatpush2.msra.mxu0 0.0
        %1397 = vmatprep.subr.mxu0 0.0
        %1398 = vmatpush2.msra.mxu0 0.0
        %1399 = vmatprep.subr.mxu0 0.0
        %1400 = vmatpush2.msra.mxu0 0.0
        %1401 = vmatprep.subr.mxu0 0.0
        %1402 = vmatpush2.msra.mxu0 0.0
        %1403 = vmatprep.subr.mxu0 0.0
        %1404 = vmatpush2.msra.mxu0 0.0
        %1405 = vmatprep.subr.mxu0 0.0
        %1406 = vmatpush2.msra.mxu0 0.0
        %1407 = vmatprep.subr.mxu0 0.0
        %1408 = vmatpush2.msra.mxu0 0.0
        %1409 = vmatprep.subr.mxu0 0.0
        %1410 = vmatpush2.msra.mxu0 0.0
        %1411 = vmatprep.subr.mxu0 0.0
        %1412 = vmatpush2.msra.mxu0 0.0
        %1413 = vmatprep.subr.mxu0 0.0
        %1414 = vmatpush2.msra.mxu0 0.0
        %1415 = vmatprep.mubr.f32.mxu0 0.0
        %1416 = vmatmul.mubr.f32.gmra.mxu0 %v1343
        %v1417 = vpop.f32.mrf.mxu0
        %v1418 = vadd.f32 0.0, %v1417
        %v1419 = vpop.f32.mrf.mxu0
        %v1420 = vadd.f32 0.0, %v1419
        %1421 = vdwg.mxu0
        %1422 = vmatprep.subr.mxu0 0.0
        %1423 = vmatpush1.msra.mxu0 0.0
        %1424 = vmatprep.subr.mxu0 0.0
        %1425 = vmatpush1.msra.mxu0 0.0
        %1426 = vmatprep.subr.mxu0 0.0
        %1427 = vmatpush1.msra.mxu0 0.0
        %1428 = vmatprep.subr.mxu0 0.0
        %1429 = vmatpush1.msra.mxu0 0.0
        %1430 = vmatprep.subr.mxu0 0.0
        %1431 = vmatpush1.msra.mxu0 0.0
        %1432 = vmatprep.subr.mxu0 0.0
        %1433 = vmatpush1.msra.mxu0 0.0
        %1434 = vmatprep.subr.mxu0 0.0
        %1435 = vmatpush1.msra.mxu0 0.0
        %1436 = vmatprep.subr.mxu0 0.0
        %1437 = vmatpush1.msra.mxu0 0.0
        %1438 = vmatprep.subr.mxu0 0.0
        %1439 = vmatpush1.msra.mxu0 0.0
        %1440 = vmatprep.subr.mxu0 0.0
        %1441 = vmatpush1.msra.mxu0 0.0
        %1442 = vmatprep.subr.mxu0 0.0
        %1443 = vmatpush1.msra.mxu0 0.0
        %1444 = vmatprep.subr.mxu0 0.0
        %1445 = vmatpush1.msra.mxu0 0.0
        %1446 = vmatprep.subr.mxu0 0.0
        %1447 = vmatpush1.msra.mxu0 0.0
        %1448 = vmatprep.subr.mxu0 0.0
        %1449 = vmatpush1.msra.mxu0 0.0
        %1450 = vmatprep.subr.mxu0 0.0
        %1451 = vmatpush1.msra.mxu0 0.0
        %1452 = vmatprep.subr.mxu0 0.0
        %1453 = vmatpush1.msra.mxu0 %v1349
        %1454 = vmatprep.subr.mxu0 0.0
        %1455 = vmatpush2.msra.mxu0 0.0
        %1456 = vmatprep.subr.mxu0 0.0
        %1457 = vmatpush2.msra.mxu0 0.0
        %1458 = vmatprep.subr.mxu0 0.0
        %1459 = vmatpush2.msra.mxu0 0.0
        %1460 = vmatprep.subr.mxu0 0.0
        %1461 = vmatpush2.msra.mxu0 0.0
        %1462 = vmatprep.subr.mxu0 0.0
        %1463 = vmatpush2.msra.mxu0 0.0
        %1464 = vmatprep.subr.mxu0 0.0
        %1465 = vmatpush2.msra.mxu0 0.0
        %1466 = vmatprep.subr.mxu0 0.0
        %1467 = vmatpush2.msra.mxu0 0.0
        %1468 = vmatprep.subr.mxu0 0.0
        %1469 = vmatpush2.msra.mxu0 0.0
        %1470 = vmatprep.subr.mxu0 0.0
        %1471 = vmatpush2.msra.mxu0 0.0
        %1472 = vmatprep.subr.mxu0 0.0
        %1473 = vmatpush2.msra.mxu0 0.0
        %1474 = vmatprep.subr.mxu0 0.0
        %1475 = vmatpush2.msra.mxu0 0.0
        %1476 = vmatprep.subr.mxu0 0.0
        %1477 = vmatpush2.msra.mxu0 0.0
        %1478 = vmatprep.subr.mxu0 0.0
        %1479 = vmatpush2.msra.mxu0 0.0
        %1480 = vmatprep.subr.mxu0 0.0
        %1481 = vmatpush2.msra.mxu0 0.0
        %1482 = vmatprep.subr.mxu0 0.0
        %1483 = vmatpush2.msra.mxu0 0.0
        %1484 = vmatprep.subr.mxu0 0.0
        %1485 = vmatpush2.msra.mxu0 0.0
        %1486 = vmatprep.mubr.f32.mxu0 0.0
        %1487 = vmatmul.mubr.f32.gmra.mxu0 %v1343
        %v1488 = vpop.f32.mrf.mxu0
        %v1489 = vadd.f32 0.0, %v1488
        %v1490 = vpop.f32.mrf.mxu0
        %1491 = vdwg.mxu0
        %v1492 = vadd.f32 %v1328, %v1418
        %v1493 = vadd.f32 %v1329, %v1420
        %v1494 = vadd.f32 %v1330, %v1489
        %s1495 = scalar_lea.vmem %s2, 40
        %v1496 = vld [vmem:[%s1495] sm:$0xff]
        %1497 = vrot.lane.b32.xlu0 %v684, 108
        %v1498 = vpop.permute.xlu0 %1497
        %1499 = vrot.lane.b32.xlu0 %v691, 108
        %v1500 = vpop.permute.xlu0 %1499
        %1501 = vrot.lane.b32.xlu0 %v685, 108
        %v1502 = vpop.permute.xlu0 %1501
        %vm1503 = vcmask 883712
        %v1504 = vsel %vm1503, %v1498, %v1500
        %v1505 = vsel %vm1503, %v1500, %v1502
        %v1507 = vsel %vm701, %v1496, 0
        %v1509 = vsel %vm705, %v1504, 0
        %v1511 = vsel %vm705, %v1505, 0
        %v1513 = vsel %vm705, %v1502, 0
        %1515 = vmatprep.subr.mxu0 0.0
        %1516 = vmatpush1.msra.mxu0 0.0
        %1517 = vmatprep.subr.mxu0 0.0
        %1518 = vmatpush1.msra.mxu0 0.0
        %1519 = vmatprep.subr.mxu0 0.0
        %1520 = vmatpush1.msra.mxu0 0.0
        %1521 = vmatprep.subr.mxu0 0.0
        %1522 = vmatpush1.msra.mxu0 0.0
        %1523 = vmatprep.subr.mxu0 0.0
        %1524 = vmatpush1.msra.mxu0 0.0
        %1525 = vmatprep.subr.mxu0 0.0
        %1526 = vmatpush1.msra.mxu0 0.0
        %1527 = vmatprep.subr.mxu0 0.0
        %1528 = vmatpush1.msra.mxu0 0.0
        %1529 = vmatprep.subr.mxu0 0.0
        %1530 = vmatpush1.msra.mxu0 0.0
        %1531 = vmatprep.subr.mxu0 0.0
        %1532 = vmatpush1.msra.mxu0 0.0
        %1533 = vmatprep.subr.mxu0 0.0
        %1534 = vmatpush1.msra.mxu0 0.0
        %1535 = vmatprep.subr.mxu0 0.0
        %1536 = vmatpush1.msra.mxu0 0.0
        %1537 = vmatprep.subr.mxu0 0.0
        %1538 = vmatpush1.msra.mxu0 0.0
        %1539 = vmatprep.subr.mxu0 0.0
        %1540 = vmatpush1.msra.mxu0 0.0
        %1541 = vmatprep.subr.mxu0 0.0
        %1542 = vmatpush1.msra.mxu0 0.0
        %1543 = vmatprep.subr.mxu0 0.0
        %1544 = vmatpush1.msra.mxu0 0.0
        %1545 = vmatprep.subr.mxu0 %v1511
        %1546 = vmatpush1.msra.mxu0 %v1509
        %1547 = vmatprep.subr.mxu0 0.0
        %1548 = vmatpush2.msra.mxu0 0.0
        %1549 = vmatprep.subr.mxu0 0.0
        %1550 = vmatpush2.msra.mxu0 0.0
        %1551 = vmatprep.subr.mxu0 0.0
        %1552 = vmatpush2.msra.mxu0 0.0
        %1553 = vmatprep.subr.mxu0 0.0
        %1554 = vmatpush2.msra.mxu0 0.0
        %1555 = vmatprep.subr.mxu0 0.0
        %1556 = vmatpush2.msra.mxu0 0.0
        %1557 = vmatprep.subr.mxu0 0.0
        %1558 = vmatpush2.msra.mxu0 0.0
        %1559 = vmatprep.subr.mxu0 0.0
        %1560 = vmatpush2.msra.mxu0 0.0
        %1561 = vmatprep.subr.mxu0 0.0
        %1562 = vmatpush2.msra.mxu0 0.0
        %1563 = vmatprep.subr.mxu0 0.0
        %1564 = vmatpush2.msra.mxu0 0.0
        %1565 = vmatprep.subr.mxu0 0.0
        %1566 = vmatpush2.msra.mxu0 0.0
        %1567 = vmatprep.subr.mxu0 0.0
        %1568 = vmatpush2.msra.mxu0 0.0
        %1569 = vmatprep.subr.mxu0 0.0
        %1570 = vmatpush2.msra.mxu0 0.0
        %1571 = vmatprep.subr.mxu0 0.0
        %1572 = vmatpush2.msra.mxu0 0.0
        %1573 = vmatprep.subr.mxu0 0.0
        %1574 = vmatpush2.msra.mxu0 0.0
        %1575 = vmatprep.subr.mxu0 0.0
        %1576 = vmatpush2.msra.mxu0 0.0
        %1577 = vmatprep.subr.mxu0 0.0
        %1578 = vmatpush2.msra.mxu0 0.0
        %1579 = vmatprep.mubr.f32.mxu0 0.0
        %1580 = vmatmul.mubr.f32.gmra.mxu0 %v1507
        %v1581 = vpop.f32.mrf.mxu0
        %v1582 = vadd.f32 0.0, %v1581
        %v1583 = vpop.f32.mrf.mxu0
        %v1584 = vadd.f32 0.0, %v1583
        %1585 = vdwg.mxu0
        %1586 = vmatprep.subr.mxu0 0.0
        %1587 = vmatpush1.msra.mxu0 0.0
        %1588 = vmatprep.subr.mxu0 0.0
        %1589 = vmatpush1.msra.mxu0 0.0
        %1590 = vmatprep.subr.mxu0 0.0
        %1591 = vmatpush1.msra.mxu0 0.0
        %1592 = vmatprep.subr.mxu0 0.0
        %1593 = vmatpush1.msra.mxu0 0.0
        %1594 = vmatprep.subr.mxu0 0.0
        %1595 = vmatpush1.msra.mxu0 0.0
        %1596 = vmatprep.subr.mxu0 0.0
        %1597 = vmatpush1.msra.mxu0 0.0
        %1598 = vmatprep.subr.mxu0 0.0
        %1599 = vmatpush1.msra.mxu0 0.0
        %1600 = vmatprep.subr.mxu0 0.0
        %1601 = vmatpush1.msra.mxu0 0.0
        %1602 = vmatprep.subr.mxu0 0.0
        %1603 = vmatpush1.msra.mxu0 0.0
        %1604 = vmatprep.subr.mxu0 0.0
        %1605 = vmatpush1.msra.mxu0 0.0
        %1606 = vmatprep.subr.mxu0 0.0
        %1607 = vmatpush1.msra.mxu0 0.0
        %1608 = vmatprep.subr.mxu0 0.0
        %1609 = vmatpush1.msra.mxu0 0.0
        %1610 = vmatprep.subr.mxu0 0.0
        %1611 = vmatpush1.msra.mxu0 0.0
        %1612 = vmatprep.subr.mxu0 0.0
        %1613 = vmatpush1.msra.mxu0 0.0
        %1614 = vmatprep.subr.mxu0 0.0
        %1615 = vmatpush1.msra.mxu0 0.0
        %1616 = vmatprep.subr.mxu0 0.0
        %1617 = vmatpush1.msra.mxu0 %v1513
        %1618 = vmatprep.subr.mxu0 0.0
        %1619 = vmatpush2.msra.mxu0 0.0
        %1620 = vmatprep.subr.mxu0 0.0
        %1621 = vmatpush2.msra.mxu0 0.0
        %1622 = vmatprep.subr.mxu0 0.0
        %1623 = vmatpush2.msra.mxu0 0.0
        %1624 = vmatprep.subr.mxu0 0.0
        %1625 = vmatpush2.msra.mxu0 0.0
        %1626 = vmatprep.subr.mxu0 0.0
        %1627 = vmatpush2.msra.mxu0 0.0
        %1628 = vmatprep.subr.mxu0 0.0
        %1629 = vmatpush2.msra.mxu0 0.0
        %1630 = vmatprep.subr.mxu0 0.0
        %1631 = vmatpush2.msra.mxu0 0.0
        %1632 = vmatprep.subr.mxu0 0.0
        %1633 = vmatpush2.msra.mxu0 0.0
        %1634 = vmatprep.subr.mxu0 0.0
        %1635 = vmatpush2.msra.mxu0 0.0
        %1636 = vmatprep.subr.mxu0 0.0
        %1637 = vmatpush2.msra.mxu0 0.0
        %1638 = vmatprep.subr.mxu0 0.0
        %1639 = vmatpush2.msra.mxu0 0.0
        %1640 = vmatprep.subr.mxu0 0.0
        %1641 = vmatpush2.msra.mxu0 0.0
        %1642 = vmatprep.subr.mxu0 0.0
        %1643 = vmatpush2.msra.mxu0 0.0
        %1644 = vmatprep.subr.mxu0 0.0
        %1645 = vmatpush2.msra.mxu0 0.0
        %1646 = vmatprep.subr.mxu0 0.0
        %1647 = vmatpush2.msra.mxu0 0.0
        %1648 = vmatprep.subr.mxu0 0.0
        %1649 = vmatpush2.msra.mxu0 0.0
        %1650 = vmatprep.mubr.f32.mxu0 0.0
        %1651 = vmatmul.mubr.f32.gmra.mxu0 %v1507
        %v1652 = vpop.f32.mrf.mxu0
        %v1653 = vadd.f32 0.0, %v1652
        %v1654 = vpop.f32.mrf.mxu0
        %1655 = vdwg.mxu0
        %v1656 = vadd.f32 %v1492, %v1582
        %v1657 = vadd.f32 %v1493, %v1584
        %v1658 = vadd.f32 %v1494, %v1653
        %s1659 = scalar_lea.vmem %s2, 48
        %v1660 = vld [vmem:[%s1659] sm:$0xff]
        %1661 = vrot.lane.b32.xlu0 %v684, 92
        %v1662 = vpop.permute.xlu0 %1661
        %1663 = vrot.lane.b32.xlu0 %v691, 92
        %v1664 = vpop.permute.xlu0 %1663
        %1665 = vrot.lane.b32.xlu0 %v685, 92
        %v1666 = vpop.permute.xlu0 %1665
        %vm1667 = vcmask 752640
        %v1668 = vsel %vm1667, %v1662, %v1664
        %v1669 = vsel %vm1667, %v1664, %v1666
        %v1671 = vsel %vm701, %v1660, 0
        %v1673 = vsel %vm705, %v1668, 0
        %v1675 = vsel %vm705, %v1669, 0
        %v1677 = vsel %vm705, %v1666, 0
        %1679 = vmatprep.subr.mxu0 0.0
        %1680 = vmatpush1.msra.mxu0 0.0
        %1681 = vmatprep.subr.mxu0 0.0
        %1682 = vmatpush1.msra.mxu0 0.0
        %1683 = vmatprep.subr.mxu0 0.0
        %1684 = vmatpush1.msra.mxu0 0.0
        %1685 = vmatprep.subr.mxu0 0.0
        %1686 = vmatpush1.msra.mxu0 0.0
        %1687 = vmatprep.subr.mxu0 0.0
        %1688 = vmatpush1.msra.mxu0 0.0
        %1689 = vmatprep.subr.mxu0 0.0
        %1690 = vmatpush1.msra.mxu0 0.0
        %1691 = vmatprep.subr.mxu0 0.0
        %1692 = vmatpush1.msra.mxu0 0.0
        %1693 = vmatprep.subr.mxu0 0.0
        %1694 = vmatpush1.msra.mxu0 0.0
        %1695 = vmatprep.subr.mxu0 0.0
        %1696 = vmatpush1.msra.mxu0 0.0
        %1697 = vmatprep.subr.mxu0 0.0
        %1698 = vmatpush1.msra.mxu0 0.0
        %1699 = vmatprep.subr.mxu0 0.0
        %1700 = vmatpush1.msra.mxu0 0.0
        %1701 = vmatprep.subr.mxu0 0.0
        %1702 = vmatpush1.msra.mxu0 0.0
        %1703 = vmatprep.subr.mxu0 0.0
        %1704 = vmatpush1.msra.mxu0 0.0
        %1705 = vmatprep.subr.mxu0 0.0
        %1706 = vmatpush1.msra.mxu0 0.0
        %1707 = vmatprep.subr.mxu0 0.0
        %1708 = vmatpush1.msra.mxu0 0.0
        %1709 = vmatprep.subr.mxu0 %v1675
        %1710 = vmatpush1.msra.mxu0 %v1673
        %1711 = vmatprep.subr.mxu0 0.0
        %1712 = vmatpush2.msra.mxu0 0.0
        %1713 = vmatprep.subr.mxu0 0.0
        %1714 = vmatpush2.msra.mxu0 0.0
        %1715 = vmatprep.subr.mxu0 0.0
        %1716 = vmatpush2.msra.mxu0 0.0
        %1717 = vmatprep.subr.mxu0 0.0
        %1718 = vmatpush2.msra.mxu0 0.0
        %1719 = vmatprep.subr.mxu0 0.0
        %1720 = vmatpush2.msra.mxu0 0.0
        %1721 = vmatprep.subr.mxu0 0.0
        %1722 = vmatpush2.msra.mxu0 0.0
        %1723 = vmatprep.subr.mxu0 0.0
        %1724 = vmatpush2.msra.mxu0 0.0
        %1725 = vmatprep.subr.mxu0 0.0
        %1726 = vmatpush2.msra.mxu0 0.0
        %1727 = vmatprep.subr.mxu0 0.0
        %1728 = vmatpush2.msra.mxu0 0.0
        %1729 = vmatprep.subr.mxu0 0.0
        %1730 = vmatpush2.msra.mxu0 0.0
        %1731 = vmatprep.subr.mxu0 0.0
        %1732 = vmatpush2.msra.mxu0 0.0
        %1733 = vmatprep.subr.mxu0 0.0
        %1734 = vmatpush2.msra.mxu0 0.0
        %1735 = vmatprep.subr.mxu0 0.0
        %1736 = vmatpush2.msra.mxu0 0.0
        %1737 = vmatprep.subr.mxu0 0.0
        %1738 = vmatpush2.msra.mxu0 0.0
        %1739 = vmatprep.subr.mxu0 0.0
        %1740 = vmatpush2.msra.mxu0 0.0
        %1741 = vmatprep.subr.mxu0 0.0
        %1742 = vmatpush2.msra.mxu0 0.0
        %1743 = vmatprep.mubr.f32.mxu0 0.0
        %1744 = vmatmul.mubr.f32.gmra.mxu0 %v1671
        %v1745 = vpop.f32.mrf.mxu0
        %v1746 = vadd.f32 0.0, %v1745
        %v1747 = vpop.f32.mrf.mxu0
        %v1748 = vadd.f32 0.0, %v1747
        %1749 = vdwg.mxu0
        %1750 = vmatprep.subr.mxu0 0.0
        %1751 = vmatpush1.msra.mxu0 0.0
        %1752 = vmatprep.subr.mxu0 0.0
        %1753 = vmatpush1.msra.mxu0 0.0
        %1754 = vmatprep.subr.mxu0 0.0
        %1755 = vmatpush1.msra.mxu0 0.0
        %1756 = vmatprep.subr.mxu0 0.0
        %1757 = vmatpush1.msra.mxu0 0.0
        %1758 = vmatprep.subr.mxu0 0.0
        %1759 = vmatpush1.msra.mxu0 0.0
        %1760 = vmatprep.subr.mxu0 0.0
        %1761 = vmatpush1.msra.mxu0 0.0
        %1762 = vmatprep.subr.mxu0 0.0
        %1763 = vmatpush1.msra.mxu0 0.0
        %1764 = vmatprep.subr.mxu0 0.0
        %1765 = vmatpush1.msra.mxu0 0.0
        %1766 = vmatprep.subr.mxu0 0.0
        %1767 = vmatpush1.msra.mxu0 0.0
        %1768 = vmatprep.subr.mxu0 0.0
        %1769 = vmatpush1.msra.mxu0 0.0
        %1770 = vmatprep.subr.mxu0 0.0
        %1771 = vmatpush1.msra.mxu0 0.0
        %1772 = vmatprep.subr.mxu0 0.0
        %1773 = vmatpush1.msra.mxu0 0.0
        %1774 = vmatprep.subr.mxu0 0.0
        %1775 = vmatpush1.msra.mxu0 0.0
        %1776 = vmatprep.subr.mxu0 0.0
        %1777 = vmatpush1.msra.mxu0 0.0
        %1778 = vmatprep.subr.mxu0 0.0
        %1779 = vmatpush1.msra.mxu0 0.0
        %1780 = vmatprep.subr.mxu0 0.0
        %1781 = vmatpush1.msra.mxu0 %v1677
        %1782 = vmatprep.subr.mxu0 0.0
        %1783 = vmatpush2.msra.mxu0 0.0
        %1784 = vmatprep.subr.mxu0 0.0
        %1785 = vmatpush2.msra.mxu0 0.0
        %1786 = vmatprep.subr.mxu0 0.0
        %1787 = vmatpush2.msra.mxu0 0.0
        %1788 = vmatprep.subr.mxu0 0.0
        %1789 = vmatpush2.msra.mxu0 0.0
        %1790 = vmatprep.subr.mxu0 0.0
        %1791 = vmatpush2.msra.mxu0 0.0
        %1792 = vmatprep.subr.mxu0 0.0
        %1793 = vmatpush2.msra.mxu0 0.0
        %1794 = vmatprep.subr.mxu0 0.0
        %1795 = vmatpush2.msra.mxu0 0.0
        %1796 = vmatprep.subr.mxu0 0.0
        %1797 = vmatpush2.msra.mxu0 0.0
        %1798 = vmatprep.subr.mxu0 0.0
        %1799 = vmatpush2.msra.mxu0 0.0
        %1800 = vmatprep.subr.mxu0 0.0
        %1801 = vmatpush2.msra.mxu0 0.0
        %1802 = vmatprep.subr.mxu0 0.0
        %1803 = vmatpush2.msra.mxu0 0.0
        %1804 = vmatprep.subr.mxu0 0.0
        %1805 = vmatpush2.msra.mxu0 0.0
        %1806 = vmatprep.subr.mxu0 0.0
        %1807 = vmatpush2.msra.mxu0 0.0
        %1808 = vmatprep.subr.mxu0 0.0
        %1809 = vmatpush2.msra.mxu0 0.0
        %1810 = vmatprep.subr.mxu0 0.0
        %1811 = vmatpush2.msra.mxu0 0.0
        %1812 = vmatprep.subr.mxu0 0.0
        %1813 = vmatpush2.msra.mxu0 0.0
        %1814 = vmatprep.mubr.f32.mxu0 0.0
        %1815 = vmatmul.mubr.f32.gmra.mxu0 %v1671
        %v1816 = vpop.f32.mrf.mxu0
        %v1817 = vadd.f32 0.0, %v1816
        %v1818 = vpop.f32.mrf.mxu0
        %1819 = vdwg.mxu0
        %v1820 = vadd.f32 %v1656, %v1746
        %v1821 = vadd.f32 %v1657, %v1748
        %v1822 = vadd.f32 %v1658, %v1817
        %s1823 = scalar_lea.vmem %s2, 56
        %v1824 = vld [vmem:[%s1823] sm:$0xff]
        %1825 = vrot.lane.b32.xlu0 %v684, 91
        %v1826 = vpop.permute.xlu0 %1825
        %1827 = vrot.lane.b32.xlu0 %v691, 91
        %v1828 = vpop.permute.xlu0 %1827
        %1829 = vrot.lane.b32.xlu0 %v685, 91
        %v1830 = vpop.permute.xlu0 %1829
        %vm1831 = vcmask 744448
        %v1832 = vsel %vm1831, %v1826, %v1828
        %v1833 = vsel %vm1831, %v1828, %v1830
        %v1835 = vsel %vm701, %v1824, 0
        %v1837 = vsel %vm705, %v1832, 0
        %v1839 = vsel %vm705, %v1833, 0
        %v1841 = vsel %vm705, %v1830, 0
        %1843 = vmatprep.subr.mxu0 0.0
        %1844 = vmatpush1.msra.mxu0 0.0
        %1845 = vmatprep.subr.mxu0 0.0
        %1846 = vmatpush1.msra.mxu0 0.0
        %1847 = vmatprep.subr.mxu0 0.0
        %1848 = vmatpush1.msra.mxu0 0.0
        %1849 = vmatprep.subr.mxu0 0.0
        %1850 = vmatpush1.msra.mxu0 0.0
        %1851 = vmatprep.subr.mxu0 0.0
        %1852 = vmatpush1.msra.mxu0 0.0
        %1853 = vmatprep.subr.mxu0 0.0
        %1854 = vmatpush1.msra.mxu0 0.0
        %1855 = vmatprep.subr.mxu0 0.0
        %1856 = vmatpush1.msra.mxu0 0.0
        %1857 = vmatprep.subr.mxu0 0.0
        %1858 = vmatpush1.msra.mxu0 0.0
        %1859 = vmatprep.subr.mxu0 0.0
        %1860 = vmatpush1.msra.mxu0 0.0
        %1861 = vmatprep.subr.mxu0 0.0
        %1862 = vmatpush1.msra.mxu0 0.0
        %1863 = vmatprep.subr.mxu0 0.0
        %1864 = vmatpush1.msra.mxu0 0.0
        %1865 = vmatprep.subr.mxu0 0.0
        %1866 = vmatpush1.msra.mxu0 0.0
        %1867 = vmatprep.subr.mxu0 0.0
        %1868 = vmatpush1.msra.mxu0 0.0
        %1869 = vmatprep.subr.mxu0 0.0
        %1870 = vmatpush1.msra.mxu0 0.0
        %1871 = vmatprep.subr.mxu0 0.0
        %1872 = vmatpush1.msra.mxu0 0.0
        %1873 = vmatprep.subr.mxu0 %v1839
        %1874 = vmatpush1.msra.mxu0 %v1837
        %1875 = vmatprep.subr.mxu0 0.0
        %1876 = vmatpush2.msra.mxu0 0.0
        %1877 = vmatprep.subr.mxu0 0.0
        %1878 = vmatpush2.msra.mxu0 0.0
        %1879 = vmatprep.subr.mxu0 0.0
        %1880 = vmatpush2.msra.mxu0 0.0
        %1881 = vmatprep.subr.mxu0 0.0
        %1882 = vmatpush2.msra.mxu0 0.0
        %1883 = vmatprep.subr.mxu0 0.0
        %1884 = vmatpush2.msra.mxu0 0.0
        %1885 = vmatprep.subr.mxu0 0.0
        %1886 = vmatpush2.msra.mxu0 0.0
        %1887 = vmatprep.subr.mxu0 0.0
        %1888 = vmatpush2.msra.mxu0 0.0
        %1889 = vmatprep.subr.mxu0 0.0
        %1890 = vmatpush2.msra.mxu0 0.0
        %1891 = vmatprep.subr.mxu0 0.0
        %1892 = vmatpush2.msra.mxu0 0.0
        %1893 = vmatprep.subr.mxu0 0.0
        %1894 = vmatpush2.msra.mxu0 0.0
        %1895 = vmatprep.subr.mxu0 0.0
        %1896 = vmatpush2.msra.mxu0 0.0
        %1897 = vmatprep.subr.mxu0 0.0
        %1898 = vmatpush2.msra.mxu0 0.0
        %1899 = vmatprep.subr.mxu0 0.0
        %1900 = vmatpush2.msra.mxu0 0.0
        %1901 = vmatprep.subr.mxu0 0.0
        %1902 = vmatpush2.msra.mxu0 0.0
        %1903 = vmatprep.subr.mxu0 0.0
        %1904 = vmatpush2.msra.mxu0 0.0
        %1905 = vmatprep.subr.mxu0 0.0
        %1906 = vmatpush2.msra.mxu0 0.0
        %1907 = vmatprep.mubr.f32.mxu0 0.0
        %1908 = vmatmul.mubr.f32.gmra.mxu0 %v1835
        %v1909 = vpop.f32.mrf.mxu0
        %v1910 = vadd.f32 0.0, %v1909
        %v1911 = vpop.f32.mrf.mxu0
        %v1912 = vadd.f32 0.0, %v1911
        %1913 = vdwg.mxu0
        %1914 = vmatprep.subr.mxu0 0.0
        %1915 = vmatpush1.msra.mxu0 0.0
        %1916 = vmatprep.subr.mxu0 0.0
        %1917 = vmatpush1.msra.mxu0 0.0
        %1918 = vmatprep.subr.mxu0 0.0
        %1919 = vmatpush1.msra.mxu0 0.0
        %1920 = vmatprep.subr.mxu0 0.0
        %1921 = vmatpush1.msra.mxu0 0.0
        %1922 = vmatprep.subr.mxu0 0.0
        %1923 = vmatpush1.msra.mxu0 0.0
        %1924 = vmatprep.subr.mxu0 0.0
        %1925 = vmatpush1.msra.mxu0 0.0
        %1926 = vmatprep.subr.mxu0 0.0
        %1927 = vmatpush1.msra.mxu0 0.0
        %1928 = vmatprep.subr.mxu0 0.0
        %1929 = vmatpush1.msra.mxu0 0.0
        %1930 = vmatprep.subr.mxu0 0.0
        %1931 = vmatpush1.msra.mxu0 0.0
        %1932 = vmatprep.subr.mxu0 0.0
        %1933 = vmatpush1.msra.mxu0 0.0
        %1934 = vmatprep.subr.mxu0 0.0
        %1935 = vmatpush1.msra.mxu0 0.0
        %1936 = vmatprep.subr.mxu0 0.0
        %1937 = vmatpush1.msra.mxu0 0.0
        %1938 = vmatprep.subr.mxu0 0.0
        %1939 = vmatpush1.msra.mxu0 0.0
        %1940 = vmatprep.subr.mxu0 0.0
        %1941 = vmatpush1.msra.mxu0 0.0
        %1942 = vmatprep.subr.mxu0 0.0
        %1943 = vmatpush1.msra.mxu0 0.0
        %1944 = vmatprep.subr.mxu0 0.0
        %1945 = vmatpush1.msra.mxu0 %v1841
        %1946 = vmatprep.subr.mxu0 0.0
        %1947 = vmatpush2.msra.mxu0 0.0
        %1948 = vmatprep.subr.mxu0 0.0
        %1949 = vmatpush2.msra.mxu0 0.0
        %1950 = vmatprep.subr.mxu0 0.0
        %1951 = vmatpush2.msra.mxu0 0.0
        %1952 = vmatprep.subr.mxu0 0.0
        %1953 = vmatpush2.msra.mxu0 0.0
        %1954 = vmatprep.subr.mxu0 0.0
        %1955 = vmatpush2.msra.mxu0 0.0
        %1956 = vmatprep.subr.mxu0 0.0
        %1957 = vmatpush2.msra.mxu0 0.0
        %1958 = vmatprep.subr.mxu0 0.0
        %1959 = vmatpush2.msra.mxu0 0.0
        %1960 = vmatprep.subr.mxu0 0.0
        %1961 = vmatpush2.msra.mxu0 0.0
        %1962 = vmatprep.subr.mxu0 0.0
        %1963 = vmatpush2.msra.mxu0 0.0
        %1964 = vmatprep.subr.mxu0 0.0
        %1965 = vmatpush2.msra.mxu0 0.0
        %1966 = vmatprep.subr.mxu0 0.0
        %1967 = vmatpush2.msra.mxu0 0.0
        %1968 = vmatprep.subr.mxu0 0.0
        %1969 = vmatpush2.msra.mxu0 0.0
        %1970 = vmatprep.subr.mxu0 0.0
        %1971 = vmatpush2.msra.mxu0 0.0
        %1972 = vmatprep.subr.mxu0 0.0
        %1973 = vmatpush2.msra.mxu0 0.0
        %1974 = vmatprep.subr.mxu0 0.0
        %1975 = vmatpush2.msra.mxu0 0.0
        %1976 = vmatprep.subr.mxu0 0.0
        %1977 = vmatpush2.msra.mxu0 0.0
        %1978 = vmatprep.mubr.f32.mxu0 0.0
        %1979 = vmatmul.mubr.f32.gmra.mxu0 %v1835
        %v1980 = vpop.f32.mrf.mxu0
        %v1981 = vadd.f32 0.0, %v1980
        %v1982 = vpop.f32.mrf.mxu0
        %1983 = vdwg.mxu0
        %v1984 = vadd.f32 %v1820, %v1910
        %v1985 = vadd.f32 %v1821, %v1912
        %v1986 = vadd.f32 %v1822, %v1981
        %s1987 = scalar_lea.vmem %s2, 64
        %v1988 = vld [vmem:[%s1987] sm:$0xff]
        %1989 = vrot.lane.b32.xlu0 %v684, 90
        %v1990 = vpop.permute.xlu0 %1989
        %1991 = vrot.lane.b32.xlu0 %v691, 90
        %v1992 = vpop.permute.xlu0 %1991
        %1993 = vrot.lane.b32.xlu0 %v685, 90
        %v1994 = vpop.permute.xlu0 %1993
        %vm1995 = vcmask 736256
        %v1996 = vsel %vm1995, %v1990, %v1992
        %v1997 = vsel %vm1995, %v1992, %v1994
        %v1999 = vsel %vm701, %v1988, 0
        %v2001 = vsel %vm705, %v1996, 0
        %v2003 = vsel %vm705, %v1997, 0
        %v2005 = vsel %vm705, %v1994, 0
        %2007 = vmatprep.subr.mxu0 0.0
        %2008 = vmatpush1.msra.mxu0 0.0
        %2009 = vmatprep.subr.mxu0 0.0
        %2010 = vmatpush1.msra.mxu0 0.0
        %2011 = vmatprep.subr.mxu0 0.0
        %2012 = vmatpush1.msra.mxu0 0.0
        %2013 = vmatprep.subr.mxu0 0.0
        %2014 = vmatpush1.msra.mxu0 0.0
        %2015 = vmatprep.subr.mxu0 0.0
        %2016 = vmatpush1.msra.mxu0 0.0
        %2017 = vmatprep.subr.mxu0 0.0
        %2018 = vmatpush1.msra.mxu0 0.0
        %2019 = vmatprep.subr.mxu0 0.0
        %2020 = vmatpush1.msra.mxu0 0.0
        %2021 = vmatprep.subr.mxu0 0.0
        %2022 = vmatpush1.msra.mxu0 0.0
        %2023 = vmatprep.subr.mxu0 0.0
        %2024 = vmatpush1.msra.mxu0 0.0
        %2025 = vmatprep.subr.mxu0 0.0
        %2026 = vmatpush1.msra.mxu0 0.0
        %2027 = vmatprep.subr.mxu0 0.0
        %2028 = vmatpush1.msra.mxu0 0.0
        %2029 = vmatprep.subr.mxu0 0.0
        %2030 = vmatpush1.msra.mxu0 0.0
        %2031 = vmatprep.subr.mxu0 0.0
        %2032 = vmatpush1.msra.mxu0 0.0
        %2033 = vmatprep.subr.mxu0 0.0
        %2034 = vmatpush1.msra.mxu0 0.0
        %2035 = vmatprep.subr.mxu0 0.0
        %2036 = vmatpush1.msra.mxu0 0.0
        %2037 = vmatprep.subr.mxu0 %v2003
        %2038 = vmatpush1.msra.mxu0 %v2001
        %2039 = vmatprep.subr.mxu0 0.0
        %2040 = vmatpush2.msra.mxu0 0.0
        %2041 = vmatprep.subr.mxu0 0.0
        %2042 = vmatpush2.msra.mxu0 0.0
        %2043 = vmatprep.subr.mxu0 0.0
        %2044 = vmatpush2.msra.mxu0 0.0
        %2045 = vmatprep.subr.mxu0 0.0
        %2046 = vmatpush2.msra.mxu0 0.0
        %2047 = vmatprep.subr.mxu0 0.0
        %2048 = vmatpush2.msra.mxu0 0.0
        %2049 = vmatprep.subr.mxu0 0.0
        %2050 = vmatpush2.msra.mxu0 0.0
        %2051 = vmatprep.subr.mxu0 0.0
        %2052 = vmatpush2.msra.mxu0 0.0
        %2053 = vmatprep.subr.mxu0 0.0
        %2054 = vmatpush2.msra.mxu0 0.0
        %2055 = vmatprep.subr.mxu0 0.0
        %2056 = vmatpush2.msra.mxu0 0.0
        %2057 = vmatprep.subr.mxu0 0.0
        %2058 = vmatpush2.msra.mxu0 0.0
        %2059 = vmatprep.subr.mxu0 0.0
        %2060 = vmatpush2.msra.mxu0 0.0
        %2061 = vmatprep.subr.mxu0 0.0
        %2062 = vmatpush2.msra.mxu0 0.0
        %2063 = vmatprep.subr.mxu0 0.0
        %2064 = vmatpush2.msra.mxu0 0.0
        %2065 = vmatprep.subr.mxu0 0.0
        %2066 = vmatpush2.msra.mxu0 0.0
        %2067 = vmatprep.subr.mxu0 0.0
        %2068 = vmatpush2.msra.mxu0 0.0
        %2069 = vmatprep.subr.mxu0 0.0
        %2070 = vmatpush2.msra.mxu0 0.0
        %2071 = vmatprep.mubr.f32.mxu0 0.0
        %2072 = vmatmul.mubr.f32.gmra.mxu0 %v1999
        %v2073 = vpop.f32.mrf.mxu0
        %v2074 = vadd.f32 0.0, %v2073
        %v2075 = vpop.f32.mrf.mxu0
        %v2076 = vadd.f32 0.0, %v2075
        %2077 = vdwg.mxu0
        %2078 = vmatprep.subr.mxu0 0.0
        %2079 = vmatpush1.msra.mxu0 0.0
        %2080 = vmatprep.subr.mxu0 0.0
        %2081 = vmatpush1.msra.mxu0 0.0
        %2082 = vmatprep.subr.mxu0 0.0
        %2083 = vmatpush1.msra.mxu0 0.0
        %2084 = vmatprep.subr.mxu0 0.0
        %2085 = vmatpush1.msra.mxu0 0.0
        %2086 = vmatprep.subr.mxu0 0.0
        %2087 = vmatpush1.msra.mxu0 0.0
        %2088 = vmatprep.subr.mxu0 0.0
        %2089 = vmatpush1.msra.mxu0 0.0
        %2090 = vmatprep.subr.mxu0 0.0
        %2091 = vmatpush1.msra.mxu0 0.0
        %2092 = vmatprep.subr.mxu0 0.0
        %2093 = vmatpush1.msra.mxu0 0.0
        %2094 = vmatprep.subr.mxu0 0.0
        %2095 = vmatpush1.msra.mxu0 0.0
        %2096 = vmatprep.subr.mxu0 0.0
        %2097 = vmatpush1.msra.mxu0 0.0
        %2098 = vmatprep.subr.mxu0 0.0
        %2099 = vmatpush1.msra.mxu0 0.0
        %2100 = vmatprep.subr.mxu0 0.0
        %2101 = vmatpush1.msra.mxu0 0.0
        %2102 = vmatprep.subr.mxu0 0.0
        %2103 = vmatpush1.msra.mxu0 0.0
        %2104 = vmatprep.subr.mxu0 0.0
        %2105 = vmatpush1.msra.mxu0 0.0
        %2106 = vmatprep.subr.mxu0 0.0
        %2107 = vmatpush1.msra.mxu0 0.0
        %2108 = vmatprep.subr.mxu0 0.0
        %2109 = vmatpush1.msra.mxu0 %v2005
        %2110 = vmatprep.subr.mxu0 0.0
        %2111 = vmatpush2.msra.mxu0 0.0
        %2112 = vmatprep.subr.mxu0 0.0
        %2113 = vmatpush2.msra.mxu0 0.0
        %2114 = vmatprep.subr.mxu0 0.0
        %2115 = vmatpush2.msra.mxu0 0.0
        %2116 = vmatprep.subr.mxu0 0.0
        %2117 = vmatpush2.msra.mxu0 0.0
        %2118 = vmatprep.subr.mxu0 0.0
        %2119 = vmatpush2.msra.mxu0 0.0
        %2120 = vmatprep.subr.mxu0 0.0
        %2121 = vmatpush2.msra.mxu0 0.0
        %2122 = vmatprep.subr.mxu0 0.0
        %2123 = vmatpush2.msra.mxu0 0.0
        %2124 = vmatprep.subr.mxu0 0.0
        %2125 = vmatpush2.msra.mxu0 0.0
        %2126 = vmatprep.subr.mxu0 0.0
        %2127 = vmatpush2.msra.mxu0 0.0
        %2128 = vmatprep.subr.mxu0 0.0
        %2129 = vmatpush2.msra.mxu0 0.0
        %2130 = vmatprep.subr.mxu0 0.0
        %2131 = vmatpush2.msra.mxu0 0.0
        %2132 = vmatprep.subr.mxu0 0.0
        %2133 = vmatpush2.msra.mxu0 0.0
        %2134 = vmatprep.subr.mxu0 0.0
        %2135 = vmatpush2.msra.mxu0 0.0
        %2136 = vmatprep.subr.mxu0 0.0
        %2137 = vmatpush2.msra.mxu0 0.0
        %2138 = vmatprep.subr.mxu0 0.0
        %2139 = vmatpush2.msra.mxu0 0.0
        %2140 = vmatprep.subr.mxu0 0.0
        %2141 = vmatpush2.msra.mxu0 0.0
        %2142 = vmatprep.mubr.f32.mxu0 0.0
        %2143 = vmatmul.mubr.f32.gmra.mxu0 %v1999
        %v2144 = vpop.f32.mrf.mxu0
        %v2145 = vadd.f32 0.0, %v2144
        %v2146 = vpop.f32.mrf.mxu0
        %2147 = vdwg.mxu0
        %v2148 = vadd.f32 %v1984, %v2074
        %v2149 = vadd.f32 %v1985, %v2076
        %v2150 = vadd.f32 %v1986, %v2145
        %s2151 = sld [smem:[#allocation2]]
        %vm2152 = vcmp.ge.f32.partialorder %v2148, 0.0
        %vm2153 = vcmp.ge.f32.partialorder %v2149, 0.0
        %vm2154 = vcmp.ge.f32.partialorder %v2150, 0.0
        %v2155 = vstv %s2151
        %v2156 = vmul.f32 %v2155, %v2148
        %v2157 = vmul.f32 %v2155, %v2149
        %v2158 = vmul.f32 %v2155, %v2150
        %v2159 = vsel %vm2152, %v2148, %v2156
        %v2160 = vsel %vm2153, %v2149, %v2157
        %v2161 = vsel %vm2154, %v2150, %v2158
        %v2162 = vld [vmem:[%s8] sm:$0xff]
        %v2163 = vld [vmem:[%s8 + $0x8] sm:$0xff]
        %v2164 = vld [vmem:[%s8 + $0x10] sm:$0xff]
        %v2165 = vld [vmem:[%s8 + $0x18] sm:$0xff]
        %v2166 = vld [vmem:[%s8 + $0x20] sm:$0xff]
        %v2167 = vld [vmem:[%s8 + $0x28] sm:$0xff]
        %v2168 = vld [vmem:[%s8 + $0x30] sm:$0xff]
        %v2169 = vld [vmem:[%s8 + $0x38] sm:$0xff]
        %v2170 = vld [vmem:[%s8 + $0x40] sm:$0xff]
        %v2171 = vld [vmem:[%s8 + $0x48] sm:$0xff]
        %v2172 = vld [vmem:[%s8 + $0x50] sm:$0xff]
        %v2173 = vld [vmem:[%s8 + $0x58] sm:$0xff]
        %v2174 = vld [vmem:[%s8 + $0x60] sm:$0xff]
        %v2175 = vld [vmem:[%s8 + $0x68] sm:$0xff]
        %v2176 = vld [vmem:[%s8 + $0x70] sm:$0xff]
        %v2177 = vld [vmem:[%s8 + $0x78] sm:$0xff]
        %v2178 = vld [vmem:[%s8 + $0x80] sm:$0xff]
        %v2179 = vld [vmem:[%s8 + $0x88] sm:$0xff]
        %v2180 = vld [vmem:[%s8 + $0x90] sm:$0xff]
        %v2181 = vld [vmem:[%s8 + $0x98] sm:$0xff]
        %v2182 = vld [vmem:[%s8 + $0xa0] sm:$0xff]
        %v2183 = vld [vmem:[%s8 + $0xa8] sm:$0xff]
        %v2184 = vld [vmem:[%s8 + $0xb0] sm:$0xff]
        %v2185 = vld [vmem:[%s8 + $0xb8] sm:$0xff]
        %v2186 = vld [vmem:[%s8 + $0xc0] sm:$0xff]
        %v2187 = vld [vmem:[%s8 + $0xc8] sm:$0xff]
        %v2188 = vld [vmem:[%s8 + $0xd0] sm:$0xff]
        %v2189 = vld [vmem:[%s8 + $0xd8] sm:$0xff]
        %v2190 = vld [vmem:[%s8 + $0xe0] sm:$0xff]
        %v2191 = vld [vmem:[%s8 + $0xe8] sm:$0xff]
        %v2192 = vld [vmem:[%s8 + $0xf0] sm:$0xff]
        %v2193 = vld [vmem:[%s8 + $0xf8] sm:$0xff]
        %v2194 = vld [vmem:[%s8 + $0x100] sm:$0xff]
        %v2195 = vld [vmem:[%s8 + $0x108] sm:$0xff]
        %v2196 = vld [vmem:[%s8 + $0x110] sm:$0xff]
        %v2197 = vld [vmem:[%s8 + $0x118] sm:$0xff]
        %v2198 = vld [vmem:[%s8 + $0x120] sm:$0xff]
        %v2199 = vld [vmem:[%s8 + $0x128] sm:$0xff]
        %v2200 = vld [vmem:[%s8 + $0x130] sm:$0xff]
        %v2201 = vld [vmem:[%s8 + $0x138] sm:$0xff]
        %v2202 = vld [vmem:[%s8 + $0x140] sm:$0xff]
        %v2203 = vld [vmem:[%s8 + $0x148] sm:$0xff]
        %v2204 = vld [vmem:[%s8 + $0x150] sm:$0xff]
        %v2205 = vld [vmem:[%s8 + $0x158] sm:$0xff]
        %v2206 = vld [vmem:[%s8 + $0x160] sm:$0xff]
        %v2207 = vld [vmem:[%s8 + $0x168] sm:$0xff]
        %v2208 = vld [vmem:[%s8 + $0x170] sm:$0xff]
        %v2209 = vld [vmem:[%s8 + $0x178] sm:$0xff]
        %v2210 = vld [vmem:[%s8 + $0x180] sm:$0xff]
        %v2211 = vld [vmem:[%s8 + $0x188] sm:$0xff]
        %v2212 = vld [vmem:[%s8 + $0x190] sm:$0xff]
        %v2213 = vld [vmem:[%s8 + $0x198] sm:$0xff]
        %v2214 = vld [vmem:[%s8 + $0x1a0] sm:$0xff]
        %v2215 = vld [vmem:[%s8 + $0x1a8] sm:$0xff]
        %v2216 = vld [vmem:[%s8 + $0x1b0] sm:$0xff]
        %v2217 = vld [vmem:[%s8 + $0x1b8] sm:$0xff]
        %v2218 = vld [vmem:[%s8 + $0x1c0] sm:$0xff]
        %v2219 = vld [vmem:[%s8 + $0x1c8] sm:$0xff]
        %v2220 = vld [vmem:[%s8 + $0x1d0] sm:$0xff]
        %v2221 = vld [vmem:[%s8 + $0x1d8] sm:$0xff]
        %v2222 = vld [vmem:[%s8 + $0x1e0] sm:$0xff]
        %v2223 = vld [vmem:[%s8 + $0x1e8] sm:$0xff]
        %v2224 = vld [vmem:[%s8 + $0x1f0] sm:$0xff]
        %v2225 = vld [vmem:[%s8 + $0x1f8] sm:$0xff]
        %v2226 = vld [vmem:[%s8 + $0x200] sm:$0xff]
        %v2227 = vld [vmem:[%s8 + $0x208] sm:$0xff]
        %v2228 = vld [vmem:[%s8 + $0x210] sm:$0xff]
        %v2229 = vld [vmem:[%s8 + $0x218] sm:$0xff]
        %v2230 = vld [vmem:[%s8 + $0x220] sm:$0xff]
        %v2231 = vld [vmem:[%s8 + $0x228] sm:$0xff]
        %v2232 = vld [vmem:[%s8 + $0x230] sm:$0xff]
        %v2233 = vld [vmem:[%s8 + $0x238] sm:$0xff]
        %v2234 = vld [vmem:[%s8 + $0x240] sm:$0xff]
        %v2235 = vld [vmem:[%s8 + $0x248] sm:$0xff]
        %v2236 = vld [vmem:[%s8 + $0x250] sm:$0xff]
        %v2237 = vld [vmem:[%s8 + $0x258] sm:$0xff]
        %v2238 = vld [vmem:[%s8 + $0x260] sm:$0xff]
        %v2239 = vld [vmem:[%s8 + $0x268] sm:$0xff]
        %v2240 = vld [vmem:[%s8 + $0x270] sm:$0xff]
        %v2241 = vld [vmem:[%s8 + $0x278] sm:$0xff]
        %v2242 = vld [vmem:[%s8 + $0x280] sm:$0xff]
        %v2243 = vld [vmem:[%s8 + $0x288] sm:$0xff]
        %v2244 = vld [vmem:[%s8 + $0x290] sm:$0xff]
        %v2245 = vld [vmem:[%s8 + $0x298] sm:$0xff]
        %v2246 = vld [vmem:[%s8 + $0x2a0] sm:$0xff]
        %v2247 = vld [vmem:[%s8 + $0x2a8] sm:$0xff]
        %v2248 = vld [vmem:[%s8 + $0x2b0] sm:$0xff]
        %v2249 = vld [vmem:[%s8 + $0x2b8] sm:$0xff]
        %v2250 = vld [vmem:[%s8 + $0x2c0] sm:$0xff]
        %v2251 = vld [vmem:[%s8 + $0x2c8] sm:$0xff]
        %v2252 = vld [vmem:[%s8 + $0x2d0] sm:$0xff]
        %v2253 = vld [vmem:[%s8 + $0x2d8] sm:$0xff]
        %v2254 = vld [vmem:[%s8 + $0x2e0] sm:$0xff]
        %v2255 = vld [vmem:[%s8 + $0x2e8] sm:$0xff]
        %v2256 = vld [vmem:[%s8 + $0x2f0] sm:$0xff]
        %v2257 = vld [vmem:[%s8 + $0x2f8] sm:$0xff]
        %v2258 = vld [vmem:[%s8 + $0x300] sm:$0xff]
        %v2259 = vld [vmem:[%s8 + $0x308] sm:$0xff]
        %v2260 = vld [vmem:[%s8 + $0x310] sm:$0xff]
        %v2261 = vld [vmem:[%s8 + $0x318] sm:$0xff]
        %v2262 = vld [vmem:[%s8 + $0x320] sm:$0xff]
        %v2263 = vld [vmem:[%s8 + $0x328] sm:$0xff]
        %v2264 = vld [vmem:[%s8 + $0x330] sm:$0xff]
        %v2265 = vld [vmem:[%s8 + $0x338] sm:$0xff]
        %v2266 = vld [vmem:[%s8 + $0x340] sm:$0xff]
        %v2267 = vld [vmem:[%s8 + $0x348] sm:$0xff]
        %v2268 = vld [vmem:[%s8 + $0x350] sm:$0xff]
        %v2269 = vld [vmem:[%s8 + $0x358] sm:$0xff]
        %v2270 = vld [vmem:[%s8 + $0x360] sm:$0xff]
        %v2271 = vld [vmem:[%s8 + $0x368] sm:$0xff]
        %v2272 = vld [vmem:[%s8 + $0x370] sm:$0xff]
        %v2273 = vld [vmem:[%s8 + $0x378] sm:$0xff]
        %v2274 = vld [vmem:[%s8 + $0x380] sm:$0xff]
        %v2275 = vld [vmem:[%s8 + $0x388] sm:$0xff]
        %v2276 = vld [vmem:[%s8 + $0x390] sm:$0xff]
        %v2277 = vld [vmem:[%s8 + $0x398] sm:$0xff]
        %v2278 = vld [vmem:[%s8 + $0x3a0] sm:$0xff]
        %v2279 = vld [vmem:[%s8 + $0x3a8] sm:$0xff]
        %v2280 = vld [vmem:[%s8 + $0x3b0] sm:$0xff]
        %v2281 = vld [vmem:[%s8 + $0x3b8] sm:$0xff]
        %v2282 = vld [vmem:[%s8 + $0x3c0] sm:$0xf]
        %v2283 = vld [vmem:[%s8 + $0x3c8] sm:$0xf]
        %v2284 = vld [vmem:[%s8 + $0x3d0] sm:$0xf]
        %vm2285 = vcmask 556032
        %v2287 = vsel %vm2285, %v2161, 0
        %vm2289 = vcmask 1043456
        %v2291 = vsel %vm2289, %v2282, 0
        %v2294 = vsel %vm2289, %v2283, 0
        %v2297 = vsel %vm2289, %v2284, 0
        %2299 = vmatprep.subr.mxu0 %v2208
        %2300 = vmatpush1.msra.mxu0 %v2207
        %2301 = vmatprep.subr.mxu0 %v2205
        %2302 = vmatpush1.msra.mxu0 %v2204
        %2303 = vmatprep.subr.mxu0 %v2202
        %2304 = vmatpush1.msra.mxu0 %v2201
        %2305 = vmatprep.subr.mxu0 %v2199
        %2306 = vmatpush1.msra.mxu0 %v2198
        %2307 = vmatprep.subr.mxu0 %v2196
        %2308 = vmatpush1.msra.mxu0 %v2195
        %2309 = vmatprep.subr.mxu0 %v2193
        %2310 = vmatpush1.msra.mxu0 %v2192
        %2311 = vmatprep.subr.mxu0 %v2190
        %2312 = vmatpush1.msra.mxu0 %v2189
        %2313 = vmatprep.subr.mxu0 %v2187
        %2314 = vmatpush1.msra.mxu0 %v2186
        %2315 = vmatprep.subr.mxu0 %v2184
        %2316 = vmatpush1.msra.mxu0 %v2183
        %2317 = vmatprep.subr.mxu0 %v2181
        %2318 = vmatpush1.msra.mxu0 %v2180
        %2319 = vmatprep.subr.mxu0 %v2178
        %2320 = vmatpush1.msra.mxu0 %v2177
        %2321 = vmatprep.subr.mxu0 %v2175
        %2322 = vmatpush1.msra.mxu0 %v2174
        %2323 = vmatprep.subr.mxu0 %v2172
        %2324 = vmatpush1.msra.mxu0 %v2171
        %2325 = vmatprep.subr.mxu0 %v2169
        %2326 = vmatpush1.msra.mxu0 %v2168
        %2327 = vmatprep.subr.mxu0 %v2166
        %2328 = vmatpush1.msra.mxu0 %v2165
        %2329 = vmatprep.subr.mxu0 %v2163
        %2330 = vmatpush1.msra.mxu0 %v2162
        %2331 = vmatprep.subr.mxu0 %v2256
        %2332 = vmatpush2.msra.mxu0 %v2255
        %2333 = vmatprep.subr.mxu0 %v2253
        %2334 = vmatpush2.msra.mxu0 %v2252
        %2335 = vmatprep.subr.mxu0 %v2250
        %2336 = vmatpush2.msra.mxu0 %v2249
        %2337 = vmatprep.subr.mxu0 %v2247
        %2338 = vmatpush2.msra.mxu0 %v2246
        %2339 = vmatprep.subr.mxu0 %v2244
        %2340 = vmatpush2.msra.mxu0 %v2243
        %2341 = vmatprep.subr.mxu0 %v2241
        %2342 = vmatpush2.msra.mxu0 %v2240
        %2343 = vmatprep.subr.mxu0 %v2238
        %2344 = vmatpush2.msra.mxu0 %v2237
        %2345 = vmatprep.subr.mxu0 %v2235
        %2346 = vmatpush2.msra.mxu0 %v2234
        %2347 = vmatprep.subr.mxu0 %v2232
        %2348 = vmatpush2.msra.mxu0 %v2231
        %2349 = vmatprep.subr.mxu0 %v2229
        %2350 = vmatpush2.msra.mxu0 %v2228
        %2351 = vmatprep.subr.mxu0 %v2226
        %2352 = vmatpush2.msra.mxu0 %v2225
        %2353 = vmatprep.subr.mxu0 %v2223
        %2354 = vmatpush2.msra.mxu0 %v2222
        %2355 = vmatprep.subr.mxu0 %v2220
        %2356 = vmatpush2.msra.mxu0 %v2219
        %2357 = vmatprep.subr.mxu0 %v2217
        %2358 = vmatpush2.msra.mxu0 %v2216
        %2359 = vmatprep.subr.mxu0 %v2214
        %2360 = vmatpush2.msra.mxu0 %v2213
        %2361 = vmatprep.subr.mxu0 %v2211
        %2362 = vmatpush2.msra.mxu0 %v2210
        %2363 = vmatprep.mubr.f32.mxu0 %v2160
        %2364 = vmatmul.mubr.f32.gmra.mxu0 %v2159
        %v2365 = vpop.f32.mrf.mxu0
        %v2366 = vadd.f32 0.0, %v2365
        %v2367 = vpop.f32.mrf.mxu0
        %v2368 = vadd.f32 0.0, %v2367
        %2369 = vdwg.mxu0
        %2370 = vmatprep.subr.mxu0 0.0
        %2371 = vmatpush1.msra.mxu0 0.0
        %2372 = vmatprep.subr.mxu0 0.0
        %2373 = vmatpush1.msra.mxu0 0.0
        %2374 = vmatprep.subr.mxu0 0.0
        %2375 = vmatpush1.msra.mxu0 0.0
        %2376 = vmatprep.subr.mxu0 0.0
        %2377 = vmatpush1.msra.mxu0 0.0
        %2378 = vmatprep.subr.mxu0 0.0
        %2379 = vmatpush1.msra.mxu0 0.0
        %2380 = vmatprep.subr.mxu0 0.0
        %2381 = vmatpush1.msra.mxu0 0.0
        %2382 = vmatprep.subr.mxu0 0.0
        %2383 = vmatpush1.msra.mxu0 0.0
        %2384 = vmatprep.subr.mxu0 %v2294
        %2385 = vmatpush1.msra.mxu0 %v2291
        %2386 = vmatprep.subr.mxu0 %v2280
        %2387 = vmatpush1.msra.mxu0 %v2279
        %2388 = vmatprep.subr.mxu0 %v2277
        %2389 = vmatpush1.msra.mxu0 %v2276
        %2390 = vmatprep.subr.mxu0 %v2274
        %2391 = vmatpush1.msra.mxu0 %v2273
        %2392 = vmatprep.subr.mxu0 %v2271
        %2393 = vmatpush1.msra.mxu0 %v2270
        %2394 = vmatprep.subr.mxu0 %v2268
        %2395 = vmatpush1.msra.mxu0 %v2267
        %2396 = vmatprep.subr.mxu0 %v2265
        %2397 = vmatpush1.msra.mxu0 %v2264
        %2398 = vmatprep.subr.mxu0 %v2262
        %2399 = vmatpush1.msra.mxu0 %v2261
        %2400 = vmatprep.subr.mxu0 %v2259
        %2401 = vmatpush1.msra.mxu0 %v2258
        %2402 = vmatprep.subr.mxu0 0.0
        %2403 = vmatpush2.msra.mxu0 0.0
        %2404 = vmatprep.subr.mxu0 0.0
        %2405 = vmatpush2.msra.mxu0 0.0
        %2406 = vmatprep.subr.mxu0 0.0
        %2407 = vmatpush2.msra.mxu0 0.0
        %2408 = vmatprep.subr.mxu0 0.0
        %2409 = vmatpush2.msra.mxu0 0.0
        %2410 = vmatprep.subr.mxu0 0.0
        %2411 = vmatpush2.msra.mxu0 0.0
        %2412 = vmatprep.subr.mxu0 0.0
        %2413 = vmatpush2.msra.mxu0 0.0
        %2414 = vmatprep.subr.mxu0 0.0
        %2415 = vmatpush2.msra.mxu0 0.0
        %2416 = vmatprep.subr.mxu0 0.0
        %2417 = vmatpush2.msra.mxu0 0.0
        %2418 = vmatprep.subr.mxu0 0.0
        %2419 = vmatpush2.msra.mxu0 0.0
        %2420 = vmatprep.subr.mxu0 0.0
        %2421 = vmatpush2.msra.mxu0 0.0
        %2422 = vmatprep.subr.mxu0 0.0
        %2423 = vmatpush2.msra.mxu0 0.0
        %2424 = vmatprep.subr.mxu0 0.0
        %2425 = vmatpush2.msra.mxu0 0.0
        %2426 = vmatprep.subr.mxu0 0.0
        %2427 = vmatpush2.msra.mxu0 0.0
        %2428 = vmatprep.subr.mxu0 0.0
        %2429 = vmatpush2.msra.mxu0 0.0
        %2430 = vmatprep.subr.mxu0 0.0
        %2431 = vmatpush2.msra.mxu0 0.0
        %2432 = vmatprep.subr.mxu0 0.0
        %2433 = vmatpush2.msra.mxu0 0.0
        %2434 = vmatprep.mubr.f32.mxu0 0.0
        %2435 = vmatmul.mubr.f32.gmra.mxu0 %v2287
        %v2436 = vpop.f32.mrf.mxu0
        %v2437 = vadd.f32 %v2366, %v2436
        %v2438 = vpop.f32.mrf.mxu0
        %v2439 = vadd.f32 %v2368, %v2438
        %2440 = vdwg.mxu0
        %2441 = vmatprep.subr.mxu0 0.0
        %2442 = vmatpush1.msra.mxu0 %v2209
        %2443 = vmatprep.subr.mxu0 0.0
        %2444 = vmatpush1.msra.mxu0 %v2206
        %2445 = vmatprep.subr.mxu0 0.0
        %2446 = vmatpush1.msra.mxu0 %v2203
        %2447 = vmatprep.subr.mxu0 0.0
        %2448 = vmatpush1.msra.mxu0 %v2200
        %2449 = vmatprep.subr.mxu0 0.0
        %2450 = vmatpush1.msra.mxu0 %v2197
        %2451 = vmatprep.subr.mxu0 0.0
        %2452 = vmatpush1.msra.mxu0 %v2194
        %2453 = vmatprep.subr.mxu0 0.0
        %2454 = vmatpush1.msra.mxu0 %v2191
        %2455 = vmatprep.subr.mxu0 0.0
        %2456 = vmatpush1.msra.mxu0 %v2188
        %2457 = vmatprep.subr.mxu0 0.0
        %2458 = vmatpush1.msra.mxu0 %v2185
        %2459 = vmatprep.subr.mxu0 0.0
        %2460 = vmatpush1.msra.mxu0 %v2182
        %2461 = vmatprep.subr.mxu0 0.0
        %2462 = vmatpush1.msra.mxu0 %v2179
        %2463 = vmatprep.subr.mxu0 0.0
        %2464 = vmatpush1.msra.mxu0 %v2176
        %2465 = vmatprep.subr.mxu0 0.0
        %2466 = vmatpush1.msra.mxu0 %v2173
        %2467 = vmatprep.subr.mxu0 0.0
        %2468 = vmatpush1.msra.mxu0 %v2170
        %2469 = vmatprep.subr.mxu0 0.0
        %2470 = vmatpush1.msra.mxu0 %v2167
        %2471 = vmatprep.subr.mxu0 0.0
        %2472 = vmatpush1.msra.mxu0 %v2164
        %2473 = vmatprep.subr.mxu0 0.0
        %2474 = vmatpush2.msra.mxu0 %v2257
        %2475 = vmatprep.subr.mxu0 0.0
        %2476 = vmatpush2.msra.mxu0 %v2254
        %2477 = vmatprep.subr.mxu0 0.0
        %2478 = vmatpush2.msra.mxu0 %v2251
        %2479 = vmatprep.subr.mxu0 0.0
        %2480 = vmatpush2.msra.mxu0 %v2248
        %2481 = vmatprep.subr.mxu0 0.0
        %2482 = vmatpush2.msra.mxu0 %v2245
        %2483 = vmatprep.subr.mxu0 0.0
        %2484 = vmatpush2.msra.mxu0 %v2242
        %2485 = vmatprep.subr.mxu0 0.0
        %2486 = vmatpush2.msra.mxu0 %v2239
        %2487 = vmatprep.subr.mxu0 0.0
        %2488 = vmatpush2.msra.mxu0 %v2236
        %2489 = vmatprep.subr.mxu0 0.0
        %2490 = vmatpush2.msra.mxu0 %v2233
        %2491 = vmatprep.subr.mxu0 0.0
        %2492 = vmatpush2.msra.mxu0 %v2230
        %2493 = vmatprep.subr.mxu0 0.0
        %2494 = vmatpush2.msra.mxu0 %v2227
        %2495 = vmatprep.subr.mxu0 0.0
        %2496 = vmatpush2.msra.mxu0 %v2224
        %2497 = vmatprep.subr.mxu0 0.0
        %2498 = vmatpush2.msra.mxu0 %v2221
        %2499 = vmatprep.subr.mxu0 0.0
        %2500 = vmatpush2.msra.mxu0 %v2218
        %2501 = vmatprep.subr.mxu0 0.0
        %2502 = vmatpush2.msra.mxu0 %v2215
        %2503 = vmatprep.subr.mxu0 0.0
        %2504 = vmatpush2.msra.mxu0 %v2212
        %2505 = vmatprep.mubr.f32.mxu0 %v2160
        %2506 = vmatmul.mubr.f32.gmra.mxu0 %v2159
        %v2507 = vpop.f32.mrf.mxu0
        %v2508 = vadd.f32 0.0, %v2507
        %v2509 = vpop.f32.mrf.mxu0
        %2510 = vdwg.mxu0
        %2511 = vmatprep.subr.mxu0 0.0
        %2512 = vmatpush1.msra.mxu0 0.0
        %2513 = vmatprep.subr.mxu0 0.0
        %2514 = vmatpush1.msra.mxu0 0.0
        %2515 = vmatprep.subr.mxu0 0.0
        %2516 = vmatpush1.msra.mxu0 0.0
        %2517 = vmatprep.subr.mxu0 0.0
        %2518 = vmatpush1.msra.mxu0 0.0
        %2519 = vmatprep.subr.mxu0 0.0
        %2520 = vmatpush1.msra.mxu0 0.0
        %2521 = vmatprep.subr.mxu0 0.0
        %2522 = vmatpush1.msra.mxu0 0.0
        %2523 = vmatprep.subr.mxu0 0.0
        %2524 = vmatpush1.msra.mxu0 0.0
        %2525 = vmatprep.subr.mxu0 0.0
        %2526 = vmatpush1.msra.mxu0 %v2297
        %2527 = vmatprep.subr.mxu0 0.0
        %2528 = vmatpush1.msra.mxu0 %v2281
        %2529 = vmatprep.subr.mxu0 0.0
        %2530 = vmatpush1.msra.mxu0 %v2278
        %2531 = vmatprep.subr.mxu0 0.0
        %2532 = vmatpush1.msra.mxu0 %v2275
        %2533 = vmatprep.subr.mxu0 0.0
        %2534 = vmatpush1.msra.mxu0 %v2272
        %2535 = vmatprep.subr.mxu0 0.0
        %2536 = vmatpush1.msra.mxu0 %v2269
        %2537 = vmatprep.subr.mxu0 0.0
        %2538 = vmatpush1.msra.mxu0 %v2266
        %2539 = vmatprep.subr.mxu0 0.0
        %2540 = vmatpush1.msra.mxu0 %v2263
        %2541 = vmatprep.subr.mxu0 0.0
        %2542 = vmatpush1.msra.mxu0 %v2260
        %2543 = vmatprep.subr.mxu0 0.0
        %2544 = vmatpush2.msra.mxu0 0.0
        %2545 = vmatprep.subr.mxu0 0.0
        %2546 = vmatpush2.msra.mxu0 0.0
        %2547 = vmatprep.subr.mxu0 0.0
        %2548 = vmatpush2.msra.mxu0 0.0
        %2549 = vmatprep.subr.mxu0 0.0
        %2550 = vmatpush2.msra.mxu0 0.0
        %2551 = vmatprep.subr.mxu0 0.0
        %2552 = vmatpush2.msra.mxu0 0.0
        %2553 = vmatprep.subr.mxu0 0.0
        %2554 = vmatpush2.msra.mxu0 0.0
        %2555 = vmatprep.subr.mxu0 0.0
        %2556 = vmatpush2.msra.mxu0 0.0
        %2557 = vmatprep.subr.mxu0 0.0
        %2558 = vmatpush2.msra.mxu0 0.0
        %2559 = vmatprep.subr.mxu0 0.0
        %2560 = vmatpush2.msra.mxu0 0.0
        %2561 = vmatprep.subr.mxu0 0.0
        %2562 = vmatpush2.msra.mxu0 0.0
        %2563 = vmatprep.subr.mxu0 0.0
        %2564 = vmatpush2.msra.mxu0 0.0
        %2565 = vmatprep.subr.mxu0 0.0
        %2566 = vmatpush2.msra.mxu0 0.0
        %2567 = vmatprep.subr.mxu0 0.0
        %2568 = vmatpush2.msra.mxu0 0.0
        %2569 = vmatprep.subr.mxu0 0.0
        %2570 = vmatpush2.msra.mxu0 0.0
        %2571 = vmatprep.subr.mxu0 0.0
        %2572 = vmatpush2.msra.mxu0 0.0
        %2573 = vmatprep.subr.mxu0 0.0
        %2574 = vmatpush2.msra.mxu0 0.0
        %2575 = vmatprep.mubr.f32.mxu0 0.0
        %2576 = vmatmul.mubr.f32.gmra.mxu0 %v2287
        %v2577 = vpop.f32.mrf.mxu0
        %v2578 = vadd.f32 %v2508, %v2577
        %v2579 = vpop.f32.mrf.mxu0
        %2580 = vdwg.mxu0
        %v2581 = vld [vmem:[%s3] sm:$0xff]
        %s2582 = scalar_lea.vmem %s3, 8
        %v2583 = vld [vmem:[%s2582] sm:$0xff]
        %2587 = vrot.lane.b32.xlu0 %v2437, 127
        %v2588 = vpop.permute.xlu0 %2587
        %2589 = vrot.lane.b32.xlu0 %v2439, 127
        %v2590 = vpop.permute.xlu0 %2589
        %2591 = vrot.lane.b32.xlu0 %v2578, 127
        %v2592 = vpop.permute.xlu0 %2591
        %v2593 = vsel %vm698, %v2588, %v2590
        %v2594 = vsel %vm698, %v2590, %v2592
        %vm2598 = vcmask 64512
        %v2600 = vsel %vm2598, %v2583, 0
        %2602 = vmatprep.subr.mxu0 0.0
        %2603 = vmatpush1.msra.mxu0 0.0
        %2604 = vmatprep.subr.mxu0 0.0
        %2605 = vmatpush1.msra.mxu0 0.0
        %2606 = vmatprep.subr.mxu0 0.0
        %2607 = vmatpush1.msra.mxu0 0.0
        %2608 = vmatprep.subr.mxu0 0.0
        %2609 = vmatpush1.msra.mxu0 0.0
        %2610 = vmatprep.subr.mxu0 0.0
        %2611 = vmatpush1.msra.mxu0 0.0
        %2612 = vmatprep.subr.mxu0 0.0
        %2613 = vmatpush1.msra.mxu0 0.0
        %2614 = vmatprep.subr.mxu0 0.0
        %2615 = vmatpush1.msra.mxu0 0.0
        %2616 = vmatprep.subr.mxu0 0.0
        %2617 = vmatpush1.msra.mxu0 0.0
        %2618 = vmatprep.subr.mxu0 0.0
        %2619 = vmatpush1.msra.mxu0 0.0
        %2620 = vmatprep.subr.mxu0 0.0
        %2621 = vmatpush1.msra.mxu0 0.0
        %2622 = vmatprep.subr.mxu0 0.0
        %2623 = vmatpush1.msra.mxu0 0.0
        %2624 = vmatprep.subr.mxu0 0.0
        %2625 = vmatpush1.msra.mxu0 0.0
        %2626 = vmatprep.subr.mxu0 0.0
        %2627 = vmatpush1.msra.mxu0 0.0
        %2628 = vmatprep.subr.mxu0 0.0
        %2629 = vmatpush1.msra.mxu0 0.0
        %2630 = vmatprep.subr.mxu0 0.0
        %2631 = vmatpush1.msra.mxu0 0.0
        %2632 = vmatprep.subr.mxu0 %v2594
        %2633 = vmatpush1.msra.mxu0 %v2593
        %2634 = vmatprep.subr.mxu0 0.0
        %2635 = vmatpush2.msra.mxu0 0.0
        %2636 = vmatprep.subr.mxu0 0.0
        %2637 = vmatpush2.msra.mxu0 0.0
        %2638 = vmatprep.subr.mxu0 0.0
        %2639 = vmatpush2.msra.mxu0 0.0
        %2640 = vmatprep.subr.mxu0 0.0
        %2641 = vmatpush2.msra.mxu0 0.0
        %2642 = vmatprep.subr.mxu0 0.0
        %2643 = vmatpush2.msra.mxu0 0.0
        %2644 = vmatprep.subr.mxu0 0.0
        %2645 = vmatpush2.msra.mxu0 0.0
        %2646 = vmatprep.subr.mxu0 0.0
        %2647 = vmatpush2.msra.mxu0 0.0
        %2648 = vmatprep.subr.mxu0 0.0
        %2649 = vmatpush2.msra.mxu0 0.0
        %2650 = vmatprep.subr.mxu0 0.0
        %2651 = vmatpush2.msra.mxu0 0.0
        %2652 = vmatprep.subr.mxu0 0.0
        %2653 = vmatpush2.msra.mxu0 0.0
        %2654 = vmatprep.subr.mxu0 0.0
        %2655 = vmatpush2.msra.mxu0 0.0
        %2656 = vmatprep.subr.mxu0 0.0
        %2657 = vmatpush2.msra.mxu0 0.0
        %2658 = vmatprep.subr.mxu0 0.0
        %2659 = vmatpush2.msra.mxu0 0.0
        %2660 = vmatprep.subr.mxu0 0.0
        %2661 = vmatpush2.msra.mxu0 0.0
        %2662 = vmatprep.subr.mxu0 0.0
        %2663 = vmatpush2.msra.mxu0 0.0
        %2664 = vmatprep.subr.mxu0 0.0
        %2665 = vmatpush2.msra.mxu0 0.0
        %2666 = vmatprep.mubr.f32.mxu0 0.0
        %2667 = vmatmul.mubr.f32.gmra.mxu0 %v2600
        %v2668 = vpop.f32.mrf.mxu0
        %v2669 = vadd.f32 0.0, %v2668
        %v2670 = vpop.f32.mrf.mxu0
        %v2671 = vadd.f32 0.0, %v2670
        %2672 = vdwg.mxu0
        %2673 = vmatprep.subr.mxu0 0.0
        %2674 = vmatpush1.msra.mxu0 0.0
        %2675 = vmatprep.subr.mxu0 0.0
        %2676 = vmatpush1.msra.mxu0 0.0
        %2677 = vmatprep.subr.mxu0 0.0
        %2678 = vmatpush1.msra.mxu0 0.0
        %2679 = vmatprep.subr.mxu0 0.0
        %2680 = vmatpush1.msra.mxu0 0.0
        %2681 = vmatprep.subr.mxu0 0.0
        %2682 = vmatpush1.msra.mxu0 0.0
        %2683 = vmatprep.subr.mxu0 0.0
        %2684 = vmatpush1.msra.mxu0 0.0
        %2685 = vmatprep.subr.mxu0 0.0
        %2686 = vmatpush1.msra.mxu0 0.0
        %2687 = vmatprep.subr.mxu0 0.0
        %2688 = vmatpush1.msra.mxu0 0.0
        %2689 = vmatprep.subr.mxu0 0.0
        %2690 = vmatpush1.msra.mxu0 0.0
        %2691 = vmatprep.subr.mxu0 0.0
        %2692 = vmatpush1.msra.mxu0 0.0
        %2693 = vmatprep.subr.mxu0 0.0
        %2694 = vmatpush1.msra.mxu0 0.0
        %2695 = vmatprep.subr.mxu0 0.0
        %2696 = vmatpush1.msra.mxu0 0.0
        %2697 = vmatprep.subr.mxu0 0.0
        %2698 = vmatpush1.msra.mxu0 0.0
        %2699 = vmatprep.subr.mxu0 0.0
        %2700 = vmatpush1.msra.mxu0 0.0
        %2701 = vmatprep.subr.mxu0 0.0
        %2702 = vmatpush1.msra.mxu0 0.0
        %2703 = vmatprep.subr.mxu0 0.0
        %2704 = vmatpush1.msra.mxu0 %v2592
        %2705 = vmatprep.subr.mxu0 0.0
        %2706 = vmatpush2.msra.mxu0 0.0
        %2707 = vmatprep.subr.mxu0 0.0
        %2708 = vmatpush2.msra.mxu0 0.0
        %2709 = vmatprep.subr.mxu0 0.0
        %2710 = vmatpush2.msra.mxu0 0.0
        %2711 = vmatprep.subr.mxu0 0.0
        %2712 = vmatpush2.msra.mxu0 0.0
        %2713 = vmatprep.subr.mxu0 0.0
        %2714 = vmatpush2.msra.mxu0 0.0
        %2715 = vmatprep.subr.mxu0 0.0
        %2716 = vmatpush2.msra.mxu0 0.0
        %2717 = vmatprep.subr.mxu0 0.0
        %2718 = vmatpush2.msra.mxu0 0.0
        %2719 = vmatprep.subr.mxu0 0.0
        %2720 = vmatpush2.msra.mxu0 0.0
        %2721 = vmatprep.subr.mxu0 0.0
        %2722 = vmatpush2.msra.mxu0 0.0
        %2723 = vmatprep.subr.mxu0 0.0
        %2724 = vmatpush2.msra.mxu0 0.0
        %2725 = vmatprep.subr.mxu0 0.0
        %2726 = vmatpush2.msra.mxu0 0.0
        %2727 = vmatprep.subr.mxu0 0.0
        %2728 = vmatpush2.msra.mxu0 0.0
        %2729 = vmatprep.subr.mxu0 0.0
        %2730 = vmatpush2.msra.mxu0 0.0
        %2731 = vmatprep.subr.mxu0 0.0
        %2732 = vmatpush2.msra.mxu0 0.0
        %2733 = vmatprep.subr.mxu0 0.0
        %2734 = vmatpush2.msra.mxu0 0.0
        %2735 = vmatprep.subr.mxu0 0.0
        %2736 = vmatpush2.msra.mxu0 0.0
        %2737 = vmatprep.mubr.f32.mxu0 0.0
        %2738 = vmatmul.mubr.f32.gmra.mxu0 %v2600
        %v2739 = vpop.f32.mrf.mxu0
        %v2740 = vadd.f32 0.0, %v2739
        %v2741 = vpop.f32.mrf.mxu0
        %2742 = vdwg.mxu0
        %v2744 = vsel %vm2598, %v2581, 0
        %2746 = vmatprep.subr.mxu0 0.0
        %2747 = vmatpush1.msra.mxu0 0.0
        %2748 = vmatprep.subr.mxu0 0.0
        %2749 = vmatpush1.msra.mxu0 0.0
        %2750 = vmatprep.subr.mxu0 0.0
        %2751 = vmatpush1.msra.mxu0 0.0
        %2752 = vmatprep.subr.mxu0 0.0
        %2753 = vmatpush1.msra.mxu0 0.0
        %2754 = vmatprep.subr.mxu0 0.0
        %2755 = vmatpush1.msra.mxu0 0.0
        %2756 = vmatprep.subr.mxu0 0.0
        %2757 = vmatpush1.msra.mxu0 0.0
        %2758 = vmatprep.subr.mxu0 0.0
        %2759 = vmatpush1.msra.mxu0 0.0
        %2760 = vmatprep.subr.mxu0 0.0
        %2761 = vmatpush1.msra.mxu0 0.0
        %2762 = vmatprep.subr.mxu0 0.0
        %2763 = vmatpush1.msra.mxu0 0.0
        %2764 = vmatprep.subr.mxu0 0.0
        %2765 = vmatpush1.msra.mxu0 0.0
        %2766 = vmatprep.subr.mxu0 0.0
        %2767 = vmatpush1.msra.mxu0 0.0
        %2768 = vmatprep.subr.mxu0 0.0
        %2769 = vmatpush1.msra.mxu0 0.0
        %2770 = vmatprep.subr.mxu0 0.0
        %2771 = vmatpush1.msra.mxu0 0.0
        %2772 = vmatprep.subr.mxu0 0.0
        %2773 = vmatpush1.msra.mxu0 0.0
        %2774 = vmatprep.subr.mxu0 0.0
        %2775 = vmatpush1.msra.mxu0 0.0
        %2776 = vmatprep.subr.mxu0 %v2439
        %2777 = vmatpush1.msra.mxu0 %v2437
        %2778 = vmatprep.subr.mxu0 0.0
        %2779 = vmatpush2.msra.mxu0 0.0
        %2780 = vmatprep.subr.mxu0 0.0
        %2781 = vmatpush2.msra.mxu0 0.0
        %2782 = vmatprep.subr.mxu0 0.0
        %2783 = vmatpush2.msra.mxu0 0.0
        %2784 = vmatprep.subr.mxu0 0.0
        %2785 = vmatpush2.msra.mxu0 0.0
        %2786 = vmatprep.subr.mxu0 0.0
        %2787 = vmatpush2.msra.mxu0 0.0
        %2788 = vmatprep.subr.mxu0 0.0
        %2789 = vmatpush2.msra.mxu0 0.0
        %2790 = vmatprep.subr.mxu0 0.0
        %2791 = vmatpush2.msra.mxu0 0.0
        %2792 = vmatprep.subr.mxu0 0.0
        %2793 = vmatpush2.msra.mxu0 0.0
        %2794 = vmatprep.subr.mxu0 0.0
        %2795 = vmatpush2.msra.mxu0 0.0
        %2796 = vmatprep.subr.mxu0 0.0
        %2797 = vmatpush2.msra.mxu0 0.0
        %2798 = vmatprep.subr.mxu0 0.0
        %2799 = vmatpush2.msra.mxu0 0.0
        %2800 = vmatprep.subr.mxu0 0.0
        %2801 = vmatpush2.msra.mxu0 0.0
        %2802 = vmatprep.subr.mxu0 0.0
        %2803 = vmatpush2.msra.mxu0 0.0
        %2804 = vmatprep.subr.mxu0 0.0
        %2805 = vmatpush2.msra.mxu0 0.0
        %2806 = vmatprep.subr.mxu0 0.0
        %2807 = vmatpush2.msra.mxu0 0.0
        %2808 = vmatprep.subr.mxu0 0.0
        %2809 = vmatpush2.msra.mxu0 0.0
        %2810 = vmatprep.mubr.f32.mxu0 0.0
        %2811 = vmatmul.mubr.f32.gmra.mxu0 %v2744
        %v2812 = vpop.f32.mrf.mxu0
        %v2813 = vadd.f32 %v2669, %v2812
        %v2814 = vpop.f32.mrf.mxu0
        %v2815 = vadd.f32 %v2671, %v2814
        %2816 = vdwg.mxu0
        %2817 = vmatprep.subr.mxu0 0.0
        %2818 = vmatpush1.msra.mxu0 0.0
        %2819 = vmatprep.subr.mxu0 0.0
        %2820 = vmatpush1.msra.mxu0 0.0
        %2821 = vmatprep.subr.mxu0 0.0
        %2822 = vmatpush1.msra.mxu0 0.0
        %2823 = vmatprep.subr.mxu0 0.0
        %2824 = vmatpush1.msra.mxu0 0.0
        %2825 = vmatprep.subr.mxu0 0.0
        %2826 = vmatpush1.msra.mxu0 0.0
        %2827 = vmatprep.subr.mxu0 0.0
        %2828 = vmatpush1.msra.mxu0 0.0
        %2829 = vmatprep.subr.mxu0 0.0
        %2830 = vmatpush1.msra.mxu0 0.0
        %2831 = vmatprep.subr.mxu0 0.0
        %2832 = vmatpush1.msra.mxu0 0.0
        %2833 = vmatprep.subr.mxu0 0.0
        %2834 = vmatpush1.msra.mxu0 0.0
        %2835 = vmatprep.subr.mxu0 0.0
        %2836 = vmatpush1.msra.mxu0 0.0
        %2837 = vmatprep.subr.mxu0 0.0
        %2838 = vmatpush1.msra.mxu0 0.0
        %2839 = vmatprep.subr.mxu0 0.0
        %2840 = vmatpush1.msra.mxu0 0.0
        %2841 = vmatprep.subr.mxu0 0.0
        %2842 = vmatpush1.msra.mxu0 0.0
        %2843 = vmatprep.subr.mxu0 0.0
        %2844 = vmatpush1.msra.mxu0 0.0
        %2845 = vmatprep.subr.mxu0 0.0
        %2846 = vmatpush1.msra.mxu0 0.0
        %2847 = vmatprep.subr.mxu0 0.0
        %2848 = vmatpush1.msra.mxu0 %v2578
        %2849 = vmatprep.subr.mxu0 0.0
        %2850 = vmatpush2.msra.mxu0 0.0
        %2851 = vmatprep.subr.mxu0 0.0
        %2852 = vmatpush2.msra.mxu0 0.0
        %2853 = vmatprep.subr.mxu0 0.0
        %2854 = vmatpush2.msra.mxu0 0.0
        %2855 = vmatprep.subr.mxu0 0.0
        %2856 = vmatpush2.msra.mxu0 0.0
        %2857 = vmatprep.subr.mxu0 0.0
        %2858 = vmatpush2.msra.mxu0 0.0
        %2859 = vmatprep.subr.mxu0 0.0
        %2860 = vmatpush2.msra.mxu0 0.0
        %2861 = vmatprep.subr.mxu0 0.0
        %2862 = vmatpush2.msra.mxu0 0.0
        %2863 = vmatprep.subr.mxu0 0.0
        %2864 = vmatpush2.msra.mxu0 0.0
        %2865 = vmatprep.subr.mxu0 0.0
        %2866 = vmatpush2.msra.mxu0 0.0
        %2867 = vmatprep.subr.mxu0 0.0
        %2868 = vmatpush2.msra.mxu0 0.0
        %2869 = vmatprep.subr.mxu0 0.0
        %2870 = vmatpush2.msra.mxu0 0.0
        %2871 = vmatprep.subr.mxu0 0.0
        %2872 = vmatpush2.msra.mxu0 0.0
        %2873 = vmatprep.subr.mxu0 0.0
        %2874 = vmatpush2.msra.mxu0 0.0
        %2875 = vmatprep.subr.mxu0 0.0
        %2876 = vmatpush2.msra.mxu0 0.0
        %2877 = vmatprep.subr.mxu0 0.0
        %2878 = vmatpush2.msra.mxu0 0.0
        %2879 = vmatprep.subr.mxu0 0.0
        %2880 = vmatpush2.msra.mxu0 0.0
        %2881 = vmatprep.mubr.f32.mxu0 0.0
        %2882 = vmatmul.mubr.f32.gmra.mxu0 %v2744
        %v2883 = vpop.f32.mrf.mxu0
        %v2884 = vadd.f32 %v2740, %v2883
        %v2885 = vpop.f32.mrf.mxu0
        %2886 = vdwg.mxu0
        %s2887 = scalar_lea.vmem %s3, 16
        %v2888 = vld [vmem:[%s2887] sm:$0xff]
        %2889 = vrot.lane.b32.xlu0 %v2437, 126
        %v2890 = vpop.permute.xlu0 %2889
        %2891 = vrot.lane.b32.xlu0 %v2439, 126
        %v2892 = vpop.permute.xlu0 %2891
        %2893 = vrot.lane.b32.xlu0 %v2578, 126
        %v2894 = vpop.permute.xlu0 %2893
        %v2895 = vsel %vm1011, %v2890, %v2892
        %v2896 = vsel %vm1011, %v2892, %v2894
        %v2901 = vsel %vm2598, %v2888, 0
        %2903 = vmatprep.subr.mxu0 0.0
        %2904 = vmatpush1.msra.mxu0 0.0
        %2905 = vmatprep.subr.mxu0 0.0
        %2906 = vmatpush1.msra.mxu0 0.0
        %2907 = vmatprep.subr.mxu0 0.0
        %2908 = vmatpush1.msra.mxu0 0.0
        %2909 = vmatprep.subr.mxu0 0.0
        %2910 = vmatpush1.msra.mxu0 0.0
        %2911 = vmatprep.subr.mxu0 0.0
        %2912 = vmatpush1.msra.mxu0 0.0
        %2913 = vmatprep.subr.mxu0 0.0
        %2914 = vmatpush1.msra.mxu0 0.0
        %2915 = vmatprep.subr.mxu0 0.0
        %2916 = vmatpush1.msra.mxu0 0.0
        %2917 = vmatprep.subr.mxu0 0.0
        %2918 = vmatpush1.msra.mxu0 0.0
        %2919 = vmatprep.subr.mxu0 0.0
        %2920 = vmatpush1.msra.mxu0 0.0
        %2921 = vmatprep.subr.mxu0 0.0
        %2922 = vmatpush1.msra.mxu0 0.0
        %2923 = vmatprep.subr.mxu0 0.0
        %2924 = vmatpush1.msra.mxu0 0.0
        %2925 = vmatprep.subr.mxu0 0.0
        %2926 = vmatpush1.msra.mxu0 0.0
        %2927 = vmatprep.subr.mxu0 0.0
        %2928 = vmatpush1.msra.mxu0 0.0
        %2929 = vmatprep.subr.mxu0 0.0
        %2930 = vmatpush1.msra.mxu0 0.0
        %2931 = vmatprep.subr.mxu0 0.0
        %2932 = vmatpush1.msra.mxu0 0.0
        %2933 = vmatprep.subr.mxu0 %v2896
        %2934 = vmatpush1.msra.mxu0 %v2895
        %2935 = vmatprep.subr.mxu0 0.0
        %2936 = vmatpush2.msra.mxu0 0.0
        %2937 = vmatprep.subr.mxu0 0.0
        %2938 = vmatpush2.msra.mxu0 0.0
        %2939 = vmatprep.subr.mxu0 0.0
        %2940 = vmatpush2.msra.mxu0 0.0
        %2941 = vmatprep.subr.mxu0 0.0
        %2942 = vmatpush2.msra.mxu0 0.0
        %2943 = vmatprep.subr.mxu0 0.0
        %2944 = vmatpush2.msra.mxu0 0.0
        %2945 = vmatprep.subr.mxu0 0.0
        %2946 = vmatpush2.msra.mxu0 0.0
        %2947 = vmatprep.subr.mxu0 0.0
        %2948 = vmatpush2.msra.mxu0 0.0
        %2949 = vmatprep.subr.mxu0 0.0
        %2950 = vmatpush2.msra.mxu0 0.0
        %2951 = vmatprep.subr.mxu0 0.0
        %2952 = vmatpush2.msra.mxu0 0.0
        %2953 = vmatprep.subr.mxu0 0.0
        %2954 = vmatpush2.msra.mxu0 0.0
        %2955 = vmatprep.subr.mxu0 0.0
        %2956 = vmatpush2.msra.mxu0 0.0
        %2957 = vmatprep.subr.mxu0 0.0
        %2958 = vmatpush2.msra.mxu0 0.0
        %2959 = vmatprep.subr.mxu0 0.0
        %2960 = vmatpush2.msra.mxu0 0.0
        %2961 = vmatprep.subr.mxu0 0.0
        %2962 = vmatpush2.msra.mxu0 0.0
        %2963 = vmatprep.subr.mxu0 0.0
        %2964 = vmatpush2.msra.mxu0 0.0
        %2965 = vmatprep.subr.mxu0 0.0
        %2966 = vmatpush2.msra.mxu0 0.0
        %2967 = vmatprep.mubr.f32.mxu0 0.0
        %2968 = vmatmul.mubr.f32.gmra.mxu0 %v2901
        %v2969 = vpop.f32.mrf.mxu0
        %v2970 = vadd.f32 0.0, %v2969
        %v2971 = vpop.f32.mrf.mxu0
        %v2972 = vadd.f32 0.0, %v2971
        %2973 = vdwg.mxu0
        %2974 = vmatprep.subr.mxu0 0.0
        %2975 = vmatpush1.msra.mxu0 0.0
        %2976 = vmatprep.subr.mxu0 0.0
        %2977 = vmatpush1.msra.mxu0 0.0
        %2978 = vmatprep.subr.mxu0 0.0
        %2979 = vmatpush1.msra.mxu0 0.0
        %2980 = vmatprep.subr.mxu0 0.0
        %2981 = vmatpush1.msra.mxu0 0.0
        %2982 = vmatprep.subr.mxu0 0.0
        %2983 = vmatpush1.msra.mxu0 0.0
        %2984 = vmatprep.subr.mxu0 0.0
        %2985 = vmatpush1.msra.mxu0 0.0
        %2986 = vmatprep.subr.mxu0 0.0
        %2987 = vmatpush1.msra.mxu0 0.0
        %2988 = vmatprep.subr.mxu0 0.0
        %2989 = vmatpush1.msra.mxu0 0.0
        %2990 = vmatprep.subr.mxu0 0.0
        %2991 = vmatpush1.msra.mxu0 0.0
        %2992 = vmatprep.subr.mxu0 0.0
        %2993 = vmatpush1.msra.mxu0 0.0
        %2994 = vmatprep.subr.mxu0 0.0
        %2995 = vmatpush1.msra.mxu0 0.0
        %2996 = vmatprep.subr.mxu0 0.0
        %2997 = vmatpush1.msra.mxu0 0.0
        %2998 = vmatprep.subr.mxu0 0.0
        %2999 = vmatpush1.msra.mxu0 0.0
        %3000 = vmatprep.subr.mxu0 0.0
        %3001 = vmatpush1.msra.mxu0 0.0
        %3002 = vmatprep.subr.mxu0 0.0
        %3003 = vmatpush1.msra.mxu0 0.0
        %3004 = vmatprep.subr.mxu0 0.0
        %3005 = vmatpush1.msra.mxu0 %v2894
        %3006 = vmatprep.subr.mxu0 0.0
        %3007 = vmatpush2.msra.mxu0 0.0
        %3008 = vmatprep.subr.mxu0 0.0
        %3009 = vmatpush2.msra.mxu0 0.0
        %3010 = vmatprep.subr.mxu0 0.0
        %3011 = vmatpush2.msra.mxu0 0.0
        %3012 = vmatprep.subr.mxu0 0.0
        %3013 = vmatpush2.msra.mxu0 0.0
        %3014 = vmatprep.subr.mxu0 0.0
        %3015 = vmatpush2.msra.mxu0 0.0
        %3016 = vmatprep.subr.mxu0 0.0
        %3017 = vmatpush2.msra.mxu0 0.0
        %3018 = vmatprep.subr.mxu0 0.0
        %3019 = vmatpush2.msra.mxu0 0.0
        %3020 = vmatprep.subr.mxu0 0.0
        %3021 = vmatpush2.msra.mxu0 0.0
        %3022 = vmatprep.subr.mxu0 0.0
        %3023 = vmatpush2.msra.mxu0 0.0
        %3024 = vmatprep.subr.mxu0 0.0
        %3025 = vmatpush2.msra.mxu0 0.0
        %3026 = vmatprep.subr.mxu0 0.0
        %3027 = vmatpush2.msra.mxu0 0.0
        %3028 = vmatprep.subr.mxu0 0.0
        %3029 = vmatpush2.msra.mxu0 0.0
        %3030 = vmatprep.subr.mxu0 0.0
        %3031 = vmatpush2.msra.mxu0 0.0
        %3032 = vmatprep.subr.mxu0 0.0
        %3033 = vmatpush2.msra.mxu0 0.0
        %3034 = vmatprep.subr.mxu0 0.0
        %3035 = vmatpush2.msra.mxu0 0.0
        %3036 = vmatprep.subr.mxu0 0.0
        %3037 = vmatpush2.msra.mxu0 0.0
        %3038 = vmatprep.mubr.f32.mxu0 0.0
        %3039 = vmatmul.mubr.f32.gmra.mxu0 %v2901
        %v3040 = vpop.f32.mrf.mxu0
        %v3041 = vadd.f32 0.0, %v3040
        %v3042 = vpop.f32.mrf.mxu0
        %3043 = vdwg.mxu0
        %v3044 = vadd.f32 %v2813, %v2970
        %v3045 = vadd.f32 %v2815, %v2972
        %v3046 = vadd.f32 %v2884, %v3041
        %s3047 = scalar_lea.vmem %s3, 24
        %v3048 = vld [vmem:[%s3047] sm:$0xff]
        %3049 = vrot.lane.b32.xlu0 %v2437, 110
        %v3050 = vpop.permute.xlu0 %3049
        %3051 = vrot.lane.b32.xlu0 %v2439, 110
        %v3052 = vpop.permute.xlu0 %3051
        %3053 = vrot.lane.b32.xlu0 %v2578, 110
        %v3054 = vpop.permute.xlu0 %3053
        %v3055 = vsel %vm1175, %v3050, %v3052
        %v3056 = vsel %vm1175, %v3052, %v3054
        %v3061 = vsel %vm2598, %v3048, 0
        %3063 = vmatprep.subr.mxu0 0.0
        %3064 = vmatpush1.msra.mxu0 0.0
        %3065 = vmatprep.subr.mxu0 0.0
        %3066 = vmatpush1.msra.mxu0 0.0
        %3067 = vmatprep.subr.mxu0 0.0
        %3068 = vmatpush1.msra.mxu0 0.0
        %3069 = vmatprep.subr.mxu0 0.0
        %3070 = vmatpush1.msra.mxu0 0.0
        %3071 = vmatprep.subr.mxu0 0.0
        %3072 = vmatpush1.msra.mxu0 0.0
        %3073 = vmatprep.subr.mxu0 0.0
        %3074 = vmatpush1.msra.mxu0 0.0
        %3075 = vmatprep.subr.mxu0 0.0
        %3076 = vmatpush1.msra.mxu0 0.0
        %3077 = vmatprep.subr.mxu0 0.0
        %3078 = vmatpush1.msra.mxu0 0.0
        %3079 = vmatprep.subr.mxu0 0.0
        %3080 = vmatpush1.msra.mxu0 0.0
        %3081 = vmatprep.subr.mxu0 0.0
        %3082 = vmatpush1.msra.mxu0 0.0
        %3083 = vmatprep.subr.mxu0 0.0
        %3084 = vmatpush1.msra.mxu0 0.0
        %3085 = vmatprep.subr.mxu0 0.0
        %3086 = vmatpush1.msra.mxu0 0.0
        %3087 = vmatprep.subr.mxu0 0.0
        %3088 = vmatpush1.msra.mxu0 0.0
        %3089 = vmatprep.subr.mxu0 0.0
        %3090 = vmatpush1.msra.mxu0 0.0
        %3091 = vmatprep.subr.mxu0 0.0
        %3092 = vmatpush1.msra.mxu0 0.0
        %3093 = vmatprep.subr.mxu0 %v3056
        %3094 = vmatpush1.msra.mxu0 %v3055
        %3095 = vmatprep.subr.mxu0 0.0
        %3096 = vmatpush2.msra.mxu0 0.0
        %3097 = vmatprep.subr.mxu0 0.0
        %3098 = vmatpush2.msra.mxu0 0.0
        %3099 = vmatprep.subr.mxu0 0.0
        %3100 = vmatpush2.msra.mxu0 0.0
        %3101 = vmatprep.subr.mxu0 0.0
        %3102 = vmatpush2.msra.mxu0 0.0
        %3103 = vmatprep.subr.mxu0 0.0
        %3104 = vmatpush2.msra.mxu0 0.0
        %3105 = vmatprep.subr.mxu0 0.0
        %3106 = vmatpush2.msra.mxu0 0.0
        %3107 = vmatprep.subr.mxu0 0.0
        %3108 = vmatpush2.msra.mxu0 0.0
        %3109 = vmatprep.subr.mxu0 0.0
        %3110 = vmatpush2.msra.mxu0 0.0
        %3111 = vmatprep.subr.mxu0 0.0
        %3112 = vmatpush2.msra.mxu0 0.0
        %3113 = vmatprep.subr.mxu0 0.0
        %3114 = vmatpush2.msra.mxu0 0.0
        %3115 = vmatprep.subr.mxu0 0.0
        %3116 = vmatpush2.msra.mxu0 0.0
        %3117 = vmatprep.subr.mxu0 0.0
        %3118 = vmatpush2.msra.mxu0 0.0
        %3119 = vmatprep.subr.mxu0 0.0
        %3120 = vmatpush2.msra.mxu0 0.0
        %3121 = vmatprep.subr.mxu0 0.0
        %3122 = vmatpush2.msra.mxu0 0.0
        %3123 = vmatprep.subr.mxu0 0.0
        %3124 = vmatpush2.msra.mxu0 0.0
        %3125 = vmatprep.subr.mxu0 0.0
        %3126 = vmatpush2.msra.mxu0 0.0
        %3127 = vmatprep.mubr.f32.mxu0 0.0
        %3128 = vmatmul.mubr.f32.gmra.mxu0 %v3061
        %v3129 = vpop.f32.mrf.mxu0
        %v3130 = vadd.f32 0.0, %v3129
        %v3131 = vpop.f32.mrf.mxu0
        %v3132 = vadd.f32 0.0, %v3131
        %3133 = vdwg.mxu0
        %3134 = vmatprep.subr.mxu0 0.0
        %3135 = vmatpush1.msra.mxu0 0.0
        %3136 = vmatprep.subr.mxu0 0.0
        %3137 = vmatpush1.msra.mxu0 0.0
        %3138 = vmatprep.subr.mxu0 0.0
        %3139 = vmatpush1.msra.mxu0 0.0
        %3140 = vmatprep.subr.mxu0 0.0
        %3141 = vmatpush1.msra.mxu0 0.0
        %3142 = vmatprep.subr.mxu0 0.0
        %3143 = vmatpush1.msra.mxu0 0.0
        %3144 = vmatprep.subr.mxu0 0.0
        %3145 = vmatpush1.msra.mxu0 0.0
        %3146 = vmatprep.subr.mxu0 0.0
        %3147 = vmatpush1.msra.mxu0 0.0
        %3148 = vmatprep.subr.mxu0 0.0
        %3149 = vmatpush1.msra.mxu0 0.0
        %3150 = vmatprep.subr.mxu0 0.0
        %3151 = vmatpush1.msra.mxu0 0.0
        %3152 = vmatprep.subr.mxu0 0.0
        %3153 = vmatpush1.msra.mxu0 0.0
        %3154 = vmatprep.subr.mxu0 0.0
        %3155 = vmatpush1.msra.mxu0 0.0
        %3156 = vmatprep.subr.mxu0 0.0
        %3157 = vmatpush1.msra.mxu0 0.0
        %3158 = vmatprep.subr.mxu0 0.0
        %3159 = vmatpush1.msra.mxu0 0.0
        %3160 = vmatprep.subr.mxu0 0.0
        %3161 = vmatpush1.msra.mxu0 0.0
        %3162 = vmatprep.subr.mxu0 0.0
        %3163 = vmatpush1.msra.mxu0 0.0
        %3164 = vmatprep.subr.mxu0 0.0
        %3165 = vmatpush1.msra.mxu0 %v3054
        %3166 = vmatprep.subr.mxu0 0.0
        %3167 = vmatpush2.msra.mxu0 0.0
        %3168 = vmatprep.subr.mxu0 0.0
        %3169 = vmatpush2.msra.mxu0 0.0
        %3170 = vmatprep.subr.mxu0 0.0
        %3171 = vmatpush2.msra.mxu0 0.0
        %3172 = vmatprep.subr.mxu0 0.0
        %3173 = vmatpush2.msra.mxu0 0.0
        %3174 = vmatprep.subr.mxu0 0.0
        %3175 = vmatpush2.msra.mxu0 0.0
        %3176 = vmatprep.subr.mxu0 0.0
        %3177 = vmatpush2.msra.mxu0 0.0
        %3178 = vmatprep.subr.mxu0 0.0
        %3179 = vmatpush2.msra.mxu0 0.0
        %3180 = vmatprep.subr.mxu0 0.0
        %3181 = vmatpush2.msra.mxu0 0.0
        %3182 = vmatprep.subr.mxu0 0.0
        %3183 = vmatpush2.msra.mxu0 0.0
        %3184 = vmatprep.subr.mxu0 0.0
        %3185 = vmatpush2.msra.mxu0 0.0
        %3186 = vmatprep.subr.mxu0 0.0
        %3187 = vmatpush2.msra.mxu0 0.0
        %3188 = vmatprep.subr.mxu0 0.0
        %3189 = vmatpush2.msra.mxu0 0.0
        %3190 = vmatprep.subr.mxu0 0.0
        %3191 = vmatpush2.msra.mxu0 0.0
        %3192 = vmatprep.subr.mxu0 0.0
        %3193 = vmatpush2.msra.mxu0 0.0
        %3194 = vmatprep.subr.mxu0 0.0
        %3195 = vmatpush2.msra.mxu0 0.0
        %3196 = vmatprep.subr.mxu0 0.0
        %3197 = vmatpush2.msra.mxu0 0.0
        %3198 = vmatprep.mubr.f32.mxu0 0.0
        %3199 = vmatmul.mubr.f32.gmra.mxu0 %v3061
        %v3200 = vpop.f32.mrf.mxu0
        %v3201 = vadd.f32 0.0, %v3200
        %v3202 = vpop.f32.mrf.mxu0
        %3203 = vdwg.mxu0
        %v3204 = vadd.f32 %v3044, %v3130
        %v3205 = vadd.f32 %v3045, %v3132
        %v3206 = vadd.f32 %v3046, %v3201
        %s3207 = scalar_lea.vmem %s3, 32
        %v3208 = vld [vmem:[%s3207] sm:$0xff]
        %3209 = vrot.lane.b32.xlu0 %v2437, 109
        %v3210 = vpop.permute.xlu0 %3209
        %3211 = vrot.lane.b32.xlu0 %v2439, 109
        %v3212 = vpop.permute.xlu0 %3211
        %3213 = vrot.lane.b32.xlu0 %v2578, 109
        %v3214 = vpop.permute.xlu0 %3213
        %v3215 = vsel %vm1339, %v3210, %v3212
        %v3216 = vsel %vm1339, %v3212, %v3214
        %v3221 = vsel %vm2598, %v3208, 0
        %3223 = vmatprep.subr.mxu0 0.0
        %3224 = vmatpush1.msra.mxu0 0.0
        %3225 = vmatprep.subr.mxu0 0.0
        %3226 = vmatpush1.msra.mxu0 0.0
        %3227 = vmatprep.subr.mxu0 0.0
        %3228 = vmatpush1.msra.mxu0 0.0
        %3229 = vmatprep.subr.mxu0 0.0
        %3230 = vmatpush1.msra.mxu0 0.0
        %3231 = vmatprep.subr.mxu0 0.0
        %3232 = vmatpush1.msra.mxu0 0.0
        %3233 = vmatprep.subr.mxu0 0.0
        %3234 = vmatpush1.msra.mxu0 0.0
        %3235 = vmatprep.subr.mxu0 0.0
        %3236 = vmatpush1.msra.mxu0 0.0
        %3237 = vmatprep.subr.mxu0 0.0
        %3238 = vmatpush1.msra.mxu0 0.0
        %3239 = vmatprep.subr.mxu0 0.0
        %3240 = vmatpush1.msra.mxu0 0.0
        %3241 = vmatprep.subr.mxu0 0.0
        %3242 = vmatpush1.msra.mxu0 0.0
        %3243 = vmatprep.subr.mxu0 0.0
        %3244 = vmatpush1.msra.mxu0 0.0
        %3245 = vmatprep.subr.mxu0 0.0
        %3246 = vmatpush1.msra.mxu0 0.0
        %3247 = vmatprep.subr.mxu0 0.0
        %3248 = vmatpush1.msra.mxu0 0.0
        %3249 = vmatprep.subr.mxu0 0.0
        %3250 = vmatpush1.msra.mxu0 0.0
        %3251 = vmatprep.subr.mxu0 0.0
        %3252 = vmatpush1.msra.mxu0 0.0
        %3253 = vmatprep.subr.mxu0 %v3216
        %3254 = vmatpush1.msra.mxu0 %v3215
        %3255 = vmatprep.subr.mxu0 0.0
        %3256 = vmatpush2.msra.mxu0 0.0
        %3257 = vmatprep.subr.mxu0 0.0
        %3258 = vmatpush2.msra.mxu0 0.0
        %3259 = vmatprep.subr.mxu0 0.0
        %3260 = vmatpush2.msra.mxu0 0.0
        %3261 = vmatprep.subr.mxu0 0.0
        %3262 = vmatpush2.msra.mxu0 0.0
        %3263 = vmatprep.subr.mxu0 0.0
        %3264 = vmatpush2.msra.mxu0 0.0
        %3265 = vmatprep.subr.mxu0 0.0
        %3266 = vmatpush2.msra.mxu0 0.0
        %3267 = vmatprep.subr.mxu0 0.0
        %3268 = vmatpush2.msra.mxu0 0.0
        %3269 = vmatprep.subr.mxu0 0.0
        %3270 = vmatpush2.msra.mxu0 0.0
        %3271 = vmatprep.subr.mxu0 0.0
        %3272 = vmatpush2.msra.mxu0 0.0
        %3273 = vmatprep.subr.mxu0 0.0
        %3274 = vmatpush2.msra.mxu0 0.0
        %3275 = vmatprep.subr.mxu0 0.0
        %3276 = vmatpush2.msra.mxu0 0.0
        %3277 = vmatprep.subr.mxu0 0.0
        %3278 = vmatpush2.msra.mxu0 0.0
        %3279 = vmatprep.subr.mxu0 0.0
        %3280 = vmatpush2.msra.mxu0 0.0
        %3281 = vmatprep.subr.mxu0 0.0
        %3282 = vmatpush2.msra.mxu0 0.0
        %3283 = vmatprep.subr.mxu0 0.0
        %3284 = vmatpush2.msra.mxu0 0.0
        %3285 = vmatprep.subr.mxu0 0.0
        %3286 = vmatpush2.msra.mxu0 0.0
        %3287 = vmatprep.mubr.f32.mxu0 0.0
        %3288 = vmatmul.mubr.f32.gmra.mxu0 %v3221
        %v3289 = vpop.f32.mrf.mxu0
        %v3290 = vadd.f32 0.0, %v3289
        %v3291 = vpop.f32.mrf.mxu0
        %v3292 = vadd.f32 0.0, %v3291
        %3293 = vdwg.mxu0
        %3294 = vmatprep.subr.mxu0 0.0
        %3295 = vmatpush1.msra.mxu0 0.0
        %3296 = vmatprep.subr.mxu0 0.0
        %3297 = vmatpush1.msra.mxu0 0.0
        %3298 = vmatprep.subr.mxu0 0.0
        %3299 = vmatpush1.msra.mxu0 0.0
        %3300 = vmatprep.subr.mxu0 0.0
        %3301 = vmatpush1.msra.mxu0 0.0
        %3302 = vmatprep.subr.mxu0 0.0
        %3303 = vmatpush1.msra.mxu0 0.0
        %3304 = vmatprep.subr.mxu0 0.0
        %3305 = vmatpush1.msra.mxu0 0.0
        %3306 = vmatprep.subr.mxu0 0.0
        %3307 = vmatpush1.msra.mxu0 0.0
        %3308 = vmatprep.subr.mxu0 0.0
        %3309 = vmatpush1.msra.mxu0 0.0
        %3310 = vmatprep.subr.mxu0 0.0
        %3311 = vmatpush1.msra.mxu0 0.0
        %3312 = vmatprep.subr.mxu0 0.0
        %3313 = vmatpush1.msra.mxu0 0.0
        %3314 = vmatprep.subr.mxu0 0.0
        %3315 = vmatpush1.msra.mxu0 0.0
        %3316 = vmatprep.subr.mxu0 0.0
        %3317 = vmatpush1.msra.mxu0 0.0
        %3318 = vmatprep.subr.mxu0 0.0
        %3319 = vmatpush1.msra.mxu0 0.0
        %3320 = vmatprep.subr.mxu0 0.0
        %3321 = vmatpush1.msra.mxu0 0.0
        %3322 = vmatprep.subr.mxu0 0.0
        %3323 = vmatpush1.msra.mxu0 0.0
        %3324 = vmatprep.subr.mxu0 0.0
        %3325 = vmatpush1.msra.mxu0 %v3214
        %3326 = vmatprep.subr.mxu0 0.0
        %3327 = vmatpush2.msra.mxu0 0.0
        %3328 = vmatprep.subr.mxu0 0.0
        %3329 = vmatpush2.msra.mxu0 0.0
        %3330 = vmatprep.subr.mxu0 0.0
        %3331 = vmatpush2.msra.mxu0 0.0
        %3332 = vmatprep.subr.mxu0 0.0
        %3333 = vmatpush2.msra.mxu0 0.0
        %3334 = vmatprep.subr.mxu0 0.0
        %3335 = vmatpush2.msra.mxu0 0.0
        %3336 = vmatprep.subr.mxu0 0.0
        %3337 = vmatpush2.msra.mxu0 0.0
        %3338 = vmatprep.subr.mxu0 0.0
        %3339 = vmatpush2.msra.mxu0 0.0
        %3340 = vmatprep.subr.mxu0 0.0
        %3341 = vmatpush2.msra.mxu0 0.0
        %3342 = vmatprep.subr.mxu0 0.0
        %3343 = vmatpush2.msra.mxu0 0.0
        %3344 = vmatprep.subr.mxu0 0.0
        %3345 = vmatpush2.msra.mxu0 0.0
        %3346 = vmatprep.subr.mxu0 0.0
        %3347 = vmatpush2.msra.mxu0 0.0
        %3348 = vmatprep.subr.mxu0 0.0
        %3349 = vmatpush2.msra.mxu0 0.0
        %3350 = vmatprep.subr.mxu0 0.0
        %3351 = vmatpush2.msra.mxu0 0.0
        %3352 = vmatprep.subr.mxu0 0.0
        %3353 = vmatpush2.msra.mxu0 0.0
        %3354 = vmatprep.subr.mxu0 0.0
        %3355 = vmatpush2.msra.mxu0 0.0
        %3356 = vmatprep.subr.mxu0 0.0
        %3357 = vmatpush2.msra.mxu0 0.0
        %3358 = vmatprep.mubr.f32.mxu0 0.0
        %3359 = vmatmul.mubr.f32.gmra.mxu0 %v3221
        %v3360 = vpop.f32.mrf.mxu0
        %v3361 = vadd.f32 0.0, %v3360
        %v3362 = vpop.f32.mrf.mxu0
        %3363 = vdwg.mxu0
        %v3364 = vadd.f32 %v3204, %v3290
        %v3365 = vadd.f32 %v3205, %v3292
        %v3366 = vadd.f32 %v3206, %v3361
        %s3367 = scalar_lea.vmem %s3, 40
        %v3368 = vld [vmem:[%s3367] sm:$0xff]
        %3369 = vrot.lane.b32.xlu0 %v2437, 108
        %v3370 = vpop.permute.xlu0 %3369
        %3371 = vrot.lane.b32.xlu0 %v2439, 108
        %v3372 = vpop.permute.xlu0 %3371
        %3373 = vrot.lane.b32.xlu0 %v2578, 108
        %v3374 = vpop.permute.xlu0 %3373
        %v3375 = vsel %vm1503, %v3370, %v3372
        %v3376 = vsel %vm1503, %v3372, %v3374
        %v3381 = vsel %vm2598, %v3368, 0
        %3383 = vmatprep.subr.mxu0 0.0
        %3384 = vmatpush1.msra.mxu0 0.0
        %3385 = vmatprep.subr.mxu0 0.0
        %3386 = vmatpush1.msra.mxu0 0.0
        %3387 = vmatprep.subr.mxu0 0.0
        %3388 = vmatpush1.msra.mxu0 0.0
        %3389 = vmatprep.subr.mxu0 0.0
        %3390 = vmatpush1.msra.mxu0 0.0
        %3391 = vmatprep.subr.mxu0 0.0
        %3392 = vmatpush1.msra.mxu0 0.0
        %3393 = vmatprep.subr.mxu0 0.0
        %3394 = vmatpush1.msra.mxu0 0.0
        %3395 = vmatprep.subr.mxu0 0.0
        %3396 = vmatpush1.msra.mxu0 0.0
        %3397 = vmatprep.subr.mxu0 0.0
        %3398 = vmatpush1.msra.mxu0 0.0
        %3399 = vmatprep.subr.mxu0 0.0
        %3400 = vmatpush1.msra.mxu0 0.0
        %3401 = vmatprep.subr.mxu0 0.0
        %3402 = vmatpush1.msra.mxu0 0.0
        %3403 = vmatprep.subr.mxu0 0.0
        %3404 = vmatpush1.msra.mxu0 0.0
        %3405 = vmatprep.subr.mxu0 0.0
        %3406 = vmatpush1.msra.mxu0 0.0
        %3407 = vmatprep.subr.mxu0 0.0
        %3408 = vmatpush1.msra.mxu0 0.0
        %3409 = vmatprep.subr.mxu0 0.0
        %3410 = vmatpush1.msra.mxu0 0.0
        %3411 = vmatprep.subr.mxu0 0.0
        %3412 = vmatpush1.msra.mxu0 0.0
        %3413 = vmatprep.subr.mxu0 %v3376
        %3414 = vmatpush1.msra.mxu0 %v3375
        %3415 = vmatprep.subr.mxu0 0.0
        %3416 = vmatpush2.msra.mxu0 0.0
        %3417 = vmatprep.subr.mxu0 0.0
        %3418 = vmatpush2.msra.mxu0 0.0
        %3419 = vmatprep.subr.mxu0 0.0
        %3420 = vmatpush2.msra.mxu0 0.0
        %3421 = vmatprep.subr.mxu0 0.0
        %3422 = vmatpush2.msra.mxu0 0.0
        %3423 = vmatprep.subr.mxu0 0.0
        %3424 = vmatpush2.msra.mxu0 0.0
        %3425 = vmatprep.subr.mxu0 0.0
        %3426 = vmatpush2.msra.mxu0 0.0
        %3427 = vmatprep.subr.mxu0 0.0
        %3428 = vmatpush2.msra.mxu0 0.0
        %3429 = vmatprep.subr.mxu0 0.0
        %3430 = vmatpush2.msra.mxu0 0.0
        %3431 = vmatprep.subr.mxu0 0.0
        %3432 = vmatpush2.msra.mxu0 0.0
        %3433 = vmatprep.subr.mxu0 0.0
        %3434 = vmatpush2.msra.mxu0 0.0
        %3435 = vmatprep.subr.mxu0 0.0
        %3436 = vmatpush2.msra.mxu0 0.0
        %3437 = vmatprep.subr.mxu0 0.0
        %3438 = vmatpush2.msra.mxu0 0.0
        %3439 = vmatprep.subr.mxu0 0.0
        %3440 = vmatpush2.msra.mxu0 0.0
        %3441 = vmatprep.subr.mxu0 0.0
        %3442 = vmatpush2.msra.mxu0 0.0
        %3443 = vmatprep.subr.mxu0 0.0
        %3444 = vmatpush2.msra.mxu0 0.0
        %3445 = vmatprep.subr.mxu0 0.0
        %3446 = vmatpush2.msra.mxu0 0.0
        %3447 = vmatprep.mubr.f32.mxu0 0.0
        %3448 = vmatmul.mubr.f32.gmra.mxu0 %v3381
        %v3449 = vpop.f32.mrf.mxu0
        %v3450 = vadd.f32 0.0, %v3449
        %v3451 = vpop.f32.mrf.mxu0
        %v3452 = vadd.f32 0.0, %v3451
        %3453 = vdwg.mxu0
        %3454 = vmatprep.subr.mxu0 0.0
        %3455 = vmatpush1.msra.mxu0 0.0
        %3456 = vmatprep.subr.mxu0 0.0
        %3457 = vmatpush1.msra.mxu0 0.0
        %3458 = vmatprep.subr.mxu0 0.0
        %3459 = vmatpush1.msra.mxu0 0.0
        %3460 = vmatprep.subr.mxu0 0.0
        %3461 = vmatpush1.msra.mxu0 0.0
        %3462 = vmatprep.subr.mxu0 0.0
        %3463 = vmatpush1.msra.mxu0 0.0
        %3464 = vmatprep.subr.mxu0 0.0
        %3465 = vmatpush1.msra.mxu0 0.0
        %3466 = vmatprep.subr.mxu0 0.0
        %3467 = vmatpush1.msra.mxu0 0.0
        %3468 = vmatprep.subr.mxu0 0.0
        %3469 = vmatpush1.msra.mxu0 0.0
        %3470 = vmatprep.subr.mxu0 0.0
        %3471 = vmatpush1.msra.mxu0 0.0
        %3472 = vmatprep.subr.mxu0 0.0
        %3473 = vmatpush1.msra.mxu0 0.0
        %3474 = vmatprep.subr.mxu0 0.0
        %3475 = vmatpush1.msra.mxu0 0.0
        %3476 = vmatprep.subr.mxu0 0.0
        %3477 = vmatpush1.msra.mxu0 0.0
        %3478 = vmatprep.subr.mxu0 0.0
        %3479 = vmatpush1.msra.mxu0 0.0
        %3480 = vmatprep.subr.mxu0 0.0
        %3481 = vmatpush1.msra.mxu0 0.0
        %3482 = vmatprep.subr.mxu0 0.0
        %3483 = vmatpush1.msra.mxu0 0.0
        %3484 = vmatprep.subr.mxu0 0.0
        %3485 = vmatpush1.msra.mxu0 %v3374
        %3486 = vmatprep.subr.mxu0 0.0
        %3487 = vmatpush2.msra.mxu0 0.0
        %3488 = vmatprep.subr.mxu0 0.0
        %3489 = vmatpush2.msra.mxu0 0.0
        %3490 = vmatprep.subr.mxu0 0.0
        %3491 = vmatpush2.msra.mxu0 0.0
        %3492 = vmatprep.subr.mxu0 0.0
        %3493 = vmatpush2.msra.mxu0 0.0
        %3494 = vmatprep.subr.mxu0 0.0
        %3495 = vmatpush2.msra.mxu0 0.0
        %3496 = vmatprep.subr.mxu0 0.0
        %3497 = vmatpush2.msra.mxu0 0.0
        %3498 = vmatprep.subr.mxu0 0.0
        %3499 = vmatpush2.msra.mxu0 0.0
        %3500 = vmatprep.subr.mxu0 0.0
        %3501 = vmatpush2.msra.mxu0 0.0
        %3502 = vmatprep.subr.mxu0 0.0
        %3503 = vmatpush2.msra.mxu0 0.0
        %3504 = vmatprep.subr.mxu0 0.0
        %3505 = vmatpush2.msra.mxu0 0.0
        %3506 = vmatprep.subr.mxu0 0.0
        %3507 = vmatpush2.msra.mxu0 0.0
        %3508 = vmatprep.subr.mxu0 0.0
        %3509 = vmatpush2.msra.mxu0 0.0
        %3510 = vmatprep.subr.mxu0 0.0
        %3511 = vmatpush2.msra.mxu0 0.0
        %3512 = vmatprep.subr.mxu0 0.0
        %3513 = vmatpush2.msra.mxu0 0.0
        %3514 = vmatprep.subr.mxu0 0.0
        %3515 = vmatpush2.msra.mxu0 0.0
        %3516 = vmatprep.subr.mxu0 0.0
        %3517 = vmatpush2.msra.mxu0 0.0
        %3518 = vmatprep.mubr.f32.mxu0 0.0
        %3519 = vmatmul.mubr.f32.gmra.mxu0 %v3381
        %v3520 = vpop.f32.mrf.mxu0
        %v3521 = vadd.f32 0.0, %v3520
        %v3522 = vpop.f32.mrf.mxu0
        %3523 = vdwg.mxu0
        %v3524 = vadd.f32 %v3364, %v3450
        %v3525 = vadd.f32 %v3365, %v3452
        %v3526 = vadd.f32 %v3366, %v3521
        %s3527 = scalar_lea.vmem %s3, 48
        %v3528 = vld [vmem:[%s3527] sm:$0xff]
        %3529 = vrot.lane.b32.xlu0 %v2437, 92
        %v3530 = vpop.permute.xlu0 %3529
        %3531 = vrot.lane.b32.xlu0 %v2439, 92
        %v3532 = vpop.permute.xlu0 %3531
        %3533 = vrot.lane.b32.xlu0 %v2578, 92
        %v3534 = vpop.permute.xlu0 %3533
        %v3535 = vsel %vm1667, %v3530, %v3532
        %v3536 = vsel %vm1667, %v3532, %v3534
        %v3541 = vsel %vm2598, %v3528, 0
        %3543 = vmatprep.subr.mxu0 0.0
        %3544 = vmatpush1.msra.mxu0 0.0
        %3545 = vmatprep.subr.mxu0 0.0
        %3546 = vmatpush1.msra.mxu0 0.0
        %3547 = vmatprep.subr.mxu0 0.0
        %3548 = vmatpush1.msra.mxu0 0.0
        %3549 = vmatprep.subr.mxu0 0.0
        %3550 = vmatpush1.msra.mxu0 0.0
        %3551 = vmatprep.subr.mxu0 0.0
        %3552 = vmatpush1.msra.mxu0 0.0
        %3553 = vmatprep.subr.mxu0 0.0
        %3554 = vmatpush1.msra.mxu0 0.0
        %3555 = vmatprep.subr.mxu0 0.0
        %3556 = vmatpush1.msra.mxu0 0.0
        %3557 = vmatprep.subr.mxu0 0.0
        %3558 = vmatpush1.msra.mxu0 0.0
        %3559 = vmatprep.subr.mxu0 0.0
        %3560 = vmatpush1.msra.mxu0 0.0
        %3561 = vmatprep.subr.mxu0 0.0
        %3562 = vmatpush1.msra.mxu0 0.0
        %3563 = vmatprep.subr.mxu0 0.0
        %3564 = vmatpush1.msra.mxu0 0.0
        %3565 = vmatprep.subr.mxu0 0.0
        %3566 = vmatpush1.msra.mxu0 0.0
        %3567 = vmatprep.subr.mxu0 0.0
        %3568 = vmatpush1.msra.mxu0 0.0
        %3569 = vmatprep.subr.mxu0 0.0
        %3570 = vmatpush1.msra.mxu0 0.0
        %3571 = vmatprep.subr.mxu0 0.0
        %3572 = vmatpush1.msra.mxu0 0.0
        %3573 = vmatprep.subr.mxu0 %v3536
        %3574 = vmatpush1.msra.mxu0 %v3535
        %3575 = vmatprep.subr.mxu0 0.0
        %3576 = vmatpush2.msra.mxu0 0.0
        %3577 = vmatprep.subr.mxu0 0.0
        %3578 = vmatpush2.msra.mxu0 0.0
        %3579 = vmatprep.subr.mxu0 0.0
        %3580 = vmatpush2.msra.mxu0 0.0
        %3581 = vmatprep.subr.mxu0 0.0
        %3582 = vmatpush2.msra.mxu0 0.0
        %3583 = vmatprep.subr.mxu0 0.0
        %3584 = vmatpush2.msra.mxu0 0.0
        %3585 = vmatprep.subr.mxu0 0.0
        %3586 = vmatpush2.msra.mxu0 0.0
        %3587 = vmatprep.subr.mxu0 0.0
        %3588 = vmatpush2.msra.mxu0 0.0
        %3589 = vmatprep.subr.mxu0 0.0
        %3590 = vmatpush2.msra.mxu0 0.0
        %3591 = vmatprep.subr.mxu0 0.0
        %3592 = vmatpush2.msra.mxu0 0.0
        %3593 = vmatprep.subr.mxu0 0.0
        %3594 = vmatpush2.msra.mxu0 0.0
        %3595 = vmatprep.subr.mxu0 0.0
        %3596 = vmatpush2.msra.mxu0 0.0
        %3597 = vmatprep.subr.mxu0 0.0
        %3598 = vmatpush2.msra.mxu0 0.0
        %3599 = vmatprep.subr.mxu0 0.0
        %3600 = vmatpush2.msra.mxu0 0.0
        %3601 = vmatprep.subr.mxu0 0.0
        %3602 = vmatpush2.msra.mxu0 0.0
        %3603 = vmatprep.subr.mxu0 0.0
        %3604 = vmatpush2.msra.mxu0 0.0
        %3605 = vmatprep.subr.mxu0 0.0
        %3606 = vmatpush2.msra.mxu0 0.0
        %3607 = vmatprep.mubr.f32.mxu0 0.0
        %3608 = vmatmul.mubr.f32.gmra.mxu0 %v3541
        %v3609 = vpop.f32.mrf.mxu0
        %v3610 = vadd.f32 0.0, %v3609
        %v3611 = vpop.f32.mrf.mxu0
        %v3612 = vadd.f32 0.0, %v3611
        %3613 = vdwg.mxu0
        %3614 = vmatprep.subr.mxu0 0.0
        %3615 = vmatpush1.msra.mxu0 0.0
        %3616 = vmatprep.subr.mxu0 0.0
        %3617 = vmatpush1.msra.mxu0 0.0
        %3618 = vmatprep.subr.mxu0 0.0
        %3619 = vmatpush1.msra.mxu0 0.0
        %3620 = vmatprep.subr.mxu0 0.0
        %3621 = vmatpush1.msra.mxu0 0.0
        %3622 = vmatprep.subr.mxu0 0.0
        %3623 = vmatpush1.msra.mxu0 0.0
        %3624 = vmatprep.subr.mxu0 0.0
        %3625 = vmatpush1.msra.mxu0 0.0
        %3626 = vmatprep.subr.mxu0 0.0
        %3627 = vmatpush1.msra.mxu0 0.0
        %3628 = vmatprep.subr.mxu0 0.0
        %3629 = vmatpush1.msra.mxu0 0.0
        %3630 = vmatprep.subr.mxu0 0.0
        %3631 = vmatpush1.msra.mxu0 0.0
        %3632 = vmatprep.subr.mxu0 0.0
        %3633 = vmatpush1.msra.mxu0 0.0
        %3634 = vmatprep.subr.mxu0 0.0
        %3635 = vmatpush1.msra.mxu0 0.0
        %3636 = vmatprep.subr.mxu0 0.0
        %3637 = vmatpush1.msra.mxu0 0.0
        %3638 = vmatprep.subr.mxu0 0.0
        %3639 = vmatpush1.msra.mxu0 0.0
        %3640 = vmatprep.subr.mxu0 0.0
        %3641 = vmatpush1.msra.mxu0 0.0
        %3642 = vmatprep.subr.mxu0 0.0
        %3643 = vmatpush1.msra.mxu0 0.0
        %3644 = vmatprep.subr.mxu0 0.0
        %3645 = vmatpush1.msra.mxu0 %v3534
        %3646 = vmatprep.subr.mxu0 0.0
        %3647 = vmatpush2.msra.mxu0 0.0
        %3648 = vmatprep.subr.mxu0 0.0
        %3649 = vmatpush2.msra.mxu0 0.0
        %3650 = vmatprep.subr.mxu0 0.0
        %3651 = vmatpush2.msra.mxu0 0.0
        %3652 = vmatprep.subr.mxu0 0.0
        %3653 = vmatpush2.msra.mxu0 0.0
        %3654 = vmatprep.subr.mxu0 0.0
        %3655 = vmatpush2.msra.mxu0 0.0
        %3656 = vmatprep.subr.mxu0 0.0
        %3657 = vmatpush2.msra.mxu0 0.0
        %3658 = vmatprep.subr.mxu0 0.0
        %3659 = vmatpush2.msra.mxu0 0.0
        %3660 = vmatprep.subr.mxu0 0.0
        %3661 = vmatpush2.msra.mxu0 0.0
        %3662 = vmatprep.subr.mxu0 0.0
        %3663 = vmatpush2.msra.mxu0 0.0
        %3664 = vmatprep.subr.mxu0 0.0
        %3665 = vmatpush2.msra.mxu0 0.0
        %3666 = vmatprep.subr.mxu0 0.0
        %3667 = vmatpush2.msra.mxu0 0.0
        %3668 = vmatprep.subr.mxu0 0.0
        %3669 = vmatpush2.msra.mxu0 0.0
        %3670 = vmatprep.subr.mxu0 0.0
        %3671 = vmatpush2.msra.mxu0 0.0
        %3672 = vmatprep.subr.mxu0 0.0
        %3673 = vmatpush2.msra.mxu0 0.0
        %3674 = vmatprep.subr.mxu0 0.0
        %3675 = vmatpush2.msra.mxu0 0.0
        %3676 = vmatprep.subr.mxu0 0.0
        %3677 = vmatpush2.msra.mxu0 0.0
        %3678 = vmatprep.mubr.f32.mxu0 0.0
        %3679 = vmatmul.mubr.f32.gmra.mxu0 %v3541
        %v3680 = vpop.f32.mrf.mxu0
        %v3681 = vadd.f32 0.0, %v3680
        %v3682 = vpop.f32.mrf.mxu0
        %3683 = vdwg.mxu0
        %v3684 = vadd.f32 %v3524, %v3610
        %v3685 = vadd.f32 %v3525, %v3612
        %v3686 = vadd.f32 %v3526, %v3681
        %s3687 = scalar_lea.vmem %s3, 56
        %v3688 = vld [vmem:[%s3687] sm:$0xff]
        %3689 = vrot.lane.b32.xlu0 %v2437, 91
        %v3690 = vpop.permute.xlu0 %3689
        %3691 = vrot.lane.b32.xlu0 %v2439, 91
        %v3692 = vpop.permute.xlu0 %3691
        %3693 = vrot.lane.b32.xlu0 %v2578, 91
        %v3694 = vpop.permute.xlu0 %3693
        %v3695 = vsel %vm1831, %v3690, %v3692
        %v3696 = vsel %vm1831, %v3692, %v3694
        %v3701 = vsel %vm2598, %v3688, 0
        %3703 = vmatprep.subr.mxu0 0.0
        %3704 = vmatpush1.msra.mxu0 0.0
        %3705 = vmatprep.subr.mxu0 0.0
        %3706 = vmatpush1.msra.mxu0 0.0
        %3707 = vmatprep.subr.mxu0 0.0
        %3708 = vmatpush1.msra.mxu0 0.0
        %3709 = vmatprep.subr.mxu0 0.0
        %3710 = vmatpush1.msra.mxu0 0.0
        %3711 = vmatprep.subr.mxu0 0.0
        %3712 = vmatpush1.msra.mxu0 0.0
        %3713 = vmatprep.subr.mxu0 0.0
        %3714 = vmatpush1.msra.mxu0 0.0
        %3715 = vmatprep.subr.mxu0 0.0
        %3716 = vmatpush1.msra.mxu0 0.0
        %3717 = vmatprep.subr.mxu0 0.0
        %3718 = vmatpush1.msra.mxu0 0.0
        %3719 = vmatprep.subr.mxu0 0.0
        %3720 = vmatpush1.msra.mxu0 0.0
        %3721 = vmatprep.subr.mxu0 0.0
        %3722 = vmatpush1.msra.mxu0 0.0
        %3723 = vmatprep.subr.mxu0 0.0
        %3724 = vmatpush1.msra.mxu0 0.0
        %3725 = vmatprep.subr.mxu0 0.0
        %3726 = vmatpush1.msra.mxu0 0.0
        %3727 = vmatprep.subr.mxu0 0.0
        %3728 = vmatpush1.msra.mxu0 0.0
        %3729 = vmatprep.subr.mxu0 0.0
        %3730 = vmatpush1.msra.mxu0 0.0
        %3731 = vmatprep.subr.mxu0 0.0
        %3732 = vmatpush1.msra.mxu0 0.0
        %3733 = vmatprep.subr.mxu0 %v3696
        %3734 = vmatpush1.msra.mxu0 %v3695
        %3735 = vmatprep.subr.mxu0 0.0
        %3736 = vmatpush2.msra.mxu0 0.0
        %3737 = vmatprep.subr.mxu0 0.0
        %3738 = vmatpush2.msra.mxu0 0.0
        %3739 = vmatprep.subr.mxu0 0.0
        %3740 = vmatpush2.msra.mxu0 0.0
        %3741 = vmatprep.subr.mxu0 0.0
        %3742 = vmatpush2.msra.mxu0 0.0
        %3743 = vmatprep.subr.mxu0 0.0
        %3744 = vmatpush2.msra.mxu0 0.0
        %3745 = vmatprep.subr.mxu0 0.0
        %3746 = vmatpush2.msra.mxu0 0.0
        %3747 = vmatprep.subr.mxu0 0.0
        %3748 = vmatpush2.msra.mxu0 0.0
        %3749 = vmatprep.subr.mxu0 0.0
        %3750 = vmatpush2.msra.mxu0 0.0
        %3751 = vmatprep.subr.mxu0 0.0
        %3752 = vmatpush2.msra.mxu0 0.0
        %3753 = vmatprep.subr.mxu0 0.0
        %3754 = vmatpush2.msra.mxu0 0.0
        %3755 = vmatprep.subr.mxu0 0.0
        %3756 = vmatpush2.msra.mxu0 0.0
        %3757 = vmatprep.subr.mxu0 0.0
        %3758 = vmatpush2.msra.mxu0 0.0
        %3759 = vmatprep.subr.mxu0 0.0
        %3760 = vmatpush2.msra.mxu0 0.0
        %3761 = vmatprep.subr.mxu0 0.0
        %3762 = vmatpush2.msra.mxu0 0.0
        %3763 = vmatprep.subr.mxu0 0.0
        %3764 = vmatpush2.msra.mxu0 0.0
        %3765 = vmatprep.subr.mxu0 0.0
        %3766 = vmatpush2.msra.mxu0 0.0
        %3767 = vmatprep.mubr.f32.mxu0 0.0
        %3768 = vmatmul.mubr.f32.gmra.mxu0 %v3701
        %v3769 = vpop.f32.mrf.mxu0
        %v3770 = vadd.f32 0.0, %v3769
        %v3771 = vpop.f32.mrf.mxu0
        %v3772 = vadd.f32 0.0, %v3771
        %3773 = vdwg.mxu0
        %3774 = vmatprep.subr.mxu0 0.0
        %3775 = vmatpush1.msra.mxu0 0.0
        %3776 = vmatprep.subr.mxu0 0.0
        %3777 = vmatpush1.msra.mxu0 0.0
        %3778 = vmatprep.subr.mxu0 0.0
        %3779 = vmatpush1.msra.mxu0 0.0
        %3780 = vmatprep.subr.mxu0 0.0
        %3781 = vmatpush1.msra.mxu0 0.0
        %3782 = vmatprep.subr.mxu0 0.0
        %3783 = vmatpush1.msra.mxu0 0.0
        %3784 = vmatprep.subr.mxu0 0.0
        %3785 = vmatpush1.msra.mxu0 0.0
        %3786 = vmatprep.subr.mxu0 0.0
        %3787 = vmatpush1.msra.mxu0 0.0
        %3788 = vmatprep.subr.mxu0 0.0
        %3789 = vmatpush1.msra.mxu0 0.0
        %3790 = vmatprep.subr.mxu0 0.0
        %3791 = vmatpush1.msra.mxu0 0.0
        %3792 = vmatprep.subr.mxu0 0.0
        %3793 = vmatpush1.msra.mxu0 0.0
        %3794 = vmatprep.subr.mxu0 0.0
        %3795 = vmatpush1.msra.mxu0 0.0
        %3796 = vmatprep.subr.mxu0 0.0
        %3797 = vmatpush1.msra.mxu0 0.0
        %3798 = vmatprep.subr.mxu0 0.0
        %3799 = vmatpush1.msra.mxu0 0.0
        %3800 = vmatprep.subr.mxu0 0.0
        %3801 = vmatpush1.msra.mxu0 0.0
        %3802 = vmatprep.subr.mxu0 0.0
        %3803 = vmatpush1.msra.mxu0 0.0
        %3804 = vmatprep.subr.mxu0 0.0
        %3805 = vmatpush1.msra.mxu0 %v3694
        %3806 = vmatprep.subr.mxu0 0.0
        %3807 = vmatpush2.msra.mxu0 0.0
        %3808 = vmatprep.subr.mxu0 0.0
        %3809 = vmatpush2.msra.mxu0 0.0
        %3810 = vmatprep.subr.mxu0 0.0
        %3811 = vmatpush2.msra.mxu0 0.0
        %3812 = vmatprep.subr.mxu0 0.0
        %3813 = vmatpush2.msra.mxu0 0.0
        %3814 = vmatprep.subr.mxu0 0.0
        %3815 = vmatpush2.msra.mxu0 0.0
        %3816 = vmatprep.subr.mxu0 0.0
        %3817 = vmatpush2.msra.mxu0 0.0
        %3818 = vmatprep.subr.mxu0 0.0
        %3819 = vmatpush2.msra.mxu0 0.0
        %3820 = vmatprep.subr.mxu0 0.0
        %3821 = vmatpush2.msra.mxu0 0.0
        %3822 = vmatprep.subr.mxu0 0.0
        %3823 = vmatpush2.msra.mxu0 0.0
        %3824 = vmatprep.subr.mxu0 0.0
        %3825 = vmatpush2.msra.mxu0 0.0
        %3826 = vmatprep.subr.mxu0 0.0
        %3827 = vmatpush2.msra.mxu0 0.0
        %3828 = vmatprep.subr.mxu0 0.0
        %3829 = vmatpush2.msra.mxu0 0.0
        %3830 = vmatprep.subr.mxu0 0.0
        %3831 = vmatpush2.msra.mxu0 0.0
        %3832 = vmatprep.subr.mxu0 0.0
        %3833 = vmatpush2.msra.mxu0 0.0
        %3834 = vmatprep.subr.mxu0 0.0
        %3835 = vmatpush2.msra.mxu0 0.0
        %3836 = vmatprep.subr.mxu0 0.0
        %3837 = vmatpush2.msra.mxu0 0.0
        %3838 = vmatprep.mubr.f32.mxu0 0.0
        %3839 = vmatmul.mubr.f32.gmra.mxu0 %v3701
        %v3840 = vpop.f32.mrf.mxu0
        %v3841 = vadd.f32 0.0, %v3840
        %v3842 = vpop.f32.mrf.mxu0
        %3843 = vdwg.mxu0
        %v3844 = vadd.f32 %v3684, %v3770
        %v3845 = vadd.f32 %v3685, %v3772
        %v3846 = vadd.f32 %v3686, %v3841
        %s3847 = scalar_lea.vmem %s3, 64
        %v3848 = vld [vmem:[%s3847] sm:$0xff]
        %3849 = vrot.lane.b32.xlu0 %v2437, 90
        %v3850 = vpop.permute.xlu0 %3849
        %3851 = vrot.lane.b32.xlu0 %v2439, 90
        %v3852 = vpop.permute.xlu0 %3851
        %3853 = vrot.lane.b32.xlu0 %v2578, 90
        %v3854 = vpop.permute.xlu0 %3853
        %v3855 = vsel %vm1995, %v3850, %v3852
        %v3856 = vsel %vm1995, %v3852, %v3854
        %v3861 = vsel %vm2598, %v3848, 0
        %3863 = vmatprep.subr.mxu0 0.0
        %3864 = vmatpush1.msra.mxu0 0.0
        %3865 = vmatprep.subr.mxu0 0.0
        %3866 = vmatpush1.msra.mxu0 0.0
        %3867 = vmatprep.subr.mxu0 0.0
        %3868 = vmatpush1.msra.mxu0 0.0
        %3869 = vmatprep.subr.mxu0 0.0
        %3870 = vmatpush1.msra.mxu0 0.0
        %3871 = vmatprep.subr.mxu0 0.0
        %3872 = vmatpush1.msra.mxu0 0.0
        %3873 = vmatprep.subr.mxu0 0.0
        %3874 = vmatpush1.msra.mxu0 0.0
        %3875 = vmatprep.subr.mxu0 0.0
        %3876 = vmatpush1.msra.mxu0 0.0
        %3877 = vmatprep.subr.mxu0 0.0
        %3878 = vmatpush1.msra.mxu0 0.0
        %3879 = vmatprep.subr.mxu0 0.0
        %3880 = vmatpush1.msra.mxu0 0.0
        %3881 = vmatprep.subr.mxu0 0.0
        %3882 = vmatpush1.msra.mxu0 0.0
        %3883 = vmatprep.subr.mxu0 0.0
        %3884 = vmatpush1.msra.mxu0 0.0
        %3885 = vmatprep.subr.mxu0 0.0
        %3886 = vmatpush1.msra.mxu0 0.0
        %3887 = vmatprep.subr.mxu0 0.0
        %3888 = vmatpush1.msra.mxu0 0.0
        %3889 = vmatprep.subr.mxu0 0.0
        %3890 = vmatpush1.msra.mxu0 0.0
        %3891 = vmatprep.subr.mxu0 0.0
        %3892 = vmatpush1.msra.mxu0 0.0
        %3893 = vmatprep.subr.mxu0 %v3856
        %3894 = vmatpush1.msra.mxu0 %v3855
        %3895 = vmatprep.subr.mxu0 0.0
        %3896 = vmatpush2.msra.mxu0 0.0
        %3897 = vmatprep.subr.mxu0 0.0
        %3898 = vmatpush2.msra.mxu0 0.0
        %3899 = vmatprep.subr.mxu0 0.0
        %3900 = vmatpush2.msra.mxu0 0.0
        %3901 = vmatprep.subr.mxu0 0.0
        %3902 = vmatpush2.msra.mxu0 0.0
        %3903 = vmatprep.subr.mxu0 0.0
        %3904 = vmatpush2.msra.mxu0 0.0
        %3905 = vmatprep.subr.mxu0 0.0
        %3906 = vmatpush2.msra.mxu0 0.0
        %3907 = vmatprep.subr.mxu0 0.0
        %3908 = vmatpush2.msra.mxu0 0.0
        %3909 = vmatprep.subr.mxu0 0.0
        %3910 = vmatpush2.msra.mxu0 0.0
        %3911 = vmatprep.subr.mxu0 0.0
        %3912 = vmatpush2.msra.mxu0 0.0
        %3913 = vmatprep.subr.mxu0 0.0
        %3914 = vmatpush2.msra.mxu0 0.0
        %3915 = vmatprep.subr.mxu0 0.0
        %3916 = vmatpush2.msra.mxu0 0.0
        %3917 = vmatprep.subr.mxu0 0.0
        %3918 = vmatpush2.msra.mxu0 0.0
        %3919 = vmatprep.subr.mxu0 0.0
        %3920 = vmatpush2.msra.mxu0 0.0
        %3921 = vmatprep.subr.mxu0 0.0
        %3922 = vmatpush2.msra.mxu0 0.0
        %3923 = vmatprep.subr.mxu0 0.0
        %3924 = vmatpush2.msra.mxu0 0.0
        %3925 = vmatprep.subr.mxu0 0.0
        %3926 = vmatpush2.msra.mxu0 0.0
        %3927 = vmatprep.mubr.f32.mxu0 0.0
        %3928 = vmatmul.mubr.f32.gmra.mxu0 %v3861
        %v3929 = vpop.f32.mrf.mxu0
        %v3930 = vadd.f32 0.0, %v3929
        %v3931 = vpop.f32.mrf.mxu0
        %v3932 = vadd.f32 0.0, %v3931
        %3933 = vdwg.mxu0
        %3934 = vmatprep.subr.mxu0 0.0
        %3935 = vmatpush1.msra.mxu0 0.0
        %3936 = vmatprep.subr.mxu0 0.0
        %3937 = vmatpush1.msra.mxu0 0.0
        %3938 = vmatprep.subr.mxu0 0.0
        %3939 = vmatpush1.msra.mxu0 0.0
        %3940 = vmatprep.subr.mxu0 0.0
        %3941 = vmatpush1.msra.mxu0 0.0
        %3942 = vmatprep.subr.mxu0 0.0
        %3943 = vmatpush1.msra.mxu0 0.0
        %3944 = vmatprep.subr.mxu0 0.0
        %3945 = vmatpush1.msra.mxu0 0.0
        %3946 = vmatprep.subr.mxu0 0.0
        %3947 = vmatpush1.msra.mxu0 0.0
        %3948 = vmatprep.subr.mxu0 0.0
        %3949 = vmatpush1.msra.mxu0 0.0
        %3950 = vmatprep.subr.mxu0 0.0
        %3951 = vmatpush1.msra.mxu0 0.0
        %3952 = vmatprep.subr.mxu0 0.0
        %3953 = vmatpush1.msra.mxu0 0.0
        %3954 = vmatprep.subr.mxu0 0.0
        %3955 = vmatpush1.msra.mxu0 0.0
        %3956 = vmatprep.subr.mxu0 0.0
        %3957 = vmatpush1.msra.mxu0 0.0
        %3958 = vmatprep.subr.mxu0 0.0
        %3959 = vmatpush1.msra.mxu0 0.0
        %3960 = vmatprep.subr.mxu0 0.0
        %3961 = vmatpush1.msra.mxu0 0.0
        %3962 = vmatprep.subr.mxu0 0.0
        %3963 = vmatpush1.msra.mxu0 0.0
        %3964 = vmatprep.subr.mxu0 0.0
        %3965 = vmatpush1.msra.mxu0 %v3854
        %3966 = vmatprep.subr.mxu0 0.0
        %3967 = vmatpush2.msra.mxu0 0.0
        %3968 = vmatprep.subr.mxu0 0.0
        %3969 = vmatpush2.msra.mxu0 0.0
        %3970 = vmatprep.subr.mxu0 0.0
        %3971 = vmatpush2.msra.mxu0 0.0
        %3972 = vmatprep.subr.mxu0 0.0
        %3973 = vmatpush2.msra.mxu0 0.0
        %3974 = vmatprep.subr.mxu0 0.0
        %3975 = vmatpush2.msra.mxu0 0.0
        %3976 = vmatprep.subr.mxu0 0.0
        %3977 = vmatpush2.msra.mxu0 0.0
        %3978 = vmatprep.subr.mxu0 0.0
        %3979 = vmatpush2.msra.mxu0 0.0
        %3980 = vmatprep.subr.mxu0 0.0
        %3981 = vmatpush2.msra.mxu0 0.0
        %3982 = vmatprep.subr.mxu0 0.0
        %3983 = vmatpush2.msra.mxu0 0.0
        %3984 = vmatprep.subr.mxu0 0.0
        %3985 = vmatpush2.msra.mxu0 0.0
        %3986 = vmatprep.subr.mxu0 0.0
        %3987 = vmatpush2.msra.mxu0 0.0
        %3988 = vmatprep.subr.mxu0 0.0
        %3989 = vmatpush2.msra.mxu0 0.0
        %3990 = vmatprep.subr.mxu0 0.0
        %3991 = vmatpush2.msra.mxu0 0.0
        %3992 = vmatprep.subr.mxu0 0.0
        %3993 = vmatpush2.msra.mxu0 0.0
        %3994 = vmatprep.subr.mxu0 0.0
        %3995 = vmatpush2.msra.mxu0 0.0
        %3996 = vmatprep.subr.mxu0 0.0
        %3997 = vmatpush2.msra.mxu0 0.0
        %3998 = vmatprep.mubr.f32.mxu0 0.0
        %3999 = vmatmul.mubr.f32.gmra.mxu0 %v3861
        %v4000 = vpop.f32.mrf.mxu0
        %v4001 = vadd.f32 0.0, %v4000
        %v4002 = vpop.f32.mrf.mxu0
        %4003 = vdwg.mxu0
        %v4004 = vadd.f32 %v3844, %v3930
        %v4005 = vadd.f32 %v3845, %v3932
        %v4006 = vadd.f32 %v3846, %v4001
        %s4007 = sld [smem:[#allocation2 + $0x1]]
        %vm4008 = vcmp.ge.f32.partialorder %v4004, 0.0
        %vm4009 = vcmp.ge.f32.partialorder %v4005, 0.0
        %vm4010 = vcmp.ge.f32.partialorder %v4006, 0.0
        %v4011 = vstv %s4007
        %v4012 = vmul.f32 %v4011, %v4004
        %v4013 = vmul.f32 %v4011, %v4005
        %v4014 = vmul.f32 %v4011, %v4006
        %v4015 = vsel %vm4008, %v4004, %v4012
        %v4016 = vsel %vm4009, %v4005, %v4013
        %v4017 = vsel %vm4010, %v4006, %v4014
        %v4018 = vld [vmem:[#allocation9] sm:$0xff]
        %v4019 = vld [vmem:[#allocation9 + $0x8] sm:$0xff]
        %v4020 = vld [vmem:[#allocation9 + $0x10] sm:$0xff]
        %v4021 = vld [vmem:[#allocation9 + $0x18] sm:$0xff]
        %v4022 = vld [vmem:[#allocation9 + $0x20] sm:$0xff]
        %v4023 = vld [vmem:[#allocation9 + $0x28] sm:$0xff]
        %v4024 = vld [vmem:[#allocation9 + $0x30] sm:$0xff]
        %v4025 = vld [vmem:[#allocation9 + $0x38] sm:$0xff]
        %v4026 = vld [vmem:[#allocation9 + $0x40] sm:$0xff]
        %v4027 = vld [vmem:[#allocation9 + $0x48] sm:$0xff]
        %v4028 = vld [vmem:[#allocation9 + $0x50] sm:$0xff]
        %v4029 = vld [vmem:[#allocation9 + $0x58] sm:$0xff]
        %v4030 = vld [vmem:[#allocation9 + $0x60] sm:$0xff]
        %v4031 = vld [vmem:[#allocation9 + $0x68] sm:$0xff]
        %v4032 = vld [vmem:[#allocation9 + $0x70] sm:$0xff]
        %v4033 = vld [vmem:[#allocation9 + $0x78] sm:$0xff]
        %v4034 = vld [vmem:[#allocation9 + $0x80] sm:$0xff]
        %v4035 = vld [vmem:[#allocation9 + $0x88] sm:$0xff]
        %v4036 = vld [vmem:[#allocation9 + $0x90] sm:$0xff]
        %v4037 = vld [vmem:[#allocation9 + $0x98] sm:$0xff]
        %v4038 = vld [vmem:[#allocation9 + $0xa0] sm:$0xff]
        %v4039 = vld [vmem:[#allocation9 + $0xa8] sm:$0xff]
        %v4040 = vld [vmem:[#allocation9 + $0xb0] sm:$0xff]
        %v4041 = vld [vmem:[#allocation9 + $0xb8] sm:$0xff]
        %v4042 = vld [vmem:[#allocation9 + $0xc0] sm:$0xff]
        %v4043 = vld [vmem:[#allocation9 + $0xc8] sm:$0xff]
        %v4044 = vld [vmem:[#allocation9 + $0xd0] sm:$0xff]
        %v4045 = vld [vmem:[#allocation9 + $0xd8] sm:$0xff]
        %v4046 = vld [vmem:[#allocation9 + $0xe0] sm:$0xff]
        %v4047 = vld [vmem:[#allocation9 + $0xe8] sm:$0xff]
        %v4048 = vld [vmem:[#allocation9 + $0xf0] sm:$0xff]
        %v4049 = vld [vmem:[#allocation9 + $0xf8] sm:$0xff]
        %v4050 = vld [vmem:[#allocation9 + $0x100] sm:$0xff]
        %v4051 = vld [vmem:[#allocation9 + $0x108] sm:$0xff]
        %v4052 = vld [vmem:[#allocation9 + $0x110] sm:$0xff]
        %v4053 = vld [vmem:[#allocation9 + $0x118] sm:$0xff]
        %v4054 = vld [vmem:[#allocation9 + $0x120] sm:$0xff]
        %v4055 = vld [vmem:[#allocation9 + $0x128] sm:$0xff]
        %v4056 = vld [vmem:[#allocation9 + $0x130] sm:$0xff]
        %v4057 = vld [vmem:[#allocation9 + $0x138] sm:$0xff]
        %v4058 = vld [vmem:[#allocation9 + $0x140] sm:$0xff]
        %v4059 = vld [vmem:[#allocation9 + $0x148] sm:$0xff]
        %v4060 = vld [vmem:[#allocation9 + $0x150] sm:$0xff]
        %v4061 = vld [vmem:[#allocation9 + $0x158] sm:$0xff]
        %v4062 = vld [vmem:[#allocation9 + $0x160] sm:$0xff]
        %v4063 = vld [vmem:[#allocation9 + $0x168] sm:$0xff]
        %v4064 = vld [vmem:[#allocation9 + $0x170] sm:$0xff]
        %v4065 = vld [vmem:[#allocation9 + $0x178] sm:$0xff]
        %v4066 = vld [vmem:[#allocation9 + $0x180] sm:$0xff]
        %v4067 = vld [vmem:[#allocation9 + $0x188] sm:$0xff]
        %v4068 = vld [vmem:[#allocation9 + $0x190] sm:$0xff]
        %v4069 = vld [vmem:[#allocation9 + $0x198] sm:$0xff]
        %v4070 = vld [vmem:[#allocation9 + $0x1a0] sm:$0xff]
        %v4071 = vld [vmem:[#allocation9 + $0x1a8] sm:$0xff]
        %v4072 = vld [vmem:[#allocation9 + $0x1b0] sm:$0xff]
        %v4073 = vld [vmem:[#allocation9 + $0x1b8] sm:$0xff]
        %v4074 = vld [vmem:[#allocation9 + $0x1c0] sm:$0xff]
        %v4075 = vld [vmem:[#allocation9 + $0x1c8] sm:$0xff]
        %v4076 = vld [vmem:[#allocation9 + $0x1d0] sm:$0xff]
        %v4077 = vld [vmem:[#allocation9 + $0x1d8] sm:$0xff]
        %v4078 = vld [vmem:[#allocation9 + $0x1e0] sm:$0xff]
        %v4079 = vld [vmem:[#allocation9 + $0x1e8] sm:$0xff]
        %v4080 = vld [vmem:[#allocation9 + $0x1f0] sm:$0xff]
        %v4081 = vld [vmem:[#allocation9 + $0x1f8] sm:$0xff]
        %v4082 = vld [vmem:[#allocation9 + $0x200] sm:$0xff]
        %v4083 = vld [vmem:[#allocation9 + $0x208] sm:$0xff]
        %v4084 = vld [vmem:[#allocation9 + $0x210] sm:$0xff]
        %v4085 = vld [vmem:[#allocation9 + $0x218] sm:$0xff]
        %v4086 = vld [vmem:[#allocation9 + $0x220] sm:$0xff]
        %v4087 = vld [vmem:[#allocation9 + $0x228] sm:$0xff]
        %v4088 = vld [vmem:[#allocation9 + $0x230] sm:$0xff]
        %v4089 = vld [vmem:[#allocation9 + $0x238] sm:$0xff]
        %v4090 = vld [vmem:[#allocation9 + $0x240] sm:$0xff]
        %v4091 = vld [vmem:[#allocation9 + $0x248] sm:$0xff]
        %v4092 = vld [vmem:[#allocation9 + $0x250] sm:$0xff]
        %v4093 = vld [vmem:[#allocation9 + $0x258] sm:$0xff]
        %v4094 = vld [vmem:[#allocation9 + $0x260] sm:$0xff]
        %v4095 = vld [vmem:[#allocation9 + $0x268] sm:$0xff]
        %v4096 = vld [vmem:[#allocation9 + $0x270] sm:$0xff]
        %v4097 = vld [vmem:[#allocation9 + $0x278] sm:$0xff]
        %v4098 = vld [vmem:[#allocation9 + $0x280] sm:$0xf]
        %v4099 = vld [vmem:[#allocation9 + $0x288] sm:$0xf]
        %v4101 = vsel %vm2285, %v4017, 0
        %v4104 = vsel %vm2289, %v4098, 0
        %v4107 = vsel %vm2289, %v4099, 0
        %4109 = vmatprep.subr.mxu0 %v4049
        %4110 = vmatpush1.msra.mxu0 %v4048
        %4111 = vmatprep.subr.mxu0 %v4047
        %4112 = vmatpush1.msra.mxu0 %v4046
        %4113 = vmatprep.subr.mxu0 %v4045
        %4114 = vmatpush1.msra.mxu0 %v4044
        %4115 = vmatprep.subr.mxu0 %v4043
        %4116 = vmatpush1.msra.mxu0 %v4042
        %4117 = vmatprep.subr.mxu0 %v4041
        %4118 = vmatpush1.msra.mxu0 %v4040
        %4119 = vmatprep.subr.mxu0 %v4039
        %4120 = vmatpush1.msra.mxu0 %v4038
        %4121 = vmatprep.subr.mxu0 %v4037
        %4122 = vmatpush1.msra.mxu0 %v4036
        %4123 = vmatprep.subr.mxu0 %v4035
        %4124 = vmatpush1.msra.mxu0 %v4034
        %4125 = vmatprep.subr.mxu0 %v4033
        %4126 = vmatpush1.msra.mxu0 %v4032
        %4127 = vmatprep.subr.mxu0 %v4031
        %4128 = vmatpush1.msra.mxu0 %v4030
        %4129 = vmatprep.subr.mxu0 %v4029
        %4130 = vmatpush1.msra.mxu0 %v4028
        %4131 = vmatprep.subr.mxu0 %v4027
        %4132 = vmatpush1.msra.mxu0 %v4026
        %4133 = vmatprep.subr.mxu0 %v4025
        %4134 = vmatpush1.msra.mxu0 %v4024
        %4135 = vmatprep.subr.mxu0 %v4023
        %4136 = vmatpush1.msra.mxu0 %v4022
        %4137 = vmatprep.subr.mxu0 %v4021
        %4138 = vmatpush1.msra.mxu0 %v4020
        %4139 = vmatprep.subr.mxu0 %v4019
        %4140 = vmatpush1.msra.mxu0 %v4018
        %4141 = vmatprep.subr.mxu0 %v4081
        %4142 = vmatpush2.msra.mxu0 %v4080
        %4143 = vmatprep.subr.mxu0 %v4079
        %4144 = vmatpush2.msra.mxu0 %v4078
        %4145 = vmatprep.subr.mxu0 %v4077
        %4146 = vmatpush2.msra.mxu0 %v4076
        %4147 = vmatprep.subr.mxu0 %v4075
        %4148 = vmatpush2.msra.mxu0 %v4074
        %4149 = vmatprep.subr.mxu0 %v4073
        %4150 = vmatpush2.msra.mxu0 %v4072
        %4151 = vmatprep.subr.mxu0 %v4071
        %4152 = vmatpush2.msra.mxu0 %v4070
        %4153 = vmatprep.subr.mxu0 %v4069
        %4154 = vmatpush2.msra.mxu0 %v4068
        %4155 = vmatprep.subr.mxu0 %v4067
        %4156 = vmatpush2.msra.mxu0 %v4066
        %4157 = vmatprep.subr.mxu0 %v4065
        %4158 = vmatpush2.msra.mxu0 %v4064
        %4159 = vmatprep.subr.mxu0 %v4063
        %4160 = vmatpush2.msra.mxu0 %v4062
        %4161 = vmatprep.subr.mxu0 %v4061
        %4162 = vmatpush2.msra.mxu0 %v4060
        %4163 = vmatprep.subr.mxu0 %v4059
        %4164 = vmatpush2.msra.mxu0 %v4058
        %4165 = vmatprep.subr.mxu0 %v4057
        %4166 = vmatpush2.msra.mxu0 %v4056
        %4167 = vmatprep.subr.mxu0 %v4055
        %4168 = vmatpush2.msra.mxu0 %v4054
        %4169 = vmatprep.subr.mxu0 %v4053
        %4170 = vmatpush2.msra.mxu0 %v4052
        %4171 = vmatprep.subr.mxu0 %v4051
        %4172 = vmatpush2.msra.mxu0 %v4050
        %4173 = vmatprep.mubr.f32.mxu0 %v4016
        %4174 = vmatmul.mubr.f32.gmra.mxu0 %v4015
        %v4175 = vpop.f32.mrf.mxu0
        %v4176 = vadd.f32 0.0, %v4175
        %v4177 = vpop.f32.mrf.mxu0
        %v4178 = vadd.f32 0.0, %v4177
        %4179 = vdwg.mxu0
        %4180 = vmatprep.subr.mxu0 0.0
        %4181 = vmatpush1.msra.mxu0 0.0
        %4182 = vmatprep.subr.mxu0 0.0
        %4183 = vmatpush1.msra.mxu0 0.0
        %4184 = vmatprep.subr.mxu0 0.0
        %4185 = vmatpush1.msra.mxu0 0.0
        %4186 = vmatprep.subr.mxu0 0.0
        %4187 = vmatpush1.msra.mxu0 0.0
        %4188 = vmatprep.subr.mxu0 0.0
        %4189 = vmatpush1.msra.mxu0 0.0
        %4190 = vmatprep.subr.mxu0 0.0
        %4191 = vmatpush1.msra.mxu0 0.0
        %4192 = vmatprep.subr.mxu0 0.0
        %4193 = vmatpush1.msra.mxu0 0.0
        %4194 = vmatprep.subr.mxu0 %v4107
        %4195 = vmatpush1.msra.mxu0 %v4104
        %4196 = vmatprep.subr.mxu0 %v4097
        %4197 = vmatpush1.msra.mxu0 %v4096
        %4198 = vmatprep.subr.mxu0 %v4095
        %4199 = vmatpush1.msra.mxu0 %v4094
        %4200 = vmatprep.subr.mxu0 %v4093
        %4201 = vmatpush1.msra.mxu0 %v4092
        %4202 = vmatprep.subr.mxu0 %v4091
        %4203 = vmatpush1.msra.mxu0 %v4090
        %4204 = vmatprep.subr.mxu0 %v4089
        %4205 = vmatpush1.msra.mxu0 %v4088
        %4206 = vmatprep.subr.mxu0 %v4087
        %4207 = vmatpush1.msra.mxu0 %v4086
        %4208 = vmatprep.subr.mxu0 %v4085
        %4209 = vmatpush1.msra.mxu0 %v4084
        %4210 = vmatprep.subr.mxu0 %v4083
        %4211 = vmatpush1.msra.mxu0 %v4082
        %4212 = vmatprep.subr.mxu0 0.0
        %4213 = vmatpush2.msra.mxu0 0.0
        %4214 = vmatprep.subr.mxu0 0.0
        %4215 = vmatpush2.msra.mxu0 0.0
        %4216 = vmatprep.subr.mxu0 0.0
        %4217 = vmatpush2.msra.mxu0 0.0
        %4218 = vmatprep.subr.mxu0 0.0
        %4219 = vmatpush2.msra.mxu0 0.0
        %4220 = vmatprep.subr.mxu0 0.0
        %4221 = vmatpush2.msra.mxu0 0.0
        %4222 = vmatprep.subr.mxu0 0.0
        %4223 = vmatpush2.msra.mxu0 0.0
        %4224 = vmatprep.subr.mxu0 0.0
        %4225 = vmatpush2.msra.mxu0 0.0
        %4226 = vmatprep.subr.mxu0 0.0
        %4227 = vmatpush2.msra.mxu0 0.0
        %4228 = vmatprep.subr.mxu0 0.0
        %4229 = vmatpush2.msra.mxu0 0.0
        %4230 = vmatprep.subr.mxu0 0.0
        %4231 = vmatpush2.msra.mxu0 0.0
        %4232 = vmatprep.subr.mxu0 0.0
        %4233 = vmatpush2.msra.mxu0 0.0
        %4234 = vmatprep.subr.mxu0 0.0
        %4235 = vmatpush2.msra.mxu0 0.0
        %4236 = vmatprep.subr.mxu0 0.0
        %4237 = vmatpush2.msra.mxu0 0.0
        %4238 = vmatprep.subr.mxu0 0.0
        %4239 = vmatpush2.msra.mxu0 0.0
        %4240 = vmatprep.subr.mxu0 0.0
        %4241 = vmatpush2.msra.mxu0 0.0
        %4242 = vmatprep.subr.mxu0 0.0
        %4243 = vmatpush2.msra.mxu0 0.0
        %4244 = vmatprep.mubr.f32.mxu0 0.0
        %4245 = vmatmul.mubr.f32.gmra.mxu0 %v4101
        %v4246 = vpop.f32.mrf.mxu0
        %v4247 = vadd.f32 %v4176, %v4246
        %v4248 = vpop.f32.mrf.mxu0
        %v4249 = vadd.f32 %v4178, %v4248
        %4250 = vdwg.mxu0
        %4251 = vst [vmem:[%s659] sm:$0xff] %v4247
        %4252 = vst [vmem:[%s659 + $0x8] sm:$0xff] %v4249
        %v4253 = vld [vmem:[#allocation10] sm:$0xff]
        %v4254 = vld [vmem:[#allocation10 + $0x8] sm:$0xff]
        %v4255 = vld [vmem:[#allocation10 + $0x10] sm:$0xff]
        %v4256 = vld [vmem:[#allocation10 + $0x18] sm:$0xff]
        %v4257 = vld [vmem:[#allocation10 + $0x20] sm:$0xff]
        %v4258 = vld [vmem:[#allocation10 + $0x28] sm:$0xff]
        %v4259 = vld [vmem:[#allocation10 + $0x30] sm:$0xff]
        %v4260 = vld [vmem:[#allocation10 + $0x38] sm:$0xff]
        %v4261 = vld [vmem:[#allocation10 + $0x40] sm:$0xff]
        %v4262 = vld [vmem:[#allocation10 + $0x48] sm:$0xff]
        %v4263 = vld [vmem:[#allocation10 + $0x50] sm:$0xff]
        %v4264 = vld [vmem:[#allocation10 + $0x58] sm:$0xff]
        %v4265 = vld [vmem:[#allocation10 + $0x60] sm:$0xff]
        %v4266 = vld [vmem:[#allocation10 + $0x68] sm:$0xff]
        %v4267 = vld [vmem:[#allocation10 + $0x70] sm:$0xff]
        %v4268 = vld [vmem:[#allocation10 + $0x78] sm:$0xff]
        %v4269 = vld [vmem:[#allocation10 + $0x80] sm:$0xff]
        %v4270 = vld [vmem:[#allocation10 + $0x88] sm:$0xff]
        %v4271 = vld [vmem:[#allocation10 + $0x90] sm:$0xff]
        %v4272 = vld [vmem:[#allocation10 + $0x98] sm:$0xff]
        %v4273 = vld [vmem:[#allocation10 + $0xa0] sm:$0xff]
        %v4274 = vld [vmem:[#allocation10 + $0xa8] sm:$0xff]
        %v4275 = vld [vmem:[#allocation10 + $0xb0] sm:$0xff]
        %v4276 = vld [vmem:[#allocation10 + $0xb8] sm:$0xff]
        %v4277 = vld [vmem:[#allocation10 + $0xc0] sm:$0xff]
        %v4278 = vld [vmem:[#allocation10 + $0xc8] sm:$0xff]
        %v4279 = vld [vmem:[#allocation10 + $0xd0] sm:$0xff]
        %v4280 = vld [vmem:[#allocation10 + $0xd8] sm:$0xff]
        %v4281 = vld [vmem:[#allocation10 + $0xe0] sm:$0xff]
        %v4282 = vld [vmem:[#allocation10 + $0xe8] sm:$0xff]
        %v4283 = vld [vmem:[#allocation10 + $0xf0] sm:$0xff]
        %v4284 = vld [vmem:[#allocation10 + $0xf8] sm:$0xff]
        %v4285 = vld [vmem:[#allocation10 + $0x100] sm:$0xff]
        %v4286 = vld [vmem:[#allocation10 + $0x108] sm:$0xff]
        %v4287 = vld [vmem:[#allocation10 + $0x110] sm:$0xff]
        %v4288 = vld [vmem:[#allocation10 + $0x118] sm:$0xff]
        %v4289 = vld [vmem:[#allocation10 + $0x120] sm:$0xff]
        %v4290 = vld [vmem:[#allocation10 + $0x128] sm:$0xff]
        %v4291 = vld [vmem:[#allocation10 + $0x130] sm:$0xff]
        %v4292 = vld [vmem:[#allocation10 + $0x138] sm:$0xff]
        %v4293 = vld [vmem:[#allocation10 + $0x140] sm:$0xff]
        %v4294 = vld [vmem:[#allocation10 + $0x148] sm:$0xff]
        %v4295 = vld [vmem:[#allocation10 + $0x150] sm:$0xff]
        %v4296 = vld [vmem:[#allocation10 + $0x158] sm:$0xff]
        %v4297 = vld [vmem:[#allocation10 + $0x160] sm:$0xff]
        %v4298 = vld [vmem:[#allocation10 + $0x168] sm:$0xff]
        %v4299 = vld [vmem:[#allocation10 + $0x170] sm:$0xff]
        %v4300 = vld [vmem:[#allocation10 + $0x178] sm:$0xff]
        %v4301 = vld [vmem:[#allocation10 + $0x180] sm:$0xff]
        %v4302 = vld [vmem:[#allocation10 + $0x188] sm:$0xff]
        %v4303 = vld [vmem:[#allocation10 + $0x190] sm:$0xff]
        %v4304 = vld [vmem:[#allocation10 + $0x198] sm:$0xff]
        %v4305 = vld [vmem:[#allocation10 + $0x1a0] sm:$0xff]
        %v4306 = vld [vmem:[#allocation10 + $0x1a8] sm:$0xff]
        %v4307 = vld [vmem:[#allocation10 + $0x1b0] sm:$0xff]
        %v4308 = vld [vmem:[#allocation10 + $0x1b8] sm:$0xff]
        %v4309 = vld [vmem:[#allocation10 + $0x1c0] sm:$0xff]
        %v4310 = vld [vmem:[#allocation10 + $0x1c8] sm:$0xff]
        %v4311 = vld [vmem:[#allocation10 + $0x1d0] sm:$0xff]
        %v4312 = vld [vmem:[#allocation10 + $0x1d8] sm:$0xff]
        %v4313 = vld [vmem:[#allocation10 + $0x1e0] sm:$0xff]
        %v4314 = vld [vmem:[#allocation10 + $0x1e8] sm:$0xff]
        %v4315 = vld [vmem:[#allocation10 + $0x1f0] sm:$0xff]
        %v4316 = vld [vmem:[#allocation10 + $0x1f8] sm:$0xff]
        %v4317 = vld [vmem:[#allocation10 + $0x200] sm:$0xff]
        %v4318 = vld [vmem:[#allocation10 + $0x208] sm:$0xff]
        %v4319 = vld [vmem:[#allocation10 + $0x210] sm:$0xff]
        %v4320 = vld [vmem:[#allocation10 + $0x218] sm:$0xff]
        %v4321 = vld [vmem:[#allocation10 + $0x220] sm:$0xff]
        %v4322 = vld [vmem:[#allocation10 + $0x228] sm:$0xff]
        %v4323 = vld [vmem:[#allocation10 + $0x230] sm:$0xff]
        %v4324 = vld [vmem:[#allocation10 + $0x238] sm:$0xff]
        %v4325 = vld [vmem:[#allocation10 + $0x240] sm:$0xff]
        %v4326 = vld [vmem:[#allocation10 + $0x248] sm:$0xff]
        %v4327 = vld [vmem:[#allocation10 + $0x250] sm:$0xff]
        %v4328 = vld [vmem:[#allocation10 + $0x258] sm:$0xff]
        %v4329 = vld [vmem:[#allocation10 + $0x260] sm:$0xff]
        %v4330 = vld [vmem:[#allocation10 + $0x268] sm:$0xff]
        %v4331 = vld [vmem:[#allocation10 + $0x270] sm:$0xff]
        %v4332 = vld [vmem:[#allocation10 + $0x278] sm:$0xff]
        %v4333 = vld [vmem:[#allocation10 + $0x280] sm:$0xff]
        %v4334 = vld [vmem:[#allocation10 + $0x288] sm:$0xff]
        %v4335 = vld [vmem:[#allocation10 + $0x290] sm:$0xff]
        %v4336 = vld [vmem:[#allocation10 + $0x298] sm:$0xff]
        %v4337 = vld [vmem:[#allocation10 + $0x2a0] sm:$0xff]
        %v4338 = vld [vmem:[#allocation10 + $0x2a8] sm:$0xff]
        %v4339 = vld [vmem:[#allocation10 + $0x2b0] sm:$0xff]
        %v4340 = vld [vmem:[#allocation10 + $0x2b8] sm:$0xff]
        %v4341 = vld [vmem:[#allocation10 + $0x2c0] sm:$0xff]
        %v4342 = vld [vmem:[#allocation10 + $0x2c8] sm:$0xff]
        %v4343 = vld [vmem:[#allocation10 + $0x2d0] sm:$0xff]
        %v4344 = vld [vmem:[#allocation10 + $0x2d8] sm:$0xff]
        %v4345 = vld [vmem:[#allocation10 + $0x2e0] sm:$0xff]
        %v4346 = vld [vmem:[#allocation10 + $0x2e8] sm:$0xff]
        %v4347 = vld [vmem:[#allocation10 + $0x2f0] sm:$0xff]
        %v4348 = vld [vmem:[#allocation10 + $0x2f8] sm:$0xff]
        %v4349 = vld [vmem:[#allocation10 + $0x300] sm:$0xff]
        %v4350 = vld [vmem:[#allocation10 + $0x308] sm:$0xff]
        %v4351 = vld [vmem:[#allocation10 + $0x310] sm:$0xff]
        %v4352 = vld [vmem:[#allocation10 + $0x318] sm:$0xff]
        %v4353 = vld [vmem:[#allocation10 + $0x320] sm:$0xff]
        %v4354 = vld [vmem:[#allocation10 + $0x328] sm:$0xff]
        %v4355 = vld [vmem:[#allocation10 + $0x330] sm:$0xff]
        %v4356 = vld [vmem:[#allocation10 + $0x338] sm:$0xff]
        %v4357 = vld [vmem:[#allocation10 + $0x340] sm:$0xff]
        %v4358 = vld [vmem:[#allocation10 + $0x348] sm:$0xff]
        %v4359 = vld [vmem:[#allocation10 + $0x350] sm:$0xff]
        %v4360 = vld [vmem:[#allocation10 + $0x358] sm:$0xff]
        %v4361 = vld [vmem:[#allocation10 + $0x360] sm:$0xff]
        %v4362 = vld [vmem:[#allocation10 + $0x368] sm:$0xff]
        %v4363 = vld [vmem:[#allocation10 + $0x370] sm:$0xff]
        %v4364 = vld [vmem:[#allocation10 + $0x378] sm:$0xff]
        %v4365 = vld [vmem:[#allocation10 + $0x380] sm:$0xff]
        %v4366 = vld [vmem:[#allocation10 + $0x388] sm:$0xff]
        %v4367 = vld [vmem:[#allocation10 + $0x390] sm:$0xff]
        %v4368 = vld [vmem:[#allocation10 + $0x398] sm:$0xff]
        %v4369 = vld [vmem:[#allocation10 + $0x3a0] sm:$0xff]
        %v4370 = vld [vmem:[#allocation10 + $0x3a8] sm:$0xff]
        %v4371 = vld [vmem:[#allocation10 + $0x3b0] sm:$0xff]
        %v4372 = vld [vmem:[#allocation10 + $0x3b8] sm:$0xff]
        %v4373 = vld [vmem:[#allocation10 + $0x3c0] sm:$0xf]
        %v4374 = vld [vmem:[#allocation10 + $0x3c8] sm:$0xf]
        %v4375 = vld [vmem:[#allocation10 + $0x3d0] sm:$0xf]
        %v4377 = vsel %vm2289, %v4373, 0
        %v4380 = vsel %vm2289, %v4374, 0
        %v4383 = vsel %vm2289, %v4375, 0
        %4385 = vmatprep.subr.mxu0 %v4299
        %4386 = vmatpush1.msra.mxu0 %v4298
        %4387 = vmatprep.subr.mxu0 %v4296
        %4388 = vmatpush1.msra.mxu0 %v4295
        %4389 = vmatprep.subr.mxu0 %v4293
        %4390 = vmatpush1.msra.mxu0 %v4292
        %4391 = vmatprep.subr.mxu0 %v4290
        %4392 = vmatpush1.msra.mxu0 %v4289
        %4393 = vmatprep.subr.mxu0 %v4287
        %4394 = vmatpush1.msra.mxu0 %v4286
        %4395 = vmatprep.subr.mxu0 %v4284
        %4396 = vmatpush1.msra.mxu0 %v4283
        %4397 = vmatprep.subr.mxu0 %v4281
        %4398 = vmatpush1.msra.mxu0 %v4280
        %4399 = vmatprep.subr.mxu0 %v4278
        %4400 = vmatpush1.msra.mxu0 %v4277
        %4401 = vmatprep.subr.mxu0 %v4275
        %4402 = vmatpush1.msra.mxu0 %v4274
        %4403 = vmatprep.subr.mxu0 %v4272
        %4404 = vmatpush1.msra.mxu0 %v4271
        %4405 = vmatprep.subr.mxu0 %v4269
        %4406 = vmatpush1.msra.mxu0 %v4268
        %4407 = vmatprep.subr.mxu0 %v4266
        %4408 = vmatpush1.msra.mxu0 %v4265
        %4409 = vmatprep.subr.mxu0 %v4263
        %4410 = vmatpush1.msra.mxu0 %v4262
        %4411 = vmatprep.subr.mxu0 %v4260
        %4412 = vmatpush1.msra.mxu0 %v4259
        %4413 = vmatprep.subr.mxu0 %v4257
        %4414 = vmatpush1.msra.mxu0 %v4256
        %4415 = vmatprep.subr.mxu0 %v4254
        %4416 = vmatpush1.msra.mxu0 %v4253
        %4417 = vmatprep.subr.mxu0 %v4347
        %4418 = vmatpush2.msra.mxu0 %v4346
        %4419 = vmatprep.subr.mxu0 %v4344
        %4420 = vmatpush2.msra.mxu0 %v4343
        %4421 = vmatprep.subr.mxu0 %v4341
        %4422 = vmatpush2.msra.mxu0 %v4340
        %4423 = vmatprep.subr.mxu0 %v4338
        %4424 = vmatpush2.msra.mxu0 %v4337
        %4425 = vmatprep.subr.mxu0 %v4335
        %4426 = vmatpush2.msra.mxu0 %v4334
        %4427 = vmatprep.subr.mxu0 %v4332
        %4428 = vmatpush2.msra.mxu0 %v4331
        %4429 = vmatprep.subr.mxu0 %v4329
        %4430 = vmatpush2.msra.mxu0 %v4328
        %4431 = vmatprep.subr.mxu0 %v4326
        %4432 = vmatpush2.msra.mxu0 %v4325
        %4433 = vmatprep.subr.mxu0 %v4323
        %4434 = vmatpush2.msra.mxu0 %v4322
        %4435 = vmatprep.subr.mxu0 %v4320
        %4436 = vmatpush2.msra.mxu0 %v4319
        %4437 = vmatprep.subr.mxu0 %v4317
        %4438 = vmatpush2.msra.mxu0 %v4316
        %4439 = vmatprep.subr.mxu0 %v4314
        %4440 = vmatpush2.msra.mxu0 %v4313
        %4441 = vmatprep.subr.mxu0 %v4311
        %4442 = vmatpush2.msra.mxu0 %v4310
        %4443 = vmatprep.subr.mxu0 %v4308
        %4444 = vmatpush2.msra.mxu0 %v4307
        %4445 = vmatprep.subr.mxu0 %v4305
        %4446 = vmatpush2.msra.mxu0 %v4304
        %4447 = vmatprep.subr.mxu0 %v4302
        %4448 = vmatpush2.msra.mxu0 %v4301
        %4449 = vmatprep.mubr.f32.mxu0 %v4016
        %4450 = vmatmul.mubr.f32.gmra.mxu0 %v4015
        %v4451 = vpop.f32.mrf.mxu0
        %v4452 = vadd.f32 0.0, %v4451
        %v4453 = vpop.f32.mrf.mxu0
        %v4454 = vadd.f32 0.0, %v4453
        %4455 = vdwg.mxu0
        %4456 = vmatprep.subr.mxu0 0.0
        %4457 = vmatpush1.msra.mxu0 0.0
        %4458 = vmatprep.subr.mxu0 0.0
        %4459 = vmatpush1.msra.mxu0 0.0
        %4460 = vmatprep.subr.mxu0 0.0
        %4461 = vmatpush1.msra.mxu0 0.0
        %4462 = vmatprep.subr.mxu0 0.0
        %4463 = vmatpush1.msra.mxu0 0.0
        %4464 = vmatprep.subr.mxu0 0.0
        %4465 = vmatpush1.msra.mxu0 0.0
        %4466 = vmatprep.subr.mxu0 0.0
        %4467 = vmatpush1.msra.mxu0 0.0
        %4468 = vmatprep.subr.mxu0 0.0
        %4469 = vmatpush1.msra.mxu0 0.0
        %4470 = vmatprep.subr.mxu0 %v4380
        %4471 = vmatpush1.msra.mxu0 %v4377
        %4472 = vmatprep.subr.mxu0 %v4371
        %4473 = vmatpush1.msra.mxu0 %v4370
        %4474 = vmatprep.subr.mxu0 %v4368
        %4475 = vmatpush1.msra.mxu0 %v4367
        %4476 = vmatprep.subr.mxu0 %v4365
        %4477 = vmatpush1.msra.mxu0 %v4364
        %4478 = vmatprep.subr.mxu0 %v4362
        %4479 = vmatpush1.msra.mxu0 %v4361
        %4480 = vmatprep.subr.mxu0 %v4359
        %4481 = vmatpush1.msra.mxu0 %v4358
        %4482 = vmatprep.subr.mxu0 %v4356
        %4483 = vmatpush1.msra.mxu0 %v4355
        %4484 = vmatprep.subr.mxu0 %v4353
        %4485 = vmatpush1.msra.mxu0 %v4352
        %4486 = vmatprep.subr.mxu0 %v4350
        %4487 = vmatpush1.msra.mxu0 %v4349
        %4488 = vmatprep.subr.mxu0 0.0
        %4489 = vmatpush2.msra.mxu0 0.0
        %4490 = vmatprep.subr.mxu0 0.0
        %4491 = vmatpush2.msra.mxu0 0.0
        %4492 = vmatprep.subr.mxu0 0.0
        %4493 = vmatpush2.msra.mxu0 0.0
        %4494 = vmatprep.subr.mxu0 0.0
        %4495 = vmatpush2.msra.mxu0 0.0
        %4496 = vmatprep.subr.mxu0 0.0
        %4497 = vmatpush2.msra.mxu0 0.0
        %4498 = vmatprep.subr.mxu0 0.0
        %4499 = vmatpush2.msra.mxu0 0.0
        %4500 = vmatprep.subr.mxu0 0.0
        %4501 = vmatpush2.msra.mxu0 0.0
        %4502 = vmatprep.subr.mxu0 0.0
        %4503 = vmatpush2.msra.mxu0 0.0
        %4504 = vmatprep.subr.mxu0 0.0
        %4505 = vmatpush2.msra.mxu0 0.0
        %4506 = vmatprep.subr.mxu0 0.0
        %4507 = vmatpush2.msra.mxu0 0.0
        %4508 = vmatprep.subr.mxu0 0.0
        %4509 = vmatpush2.msra.mxu0 0.0
        %4510 = vmatprep.subr.mxu0 0.0
        %4511 = vmatpush2.msra.mxu0 0.0
        %4512 = vmatprep.subr.mxu0 0.0
        %4513 = vmatpush2.msra.mxu0 0.0
        %4514 = vmatprep.subr.mxu0 0.0
        %4515 = vmatpush2.msra.mxu0 0.0
        %4516 = vmatprep.subr.mxu0 0.0
        %4517 = vmatpush2.msra.mxu0 0.0
        %4518 = vmatprep.subr.mxu0 0.0
        %4519 = vmatpush2.msra.mxu0 0.0
        %4520 = vmatprep.mubr.f32.mxu0 0.0
        %4521 = vmatmul.mubr.f32.gmra.mxu0 %v4101
        %v4522 = vpop.f32.mrf.mxu0
        %v4523 = vadd.f32 %v4452, %v4522
        %v4524 = vpop.f32.mrf.mxu0
        %v4525 = vadd.f32 %v4454, %v4524
        %4526 = vdwg.mxu0
        %4527 = vmatprep.subr.mxu0 0.0
        %4528 = vmatpush1.msra.mxu0 %v4300
        %4529 = vmatprep.subr.mxu0 0.0
        %4530 = vmatpush1.msra.mxu0 %v4297
        %4531 = vmatprep.subr.mxu0 0.0
        %4532 = vmatpush1.msra.mxu0 %v4294
        %4533 = vmatprep.subr.mxu0 0.0
        %4534 = vmatpush1.msra.mxu0 %v4291
        %4535 = vmatprep.subr.mxu0 0.0
        %4536 = vmatpush1.msra.mxu0 %v4288
        %4537 = vmatprep.subr.mxu0 0.0
        %4538 = vmatpush1.msra.mxu0 %v4285
        %4539 = vmatprep.subr.mxu0 0.0
        %4540 = vmatpush1.msra.mxu0 %v4282
        %4541 = vmatprep.subr.mxu0 0.0
        %4542 = vmatpush1.msra.mxu0 %v4279
        %4543 = vmatprep.subr.mxu0 0.0
        %4544 = vmatpush1.msra.mxu0 %v4276
        %4545 = vmatprep.subr.mxu0 0.0
        %4546 = vmatpush1.msra.mxu0 %v4273
        %4547 = vmatprep.subr.mxu0 0.0
        %4548 = vmatpush1.msra.mxu0 %v4270
        %4549 = vmatprep.subr.mxu0 0.0
        %4550 = vmatpush1.msra.mxu0 %v4267
        %4551 = vmatprep.subr.mxu0 0.0
        %4552 = vmatpush1.msra.mxu0 %v4264
        %4553 = vmatprep.subr.mxu0 0.0
        %4554 = vmatpush1.msra.mxu0 %v4261
        %4555 = vmatprep.subr.mxu0 0.0
        %4556 = vmatpush1.msra.mxu0 %v4258
        %4557 = vmatprep.subr.mxu0 0.0
        %4558 = vmatpush1.msra.mxu0 %v4255
        %4559 = vmatprep.subr.mxu0 0.0
        %4560 = vmatpush2.msra.mxu0 %v4348
        %4561 = vmatprep.subr.mxu0 0.0
        %4562 = vmatpush2.msra.mxu0 %v4345
        %4563 = vmatprep.subr.mxu0 0.0
        %4564 = vmatpush2.msra.mxu0 %v4342
        %4565 = vmatprep.subr.mxu0 0.0
        %4566 = vmatpush2.msra.mxu0 %v4339
        %4567 = vmatprep.subr.mxu0 0.0
        %4568 = vmatpush2.msra.mxu0 %v4336
        %4569 = vmatprep.subr.mxu0 0.0
        %4570 = vmatpush2.msra.mxu0 %v4333
        %4571 = vmatprep.subr.mxu0 0.0
        %4572 = vmatpush2.msra.mxu0 %v4330
        %4573 = vmatprep.subr.mxu0 0.0
        %4574 = vmatpush2.msra.mxu0 %v4327
        %4575 = vmatprep.subr.mxu0 0.0
        %4576 = vmatpush2.msra.mxu0 %v4324
        %4577 = vmatprep.subr.mxu0 0.0
        %4578 = vmatpush2.msra.mxu0 %v4321
        %4579 = vmatprep.subr.mxu0 0.0
        %4580 = vmatpush2.msra.mxu0 %v4318
        %4581 = vmatprep.subr.mxu0 0.0
        %4582 = vmatpush2.msra.mxu0 %v4315
        %4583 = vmatprep.subr.mxu0 0.0
        %4584 = vmatpush2.msra.mxu0 %v4312
        %4585 = vmatprep.subr.mxu0 0.0
        %4586 = vmatpush2.msra.mxu0 %v4309
        %4587 = vmatprep.subr.mxu0 0.0
        %4588 = vmatpush2.msra.mxu0 %v4306
        %4589 = vmatprep.subr.mxu0 0.0
        %4590 = vmatpush2.msra.mxu0 %v4303
        %4591 = vmatprep.mubr.f32.mxu0 %v4016
        %4592 = vmatmul.mubr.f32.gmra.mxu0 %v4015
        %v4593 = vpop.f32.mrf.mxu0
        %v4594 = vadd.f32 0.0, %v4593
        %v4595 = vpop.f32.mrf.mxu0
        %4596 = vdwg.mxu0
        %4597 = vmatprep.subr.mxu0 0.0
        %4598 = vmatpush1.msra.mxu0 0.0
        %4599 = vmatprep.subr.mxu0 0.0
        %4600 = vmatpush1.msra.mxu0 0.0
        %4601 = vmatprep.subr.mxu0 0.0
        %4602 = vmatpush1.msra.mxu0 0.0
        %4603 = vmatprep.subr.mxu0 0.0
        %4604 = vmatpush1.msra.mxu0 0.0
        %4605 = vmatprep.subr.mxu0 0.0
        %4606 = vmatpush1.msra.mxu0 0.0
        %4607 = vmatprep.subr.mxu0 0.0
        %4608 = vmatpush1.msra.mxu0 0.0
        %4609 = vmatprep.subr.mxu0 0.0
        %4610 = vmatpush1.msra.mxu0 0.0
        %4611 = vmatprep.subr.mxu0 0.0
        %4612 = vmatpush1.msra.mxu0 %v4383
        %4613 = vmatprep.subr.mxu0 0.0
        %4614 = vmatpush1.msra.mxu0 %v4372
        %4615 = vmatprep.subr.mxu0 0.0
        %4616 = vmatpush1.msra.mxu0 %v4369
        %4617 = vmatprep.subr.mxu0 0.0
        %4618 = vmatpush1.msra.mxu0 %v4366
        %4619 = vmatprep.subr.mxu0 0.0
        %4620 = vmatpush1.msra.mxu0 %v4363
        %4621 = vmatprep.subr.mxu0 0.0
        %4622 = vmatpush1.msra.mxu0 %v4360
        %4623 = vmatprep.subr.mxu0 0.0
        %4624 = vmatpush1.msra.mxu0 %v4357
        %4625 = vmatprep.subr.mxu0 0.0
        %4626 = vmatpush1.msra.mxu0 %v4354
        %4627 = vmatprep.subr.mxu0 0.0
        %4628 = vmatpush1.msra.mxu0 %v4351
        %4629 = vmatprep.subr.mxu0 0.0
        %4630 = vmatpush2.msra.mxu0 0.0
        %4631 = vmatprep.subr.mxu0 0.0
        %4632 = vmatpush2.msra.mxu0 0.0
        %4633 = vmatprep.subr.mxu0 0.0
        %4634 = vmatpush2.msra.mxu0 0.0
        %4635 = vmatprep.subr.mxu0 0.0
        %4636 = vmatpush2.msra.mxu0 0.0
        %4637 = vmatprep.subr.mxu0 0.0
        %4638 = vmatpush2.msra.mxu0 0.0
        %4639 = vmatprep.subr.mxu0 0.0
        %4640 = vmatpush2.msra.mxu0 0.0
        %4641 = vmatprep.subr.mxu0 0.0
        %4642 = vmatpush2.msra.mxu0 0.0
        %4643 = vmatprep.subr.mxu0 0.0
        %4644 = vmatpush2.msra.mxu0 0.0
        %4645 = vmatprep.subr.mxu0 0.0
        %4646 = vmatpush2.msra.mxu0 0.0
        %4647 = vmatprep.subr.mxu0 0.0
        %4648 = vmatpush2.msra.mxu0 0.0
        %4649 = vmatprep.subr.mxu0 0.0
        %4650 = vmatpush2.msra.mxu0 0.0
        %4651 = vmatprep.subr.mxu0 0.0
        %4652 = vmatpush2.msra.mxu0 0.0
        %4653 = vmatprep.subr.mxu0 0.0
        %4654 = vmatpush2.msra.mxu0 0.0
        %4655 = vmatprep.subr.mxu0 0.0
        %4656 = vmatpush2.msra.mxu0 0.0
        %4657 = vmatprep.subr.mxu0 0.0
        %4658 = vmatpush2.msra.mxu0 0.0
        %4659 = vmatprep.subr.mxu0 0.0
        %4660 = vmatpush2.msra.mxu0 0.0
        %4661 = vmatprep.mubr.f32.mxu0 0.0
        %4662 = vmatmul.mubr.f32.gmra.mxu0 %v4101
        %v4663 = vpop.f32.mrf.mxu0
        %v4664 = vadd.f32 %v4594, %v4663
        %v4665 = vpop.f32.mrf.mxu0
        %4666 = vdwg.mxu0
        %v4667 = vld [vmem:[%s4] sm:$0xff]
        %v4668 = vld [vmem:[%s4 + $0x8] sm:$0xff]
        %s4669 = scalar_lea.vmem %s4, 16
        %v4670 = vld [vmem:[%s4669] sm:$0xff]
        %v4671 = vld [vmem:[%s4669 + $0x8] sm:$0xff]
        %4675 = vrot.lane.b32.xlu0 %v4523, 127
        %v4676 = vpop.permute.xlu0 %4675
        %4677 = vrot.lane.b32.xlu0 %v4525, 127
        %v4678 = vpop.permute.xlu0 %4677
        %4679 = vrot.lane.b32.xlu0 %v4664, 127
        %v4680 = vpop.permute.xlu0 %4679
        %v4681 = vsel %vm698, %v4676, %v4678
        %v4682 = vsel %vm698, %v4678, %v4680
        %v4687 = vsel %vm2598, %v4670, 0
        %v4690 = vsel %vm2598, %v4671, 0
        %4692 = vmatprep.subr.mxu0 0.0
        %4693 = vmatpush1.msra.mxu0 0.0
        %4694 = vmatprep.subr.mxu0 0.0
        %4695 = vmatpush1.msra.mxu0 0.0
        %4696 = vmatprep.subr.mxu0 0.0
        %4697 = vmatpush1.msra.mxu0 0.0
        %4698 = vmatprep.subr.mxu0 0.0
        %4699 = vmatpush1.msra.mxu0 0.0
        %4700 = vmatprep.subr.mxu0 0.0
        %4701 = vmatpush1.msra.mxu0 0.0
        %4702 = vmatprep.subr.mxu0 0.0
        %4703 = vmatpush1.msra.mxu0 0.0
        %4704 = vmatprep.subr.mxu0 0.0
        %4705 = vmatpush1.msra.mxu0 0.0
        %4706 = vmatprep.subr.mxu0 0.0
        %4707 = vmatpush1.msra.mxu0 0.0
        %4708 = vmatprep.subr.mxu0 0.0
        %4709 = vmatpush1.msra.mxu0 0.0
        %4710 = vmatprep.subr.mxu0 0.0
        %4711 = vmatpush1.msra.mxu0 0.0
        %4712 = vmatprep.subr.mxu0 0.0
        %4713 = vmatpush1.msra.mxu0 0.0
        %4714 = vmatprep.subr.mxu0 0.0
        %4715 = vmatpush1.msra.mxu0 0.0
        %4716 = vmatprep.subr.mxu0 0.0
        %4717 = vmatpush1.msra.mxu0 0.0
        %4718 = vmatprep.subr.mxu0 0.0
        %4719 = vmatpush1.msra.mxu0 0.0
        %4720 = vmatprep.subr.mxu0 0.0
        %4721 = vmatpush1.msra.mxu0 0.0
        %4722 = vmatprep.subr.mxu0 %v4682
        %4723 = vmatpush1.msra.mxu0 %v4681
        %4724 = vmatprep.subr.mxu0 0.0
        %4725 = vmatpush2.msra.mxu0 0.0
        %4726 = vmatprep.subr.mxu0 0.0
        %4727 = vmatpush2.msra.mxu0 0.0
        %4728 = vmatprep.subr.mxu0 0.0
        %4729 = vmatpush2.msra.mxu0 0.0
        %4730 = vmatprep.subr.mxu0 0.0
        %4731 = vmatpush2.msra.mxu0 0.0
        %4732 = vmatprep.subr.mxu0 0.0
        %4733 = vmatpush2.msra.mxu0 0.0
        %4734 = vmatprep.subr.mxu0 0.0
        %4735 = vmatpush2.msra.mxu0 0.0
        %4736 = vmatprep.subr.mxu0 0.0
        %4737 = vmatpush2.msra.mxu0 0.0
        %4738 = vmatprep.subr.mxu0 0.0
        %4739 = vmatpush2.msra.mxu0 0.0
        %4740 = vmatprep.subr.mxu0 0.0
        %4741 = vmatpush2.msra.mxu0 0.0
        %4742 = vmatprep.subr.mxu0 0.0
        %4743 = vmatpush2.msra.mxu0 0.0
        %4744 = vmatprep.subr.mxu0 0.0
        %4745 = vmatpush2.msra.mxu0 0.0
        %4746 = vmatprep.subr.mxu0 0.0
        %4747 = vmatpush2.msra.mxu0 0.0
        %4748 = vmatprep.subr.mxu0 0.0
        %4749 = vmatpush2.msra.mxu0 0.0
        %4750 = vmatprep.subr.mxu0 0.0
        %4751 = vmatpush2.msra.mxu0 0.0
        %4752 = vmatprep.subr.mxu0 0.0
        %4753 = vmatpush2.msra.mxu0 0.0
        %4754 = vmatprep.subr.mxu0 0.0
        %4755 = vmatpush2.msra.mxu0 0.0
        %4756 = vmatprep.mubr.f32.mxu0 0.0
        %4757 = vmatmul.mubr.f32.gmra.mxu0 %v4687
        %v4758 = vpop.f32.mrf.mxu0
        %v4759 = vadd.f32 0.0, %v4758
        %v4760 = vpop.f32.mrf.mxu0
        %v4761 = vadd.f32 0.0, %v4760
        %4762 = vmatprep.mubr.f32.mxu0 0.0
        %4763 = vmatmul.mubr.f32.gmra.mxu0 %v4690
        %v4764 = vpop.f32.mrf.mxu0
        %v4765 = vadd.f32 0.0, %v4764
        %v4766 = vpop.f32.mrf.mxu0
        %v4767 = vadd.f32 0.0, %v4766
        %4768 = vdwg.mxu0
        %4769 = vmatprep.subr.mxu0 0.0
        %4770 = vmatpush1.msra.mxu0 0.0
        %4771 = vmatprep.subr.mxu0 0.0
        %4772 = vmatpush1.msra.mxu0 0.0
        %4773 = vmatprep.subr.mxu0 0.0
        %4774 = vmatpush1.msra.mxu0 0.0
        %4775 = vmatprep.subr.mxu0 0.0
        %4776 = vmatpush1.msra.mxu0 0.0
        %4777 = vmatprep.subr.mxu0 0.0
        %4778 = vmatpush1.msra.mxu0 0.0
        %4779 = vmatprep.subr.mxu0 0.0
        %4780 = vmatpush1.msra.mxu0 0.0
        %4781 = vmatprep.subr.mxu0 0.0
        %4782 = vmatpush1.msra.mxu0 0.0
        %4783 = vmatprep.subr.mxu0 0.0
        %4784 = vmatpush1.msra.mxu0 0.0
        %4785 = vmatprep.subr.mxu0 0.0
        %4786 = vmatpush1.msra.mxu0 0.0
        %4787 = vmatprep.subr.mxu0 0.0
        %4788 = vmatpush1.msra.mxu0 0.0
        %4789 = vmatprep.subr.mxu0 0.0
        %4790 = vmatpush1.msra.mxu0 0.0
        %4791 = vmatprep.subr.mxu0 0.0
        %4792 = vmatpush1.msra.mxu0 0.0
        %4793 = vmatprep.subr.mxu0 0.0
        %4794 = vmatpush1.msra.mxu0 0.0
        %4795 = vmatprep.subr.mxu0 0.0
        %4796 = vmatpush1.msra.mxu0 0.0
        %4797 = vmatprep.subr.mxu0 0.0
        %4798 = vmatpush1.msra.mxu0 0.0
        %4799 = vmatprep.subr.mxu0 0.0
        %4800 = vmatpush1.msra.mxu0 %v4680
        %4801 = vmatprep.subr.mxu0 0.0
        %4802 = vmatpush2.msra.mxu0 0.0
        %4803 = vmatprep.subr.mxu0 0.0
        %4804 = vmatpush2.msra.mxu0 0.0
        %4805 = vmatprep.subr.mxu0 0.0
        %4806 = vmatpush2.msra.mxu0 0.0
        %4807 = vmatprep.subr.mxu0 0.0
        %4808 = vmatpush2.msra.mxu0 0.0
        %4809 = vmatprep.subr.mxu0 0.0
        %4810 = vmatpush2.msra.mxu0 0.0
        %4811 = vmatprep.subr.mxu0 0.0
        %4812 = vmatpush2.msra.mxu0 0.0
        %4813 = vmatprep.subr.mxu0 0.0
        %4814 = vmatpush2.msra.mxu0 0.0
        %4815 = vmatprep.subr.mxu0 0.0
        %4816 = vmatpush2.msra.mxu0 0.0
        %4817 = vmatprep.subr.mxu0 0.0
        %4818 = vmatpush2.msra.mxu0 0.0
        %4819 = vmatprep.subr.mxu0 0.0
        %4820 = vmatpush2.msra.mxu0 0.0
        %4821 = vmatprep.subr.mxu0 0.0
        %4822 = vmatpush2.msra.mxu0 0.0
        %4823 = vmatprep.subr.mxu0 0.0
        %4824 = vmatpush2.msra.mxu0 0.0
        %4825 = vmatprep.subr.mxu0 0.0
        %4826 = vmatpush2.msra.mxu0 0.0
        %4827 = vmatprep.subr.mxu0 0.0
        %4828 = vmatpush2.msra.mxu0 0.0
        %4829 = vmatprep.subr.mxu0 0.0
        %4830 = vmatpush2.msra.mxu0 0.0
        %4831 = vmatprep.subr.mxu0 0.0
        %4832 = vmatpush2.msra.mxu0 0.0
        %4833 = vmatprep.mubr.f32.mxu0 0.0
        %4834 = vmatmul.mubr.f32.gmra.mxu0 %v4687
        %v4835 = vpop.f32.mrf.mxu0
        %v4836 = vadd.f32 0.0, %v4835
        %v4837 = vpop.f32.mrf.mxu0
        %4838 = vmatprep.mubr.f32.mxu0 0.0
        %4839 = vmatmul.mubr.f32.gmra.mxu0 %v4690
        %v4840 = vpop.f32.mrf.mxu0
        %v4841 = vadd.f32 0.0, %v4840
        %v4842 = vpop.f32.mrf.mxu0
        %4843 = vdwg.mxu0
        %v4845 = vsel %vm2598, %v4667, 0
        %v4848 = vsel %vm2598, %v4668, 0
        %4850 = vmatprep.subr.mxu0 0.0
        %4851 = vmatpush1.msra.mxu0 0.0
        %4852 = vmatprep.subr.mxu0 0.0
        %4853 = vmatpush1.msra.mxu0 0.0
        %4854 = vmatprep.subr.mxu0 0.0
        %4855 = vmatpush1.msra.mxu0 0.0
        %4856 = vmatprep.subr.mxu0 0.0
        %4857 = vmatpush1.msra.mxu0 0.0
        %4858 = vmatprep.subr.mxu0 0.0
        %4859 = vmatpush1.msra.mxu0 0.0
        %4860 = vmatprep.subr.mxu0 0.0
        %4861 = vmatpush1.msra.mxu0 0.0
        %4862 = vmatprep.subr.mxu0 0.0
        %4863 = vmatpush1.msra.mxu0 0.0
        %4864 = vmatprep.subr.mxu0 0.0
        %4865 = vmatpush1.msra.mxu0 0.0
        %4866 = vmatprep.subr.mxu0 0.0
        %4867 = vmatpush1.msra.mxu0 0.0
        %4868 = vmatprep.subr.mxu0 0.0
        %4869 = vmatpush1.msra.mxu0 0.0
        %4870 = vmatprep.subr.mxu0 0.0
        %4871 = vmatpush1.msra.mxu0 0.0
        %4872 = vmatprep.subr.mxu0 0.0
        %4873 = vmatpush1.msra.mxu0 0.0
        %4874 = vmatprep.subr.mxu0 0.0
        %4875 = vmatpush1.msra.mxu0 0.0
        %4876 = vmatprep.subr.mxu0 0.0
        %4877 = vmatpush1.msra.mxu0 0.0
        %4878 = vmatprep.subr.mxu0 0.0
        %4879 = vmatpush1.msra.mxu0 0.0
        %4880 = vmatprep.subr.mxu0 %v4525
        %4881 = vmatpush1.msra.mxu0 %v4523
        %4882 = vmatprep.subr.mxu0 0.0
        %4883 = vmatpush2.msra.mxu0 0.0
        %4884 = vmatprep.subr.mxu0 0.0
        %4885 = vmatpush2.msra.mxu0 0.0
        %4886 = vmatprep.subr.mxu0 0.0
        %4887 = vmatpush2.msra.mxu0 0.0
        %4888 = vmatprep.subr.mxu0 0.0
        %4889 = vmatpush2.msra.mxu0 0.0
        %4890 = vmatprep.subr.mxu0 0.0
        %4891 = vmatpush2.msra.mxu0 0.0
        %4892 = vmatprep.subr.mxu0 0.0
        %4893 = vmatpush2.msra.mxu0 0.0
        %4894 = vmatprep.subr.mxu0 0.0
        %4895 = vmatpush2.msra.mxu0 0.0
        %4896 = vmatprep.subr.mxu0 0.0
        %4897 = vmatpush2.msra.mxu0 0.0
        %4898 = vmatprep.subr.mxu0 0.0
        %4899 = vmatpush2.msra.mxu0 0.0
        %4900 = vmatprep.subr.mxu0 0.0
        %4901 = vmatpush2.msra.mxu0 0.0
        %4902 = vmatprep.subr.mxu0 0.0
        %4903 = vmatpush2.msra.mxu0 0.0
        %4904 = vmatprep.subr.mxu0 0.0
        %4905 = vmatpush2.msra.mxu0 0.0
        %4906 = vmatprep.subr.mxu0 0.0
        %4907 = vmatpush2.msra.mxu0 0.0
        %4908 = vmatprep.subr.mxu0 0.0
        %4909 = vmatpush2.msra.mxu0 0.0
        %4910 = vmatprep.subr.mxu0 0.0
        %4911 = vmatpush2.msra.mxu0 0.0
        %4912 = vmatprep.subr.mxu0 0.0
        %4913 = vmatpush2.msra.mxu0 0.0
        %4914 = vmatprep.mubr.f32.mxu0 0.0
        %4915 = vmatmul.mubr.f32.gmra.mxu0 %v4845
        %v4916 = vpop.f32.mrf.mxu0
        %v4917 = vadd.f32 %v4759, %v4916
        %v4918 = vpop.f32.mrf.mxu0
        %v4919 = vadd.f32 %v4761, %v4918
        %4920 = vmatprep.mubr.f32.mxu0 0.0
        %4921 = vmatmul.mubr.f32.gmra.mxu0 %v4848
        %v4922 = vpop.f32.mrf.mxu0
        %v4923 = vadd.f32 %v4765, %v4922
        %v4924 = vpop.f32.mrf.mxu0
        %v4925 = vadd.f32 %v4767, %v4924
        %4926 = vdwg.mxu0
        %4927 = vmatprep.subr.mxu0 0.0
        %4928 = vmatpush1.msra.mxu0 0.0
        %4929 = vmatprep.subr.mxu0 0.0
        %4930 = vmatpush1.msra.mxu0 0.0
        %4931 = vmatprep.subr.mxu0 0.0
        %4932 = vmatpush1.msra.mxu0 0.0
        %4933 = vmatprep.subr.mxu0 0.0
        %4934 = vmatpush1.msra.mxu0 0.0
        %4935 = vmatprep.subr.mxu0 0.0
        %4936 = vmatpush1.msra.mxu0 0.0
        %4937 = vmatprep.subr.mxu0 0.0
        %4938 = vmatpush1.msra.mxu0 0.0
        %4939 = vmatprep.subr.mxu0 0.0
        %4940 = vmatpush1.msra.mxu0 0.0
        %4941 = vmatprep.subr.mxu0 0.0
        %4942 = vmatpush1.msra.mxu0 0.0
        %4943 = vmatprep.subr.mxu0 0.0
        %4944 = vmatpush1.msra.mxu0 0.0
        %4945 = vmatprep.subr.mxu0 0.0
        %4946 = vmatpush1.msra.mxu0 0.0
        %4947 = vmatprep.subr.mxu0 0.0
        %4948 = vmatpush1.msra.mxu0 0.0
        %4949 = vmatprep.subr.mxu0 0.0
        %4950 = vmatpush1.msra.mxu0 0.0
        %4951 = vmatprep.subr.mxu0 0.0
        %4952 = vmatpush1.msra.mxu0 0.0
        %4953 = vmatprep.subr.mxu0 0.0
        %4954 = vmatpush1.msra.mxu0 0.0
        %4955 = vmatprep.subr.mxu0 0.0
        %4956 = vmatpush1.msra.mxu0 0.0
        %4957 = vmatprep.subr.mxu0 0.0
        %4958 = vmatpush1.msra.mxu0 %v4664
        %4959 = vmatprep.subr.mxu0 0.0
        %4960 = vmatpush2.msra.mxu0 0.0
        %4961 = vmatprep.subr.mxu0 0.0
        %4962 = vmatpush2.msra.mxu0 0.0
        %4963 = vmatprep.subr.mxu0 0.0
        %4964 = vmatpush2.msra.mxu0 0.0
        %4965 = vmatprep.subr.mxu0 0.0
        %4966 = vmatpush2.msra.mxu0 0.0
        %4967 = vmatprep.subr.mxu0 0.0
        %4968 = vmatpush2.msra.mxu0 0.0
        %4969 = vmatprep.subr.mxu0 0.0
        %4970 = vmatpush2.msra.mxu0 0.0
        %4971 = vmatprep.subr.mxu0 0.0
        %4972 = vmatpush2.msra.mxu0 0.0
        %4973 = vmatprep.subr.mxu0 0.0
        %4974 = vmatpush2.msra.mxu0 0.0
        %4975 = vmatprep.subr.mxu0 0.0
        %4976 = vmatpush2.msra.mxu0 0.0
        %4977 = vmatprep.subr.mxu0 0.0
        %4978 = vmatpush2.msra.mxu0 0.0
        %4979 = vmatprep.subr.mxu0 0.0
        %4980 = vmatpush2.msra.mxu0 0.0
        %4981 = vmatprep.subr.mxu0 0.0
        %4982 = vmatpush2.msra.mxu0 0.0
        %4983 = vmatprep.subr.mxu0 0.0
        %4984 = vmatpush2.msra.mxu0 0.0
        %4985 = vmatprep.subr.mxu0 0.0
        %4986 = vmatpush2.msra.mxu0 0.0
        %4987 = vmatprep.subr.mxu0 0.0
        %4988 = vmatpush2.msra.mxu0 0.0
        %4989 = vmatprep.subr.mxu0 0.0
        %4990 = vmatpush2.msra.mxu0 0.0
        %4991 = vmatprep.mubr.f32.mxu0 0.0
        %4992 = vmatmul.mubr.f32.gmra.mxu0 %v4845
        %v4993 = vpop.f32.mrf.mxu0
        %v4994 = vadd.f32 %v4836, %v4993
        %v4995 = vpop.f32.mrf.mxu0
        %4996 = vmatprep.mubr.f32.mxu0 0.0
        %4997 = vmatmul.mubr.f32.gmra.mxu0 %v4848
        %v4998 = vpop.f32.mrf.mxu0
        %v4999 = vadd.f32 %v4841, %v4998
        %v5000 = vpop.f32.mrf.mxu0
        %5001 = vdwg.mxu0
        %s5002 = scalar_lea.vmem %s4, 32
        %v5003 = vld [vmem:[%s5002] sm:$0xff]
        %v5004 = vld [vmem:[%s5002 + $0x8] sm:$0xff]
        %5005 = vrot.lane.b32.xlu0 %v4523, 126
        %v5006 = vpop.permute.xlu0 %5005
        %5007 = vrot.lane.b32.xlu0 %v4525, 126
        %v5008 = vpop.permute.xlu0 %5007
        %5009 = vrot.lane.b32.xlu0 %v4664, 126
        %v5010 = vpop.permute.xlu0 %5009
        %v5011 = vsel %vm1011, %v5006, %v5008
        %v5012 = vsel %vm1011, %v5008, %v5010
        %v5017 = vsel %vm2598, %v5003, 0
        %v5020 = vsel %vm2598, %v5004, 0
        %5022 = vmatprep.subr.mxu0 0.0
        %5023 = vmatpush1.msra.mxu0 0.0
        %5024 = vmatprep.subr.mxu0 0.0
        %5025 = vmatpush1.msra.mxu0 0.0
        %5026 = vmatprep.subr.mxu0 0.0
        %5027 = vmatpush1.msra.mxu0 0.0
        %5028 = vmatprep.subr.mxu0 0.0
        %5029 = vmatpush1.msra.mxu0 0.0
        %5030 = vmatprep.subr.mxu0 0.0
        %5031 = vmatpush1.msra.mxu0 0.0
        %5032 = vmatprep.subr.mxu0 0.0
        %5033 = vmatpush1.msra.mxu0 0.0
        %5034 = vmatprep.subr.mxu0 0.0
        %5035 = vmatpush1.msra.mxu0 0.0
        %5036 = vmatprep.subr.mxu0 0.0
        %5037 = vmatpush1.msra.mxu0 0.0
        %5038 = vmatprep.subr.mxu0 0.0
        %5039 = vmatpush1.msra.mxu0 0.0
        %5040 = vmatprep.subr.mxu0 0.0
        %5041 = vmatpush1.msra.mxu0 0.0
        %5042 = vmatprep.subr.mxu0 0.0
        %5043 = vmatpush1.msra.mxu0 0.0
        %5044 = vmatprep.subr.mxu0 0.0
        %5045 = vmatpush1.msra.mxu0 0.0
        %5046 = vmatprep.subr.mxu0 0.0
        %5047 = vmatpush1.msra.mxu0 0.0
        %5048 = vmatprep.subr.mxu0 0.0
        %5049 = vmatpush1.msra.mxu0 0.0
        %5050 = vmatprep.subr.mxu0 0.0
        %5051 = vmatpush1.msra.mxu0 0.0
        %5052 = vmatprep.subr.mxu0 %v5012
        %5053 = vmatpush1.msra.mxu0 %v5011
        %5054 = vmatprep.subr.mxu0 0.0
        %5055 = vmatpush2.msra.mxu0 0.0
        %5056 = vmatprep.subr.mxu0 0.0
        %5057 = vmatpush2.msra.mxu0 0.0
        %5058 = vmatprep.subr.mxu0 0.0
        %5059 = vmatpush2.msra.mxu0 0.0
        %5060 = vmatprep.subr.mxu0 0.0
        %5061 = vmatpush2.msra.mxu0 0.0
        %5062 = vmatprep.subr.mxu0 0.0
        %5063 = vmatpush2.msra.mxu0 0.0
        %5064 = vmatprep.subr.mxu0 0.0
        %5065 = vmatpush2.msra.mxu0 0.0
        %5066 = vmatprep.subr.mxu0 0.0
        %5067 = vmatpush2.msra.mxu0 0.0
        %5068 = vmatprep.subr.mxu0 0.0
        %5069 = vmatpush2.msra.mxu0 0.0
        %5070 = vmatprep.subr.mxu0 0.0
        %5071 = vmatpush2.msra.mxu0 0.0
        %5072 = vmatprep.subr.mxu0 0.0
        %5073 = vmatpush2.msra.mxu0 0.0
        %5074 = vmatprep.subr.mxu0 0.0
        %5075 = vmatpush2.msra.mxu0 0.0
        %5076 = vmatprep.subr.mxu0 0.0
        %5077 = vmatpush2.msra.mxu0 0.0
        %5078 = vmatprep.subr.mxu0 0.0
        %5079 = vmatpush2.msra.mxu0 0.0
        %5080 = vmatprep.subr.mxu0 0.0
        %5081 = vmatpush2.msra.mxu0 0.0
        %5082 = vmatprep.subr.mxu0 0.0
        %5083 = vmatpush2.msra.mxu0 0.0
        %5084 = vmatprep.subr.mxu0 0.0
        %5085 = vmatpush2.msra.mxu0 0.0
        %5086 = vmatprep.mubr.f32.mxu0 0.0
        %5087 = vmatmul.mubr.f32.gmra.mxu0 %v5017
        %v5088 = vpop.f32.mrf.mxu0
        %v5089 = vadd.f32 0.0, %v5088
        %v5090 = vpop.f32.mrf.mxu0
        %v5091 = vadd.f32 0.0, %v5090
        %5092 = vmatprep.mubr.f32.mxu0 0.0
        %5093 = vmatmul.mubr.f32.gmra.mxu0 %v5020
        %v5094 = vpop.f32.mrf.mxu0
        %v5095 = vadd.f32 0.0, %v5094
        %v5096 = vpop.f32.mrf.mxu0
        %v5097 = vadd.f32 0.0, %v5096
        %5098 = vdwg.mxu0
        %5099 = vmatprep.subr.mxu0 0.0
        %5100 = vmatpush1.msra.mxu0 0.0
        %5101 = vmatprep.subr.mxu0 0.0
        %5102 = vmatpush1.msra.mxu0 0.0
        %5103 = vmatprep.subr.mxu0 0.0
        %5104 = vmatpush1.msra.mxu0 0.0
        %5105 = vmatprep.subr.mxu0 0.0
        %5106 = vmatpush1.msra.mxu0 0.0
        %5107 = vmatprep.subr.mxu0 0.0
        %5108 = vmatpush1.msra.mxu0 0.0
        %5109 = vmatprep.subr.mxu0 0.0
        %5110 = vmatpush1.msra.mxu0 0.0
        %5111 = vmatprep.subr.mxu0 0.0
        %5112 = vmatpush1.msra.mxu0 0.0
        %5113 = vmatprep.subr.mxu0 0.0
        %5114 = vmatpush1.msra.mxu0 0.0
        %5115 = vmatprep.subr.mxu0 0.0
        %5116 = vmatpush1.msra.mxu0 0.0
        %5117 = vmatprep.subr.mxu0 0.0
        %5118 = vmatpush1.msra.mxu0 0.0
        %5119 = vmatprep.subr.mxu0 0.0
        %5120 = vmatpush1.msra.mxu0 0.0
        %5121 = vmatprep.subr.mxu0 0.0
        %5122 = vmatpush1.msra.mxu0 0.0
        %5123 = vmatprep.subr.mxu0 0.0
        %5124 = vmatpush1.msra.mxu0 0.0
        %5125 = vmatprep.subr.mxu0 0.0
        %5126 = vmatpush1.msra.mxu0 0.0
        %5127 = vmatprep.subr.mxu0 0.0
        %5128 = vmatpush1.msra.mxu0 0.0
        %5129 = vmatprep.subr.mxu0 0.0
        %5130 = vmatpush1.msra.mxu0 %v5010
        %5131 = vmatprep.subr.mxu0 0.0
        %5132 = vmatpush2.msra.mxu0 0.0
        %5133 = vmatprep.subr.mxu0 0.0
        %5134 = vmatpush2.msra.mxu0 0.0
        %5135 = vmatprep.subr.mxu0 0.0
        %5136 = vmatpush2.msra.mxu0 0.0
        %5137 = vmatprep.subr.mxu0 0.0
        %5138 = vmatpush2.msra.mxu0 0.0
        %5139 = vmatprep.subr.mxu0 0.0
        %5140 = vmatpush2.msra.mxu0 0.0
        %5141 = vmatprep.subr.mxu0 0.0
        %5142 = vmatpush2.msra.mxu0 0.0
        %5143 = vmatprep.subr.mxu0 0.0
        %5144 = vmatpush2.msra.mxu0 0.0
        %5145 = vmatprep.subr.mxu0 0.0
        %5146 = vmatpush2.msra.mxu0 0.0
        %5147 = vmatprep.subr.mxu0 0.0
        %5148 = vmatpush2.msra.mxu0 0.0
        %5149 = vmatprep.subr.mxu0 0.0
        %5150 = vmatpush2.msra.mxu0 0.0
        %5151 = vmatprep.subr.mxu0 0.0
        %5152 = vmatpush2.msra.mxu0 0.0
        %5153 = vmatprep.subr.mxu0 0.0
        %5154 = vmatpush2.msra.mxu0 0.0
        %5155 = vmatprep.subr.mxu0 0.0
        %5156 = vmatpush2.msra.mxu0 0.0
        %5157 = vmatprep.subr.mxu0 0.0
        %5158 = vmatpush2.msra.mxu0 0.0
        %5159 = vmatprep.subr.mxu0 0.0
        %5160 = vmatpush2.msra.mxu0 0.0
        %5161 = vmatprep.subr.mxu0 0.0
        %5162 = vmatpush2.msra.mxu0 0.0
        %5163 = vmatprep.mubr.f32.mxu0 0.0
        %5164 = vmatmul.mubr.f32.gmra.mxu0 %v5017
        %v5165 = vpop.f32.mrf.mxu0
        %v5166 = vadd.f32 0.0, %v5165
        %v5167 = vpop.f32.mrf.mxu0
        %5168 = vmatprep.mubr.f32.mxu0 0.0
        %5169 = vmatmul.mubr.f32.gmra.mxu0 %v5020
        %v5170 = vpop.f32.mrf.mxu0
        %v5171 = vadd.f32 0.0, %v5170
        %v5172 = vpop.f32.mrf.mxu0
        %5173 = vdwg.mxu0
        %v5174 = vadd.f32 %v4917, %v5089
        %v5175 = vadd.f32 %v4919, %v5091
        %v5176 = vadd.f32 %v4994, %v5166
        %v5177 = vadd.f32 %v4923, %v5095
        %v5178 = vadd.f32 %v4925, %v5097
        %v5179 = vadd.f32 %v4999, %v5171
        %s5180 = scalar_lea.vmem %s4, 48
        %v5181 = vld [vmem:[%s5180] sm:$0xff]
        %v5182 = vld [vmem:[%s5180 + $0x8] sm:$0xff]
        %5183 = vrot.lane.b32.xlu0 %v4523, 110
        %v5184 = vpop.permute.xlu0 %5183
        %5185 = vrot.lane.b32.xlu0 %v4525, 110
        %v5186 = vpop.permute.xlu0 %5185
        %5187 = vrot.lane.b32.xlu0 %v4664, 110
        %v5188 = vpop.permute.xlu0 %5187
        %v5189 = vsel %vm1175, %v5184, %v5186
        %v5190 = vsel %vm1175, %v5186, %v5188
        %v5195 = vsel %vm2598, %v5181, 0
        %v5198 = vsel %vm2598, %v5182, 0
        %5200 = vmatprep.subr.mxu0 0.0
        %5201 = vmatpush1.msra.mxu0 0.0
        %5202 = vmatprep.subr.mxu0 0.0
        %5203 = vmatpush1.msra.mxu0 0.0
        %5204 = vmatprep.subr.mxu0 0.0
        %5205 = vmatpush1.msra.mxu0 0.0
        %5206 = vmatprep.subr.mxu0 0.0
        %5207 = vmatpush1.msra.mxu0 0.0
        %5208 = vmatprep.subr.mxu0 0.0
        %5209 = vmatpush1.msra.mxu0 0.0
        %5210 = vmatprep.subr.mxu0 0.0
        %5211 = vmatpush1.msra.mxu0 0.0
        %5212 = vmatprep.subr.mxu0 0.0
        %5213 = vmatpush1.msra.mxu0 0.0
        %5214 = vmatprep.subr.mxu0 0.0
        %5215 = vmatpush1.msra.mxu0 0.0
        %5216 = vmatprep.subr.mxu0 0.0
        %5217 = vmatpush1.msra.mxu0 0.0
        %5218 = vmatprep.subr.mxu0 0.0
        %5219 = vmatpush1.msra.mxu0 0.0
        %5220 = vmatprep.subr.mxu0 0.0
        %5221 = vmatpush1.msra.mxu0 0.0
        %5222 = vmatprep.subr.mxu0 0.0
        %5223 = vmatpush1.msra.mxu0 0.0
        %5224 = vmatprep.subr.mxu0 0.0
        %5225 = vmatpush1.msra.mxu0 0.0
        %5226 = vmatprep.subr.mxu0 0.0
        %5227 = vmatpush1.msra.mxu0 0.0
        %5228 = vmatprep.subr.mxu0 0.0
        %5229 = vmatpush1.msra.mxu0 0.0
        %5230 = vmatprep.subr.mxu0 %v5190
        %5231 = vmatpush1.msra.mxu0 %v5189
        %5232 = vmatprep.subr.mxu0 0.0
        %5233 = vmatpush2.msra.mxu0 0.0
        %5234 = vmatprep.subr.mxu0 0.0
        %5235 = vmatpush2.msra.mxu0 0.0
        %5236 = vmatprep.subr.mxu0 0.0
        %5237 = vmatpush2.msra.mxu0 0.0
        %5238 = vmatprep.subr.mxu0 0.0
        %5239 = vmatpush2.msra.mxu0 0.0
        %5240 = vmatprep.subr.mxu0 0.0
        %5241 = vmatpush2.msra.mxu0 0.0
        %5242 = vmatprep.subr.mxu0 0.0
        %5243 = vmatpush2.msra.mxu0 0.0
        %5244 = vmatprep.subr.mxu0 0.0
        %5245 = vmatpush2.msra.mxu0 0.0
        %5246 = vmatprep.subr.mxu0 0.0
        %5247 = vmatpush2.msra.mxu0 0.0
        %5248 = vmatprep.subr.mxu0 0.0
        %5249 = vmatpush2.msra.mxu0 0.0
        %5250 = vmatprep.subr.mxu0 0.0
        %5251 = vmatpush2.msra.mxu0 0.0
        %5252 = vmatprep.subr.mxu0 0.0
        %5253 = vmatpush2.msra.mxu0 0.0
        %5254 = vmatprep.subr.mxu0 0.0
        %5255 = vmatpush2.msra.mxu0 0.0
        %5256 = vmatprep.subr.mxu0 0.0
        %5257 = vmatpush2.msra.mxu0 0.0
        %5258 = vmatprep.subr.mxu0 0.0
        %5259 = vmatpush2.msra.mxu0 0.0
        %5260 = vmatprep.subr.mxu0 0.0
        %5261 = vmatpush2.msra.mxu0 0.0
        %5262 = vmatprep.subr.mxu0 0.0
        %5263 = vmatpush2.msra.mxu0 0.0
        %5264 = vmatprep.mubr.f32.mxu0 0.0
        %5265 = vmatmul.mubr.f32.gmra.mxu0 %v5195
        %v5266 = vpop.f32.mrf.mxu0
        %v5267 = vadd.f32 0.0, %v5266
        %v5268 = vpop.f32.mrf.mxu0
        %v5269 = vadd.f32 0.0, %v5268
        %5270 = vmatprep.mubr.f32.mxu0 0.0
        %5271 = vmatmul.mubr.f32.gmra.mxu0 %v5198
        %v5272 = vpop.f32.mrf.mxu0
        %v5273 = vadd.f32 0.0, %v5272
        %v5274 = vpop.f32.mrf.mxu0
        %v5275 = vadd.f32 0.0, %v5274
        %5276 = vdwg.mxu0
        %5277 = vmatprep.subr.mxu0 0.0
        %5278 = vmatpush1.msra.mxu0 0.0
        %5279 = vmatprep.subr.mxu0 0.0
        %5280 = vmatpush1.msra.mxu0 0.0
        %5281 = vmatprep.subr.mxu0 0.0
        %5282 = vmatpush1.msra.mxu0 0.0
        %5283 = vmatprep.subr.mxu0 0.0
        %5284 = vmatpush1.msra.mxu0 0.0
        %5285 = vmatprep.subr.mxu0 0.0
        %5286 = vmatpush1.msra.mxu0 0.0
        %5287 = vmatprep.subr.mxu0 0.0
        %5288 = vmatpush1.msra.mxu0 0.0
        %5289 = vmatprep.subr.mxu0 0.0
        %5290 = vmatpush1.msra.mxu0 0.0
        %5291 = vmatprep.subr.mxu0 0.0
        %5292 = vmatpush1.msra.mxu0 0.0
        %5293 = vmatprep.subr.mxu0 0.0
        %5294 = vmatpush1.msra.mxu0 0.0
        %5295 = vmatprep.subr.mxu0 0.0
        %5296 = vmatpush1.msra.mxu0 0.0
        %5297 = vmatprep.subr.mxu0 0.0
        %5298 = vmatpush1.msra.mxu0 0.0
        %5299 = vmatprep.subr.mxu0 0.0
        %5300 = vmatpush1.msra.mxu0 0.0
        %5301 = vmatprep.subr.mxu0 0.0
        %5302 = vmatpush1.msra.mxu0 0.0
        %5303 = vmatprep.subr.mxu0 0.0
        %5304 = vmatpush1.msra.mxu0 0.0
        %5305 = vmatprep.subr.mxu0 0.0
        %5306 = vmatpush1.msra.mxu0 0.0
        %5307 = vmatprep.subr.mxu0 0.0
        %5308 = vmatpush1.msra.mxu0 %v5188
        %5309 = vmatprep.subr.mxu0 0.0
        %5310 = vmatpush2.msra.mxu0 0.0
        %5311 = vmatprep.subr.mxu0 0.0
        %5312 = vmatpush2.msra.mxu0 0.0
        %5313 = vmatprep.subr.mxu0 0.0
        %5314 = vmatpush2.msra.mxu0 0.0
        %5315 = vmatprep.subr.mxu0 0.0
        %5316 = vmatpush2.msra.mxu0 0.0
        %5317 = vmatprep.subr.mxu0 0.0
        %5318 = vmatpush2.msra.mxu0 0.0
        %5319 = vmatprep.subr.mxu0 0.0
        %5320 = vmatpush2.msra.mxu0 0.0
        %5321 = vmatprep.subr.mxu0 0.0
        %5322 = vmatpush2.msra.mxu0 0.0
        %5323 = vmatprep.subr.mxu0 0.0
        %5324 = vmatpush2.msra.mxu0 0.0
        %5325 = vmatprep.subr.mxu0 0.0
        %5326 = vmatpush2.msra.mxu0 0.0
        %5327 = vmatprep.subr.mxu0 0.0
        %5328 = vmatpush2.msra.mxu0 0.0
        %5329 = vmatprep.subr.mxu0 0.0
        %5330 = vmatpush2.msra.mxu0 0.0
        %5331 = vmatprep.subr.mxu0 0.0
        %5332 = vmatpush2.msra.mxu0 0.0
        %5333 = vmatprep.subr.mxu0 0.0
        %5334 = vmatpush2.msra.mxu0 0.0
        %5335 = vmatprep.subr.mxu0 0.0
        %5336 = vmatpush2.msra.mxu0 0.0
        %5337 = vmatprep.subr.mxu0 0.0
        %5338 = vmatpush2.msra.mxu0 0.0
        %5339 = vmatprep.subr.mxu0 0.0
        %5340 = vmatpush2.msra.mxu0 0.0
        %5341 = vmatprep.mubr.f32.mxu0 0.0
        %5342 = vmatmul.mubr.f32.gmra.mxu0 %v5195
        %v5343 = vpop.f32.mrf.mxu0
        %v5344 = vadd.f32 0.0, %v5343
        %v5345 = vpop.f32.mrf.mxu0
        %5346 = vmatprep.mubr.f32.mxu0 0.0
        %5347 = vmatmul.mubr.f32.gmra.mxu0 %v5198
        %v5348 = vpop.f32.mrf.mxu0
        %v5349 = vadd.f32 0.0, %v5348
        %v5350 = vpop.f32.mrf.mxu0
        %5351 = vdwg.mxu0
        %v5352 = vadd.f32 %v5174, %v5267
        %v5353 = vadd.f32 %v5175, %v5269
        %v5354 = vadd.f32 %v5176, %v5344
        %v5355 = vadd.f32 %v5177, %v5273
        %v5356 = vadd.f32 %v5178, %v5275
        %v5357 = vadd.f32 %v5179, %v5349
        %s5358 = scalar_lea.vmem %s4, 64
        %v5359 = vld [vmem:[%s5358] sm:$0xff]
        %v5360 = vld [vmem:[%s5358 + $0x8] sm:$0xff]
        %5361 = vrot.lane.b32.xlu0 %v4523, 109
        %v5362 = vpop.permute.xlu0 %5361
        %5363 = vrot.lane.b32.xlu0 %v4525, 109
        %v5364 = vpop.permute.xlu0 %5363
        %5365 = vrot.lane.b32.xlu0 %v4664, 109
        %v5366 = vpop.permute.xlu0 %5365
        %v5367 = vsel %vm1339, %v5362, %v5364
        %v5368 = vsel %vm1339, %v5364, %v5366
        %v5373 = vsel %vm2598, %v5359, 0
        %v5376 = vsel %vm2598, %v5360, 0
        %5378 = vmatprep.subr.mxu0 0.0
        %5379 = vmatpush1.msra.mxu0 0.0
        %5380 = vmatprep.subr.mxu0 0.0
        %5381 = vmatpush1.msra.mxu0 0.0
        %5382 = vmatprep.subr.mxu0 0.0
        %5383 = vmatpush1.msra.mxu0 0.0
        %5384 = vmatprep.subr.mxu0 0.0
        %5385 = vmatpush1.msra.mxu0 0.0
        %5386 = vmatprep.subr.mxu0 0.0
        %5387 = vmatpush1.msra.mxu0 0.0
        %5388 = vmatprep.subr.mxu0 0.0
        %5389 = vmatpush1.msra.mxu0 0.0
        %5390 = vmatprep.subr.mxu0 0.0
        %5391 = vmatpush1.msra.mxu0 0.0
        %5392 = vmatprep.subr.mxu0 0.0
        %5393 = vmatpush1.msra.mxu0 0.0
        %5394 = vmatprep.subr.mxu0 0.0
        %5395 = vmatpush1.msra.mxu0 0.0
        %5396 = vmatprep.subr.mxu0 0.0
        %5397 = vmatpush1.msra.mxu0 0.0
        %5398 = vmatprep.subr.mxu0 0.0
        %5399 = vmatpush1.msra.mxu0 0.0
        %5400 = vmatprep.subr.mxu0 0.0
        %5401 = vmatpush1.msra.mxu0 0.0
        %5402 = vmatprep.subr.mxu0 0.0
        %5403 = vmatpush1.msra.mxu0 0.0
        %5404 = vmatprep.subr.mxu0 0.0
        %5405 = vmatpush1.msra.mxu0 0.0
        %5406 = vmatprep.subr.mxu0 0.0
        %5407 = vmatpush1.msra.mxu0 0.0
        %5408 = vmatprep.subr.mxu0 %v5368
        %5409 = vmatpush1.msra.mxu0 %v5367
        %5410 = vmatprep.subr.mxu0 0.0
        %5411 = vmatpush2.msra.mxu0 0.0
        %5412 = vmatprep.subr.mxu0 0.0
        %5413 = vmatpush2.msra.mxu0 0.0
        %5414 = vmatprep.subr.mxu0 0.0
        %5415 = vmatpush2.msra.mxu0 0.0
        %5416 = vmatprep.subr.mxu0 0.0
        %5417 = vmatpush2.msra.mxu0 0.0
        %5418 = vmatprep.subr.mxu0 0.0
        %5419 = vmatpush2.msra.mxu0 0.0
        %5420 = vmatprep.subr.mxu0 0.0
        %5421 = vmatpush2.msra.mxu0 0.0
        %5422 = vmatprep.subr.mxu0 0.0
        %5423 = vmatpush2.msra.mxu0 0.0
        %5424 = vmatprep.subr.mxu0 0.0
        %5425 = vmatpush2.msra.mxu0 0.0
        %5426 = vmatprep.subr.mxu0 0.0
        %5427 = vmatpush2.msra.mxu0 0.0
        %5428 = vmatprep.subr.mxu0 0.0
        %5429 = vmatpush2.msra.mxu0 0.0
        %5430 = vmatprep.subr.mxu0 0.0
        %5431 = vmatpush2.msra.mxu0 0.0
        %5432 = vmatprep.subr.mxu0 0.0
        %5433 = vmatpush2.msra.mxu0 0.0
        %5434 = vmatprep.subr.mxu0 0.0
        %5435 = vmatpush2.msra.mxu0 0.0
        %5436 = vmatprep.subr.mxu0 0.0
        %5437 = vmatpush2.msra.mxu0 0.0
        %5438 = vmatprep.subr.mxu0 0.0
        %5439 = vmatpush2.msra.mxu0 0.0
        %5440 = vmatprep.subr.mxu0 0.0
        %5441 = vmatpush2.msra.mxu0 0.0
        %5442 = vmatprep.mubr.f32.mxu0 0.0
        %5443 = vmatmul.mubr.f32.gmra.mxu0 %v5373
        %v5444 = vpop.f32.mrf.mxu0
        %v5445 = vadd.f32 0.0, %v5444
        %v5446 = vpop.f32.mrf.mxu0
        %v5447 = vadd.f32 0.0, %v5446
        %5448 = vmatprep.mubr.f32.mxu0 0.0
        %5449 = vmatmul.mubr.f32.gmra.mxu0 %v5376
        %v5450 = vpop.f32.mrf.mxu0
        %v5451 = vadd.f32 0.0, %v5450
        %v5452 = vpop.f32.mrf.mxu0
        %v5453 = vadd.f32 0.0, %v5452
        %5454 = vdwg.mxu0
        %5455 = vmatprep.subr.mxu0 0.0
        %5456 = vmatpush1.msra.mxu0 0.0
        %5457 = vmatprep.subr.mxu0 0.0
        %5458 = vmatpush1.msra.mxu0 0.0
        %5459 = vmatprep.subr.mxu0 0.0
        %5460 = vmatpush1.msra.mxu0 0.0
        %5461 = vmatprep.subr.mxu0 0.0
        %5462 = vmatpush1.msra.mxu0 0.0
        %5463 = vmatprep.subr.mxu0 0.0
        %5464 = vmatpush1.msra.mxu0 0.0
        %5465 = vmatprep.subr.mxu0 0.0
        %5466 = vmatpush1.msra.mxu0 0.0
        %5467 = vmatprep.subr.mxu0 0.0
        %5468 = vmatpush1.msra.mxu0 0.0
        %5469 = vmatprep.subr.mxu0 0.0
        %5470 = vmatpush1.msra.mxu0 0.0
        %5471 = vmatprep.subr.mxu0 0.0
        %5472 = vmatpush1.msra.mxu0 0.0
        %5473 = vmatprep.subr.mxu0 0.0
        %5474 = vmatpush1.msra.mxu0 0.0
        %5475 = vmatprep.subr.mxu0 0.0
        %5476 = vmatpush1.msra.mxu0 0.0
        %5477 = vmatprep.subr.mxu0 0.0
        %5478 = vmatpush1.msra.mxu0 0.0
        %5479 = vmatprep.subr.mxu0 0.0
        %5480 = vmatpush1.msra.mxu0 0.0
        %5481 = vmatprep.subr.mxu0 0.0
        %5482 = vmatpush1.msra.mxu0 0.0
        %5483 = vmatprep.subr.mxu0 0.0
        %5484 = vmatpush1.msra.mxu0 0.0
        %5485 = vmatprep.subr.mxu0 0.0
        %5486 = vmatpush1.msra.mxu0 %v5366
        %5487 = vmatprep.subr.mxu0 0.0
        %5488 = vmatpush2.msra.mxu0 0.0
        %5489 = vmatprep.subr.mxu0 0.0
        %5490 = vmatpush2.msra.mxu0 0.0
        %5491 = vmatprep.subr.mxu0 0.0
        %5492 = vmatpush2.msra.mxu0 0.0
        %5493 = vmatprep.subr.mxu0 0.0
        %5494 = vmatpush2.msra.mxu0 0.0
        %5495 = vmatprep.subr.mxu0 0.0
        %5496 = vmatpush2.msra.mxu0 0.0
        %5497 = vmatprep.subr.mxu0 0.0
        %5498 = vmatpush2.msra.mxu0 0.0
        %5499 = vmatprep.subr.mxu0 0.0
        %5500 = vmatpush2.msra.mxu0 0.0
        %5501 = vmatprep.subr.mxu0 0.0
        %5502 = vmatpush2.msra.mxu0 0.0
        %5503 = vmatprep.subr.mxu0 0.0
        %5504 = vmatpush2.msra.mxu0 0.0
        %5505 = vmatprep.subr.mxu0 0.0
        %5506 = vmatpush2.msra.mxu0 0.0
        %5507 = vmatprep.subr.mxu0 0.0
        %5508 = vmatpush2.msra.mxu0 0.0
        %5509 = vmatprep.subr.mxu0 0.0
        %5510 = vmatpush2.msra.mxu0 0.0
        %5511 = vmatprep.subr.mxu0 0.0
        %5512 = vmatpush2.msra.mxu0 0.0
        %5513 = vmatprep.subr.mxu0 0.0
        %5514 = vmatpush2.msra.mxu0 0.0
        %5515 = vmatprep.subr.mxu0 0.0
        %5516 = vmatpush2.msra.mxu0 0.0
        %5517 = vmatprep.subr.mxu0 0.0
        %5518 = vmatpush2.msra.mxu0 0.0
        %5519 = vmatprep.mubr.f32.mxu0 0.0
        %5520 = vmatmul.mubr.f32.gmra.mxu0 %v5373
        %v5521 = vpop.f32.mrf.mxu0
        %v5522 = vadd.f32 0.0, %v5521
        %v5523 = vpop.f32.mrf.mxu0
        %5524 = vmatprep.mubr.f32.mxu0 0.0
        %5525 = vmatmul.mubr.f32.gmra.mxu0 %v5376
        %v5526 = vpop.f32.mrf.mxu0
        %v5527 = vadd.f32 0.0, %v5526
        %v5528 = vpop.f32.mrf.mxu0
        %5529 = vdwg.mxu0
        %v5530 = vadd.f32 %v5352, %v5445
        %v5531 = vadd.f32 %v5353, %v5447
        %v5532 = vadd.f32 %v5354, %v5522
        %v5533 = vadd.f32 %v5355, %v5451
        %v5534 = vadd.f32 %v5356, %v5453
        %v5535 = vadd.f32 %v5357, %v5527
        %s5536 = scalar_lea.vmem %s4, 80
        %v5537 = vld [vmem:[%s5536] sm:$0xff]
        %v5538 = vld [vmem:[%s5536 + $0x8] sm:$0xff]
        %5539 = vrot.lane.b32.xlu0 %v4523, 108
        %v5540 = vpop.permute.xlu0 %5539
        %5541 = vrot.lane.b32.xlu0 %v4525, 108
        %v5542 = vpop.permute.xlu0 %5541
        %5543 = vrot.lane.b32.xlu0 %v4664, 108
        %v5544 = vpop.permute.xlu0 %5543
        %v5545 = vsel %vm1503, %v5540, %v5542
        %v5546 = vsel %vm1503, %v5542, %v5544
        %v5551 = vsel %vm2598, %v5537, 0
        %v5554 = vsel %vm2598, %v5538, 0
        %5556 = vmatprep.subr.mxu0 0.0
        %5557 = vmatpush1.msra.mxu0 0.0
        %5558 = vmatprep.subr.mxu0 0.0
        %5559 = vmatpush1.msra.mxu0 0.0
        %5560 = vmatprep.subr.mxu0 0.0
        %5561 = vmatpush1.msra.mxu0 0.0
        %5562 = vmatprep.subr.mxu0 0.0
        %5563 = vmatpush1.msra.mxu0 0.0
        %5564 = vmatprep.subr.mxu0 0.0
        %5565 = vmatpush1.msra.mxu0 0.0
        %5566 = vmatprep.subr.mxu0 0.0
        %5567 = vmatpush1.msra.mxu0 0.0
        %5568 = vmatprep.subr.mxu0 0.0
        %5569 = vmatpush1.msra.mxu0 0.0
        %5570 = vmatprep.subr.mxu0 0.0
        %5571 = vmatpush1.msra.mxu0 0.0
        %5572 = vmatprep.subr.mxu0 0.0
        %5573 = vmatpush1.msra.mxu0 0.0
        %5574 = vmatprep.subr.mxu0 0.0
        %5575 = vmatpush1.msra.mxu0 0.0
        %5576 = vmatprep.subr.mxu0 0.0
        %5577 = vmatpush1.msra.mxu0 0.0
        %5578 = vmatprep.subr.mxu0 0.0
        %5579 = vmatpush1.msra.mxu0 0.0
        %5580 = vmatprep.subr.mxu0 0.0
        %5581 = vmatpush1.msra.mxu0 0.0
        %5582 = vmatprep.subr.mxu0 0.0
        %5583 = vmatpush1.msra.mxu0 0.0
        %5584 = vmatprep.subr.mxu0 0.0
        %5585 = vmatpush1.msra.mxu0 0.0
        %5586 = vmatprep.subr.mxu0 %v5546
        %5587 = vmatpush1.msra.mxu0 %v5545
        %5588 = vmatprep.subr.mxu0 0.0
        %5589 = vmatpush2.msra.mxu0 0.0
        %5590 = vmatprep.subr.mxu0 0.0
        %5591 = vmatpush2.msra.mxu0 0.0
        %5592 = vmatprep.subr.mxu0 0.0
        %5593 = vmatpush2.msra.mxu0 0.0
        %5594 = vmatprep.subr.mxu0 0.0
        %5595 = vmatpush2.msra.mxu0 0.0
        %5596 = vmatprep.subr.mxu0 0.0
        %5597 = vmatpush2.msra.mxu0 0.0
        %5598 = vmatprep.subr.mxu0 0.0
        %5599 = vmatpush2.msra.mxu0 0.0
        %5600 = vmatprep.subr.mxu0 0.0
        %5601 = vmatpush2.msra.mxu0 0.0
        %5602 = vmatprep.subr.mxu0 0.0
        %5603 = vmatpush2.msra.mxu0 0.0
        %5604 = vmatprep.subr.mxu0 0.0
        %5605 = vmatpush2.msra.mxu0 0.0
        %5606 = vmatprep.subr.mxu0 0.0
        %5607 = vmatpush2.msra.mxu0 0.0
        %5608 = vmatprep.subr.mxu0 0.0
        %5609 = vmatpush2.msra.mxu0 0.0
        %5610 = vmatprep.subr.mxu0 0.0
        %5611 = vmatpush2.msra.mxu0 0.0
        %5612 = vmatprep.subr.mxu0 0.0
        %5613 = vmatpush2.msra.mxu0 0.0
        %5614 = vmatprep.subr.mxu0 0.0
        %5615 = vmatpush2.msra.mxu0 0.0
        %5616 = vmatprep.subr.mxu0 0.0
        %5617 = vmatpush2.msra.mxu0 0.0
        %5618 = vmatprep.subr.mxu0 0.0
        %5619 = vmatpush2.msra.mxu0 0.0
        %5620 = vmatprep.mubr.f32.mxu0 0.0
        %5621 = vmatmul.mubr.f32.gmra.mxu0 %v5551
        %v5622 = vpop.f32.mrf.mxu0
        %v5623 = vadd.f32 0.0, %v5622
        %v5624 = vpop.f32.mrf.mxu0
        %v5625 = vadd.f32 0.0, %v5624
        %5626 = vmatprep.mubr.f32.mxu0 0.0
        %5627 = vmatmul.mubr.f32.gmra.mxu0 %v5554
        %v5628 = vpop.f32.mrf.mxu0
        %v5629 = vadd.f32 0.0, %v5628
        %v5630 = vpop.f32.mrf.mxu0
        %v5631 = vadd.f32 0.0, %v5630
        %5632 = vdwg.mxu0
        %5633 = vmatprep.subr.mxu0 0.0
        %5634 = vmatpush1.msra.mxu0 0.0
        %5635 = vmatprep.subr.mxu0 0.0
        %5636 = vmatpush1.msra.mxu0 0.0
        %5637 = vmatprep.subr.mxu0 0.0
        %5638 = vmatpush1.msra.mxu0 0.0
        %5639 = vmatprep.subr.mxu0 0.0
        %5640 = vmatpush1.msra.mxu0 0.0
        %5641 = vmatprep.subr.mxu0 0.0
        %5642 = vmatpush1.msra.mxu0 0.0
        %5643 = vmatprep.subr.mxu0 0.0
        %5644 = vmatpush1.msra.mxu0 0.0
        %5645 = vmatprep.subr.mxu0 0.0
        %5646 = vmatpush1.msra.mxu0 0.0
        %5647 = vmatprep.subr.mxu0 0.0
        %5648 = vmatpush1.msra.mxu0 0.0
        %5649 = vmatprep.subr.mxu0 0.0
        %5650 = vmatpush1.msra.mxu0 0.0
        %5651 = vmatprep.subr.mxu0 0.0
        %5652 = vmatpush1.msra.mxu0 0.0
        %5653 = vmatprep.subr.mxu0 0.0
        %5654 = vmatpush1.msra.mxu0 0.0
        %5655 = vmatprep.subr.mxu0 0.0
        %5656 = vmatpush1.msra.mxu0 0.0
        %5657 = vmatprep.subr.mxu0 0.0
        %5658 = vmatpush1.msra.mxu0 0.0
        %5659 = vmatprep.subr.mxu0 0.0
        %5660 = vmatpush1.msra.mxu0 0.0
        %5661 = vmatprep.subr.mxu0 0.0
        %5662 = vmatpush1.msra.mxu0 0.0
        %5663 = vmatprep.subr.mxu0 0.0
        %5664 = vmatpush1.msra.mxu0 %v5544
        %5665 = vmatprep.subr.mxu0 0.0
        %5666 = vmatpush2.msra.mxu0 0.0
        %5667 = vmatprep.subr.mxu0 0.0
        %5668 = vmatpush2.msra.mxu0 0.0
        %5669 = vmatprep.subr.mxu0 0.0
        %5670 = vmatpush2.msra.mxu0 0.0
        %5671 = vmatprep.subr.mxu0 0.0
        %5672 = vmatpush2.msra.mxu0 0.0
        %5673 = vmatprep.subr.mxu0 0.0
        %5674 = vmatpush2.msra.mxu0 0.0
        %5675 = vmatprep.subr.mxu0 0.0
        %5676 = vmatpush2.msra.mxu0 0.0
        %5677 = vmatprep.subr.mxu0 0.0
        %5678 = vmatpush2.msra.mxu0 0.0
        %5679 = vmatprep.subr.mxu0 0.0
        %5680 = vmatpush2.msra.mxu0 0.0
        %5681 = vmatprep.subr.mxu0 0.0
        %5682 = vmatpush2.msra.mxu0 0.0
        %5683 = vmatprep.subr.mxu0 0.0
        %5684 = vmatpush2.msra.mxu0 0.0
        %5685 = vmatprep.subr.mxu0 0.0
        %5686 = vmatpush2.msra.mxu0 0.0
        %5687 = vmatprep.subr.mxu0 0.0
        %5688 = vmatpush2.msra.mxu0 0.0
        %5689 = vmatprep.subr.mxu0 0.0
        %5690 = vmatpush2.msra.mxu0 0.0
        %5691 = vmatprep.subr.mxu0 0.0
        %5692 = vmatpush2.msra.mxu0 0.0
        %5693 = vmatprep.subr.mxu0 0.0
        %5694 = vmatpush2.msra.mxu0 0.0
        %5695 = vmatprep.subr.mxu0 0.0
        %5696 = vmatpush2.msra.mxu0 0.0
        %5697 = vmatprep.mubr.f32.mxu0 0.0
        %5698 = vmatmul.mubr.f32.gmra.mxu0 %v5551
        %v5699 = vpop.f32.mrf.mxu0
        %v5700 = vadd.f32 0.0, %v5699
        %v5701 = vpop.f32.mrf.mxu0
        %5702 = vmatprep.mubr.f32.mxu0 0.0
        %5703 = vmatmul.mubr.f32.gmra.mxu0 %v5554
        %v5704 = vpop.f32.mrf.mxu0
        %v5705 = vadd.f32 0.0, %v5704
        %v5706 = vpop.f32.mrf.mxu0
        %5707 = vdwg.mxu0
        %v5708 = vadd.f32 %v5530, %v5623
        %v5709 = vadd.f32 %v5531, %v5625
        %v5710 = vadd.f32 %v5532, %v5700
        %v5711 = vadd.f32 %v5533, %v5629
        %v5712 = vadd.f32 %v5534, %v5631
        %v5713 = vadd.f32 %v5535, %v5705
        %s5714 = scalar_lea.vmem %s4, 96
        %v5715 = vld [vmem:[%s5714] sm:$0xff]
        %v5716 = vld [vmem:[%s5714 + $0x8] sm:$0xff]
        %5717 = vrot.lane.b32.xlu0 %v4523, 92
        %v5718 = vpop.permute.xlu0 %5717
        %5719 = vrot.lane.b32.xlu0 %v4525, 92
        %v5720 = vpop.permute.xlu0 %5719
        %5721 = vrot.lane.b32.xlu0 %v4664, 92
        %v5722 = vpop.permute.xlu0 %5721
        %v5723 = vsel %vm1667, %v5718, %v5720
        %v5724 = vsel %vm1667, %v5720, %v5722
        %v5729 = vsel %vm2598, %v5715, 0
        %v5732 = vsel %vm2598, %v5716, 0
        %5734 = vmatprep.subr.mxu0 0.0
        %5735 = vmatpush1.msra.mxu0 0.0
        %5736 = vmatprep.subr.mxu0 0.0
        %5737 = vmatpush1.msra.mxu0 0.0
        %5738 = vmatprep.subr.mxu0 0.0
        %5739 = vmatpush1.msra.mxu0 0.0
        %5740 = vmatprep.subr.mxu0 0.0
        %5741 = vmatpush1.msra.mxu0 0.0
        %5742 = vmatprep.subr.mxu0 0.0
        %5743 = vmatpush1.msra.mxu0 0.0
        %5744 = vmatprep.subr.mxu0 0.0
        %5745 = vmatpush1.msra.mxu0 0.0
        %5746 = vmatprep.subr.mxu0 0.0
        %5747 = vmatpush1.msra.mxu0 0.0
        %5748 = vmatprep.subr.mxu0 0.0
        %5749 = vmatpush1.msra.mxu0 0.0
        %5750 = vmatprep.subr.mxu0 0.0
        %5751 = vmatpush1.msra.mxu0 0.0
        %5752 = vmatprep.subr.mxu0 0.0
        %5753 = vmatpush1.msra.mxu0 0.0
        %5754 = vmatprep.subr.mxu0 0.0
        %5755 = vmatpush1.msra.mxu0 0.0
        %5756 = vmatprep.subr.mxu0 0.0
        %5757 = vmatpush1.msra.mxu0 0.0
        %5758 = vmatprep.subr.mxu0 0.0
        %5759 = vmatpush1.msra.mxu0 0.0
        %5760 = vmatprep.subr.mxu0 0.0
        %5761 = vmatpush1.msra.mxu0 0.0
        %5762 = vmatprep.subr.mxu0 0.0
        %5763 = vmatpush1.msra.mxu0 0.0
        %5764 = vmatprep.subr.mxu0 %v5724
        %5765 = vmatpush1.msra.mxu0 %v5723
        %5766 = vmatprep.subr.mxu0 0.0
        %5767 = vmatpush2.msra.mxu0 0.0
        %5768 = vmatprep.subr.mxu0 0.0
        %5769 = vmatpush2.msra.mxu0 0.0
        %5770 = vmatprep.subr.mxu0 0.0
        %5771 = vmatpush2.msra.mxu0 0.0
        %5772 = vmatprep.subr.mxu0 0.0
        %5773 = vmatpush2.msra.mxu0 0.0
        %5774 = vmatprep.subr.mxu0 0.0
        %5775 = vmatpush2.msra.mxu0 0.0
        %5776 = vmatprep.subr.mxu0 0.0
        %5777 = vmatpush2.msra.mxu0 0.0
        %5778 = vmatprep.subr.mxu0 0.0
        %5779 = vmatpush2.msra.mxu0 0.0
        %5780 = vmatprep.subr.mxu0 0.0
        %5781 = vmatpush2.msra.mxu0 0.0
        %5782 = vmatprep.subr.mxu0 0.0
        %5783 = vmatpush2.msra.mxu0 0.0
        %5784 = vmatprep.subr.mxu0 0.0
        %5785 = vmatpush2.msra.mxu0 0.0
        %5786 = vmatprep.subr.mxu0 0.0
        %5787 = vmatpush2.msra.mxu0 0.0
        %5788 = vmatprep.subr.mxu0 0.0
        %5789 = vmatpush2.msra.mxu0 0.0
        %5790 = vmatprep.subr.mxu0 0.0
        %5791 = vmatpush2.msra.mxu0 0.0
        %5792 = vmatprep.subr.mxu0 0.0
        %5793 = vmatpush2.msra.mxu0 0.0
        %5794 = vmatprep.subr.mxu0 0.0
        %5795 = vmatpush2.msra.mxu0 0.0
        %5796 = vmatprep.subr.mxu0 0.0
        %5797 = vmatpush2.msra.mxu0 0.0
        %5798 = vmatprep.mubr.f32.mxu0 0.0
        %5799 = vmatmul.mubr.f32.gmra.mxu0 %v5729
        %v5800 = vpop.f32.mrf.mxu0
        %v5801 = vadd.f32 0.0, %v5800
        %v5802 = vpop.f32.mrf.mxu0
        %v5803 = vadd.f32 0.0, %v5802
        %5804 = vmatprep.mubr.f32.mxu0 0.0
        %5805 = vmatmul.mubr.f32.gmra.mxu0 %v5732
        %v5806 = vpop.f32.mrf.mxu0
        %v5807 = vadd.f32 0.0, %v5806
        %v5808 = vpop.f32.mrf.mxu0
        %v5809 = vadd.f32 0.0, %v5808
        %5810 = vdwg.mxu0
        %5811 = vmatprep.subr.mxu0 0.0
        %5812 = vmatpush1.msra.mxu0 0.0
        %5813 = vmatprep.subr.mxu0 0.0
        %5814 = vmatpush1.msra.mxu0 0.0
        %5815 = vmatprep.subr.mxu0 0.0
        %5816 = vmatpush1.msra.mxu0 0.0
        %5817 = vmatprep.subr.mxu0 0.0
        %5818 = vmatpush1.msra.mxu0 0.0
        %5819 = vmatprep.subr.mxu0 0.0
        %5820 = vmatpush1.msra.mxu0 0.0
        %5821 = vmatprep.subr.mxu0 0.0
        %5822 = vmatpush1.msra.mxu0 0.0
        %5823 = vmatprep.subr.mxu0 0.0
        %5824 = vmatpush1.msra.mxu0 0.0
        %5825 = vmatprep.subr.mxu0 0.0
        %5826 = vmatpush1.msra.mxu0 0.0
        %5827 = vmatprep.subr.mxu0 0.0
        %5828 = vmatpush1.msra.mxu0 0.0
        %5829 = vmatprep.subr.mxu0 0.0
        %5830 = vmatpush1.msra.mxu0 0.0
        %5831 = vmatprep.subr.mxu0 0.0
        %5832 = vmatpush1.msra.mxu0 0.0
        %5833 = vmatprep.subr.mxu0 0.0
        %5834 = vmatpush1.msra.mxu0 0.0
        %5835 = vmatprep.subr.mxu0 0.0
        %5836 = vmatpush1.msra.mxu0 0.0
        %5837 = vmatprep.subr.mxu0 0.0
        %5838 = vmatpush1.msra.mxu0 0.0
        %5839 = vmatprep.subr.mxu0 0.0
        %5840 = vmatpush1.msra.mxu0 0.0
        %5841 = vmatprep.subr.mxu0 0.0
        %5842 = vmatpush1.msra.mxu0 %v5722
        %5843 = vmatprep.subr.mxu0 0.0
        %5844 = vmatpush2.msra.mxu0 0.0
        %5845 = vmatprep.subr.mxu0 0.0
        %5846 = vmatpush2.msra.mxu0 0.0
        %5847 = vmatprep.subr.mxu0 0.0
        %5848 = vmatpush2.msra.mxu0 0.0
        %5849 = vmatprep.subr.mxu0 0.0
        %5850 = vmatpush2.msra.mxu0 0.0
        %5851 = vmatprep.subr.mxu0 0.0
        %5852 = vmatpush2.msra.mxu0 0.0
        %5853 = vmatprep.subr.mxu0 0.0
        %5854 = vmatpush2.msra.mxu0 0.0
        %5855 = vmatprep.subr.mxu0 0.0
        %5856 = vmatpush2.msra.mxu0 0.0
        %5857 = vmatprep.subr.mxu0 0.0
        %5858 = vmatpush2.msra.mxu0 0.0
        %5859 = vmatprep.subr.mxu0 0.0
        %5860 = vmatpush2.msra.mxu0 0.0
        %5861 = vmatprep.subr.mxu0 0.0
        %5862 = vmatpush2.msra.mxu0 0.0
        %5863 = vmatprep.subr.mxu0 0.0
        %5864 = vmatpush2.msra.mxu0 0.0
        %5865 = vmatprep.subr.mxu0 0.0
        %5866 = vmatpush2.msra.mxu0 0.0
        %5867 = vmatprep.subr.mxu0 0.0
        %5868 = vmatpush2.msra.mxu0 0.0
        %5869 = vmatprep.subr.mxu0 0.0
        %5870 = vmatpush2.msra.mxu0 0.0
        %5871 = vmatprep.subr.mxu0 0.0
        %5872 = vmatpush2.msra.mxu0 0.0
        %5873 = vmatprep.subr.mxu0 0.0
        %5874 = vmatpush2.msra.mxu0 0.0
        %5875 = vmatprep.mubr.f32.mxu0 0.0
        %5876 = vmatmul.mubr.f32.gmra.mxu0 %v5729
        %v5877 = vpop.f32.mrf.mxu0
        %v5878 = vadd.f32 0.0, %v5877
        %v5879 = vpop.f32.mrf.mxu0
        %5880 = vmatprep.mubr.f32.mxu0 0.0
        %5881 = vmatmul.mubr.f32.gmra.mxu0 %v5732
        %v5882 = vpop.f32.mrf.mxu0
        %v5883 = vadd.f32 0.0, %v5882
        %v5884 = vpop.f32.mrf.mxu0
        %5885 = vdwg.mxu0
        %v5886 = vadd.f32 %v5708, %v5801
        %v5887 = vadd.f32 %v5709, %v5803
        %v5888 = vadd.f32 %v5710, %v5878
        %v5889 = vadd.f32 %v5711, %v5807
        %v5890 = vadd.f32 %v5712, %v5809
        %v5891 = vadd.f32 %v5713, %v5883
        %s5892 = scalar_lea.vmem %s4, 112
        %v5893 = vld [vmem:[%s5892] sm:$0xff]
        %v5894 = vld [vmem:[%s5892 + $0x8] sm:$0xff]
        %5895 = vrot.lane.b32.xlu0 %v4523, 91
        %v5896 = vpop.permute.xlu0 %5895
        %5897 = vrot.lane.b32.xlu0 %v4525, 91
        %v5898 = vpop.permute.xlu0 %5897
        %5899 = vrot.lane.b32.xlu0 %v4664, 91
        %v5900 = vpop.permute.xlu0 %5899
        %v5901 = vsel %vm1831, %v5896, %v5898
        %v5902 = vsel %vm1831, %v5898, %v5900
        %v5907 = vsel %vm2598, %v5893, 0
        %v5910 = vsel %vm2598, %v5894, 0
        %5912 = vmatprep.subr.mxu0 0.0
        %5913 = vmatpush1.msra.mxu0 0.0
        %5914 = vmatprep.subr.mxu0 0.0
        %5915 = vmatpush1.msra.mxu0 0.0
        %5916 = vmatprep.subr.mxu0 0.0
        %5917 = vmatpush1.msra.mxu0 0.0
        %5918 = vmatprep.subr.mxu0 0.0
        %5919 = vmatpush1.msra.mxu0 0.0
        %5920 = vmatprep.subr.mxu0 0.0
        %5921 = vmatpush1.msra.mxu0 0.0
        %5922 = vmatprep.subr.mxu0 0.0
        %5923 = vmatpush1.msra.mxu0 0.0
        %5924 = vmatprep.subr.mxu0 0.0
        %5925 = vmatpush1.msra.mxu0 0.0
        %5926 = vmatprep.subr.mxu0 0.0
        %5927 = vmatpush1.msra.mxu0 0.0
        %5928 = vmatprep.subr.mxu0 0.0
        %5929 = vmatpush1.msra.mxu0 0.0
        %5930 = vmatprep.subr.mxu0 0.0
        %5931 = vmatpush1.msra.mxu0 0.0
        %5932 = vmatprep.subr.mxu0 0.0
        %5933 = vmatpush1.msra.mxu0 0.0
        %5934 = vmatprep.subr.mxu0 0.0
        %5935 = vmatpush1.msra.mxu0 0.0
        %5936 = vmatprep.subr.mxu0 0.0
        %5937 = vmatpush1.msra.mxu0 0.0
        %5938 = vmatprep.subr.mxu0 0.0
        %5939 = vmatpush1.msra.mxu0 0.0
        %5940 = vmatprep.subr.mxu0 0.0
        %5941 = vmatpush1.msra.mxu0 0.0
        %5942 = vmatprep.subr.mxu0 %v5902
        %5943 = vmatpush1.msra.mxu0 %v5901
        %5944 = vmatprep.subr.mxu0 0.0
        %5945 = vmatpush2.msra.mxu0 0.0
        %5946 = vmatprep.subr.mxu0 0.0
        %5947 = vmatpush2.msra.mxu0 0.0
        %5948 = vmatprep.subr.mxu0 0.0
        %5949 = vmatpush2.msra.mxu0 0.0
        %5950 = vmatprep.subr.mxu0 0.0
        %5951 = vmatpush2.msra.mxu0 0.0
        %5952 = vmatprep.subr.mxu0 0.0
        %5953 = vmatpush2.msra.mxu0 0.0
        %5954 = vmatprep.subr.mxu0 0.0
        %5955 = vmatpush2.msra.mxu0 0.0
        %5956 = vmatprep.subr.mxu0 0.0
        %5957 = vmatpush2.msra.mxu0 0.0
        %5958 = vmatprep.subr.mxu0 0.0
        %5959 = vmatpush2.msra.mxu0 0.0
        %5960 = vmatprep.subr.mxu0 0.0
        %5961 = vmatpush2.msra.mxu0 0.0
        %5962 = vmatprep.subr.mxu0 0.0
        %5963 = vmatpush2.msra.mxu0 0.0
        %5964 = vmatprep.subr.mxu0 0.0
        %5965 = vmatpush2.msra.mxu0 0.0
        %5966 = vmatprep.subr.mxu0 0.0
        %5967 = vmatpush2.msra.mxu0 0.0
        %5968 = vmatprep.subr.mxu0 0.0
        %5969 = vmatpush2.msra.mxu0 0.0
        %5970 = vmatprep.subr.mxu0 0.0
        %5971 = vmatpush2.msra.mxu0 0.0
        %5972 = vmatprep.subr.mxu0 0.0
        %5973 = vmatpush2.msra.mxu0 0.0
        %5974 = vmatprep.subr.mxu0 0.0
        %5975 = vmatpush2.msra.mxu0 0.0
        %5976 = vmatprep.mubr.f32.mxu0 0.0
        %5977 = vmatmul.mubr.f32.gmra.mxu0 %v5907
        %v5978 = vpop.f32.mrf.mxu0
        %v5979 = vadd.f32 0.0, %v5978
        %v5980 = vpop.f32.mrf.mxu0
        %v5981 = vadd.f32 0.0, %v5980
        %5982 = vmatprep.mubr.f32.mxu0 0.0
        %5983 = vmatmul.mubr.f32.gmra.mxu0 %v5910
        %v5984 = vpop.f32.mrf.mxu0
        %v5985 = vadd.f32 0.0, %v5984
        %v5986 = vpop.f32.mrf.mxu0
        %v5987 = vadd.f32 0.0, %v5986
        %5988 = vdwg.mxu0
        %5989 = vmatprep.subr.mxu0 0.0
        %5990 = vmatpush1.msra.mxu0 0.0
        %5991 = vmatprep.subr.mxu0 0.0
        %5992 = vmatpush1.msra.mxu0 0.0
        %5993 = vmatprep.subr.mxu0 0.0
        %5994 = vmatpush1.msra.mxu0 0.0
        %5995 = vmatprep.subr.mxu0 0.0
        %5996 = vmatpush1.msra.mxu0 0.0
        %5997 = vmatprep.subr.mxu0 0.0
        %5998 = vmatpush1.msra.mxu0 0.0
        %5999 = vmatprep.subr.mxu0 0.0
        %6000 = vmatpush1.msra.mxu0 0.0
        %6001 = vmatprep.subr.mxu0 0.0
        %6002 = vmatpush1.msra.mxu0 0.0
        %6003 = vmatprep.subr.mxu0 0.0
        %6004 = vmatpush1.msra.mxu0 0.0
        %6005 = vmatprep.subr.mxu0 0.0
        %6006 = vmatpush1.msra.mxu0 0.0
        %6007 = vmatprep.subr.mxu0 0.0
        %6008 = vmatpush1.msra.mxu0 0.0
        %6009 = vmatprep.subr.mxu0 0.0
        %6010 = vmatpush1.msra.mxu0 0.0
        %6011 = vmatprep.subr.mxu0 0.0
        %6012 = vmatpush1.msra.mxu0 0.0
        %6013 = vmatprep.subr.mxu0 0.0
        %6014 = vmatpush1.msra.mxu0 0.0
        %6015 = vmatprep.subr.mxu0 0.0
        %6016 = vmatpush1.msra.mxu0 0.0
        %6017 = vmatprep.subr.mxu0 0.0
        %6018 = vmatpush1.msra.mxu0 0.0
        %6019 = vmatprep.subr.mxu0 0.0
        %6020 = vmatpush1.msra.mxu0 %v5900
        %6021 = vmatprep.subr.mxu0 0.0
        %6022 = vmatpush2.msra.mxu0 0.0
        %6023 = vmatprep.subr.mxu0 0.0
        %6024 = vmatpush2.msra.mxu0 0.0
        %6025 = vmatprep.subr.mxu0 0.0
        %6026 = vmatpush2.msra.mxu0 0.0
        %6027 = vmatprep.subr.mxu0 0.0
        %6028 = vmatpush2.msra.mxu0 0.0
        %6029 = vmatprep.subr.mxu0 0.0
        %6030 = vmatpush2.msra.mxu0 0.0
        %6031 = vmatprep.subr.mxu0 0.0
        %6032 = vmatpush2.msra.mxu0 0.0
        %6033 = vmatprep.subr.mxu0 0.0
        %6034 = vmatpush2.msra.mxu0 0.0
        %6035 = vmatprep.subr.mxu0 0.0
        %6036 = vmatpush2.msra.mxu0 0.0
        %6037 = vmatprep.subr.mxu0 0.0
        %6038 = vmatpush2.msra.mxu0 0.0
        %6039 = vmatprep.subr.mxu0 0.0
        %6040 = vmatpush2.msra.mxu0 0.0
        %6041 = vmatprep.subr.mxu0 0.0
        %6042 = vmatpush2.msra.mxu0 0.0
        %6043 = vmatprep.subr.mxu0 0.0
        %6044 = vmatpush2.msra.mxu0 0.0
        %6045 = vmatprep.subr.mxu0 0.0
        %6046 = vmatpush2.msra.mxu0 0.0
        %6047 = vmatprep.subr.mxu0 0.0
        %6048 = vmatpush2.msra.mxu0 0.0
        %6049 = vmatprep.subr.mxu0 0.0
        %6050 = vmatpush2.msra.mxu0 0.0
        %6051 = vmatprep.subr.mxu0 0.0
        %6052 = vmatpush2.msra.mxu0 0.0
        %6053 = vmatprep.mubr.f32.mxu0 0.0
        %6054 = vmatmul.mubr.f32.gmra.mxu0 %v5907
        %v6055 = vpop.f32.mrf.mxu0
        %v6056 = vadd.f32 0.0, %v6055
        %v6057 = vpop.f32.mrf.mxu0
        %6058 = vmatprep.mubr.f32.mxu0 0.0
        %6059 = vmatmul.mubr.f32.gmra.mxu0 %v5910
        %v6060 = vpop.f32.mrf.mxu0
        %v6061 = vadd.f32 0.0, %v6060
        %v6062 = vpop.f32.mrf.mxu0
        %6063 = vdwg.mxu0
        %v6064 = vadd.f32 %v5886, %v5979
        %v6065 = vadd.f32 %v5887, %v5981
        %v6066 = vadd.f32 %v5888, %v6056
        %v6067 = vadd.f32 %v5889, %v5985
        %v6068 = vadd.f32 %v5890, %v5987
        %v6069 = vadd.f32 %v5891, %v6061
        %s6070 = scalar_lea.vmem %s4, 128
        %v6071 = vld [vmem:[%s6070] sm:$0xff]
        %v6072 = vld [vmem:[%s6070 + $0x8] sm:$0xff]
        %6073 = vrot.lane.b32.xlu0 %v4523, 90
        %v6074 = vpop.permute.xlu0 %6073
        %6075 = vrot.lane.b32.xlu0 %v4525, 90
        %v6076 = vpop.permute.xlu0 %6075
        %6077 = vrot.lane.b32.xlu0 %v4664, 90
        %v6078 = vpop.permute.xlu0 %6077
        %v6079 = vsel %vm1995, %v6074, %v6076
        %v6080 = vsel %vm1995, %v6076, %v6078
        %v6085 = vsel %vm2598, %v6071, 0
        %v6088 = vsel %vm2598, %v6072, 0
        %6090 = vmatprep.subr.mxu0 0.0
        %6091 = vmatpush1.msra.mxu0 0.0
        %6092 = vmatprep.subr.mxu0 0.0
        %6093 = vmatpush1.msra.mxu0 0.0
        %6094 = vmatprep.subr.mxu0 0.0
        %6095 = vmatpush1.msra.mxu0 0.0
        %6096 = vmatprep.subr.mxu0 0.0
        %6097 = vmatpush1.msra.mxu0 0.0
        %6098 = vmatprep.subr.mxu0 0.0
        %6099 = vmatpush1.msra.mxu0 0.0
        %6100 = vmatprep.subr.mxu0 0.0
        %6101 = vmatpush1.msra.mxu0 0.0
        %6102 = vmatprep.subr.mxu0 0.0
        %6103 = vmatpush1.msra.mxu0 0.0
        %6104 = vmatprep.subr.mxu0 0.0
        %6105 = vmatpush1.msra.mxu0 0.0
        %6106 = vmatprep.subr.mxu0 0.0
        %6107 = vmatpush1.msra.mxu0 0.0
        %6108 = vmatprep.subr.mxu0 0.0
        %6109 = vmatpush1.msra.mxu0 0.0
        %6110 = vmatprep.subr.mxu0 0.0
        %6111 = vmatpush1.msra.mxu0 0.0
        %6112 = vmatprep.subr.mxu0 0.0
        %6113 = vmatpush1.msra.mxu0 0.0
        %6114 = vmatprep.subr.mxu0 0.0
        %6115 = vmatpush1.msra.mxu0 0.0
        %6116 = vmatprep.subr.mxu0 0.0
        %6117 = vmatpush1.msra.mxu0 0.0
        %6118 = vmatprep.subr.mxu0 0.0
        %6119 = vmatpush1.msra.mxu0 0.0
        %6120 = vmatprep.subr.mxu0 %v6080
        %6121 = vmatpush1.msra.mxu0 %v6079
        %6122 = vmatprep.subr.mxu0 0.0
        %6123 = vmatpush2.msra.mxu0 0.0
        %6124 = vmatprep.subr.mxu0 0.0
        %6125 = vmatpush2.msra.mxu0 0.0
        %6126 = vmatprep.subr.mxu0 0.0
        %6127 = vmatpush2.msra.mxu0 0.0
        %6128 = vmatprep.subr.mxu0 0.0
        %6129 = vmatpush2.msra.mxu0 0.0
        %6130 = vmatprep.subr.mxu0 0.0
        %6131 = vmatpush2.msra.mxu0 0.0
        %6132 = vmatprep.subr.mxu0 0.0
        %6133 = vmatpush2.msra.mxu0 0.0
        %6134 = vmatprep.subr.mxu0 0.0
        %6135 = vmatpush2.msra.mxu0 0.0
        %6136 = vmatprep.subr.mxu0 0.0
        %6137 = vmatpush2.msra.mxu0 0.0
        %6138 = vmatprep.subr.mxu0 0.0
        %6139 = vmatpush2.msra.mxu0 0.0
        %6140 = vmatprep.subr.mxu0 0.0
        %6141 = vmatpush2.msra.mxu0 0.0
        %6142 = vmatprep.subr.mxu0 0.0
        %6143 = vmatpush2.msra.mxu0 0.0
        %6144 = vmatprep.subr.mxu0 0.0
        %6145 = vmatpush2.msra.mxu0 0.0
        %6146 = vmatprep.subr.mxu0 0.0
        %6147 = vmatpush2.msra.mxu0 0.0
        %6148 = vmatprep.subr.mxu0 0.0
        %6149 = vmatpush2.msra.mxu0 0.0
        %6150 = vmatprep.subr.mxu0 0.0
        %6151 = vmatpush2.msra.mxu0 0.0
        %6152 = vmatprep.subr.mxu0 0.0
        %6153 = vmatpush2.msra.mxu0 0.0
        %6154 = vmatprep.mubr.f32.mxu0 0.0
        %6155 = vmatmul.mubr.f32.gmra.mxu0 %v6085
        %v6156 = vpop.f32.mrf.mxu0
        %v6157 = vadd.f32 0.0, %v6156
        %v6158 = vpop.f32.mrf.mxu0
        %v6159 = vadd.f32 0.0, %v6158
        %6160 = vmatprep.mubr.f32.mxu0 0.0
        %6161 = vmatmul.mubr.f32.gmra.mxu0 %v6088
        %v6162 = vpop.f32.mrf.mxu0
        %v6163 = vadd.f32 0.0, %v6162
        %v6164 = vpop.f32.mrf.mxu0
        %v6165 = vadd.f32 0.0, %v6164
        %6166 = vdwg.mxu0
        %6167 = vmatprep.subr.mxu0 0.0
        %6168 = vmatpush1.msra.mxu0 0.0
        %6169 = vmatprep.subr.mxu0 0.0
        %6170 = vmatpush1.msra.mxu0 0.0
        %6171 = vmatprep.subr.mxu0 0.0
        %6172 = vmatpush1.msra.mxu0 0.0
        %6173 = vmatprep.subr.mxu0 0.0
        %6174 = vmatpush1.msra.mxu0 0.0
        %6175 = vmatprep.subr.mxu0 0.0
        %6176 = vmatpush1.msra.mxu0 0.0
        %6177 = vmatprep.subr.mxu0 0.0
        %6178 = vmatpush1.msra.mxu0 0.0
        %6179 = vmatprep.subr.mxu0 0.0
        %6180 = vmatpush1.msra.mxu0 0.0
        %6181 = vmatprep.subr.mxu0 0.0
        %6182 = vmatpush1.msra.mxu0 0.0
        %6183 = vmatprep.subr.mxu0 0.0
        %6184 = vmatpush1.msra.mxu0 0.0
        %6185 = vmatprep.subr.mxu0 0.0
        %6186 = vmatpush1.msra.mxu0 0.0
        %6187 = vmatprep.subr.mxu0 0.0
        %6188 = vmatpush1.msra.mxu0 0.0
        %6189 = vmatprep.subr.mxu0 0.0
        %6190 = vmatpush1.msra.mxu0 0.0
        %6191 = vmatprep.subr.mxu0 0.0
        %6192 = vmatpush1.msra.mxu0 0.0
        %6193 = vmatprep.subr.mxu0 0.0
        %6194 = vmatpush1.msra.mxu0 0.0
        %6195 = vmatprep.subr.mxu0 0.0
        %6196 = vmatpush1.msra.mxu0 0.0
        %6197 = vmatprep.subr.mxu0 0.0
        %6198 = vmatpush1.msra.mxu0 %v6078
        %6199 = vmatprep.subr.mxu0 0.0
        %6200 = vmatpush2.msra.mxu0 0.0
        %6201 = vmatprep.subr.mxu0 0.0
        %6202 = vmatpush2.msra.mxu0 0.0
        %6203 = vmatprep.subr.mxu0 0.0
        %6204 = vmatpush2.msra.mxu0 0.0
        %6205 = vmatprep.subr.mxu0 0.0
        %6206 = vmatpush2.msra.mxu0 0.0
        %6207 = vmatprep.subr.mxu0 0.0
        %6208 = vmatpush2.msra.mxu0 0.0
        %6209 = vmatprep.subr.mxu0 0.0
        %6210 = vmatpush2.msra.mxu0 0.0
        %6211 = vmatprep.subr.mxu0 0.0
        %6212 = vmatpush2.msra.mxu0 0.0
        %6213 = vmatprep.subr.mxu0 0.0
        %6214 = vmatpush2.msra.mxu0 0.0
        %6215 = vmatprep.subr.mxu0 0.0
        %6216 = vmatpush2.msra.mxu0 0.0
        %6217 = vmatprep.subr.mxu0 0.0
        %6218 = vmatpush2.msra.mxu0 0.0
        %6219 = vmatprep.subr.mxu0 0.0
        %6220 = vmatpush2.msra.mxu0 0.0
        %6221 = vmatprep.subr.mxu0 0.0
        %6222 = vmatpush2.msra.mxu0 0.0
        %6223 = vmatprep.subr.mxu0 0.0
        %6224 = vmatpush2.msra.mxu0 0.0
        %6225 = vmatprep.subr.mxu0 0.0
        %6226 = vmatpush2.msra.mxu0 0.0
        %6227 = vmatprep.subr.mxu0 0.0
        %6228 = vmatpush2.msra.mxu0 0.0
        %6229 = vmatprep.subr.mxu0 0.0
        %6230 = vmatpush2.msra.mxu0 0.0
        %6231 = vmatprep.mubr.f32.mxu0 0.0
        %6232 = vmatmul.mubr.f32.gmra.mxu0 %v6085
        %v6233 = vpop.f32.mrf.mxu0
        %v6234 = vadd.f32 0.0, %v6233
        %v6235 = vpop.f32.mrf.mxu0
        %6236 = vmatprep.mubr.f32.mxu0 0.0
        %6237 = vmatmul.mubr.f32.gmra.mxu0 %v6088
        %v6238 = vpop.f32.mrf.mxu0
        %v6239 = vadd.f32 0.0, %v6238
        %v6240 = vpop.f32.mrf.mxu0
        %6241 = vdwg.mxu0
        %v6242 = vadd.f32 %v6064, %v6157
        %v6243 = vadd.f32 %v6065, %v6159
        %v6244 = vadd.f32 %v6066, %v6234
        %v6245 = vadd.f32 %v6067, %v6163
        %v6246 = vadd.f32 %v6068, %v6165
        %v6247 = vadd.f32 %v6069, %v6239
        %s6248 = sld [smem:[#allocation2 + $0x2]]
        %vm6249 = vcmp.ge.f32.partialorder %v6242, 0.0
        %vm6250 = vcmp.ge.f32.partialorder %v6243, 0.0
        %vm6251 = vcmp.ge.f32.partialorder %v6244, 0.0
        %vm6252 = vcmp.ge.f32.partialorder %v6245, 0.0
        %vm6253 = vcmp.ge.f32.partialorder %v6246, 0.0
        %vm6254 = vcmp.ge.f32.partialorder %v6247, 0.0
        %v6255 = vstv %s6248
        %v6256 = vmul.f32 %v6255, %v6242
        %v6257 = vmul.f32 %v6255, %v6243
        %v6258 = vmul.f32 %v6255, %v6244
        %v6259 = vmul.f32 %v6255, %v6245
        %v6260 = vmul.f32 %v6255, %v6246
        %v6261 = vmul.f32 %v6255, %v6247
        %v6262 = vsel %vm6249, %v6242, %v6256
        %v6263 = vsel %vm6250, %v6243, %v6257
        %v6264 = vsel %vm6251, %v6244, %v6258
        %v6265 = vsel %vm6252, %v6245, %v6259
        %v6266 = vsel %vm6253, %v6246, %v6260
        %v6267 = vsel %vm6254, %v6247, %v6261
        %v6268 = vld [vmem:[%s11] sm:$0xff]
        %v6269 = vld [vmem:[%s11 + $0x8] sm:$0xff]
        %v6270 = vld [vmem:[%s11 + $0x10] sm:$0xff]
        %v6271 = vld [vmem:[%s11 + $0x18] sm:$0xff]
        %v6272 = vld [vmem:[%s11 + $0x20] sm:$0xff]
        %v6273 = vld [vmem:[%s11 + $0x28] sm:$0xff]
        %v6274 = vld [vmem:[%s11 + $0x30] sm:$0xff]
        %v6275 = vld [vmem:[%s11 + $0x38] sm:$0xff]
        %v6276 = vld [vmem:[%s11 + $0x40] sm:$0xff]
        %v6277 = vld [vmem:[%s11 + $0x48] sm:$0xff]
        %v6278 = vld [vmem:[%s11 + $0x50] sm:$0xff]
        %v6279 = vld [vmem:[%s11 + $0x58] sm:$0xff]
        %v6280 = vld [vmem:[%s11 + $0x60] sm:$0xff]
        %v6281 = vld [vmem:[%s11 + $0x68] sm:$0xff]
        %v6282 = vld [vmem:[%s11 + $0x70] sm:$0xff]
        %v6283 = vld [vmem:[%s11 + $0x78] sm:$0xff]
        %v6284 = vld [vmem:[%s11 + $0x80] sm:$0xff]
        %v6285 = vld [vmem:[%s11 + $0x88] sm:$0xff]
        %v6286 = vld [vmem:[%s11 + $0x90] sm:$0xff]
        %v6287 = vld [vmem:[%s11 + $0x98] sm:$0xff]
        %v6288 = vld [vmem:[%s11 + $0xa0] sm:$0xff]
        %v6289 = vld [vmem:[%s11 + $0xa8] sm:$0xff]
        %v6290 = vld [vmem:[%s11 + $0xb0] sm:$0xff]
        %v6291 = vld [vmem:[%s11 + $0xb8] sm:$0xff]
        %v6292 = vld [vmem:[%s11 + $0xc0] sm:$0xff]
        %v6293 = vld [vmem:[%s11 + $0xc8] sm:$0xff]
        %v6294 = vld [vmem:[%s11 + $0xd0] sm:$0xff]
        %v6295 = vld [vmem:[%s11 + $0xd8] sm:$0xff]
        %v6296 = vld [vmem:[%s11 + $0xe0] sm:$0xff]
        %v6297 = vld [vmem:[%s11 + $0xe8] sm:$0xff]
        %v6298 = vld [vmem:[%s11 + $0xf0] sm:$0xff]
        %v6299 = vld [vmem:[%s11 + $0xf8] sm:$0xff]
        %v6300 = vld [vmem:[%s11 + $0x100] sm:$0xff]
        %v6301 = vld [vmem:[%s11 + $0x108] sm:$0xff]
        %v6302 = vld [vmem:[%s11 + $0x110] sm:$0xff]
        %v6303 = vld [vmem:[%s11 + $0x118] sm:$0xff]
        %v6304 = vld [vmem:[%s11 + $0x120] sm:$0xff]
        %v6305 = vld [vmem:[%s11 + $0x128] sm:$0xff]
        %v6306 = vld [vmem:[%s11 + $0x130] sm:$0xff]
        %v6307 = vld [vmem:[%s11 + $0x138] sm:$0xff]
        %v6308 = vld [vmem:[%s11 + $0x140] sm:$0xf]
        %v6310 = vsel %vm2285, %v6264, 0
        %v6313 = vsel %vm2285, %v6267, 0
        %v6316 = vsel %vm2289, %v6308, 0
        %6318 = vmatprep.subr.mxu0 0.0
        %6319 = vmatpush1.msra.mxu0 %v6283
        %6320 = vmatprep.subr.mxu0 0.0
        %6321 = vmatpush1.msra.mxu0 %v6282
        %6322 = vmatprep.subr.mxu0 0.0
        %6323 = vmatpush1.msra.mxu0 %v6281
        %6324 = vmatprep.subr.mxu0 0.0
        %6325 = vmatpush1.msra.mxu0 %v6280
        %6326 = vmatprep.subr.mxu0 0.0
        %6327 = vmatpush1.msra.mxu0 %v6279
        %6328 = vmatprep.subr.mxu0 0.0
        %6329 = vmatpush1.msra.mxu0 %v6278
        %6330 = vmatprep.subr.mxu0 0.0
        %6331 = vmatpush1.msra.mxu0 %v6277
        %6332 = vmatprep.subr.mxu0 0.0
        %6333 = vmatpush1.msra.mxu0 %v6276
        %6334 = vmatprep.subr.mxu0 0.0
        %6335 = vmatpush1.msra.mxu0 %v6275
        %6336 = vmatprep.subr.mxu0 0.0
        %6337 = vmatpush1.msra.mxu0 %v6274
        %6338 = vmatprep.subr.mxu0 0.0
        %6339 = vmatpush1.msra.mxu0 %v6273
        %6340 = vmatprep.subr.mxu0 0.0
        %6341 = vmatpush1.msra.mxu0 %v6272
        %6342 = vmatprep.subr.mxu0 0.0
        %6343 = vmatpush1.msra.mxu0 %v6271
        %6344 = vmatprep.subr.mxu0 0.0
        %6345 = vmatpush1.msra.mxu0 %v6270
        %6346 = vmatprep.subr.mxu0 0.0
        %6347 = vmatpush1.msra.mxu0 %v6269
        %6348 = vmatprep.subr.mxu0 0.0
        %6349 = vmatpush1.msra.mxu0 %v6268
        %6350 = vmatprep.subr.mxu0 0.0
        %6351 = vmatpush2.msra.mxu0 %v6299
        %6352 = vmatprep.subr.mxu0 0.0
        %6353 = vmatpush2.msra.mxu0 %v6298
        %6354 = vmatprep.subr.mxu0 0.0
        %6355 = vmatpush2.msra.mxu0 %v6297
        %6356 = vmatprep.subr.mxu0 0.0
        %6357 = vmatpush2.msra.mxu0 %v6296
        %6358 = vmatprep.subr.mxu0 0.0
        %6359 = vmatpush2.msra.mxu0 %v6295
        %6360 = vmatprep.subr.mxu0 0.0
        %6361 = vmatpush2.msra.mxu0 %v6294
        %6362 = vmatprep.subr.mxu0 0.0
        %6363 = vmatpush2.msra.mxu0 %v6293
        %6364 = vmatprep.subr.mxu0 0.0
        %6365 = vmatpush2.msra.mxu0 %v6292
        %6366 = vmatprep.subr.mxu0 0.0
        %6367 = vmatpush2.msra.mxu0 %v6291
        %6368 = vmatprep.subr.mxu0 0.0
        %6369 = vmatpush2.msra.mxu0 %v6290
        %6370 = vmatprep.subr.mxu0 0.0
        %6371 = vmatpush2.msra.mxu0 %v6289
        %6372 = vmatprep.subr.mxu0 0.0
        %6373 = vmatpush2.msra.mxu0 %v6288
        %6374 = vmatprep.subr.mxu0 0.0
        %6375 = vmatpush2.msra.mxu0 %v6287
        %6376 = vmatprep.subr.mxu0 0.0
        %6377 = vmatpush2.msra.mxu0 %v6286
        %6378 = vmatprep.subr.mxu0 0.0
        %6379 = vmatpush2.msra.mxu0 %v6285
        %6380 = vmatprep.subr.mxu0 0.0
        %6381 = vmatpush2.msra.mxu0 %v6284
        %6382 = vmatprep.mubr.f32.mxu0 %v6263
        %6383 = vmatmul.mubr.f32.gmra.mxu0 %v6262
        %v6384 = vpop.f32.mrf.mxu0
        %v6385 = vadd.f32 0.0, %v6384
        %v6386 = vpop.f32.mrf.mxu0
        %6387 = vmatprep.mubr.f32.mxu0 %v6266
        %6388 = vmatmul.mubr.f32.gmra.mxu0 %v6265
        %v6389 = vpop.f32.mrf.mxu0
        %v6390 = vadd.f32 0.0, %v6389
        %v6391 = vpop.f32.mrf.mxu0
        %6392 = vdwg.mxu0
        %6393 = vmatprep.subr.mxu0 0.0
        %6394 = vmatpush1.msra.mxu0 0.0
        %6395 = vmatprep.subr.mxu0 0.0
        %6396 = vmatpush1.msra.mxu0 0.0
        %6397 = vmatprep.subr.mxu0 0.0
        %6398 = vmatpush1.msra.mxu0 0.0
        %6399 = vmatprep.subr.mxu0 0.0
        %6400 = vmatpush1.msra.mxu0 0.0
        %6401 = vmatprep.subr.mxu0 0.0
        %6402 = vmatpush1.msra.mxu0 0.0
        %6403 = vmatprep.subr.mxu0 0.0
        %6404 = vmatpush1.msra.mxu0 0.0
        %6405 = vmatprep.subr.mxu0 0.0
        %6406 = vmatpush1.msra.mxu0 0.0
        %6407 = vmatprep.subr.mxu0 0.0
        %6408 = vmatpush1.msra.mxu0 %v6316
        %6409 = vmatprep.subr.mxu0 0.0
        %6410 = vmatpush1.msra.mxu0 %v6307
        %6411 = vmatprep.subr.mxu0 0.0
        %6412 = vmatpush1.msra.mxu0 %v6306
        %6413 = vmatprep.subr.mxu0 0.0
        %6414 = vmatpush1.msra.mxu0 %v6305
        %6415 = vmatprep.subr.mxu0 0.0
        %6416 = vmatpush1.msra.mxu0 %v6304
        %6417 = vmatprep.subr.mxu0 0.0
        %6418 = vmatpush1.msra.mxu0 %v6303
        %6419 = vmatprep.subr.mxu0 0.0
        %6420 = vmatpush1.msra.mxu0 %v6302
        %6421 = vmatprep.subr.mxu0 0.0
        %6422 = vmatpush1.msra.mxu0 %v6301
        %6423 = vmatprep.subr.mxu0 0.0
        %6424 = vmatpush1.msra.mxu0 %v6300
        %6425 = vmatprep.subr.mxu0 0.0
        %6426 = vmatpush2.msra.mxu0 0.0
        %6427 = vmatprep.subr.mxu0 0.0
        %6428 = vmatpush2.msra.mxu0 0.0
        %6429 = vmatprep.subr.mxu0 0.0
        %6430 = vmatpush2.msra.mxu0 0.0
        %6431 = vmatprep.subr.mxu0 0.0
        %6432 = vmatpush2.msra.mxu0 0.0
        %6433 = vmatprep.subr.mxu0 0.0
        %6434 = vmatpush2.msra.mxu0 0.0
        %6435 = vmatprep.subr.mxu0 0.0
        %6436 = vmatpush2.msra.mxu0 0.0
        %6437 = vmatprep.subr.mxu0 0.0
        %6438 = vmatpush2.msra.mxu0 0.0
        %6439 = vmatprep.subr.mxu0 0.0
        %6440 = vmatpush2.msra.mxu0 0.0
        %6441 = vmatprep.subr.mxu0 0.0
        %6442 = vmatpush2.msra.mxu0 0.0
        %6443 = vmatprep.subr.mxu0 0.0
        %6444 = vmatpush2.msra.mxu0 0.0
        %6445 = vmatprep.subr.mxu0 0.0
        %6446 = vmatpush2.msra.mxu0 0.0
        %6447 = vmatprep.subr.mxu0 0.0
        %6448 = vmatpush2.msra.mxu0 0.0
        %6449 = vmatprep.subr.mxu0 0.0
        %6450 = vmatpush2.msra.mxu0 0.0
        %6451 = vmatprep.subr.mxu0 0.0
        %6452 = vmatpush2.msra.mxu0 0.0
        %6453 = vmatprep.subr.mxu0 0.0
        %6454 = vmatpush2.msra.mxu0 0.0
        %6455 = vmatprep.subr.mxu0 0.0
        %6456 = vmatpush2.msra.mxu0 0.0
        %6457 = vmatprep.mubr.f32.mxu0 0.0
        %6458 = vmatmul.mubr.f32.gmra.mxu0 %v6310
        %v6459 = vpop.f32.mrf.mxu0
        %v6460 = vadd.f32 %v6385, %v6459
        %v6461 = vpop.f32.mrf.mxu0
        %6462 = vmatprep.mubr.f32.mxu0 0.0
        %6463 = vmatmul.mubr.f32.gmra.mxu0 %v6313
        %v6464 = vpop.f32.mrf.mxu0
        %v6465 = vadd.f32 %v6390, %v6464
        %v6466 = vpop.f32.mrf.mxu0
        %6467 = vdwg.mxu0
        %v6468 = vld [vmem:[#allocation6] sm:$0xff]
        %v6469 = vld [vmem:[#allocation6 + $0x8] sm:$0xff]
        %s6470 = scalar_lea.vmem [#allocation6], 16
        %v6471 = vld [vmem:[%s6470] sm:$0xff]
        %v6472 = vld [vmem:[%s6470 + $0x8] sm:$0xff]
        %6475 = vrot.lane.b32.xlu0 %v6460, 127
        %v6476 = vpop.permute.xlu0 %6475
        %6477 = vrot.lane.b32.xlu0 %v6465, 127
        %v6478 = vpop.permute.xlu0 %6477
        %vm6481 = vcmask 130048
        %v6483 = vsel %vm6481, %v6471, 0
        %v6486 = vsel %vm6481, %v6472, 0
        %6488 = vmatprep.subr.mxu0 0.0
        %6489 = vmatpush1.msra.mxu0 0.0
        %6490 = vmatprep.subr.mxu0 0.0
        %6491 = vmatpush1.msra.mxu0 0.0
        %6492 = vmatprep.subr.mxu0 0.0
        %6493 = vmatpush1.msra.mxu0 0.0
        %6494 = vmatprep.subr.mxu0 0.0
        %6495 = vmatpush1.msra.mxu0 0.0
        %6496 = vmatprep.subr.mxu0 0.0
        %6497 = vmatpush1.msra.mxu0 0.0
        %6498 = vmatprep.subr.mxu0 0.0
        %6499 = vmatpush1.msra.mxu0 0.0
        %6500 = vmatprep.subr.mxu0 0.0
        %6501 = vmatpush1.msra.mxu0 0.0
        %6502 = vmatprep.subr.mxu0 0.0
        %6503 = vmatpush1.msra.mxu0 0.0
        %6504 = vmatprep.subr.mxu0 0.0
        %6505 = vmatpush1.msra.mxu0 0.0
        %6506 = vmatprep.subr.mxu0 0.0
        %6507 = vmatpush1.msra.mxu0 0.0
        %6508 = vmatprep.subr.mxu0 0.0
        %6509 = vmatpush1.msra.mxu0 0.0
        %6510 = vmatprep.subr.mxu0 0.0
        %6511 = vmatpush1.msra.mxu0 0.0
        %6512 = vmatprep.subr.mxu0 0.0
        %6513 = vmatpush1.msra.mxu0 0.0
        %6514 = vmatprep.subr.mxu0 0.0
        %6515 = vmatpush1.msra.mxu0 0.0
        %6516 = vmatprep.subr.mxu0 0.0
        %6517 = vmatpush1.msra.mxu0 %v6478
        %6518 = vmatprep.subr.mxu0 0.0
        %6519 = vmatpush1.msra.mxu0 %v6476
        %6520 = vmatprep.subr.mxu0 0.0
        %6521 = vmatpush2.msra.mxu0 0.0
        %6522 = vmatprep.subr.mxu0 0.0
        %6523 = vmatpush2.msra.mxu0 0.0
        %6524 = vmatprep.subr.mxu0 0.0
        %6525 = vmatpush2.msra.mxu0 0.0
        %6526 = vmatprep.subr.mxu0 0.0
        %6527 = vmatpush2.msra.mxu0 0.0
        %6528 = vmatprep.subr.mxu0 0.0
        %6529 = vmatpush2.msra.mxu0 0.0
        %6530 = vmatprep.subr.mxu0 0.0
        %6531 = vmatpush2.msra.mxu0 0.0
        %6532 = vmatprep.subr.mxu0 0.0
        %6533 = vmatpush2.msra.mxu0 0.0
        %6534 = vmatprep.subr.mxu0 0.0
        %6535 = vmatpush2.msra.mxu0 0.0
        %6536 = vmatprep.subr.mxu0 0.0
        %6537 = vmatpush2.msra.mxu0 0.0
        %6538 = vmatprep.subr.mxu0 0.0
        %6539 = vmatpush2.msra.mxu0 0.0
        %6540 = vmatprep.subr.mxu0 0.0
        %6541 = vmatpush2.msra.mxu0 0.0
        %6542 = vmatprep.subr.mxu0 0.0
        %6543 = vmatpush2.msra.mxu0 0.0
        %6544 = vmatprep.subr.mxu0 0.0
        %6545 = vmatpush2.msra.mxu0 0.0
        %6546 = vmatprep.subr.mxu0 0.0
        %6547 = vmatpush2.msra.mxu0 0.0
        %6548 = vmatprep.subr.mxu0 0.0
        %6549 = vmatpush2.msra.mxu0 0.0
        %6550 = vmatprep.subr.mxu0 0.0
        %6551 = vmatpush2.msra.mxu0 0.0
        %6552 = vmatprep.mubr.f32.mxu0 0.0
        %6553 = vmatmul.mubr.f32.gmra.mxu0 %v6483
        %v6554 = vpop.f32.mrf.mxu0
        %v6555 = vadd.f32 0.0, %v6554
        %v6556 = vpop.f32.mrf.mxu0
        %6557 = vmatprep.mubr.f32.mxu0 0.0
        %6558 = vmatmul.mubr.f32.gmra.mxu0 %v6486
        %v6559 = vpop.f32.mrf.mxu0
        %v6560 = vadd.f32 0.0, %v6559
        %v6561 = vpop.f32.mrf.mxu0
        %6562 = vdwg.mxu0
        %v6564 = vsel %vm6481, %v6468, 0
        %v6567 = vsel %vm6481, %v6469, 0
        %6569 = vmatprep.subr.mxu0 0.0
        %6570 = vmatpush1.msra.mxu0 0.0
        %6571 = vmatprep.subr.mxu0 0.0
        %6572 = vmatpush1.msra.mxu0 0.0
        %6573 = vmatprep.subr.mxu0 0.0
        %6574 = vmatpush1.msra.mxu0 0.0
        %6575 = vmatprep.subr.mxu0 0.0
        %6576 = vmatpush1.msra.mxu0 0.0
        %6577 = vmatprep.subr.mxu0 0.0
        %6578 = vmatpush1.msra.mxu0 0.0
        %6579 = vmatprep.subr.mxu0 0.0
        %6580 = vmatpush1.msra.mxu0 0.0
        %6581 = vmatprep.subr.mxu0 0.0
        %6582 = vmatpush1.msra.mxu0 0.0
        %6583 = vmatprep.subr.mxu0 0.0
        %6584 = vmatpush1.msra.mxu0 0.0
        %6585 = vmatprep.subr.mxu0 0.0
        %6586 = vmatpush1.msra.mxu0 0.0
        %6587 = vmatprep.subr.mxu0 0.0
        %6588 = vmatpush1.msra.mxu0 0.0
        %6589 = vmatprep.subr.mxu0 0.0
        %6590 = vmatpush1.msra.mxu0 0.0
        %6591 = vmatprep.subr.mxu0 0.0
        %6592 = vmatpush1.msra.mxu0 0.0
        %6593 = vmatprep.subr.mxu0 0.0
        %6594 = vmatpush1.msra.mxu0 0.0
        %6595 = vmatprep.subr.mxu0 0.0
        %6596 = vmatpush1.msra.mxu0 0.0
        %6597 = vmatprep.subr.mxu0 0.0
        %6598 = vmatpush1.msra.mxu0 %v6465
        %6599 = vmatprep.subr.mxu0 0.0
        %6600 = vmatpush1.msra.mxu0 %v6460
        %6601 = vmatprep.subr.mxu0 0.0
        %6602 = vmatpush2.msra.mxu0 0.0
        %6603 = vmatprep.subr.mxu0 0.0
        %6604 = vmatpush2.msra.mxu0 0.0
        %6605 = vmatprep.subr.mxu0 0.0
        %6606 = vmatpush2.msra.mxu0 0.0
        %6607 = vmatprep.subr.mxu0 0.0
        %6608 = vmatpush2.msra.mxu0 0.0
        %6609 = vmatprep.subr.mxu0 0.0
        %6610 = vmatpush2.msra.mxu0 0.0
        %6611 = vmatprep.subr.mxu0 0.0
        %6612 = vmatpush2.msra.mxu0 0.0
        %6613 = vmatprep.subr.mxu0 0.0
        %6614 = vmatpush2.msra.mxu0 0.0
        %6615 = vmatprep.subr.mxu0 0.0
        %6616 = vmatpush2.msra.mxu0 0.0
        %6617 = vmatprep.subr.mxu0 0.0
        %6618 = vmatpush2.msra.mxu0 0.0
        %6619 = vmatprep.subr.mxu0 0.0
        %6620 = vmatpush2.msra.mxu0 0.0
        %6621 = vmatprep.subr.mxu0 0.0
        %6622 = vmatpush2.msra.mxu0 0.0
        %6623 = vmatprep.subr.mxu0 0.0
        %6624 = vmatpush2.msra.mxu0 0.0
        %6625 = vmatprep.subr.mxu0 0.0
        %6626 = vmatpush2.msra.mxu0 0.0
        %6627 = vmatprep.subr.mxu0 0.0
        %6628 = vmatpush2.msra.mxu0 0.0
        %6629 = vmatprep.subr.mxu0 0.0
        %6630 = vmatpush2.msra.mxu0 0.0
        %6631 = vmatprep.subr.mxu0 0.0
        %6632 = vmatpush2.msra.mxu0 0.0
        %6633 = vmatprep.mubr.f32.mxu0 0.0
        %6634 = vmatmul.mubr.f32.gmra.mxu0 %v6564
        %v6635 = vpop.f32.mrf.mxu0
        %v6636 = vadd.f32 %v6555, %v6635
        %v6637 = vpop.f32.mrf.mxu0
        %6638 = vmatprep.mubr.f32.mxu0 0.0
        %6639 = vmatmul.mubr.f32.gmra.mxu0 %v6567
        %v6640 = vpop.f32.mrf.mxu0
        %v6641 = vadd.f32 %v6560, %v6640
        %v6642 = vpop.f32.mrf.mxu0
        %6643 = vdwg.mxu0
        %s6644 = scalar_lea.vmem [#allocation6], 32
        %v6645 = vld [vmem:[%s6644] sm:$0xff]
        %v6646 = vld [vmem:[%s6644 + $0x8] sm:$0xff]
        %6647 = vrot.lane.b32.xlu0 %v6460, 126
        %v6648 = vpop.permute.xlu0 %6647
        %6649 = vrot.lane.b32.xlu0 %v6465, 126
        %v6650 = vpop.permute.xlu0 %6649
        %v6654 = vsel %vm6481, %v6645, 0
        %v6657 = vsel %vm6481, %v6646, 0
        %6659 = vmatprep.subr.mxu0 0.0
        %6660 = vmatpush1.msra.mxu0 0.0
        %6661 = vmatprep.subr.mxu0 0.0
        %6662 = vmatpush1.msra.mxu0 0.0
        %6663 = vmatprep.subr.mxu0 0.0
        %6664 = vmatpush1.msra.mxu0 0.0
        %6665 = vmatprep.subr.mxu0 0.0
        %6666 = vmatpush1.msra.mxu0 0.0
        %6667 = vmatprep.subr.mxu0 0.0
        %6668 = vmatpush1.msra.mxu0 0.0
        %6669 = vmatprep.subr.mxu0 0.0
        %6670 = vmatpush1.msra.mxu0 0.0
        %6671 = vmatprep.subr.mxu0 0.0
        %6672 = vmatpush1.msra.mxu0 0.0
        %6673 = vmatprep.subr.mxu0 0.0
        %6674 = vmatpush1.msra.mxu0 0.0
        %6675 = vmatprep.subr.mxu0 0.0
        %6676 = vmatpush1.msra.mxu0 0.0
        %6677 = vmatprep.subr.mxu0 0.0
        %6678 = vmatpush1.msra.mxu0 0.0
        %6679 = vmatprep.subr.mxu0 0.0
        %6680 = vmatpush1.msra.mxu0 0.0
        %6681 = vmatprep.subr.mxu0 0.0
        %6682 = vmatpush1.msra.mxu0 0.0
        %6683 = vmatprep.subr.mxu0 0.0
        %6684 = vmatpush1.msra.mxu0 0.0
        %6685 = vmatprep.subr.mxu0 0.0
        %6686 = vmatpush1.msra.mxu0 0.0
        %6687 = vmatprep.subr.mxu0 0.0
        %6688 = vmatpush1.msra.mxu0 %v6650
        %6689 = vmatprep.subr.mxu0 0.0
        %6690 = vmatpush1.msra.mxu0 %v6648
        %6691 = vmatprep.subr.mxu0 0.0
        %6692 = vmatpush2.msra.mxu0 0.0
        %6693 = vmatprep.subr.mxu0 0.0
        %6694 = vmatpush2.msra.mxu0 0.0
        %6695 = vmatprep.subr.mxu0 0.0
        %6696 = vmatpush2.msra.mxu0 0.0
        %6697 = vmatprep.subr.mxu0 0.0
        %6698 = vmatpush2.msra.mxu0 0.0
        %6699 = vmatprep.subr.mxu0 0.0
        %6700 = vmatpush2.msra.mxu0 0.0
        %6701 = vmatprep.subr.mxu0 0.0
        %6702 = vmatpush2.msra.mxu0 0.0
        %6703 = vmatprep.subr.mxu0 0.0
        %6704 = vmatpush2.msra.mxu0 0.0
        %6705 = vmatprep.subr.mxu0 0.0
        %6706 = vmatpush2.msra.mxu0 0.0
        %6707 = vmatprep.subr.mxu0 0.0
        %6708 = vmatpush2.msra.mxu0 0.0
        %6709 = vmatprep.subr.mxu0 0.0
        %6710 = vmatpush2.msra.mxu0 0.0
        %6711 = vmatprep.subr.mxu0 0.0
        %6712 = vmatpush2.msra.mxu0 0.0
        %6713 = vmatprep.subr.mxu0 0.0
        %6714 = vmatpush2.msra.mxu0 0.0
        %6715 = vmatprep.subr.mxu0 0.0
        %6716 = vmatpush2.msra.mxu0 0.0
        %6717 = vmatprep.subr.mxu0 0.0
        %6718 = vmatpush2.msra.mxu0 0.0
        %6719 = vmatprep.subr.mxu0 0.0
        %6720 = vmatpush2.msra.mxu0 0.0
        %6721 = vmatprep.subr.mxu0 0.0
        %6722 = vmatpush2.msra.mxu0 0.0
        %6723 = vmatprep.mubr.f32.mxu0 0.0
        %6724 = vmatmul.mubr.f32.gmra.mxu0 %v6654
        %v6725 = vpop.f32.mrf.mxu0
        %v6726 = vadd.f32 0.0, %v6725
        %v6727 = vpop.f32.mrf.mxu0
        %6728 = vmatprep.mubr.f32.mxu0 0.0
        %6729 = vmatmul.mubr.f32.gmra.mxu0 %v6657
        %v6730 = vpop.f32.mrf.mxu0
        %v6731 = vadd.f32 0.0, %v6730
        %v6732 = vpop.f32.mrf.mxu0
        %6733 = vdwg.mxu0
        %v6734 = vadd.f32 %v6636, %v6726
        %v6735 = vadd.f32 %v6641, %v6731
        %s6736 = scalar_lea.vmem [#allocation6], 48
        %v6737 = vld [vmem:[%s6736] sm:$0xff]
        %v6738 = vld [vmem:[%s6736 + $0x8] sm:$0xff]
        %6739 = vrot.lane.b32.xlu0 %v6460, 118
        %v6740 = vpop.permute.xlu0 %6739
        %6741 = vrot.lane.b32.xlu0 %v6465, 118
        %v6742 = vpop.permute.xlu0 %6741
        %v6746 = vsel %vm6481, %v6737, 0
        %v6749 = vsel %vm6481, %v6738, 0
        %6751 = vmatprep.subr.mxu0 0.0
        %6752 = vmatpush1.msra.mxu0 0.0
        %6753 = vmatprep.subr.mxu0 0.0
        %6754 = vmatpush1.msra.mxu0 0.0
        %6755 = vmatprep.subr.mxu0 0.0
        %6756 = vmatpush1.msra.mxu0 0.0
        %6757 = vmatprep.subr.mxu0 0.0
        %6758 = vmatpush1.msra.mxu0 0.0
        %6759 = vmatprep.subr.mxu0 0.0
        %6760 = vmatpush1.msra.mxu0 0.0
        %6761 = vmatprep.subr.mxu0 0.0
        %6762 = vmatpush1.msra.mxu0 0.0
        %6763 = vmatprep.subr.mxu0 0.0
        %6764 = vmatpush1.msra.mxu0 0.0
        %6765 = vmatprep.subr.mxu0 0.0
        %6766 = vmatpush1.msra.mxu0 0.0
        %6767 = vmatprep.subr.mxu0 0.0
        %6768 = vmatpush1.msra.mxu0 0.0
        %6769 = vmatprep.subr.mxu0 0.0
        %6770 = vmatpush1.msra.mxu0 0.0
        %6771 = vmatprep.subr.mxu0 0.0
        %6772 = vmatpush1.msra.mxu0 0.0
        %6773 = vmatprep.subr.mxu0 0.0
        %6774 = vmatpush1.msra.mxu0 0.0
        %6775 = vmatprep.subr.mxu0 0.0
        %6776 = vmatpush1.msra.mxu0 0.0
        %6777 = vmatprep.subr.mxu0 0.0
        %6778 = vmatpush1.msra.mxu0 0.0
        %6779 = vmatprep.subr.mxu0 0.0
        %6780 = vmatpush1.msra.mxu0 %v6742
        %6781 = vmatprep.subr.mxu0 0.0
        %6782 = vmatpush1.msra.mxu0 %v6740
        %6783 = vmatprep.subr.mxu0 0.0
        %6784 = vmatpush2.msra.mxu0 0.0
        %6785 = vmatprep.subr.mxu0 0.0
        %6786 = vmatpush2.msra.mxu0 0.0
        %6787 = vmatprep.subr.mxu0 0.0
        %6788 = vmatpush2.msra.mxu0 0.0
        %6789 = vmatprep.subr.mxu0 0.0
        %6790 = vmatpush2.msra.mxu0 0.0
        %6791 = vmatprep.subr.mxu0 0.0
        %6792 = vmatpush2.msra.mxu0 0.0
        %6793 = vmatprep.subr.mxu0 0.0
        %6794 = vmatpush2.msra.mxu0 0.0
        %6795 = vmatprep.subr.mxu0 0.0
        %6796 = vmatpush2.msra.mxu0 0.0
        %6797 = vmatprep.subr.mxu0 0.0
        %6798 = vmatpush2.msra.mxu0 0.0
        %6799 = vmatprep.subr.mxu0 0.0
        %6800 = vmatpush2.msra.mxu0 0.0
        %6801 = vmatprep.subr.mxu0 0.0
        %6802 = vmatpush2.msra.mxu0 0.0
        %6803 = vmatprep.subr.mxu0 0.0
        %6804 = vmatpush2.msra.mxu0 0.0
        %6805 = vmatprep.subr.mxu0 0.0
        %6806 = vmatpush2.msra.mxu0 0.0
        %6807 = vmatprep.subr.mxu0 0.0
        %6808 = vmatpush2.msra.mxu0 0.0
        %6809 = vmatprep.subr.mxu0 0.0
        %6810 = vmatpush2.msra.mxu0 0.0
        %6811 = vmatprep.subr.mxu0 0.0
        %6812 = vmatpush2.msra.mxu0 0.0
        %6813 = vmatprep.subr.mxu0 0.0
        %6814 = vmatpush2.msra.mxu0 0.0
        %6815 = vmatprep.mubr.f32.mxu0 0.0
        %6816 = vmatmul.mubr.f32.gmra.mxu0 %v6746
        %v6817 = vpop.f32.mrf.mxu0
        %v6818 = vadd.f32 0.0, %v6817
        %v6819 = vpop.f32.mrf.mxu0
        %6820 = vmatprep.mubr.f32.mxu0 0.0
        %6821 = vmatmul.mubr.f32.gmra.mxu0 %v6749
        %v6822 = vpop.f32.mrf.mxu0
        %v6823 = vadd.f32 0.0, %v6822
        %v6824 = vpop.f32.mrf.mxu0
        %6825 = vdwg.mxu0
        %v6826 = vadd.f32 %v6734, %v6818
        %v6827 = vadd.f32 %v6735, %v6823
        %s6828 = scalar_lea.vmem [#allocation6], 64
        %v6829 = vld [vmem:[%s6828] sm:$0xff]
        %v6830 = vld [vmem:[%s6828 + $0x8] sm:$0xff]
        %6831 = vrot.lane.b32.xlu0 %v6460, 117
        %v6832 = vpop.permute.xlu0 %6831
        %6833 = vrot.lane.b32.xlu0 %v6465, 117
        %v6834 = vpop.permute.xlu0 %6833
        %v6838 = vsel %vm6481, %v6829, 0
        %v6841 = vsel %vm6481, %v6830, 0
        %6843 = vmatprep.subr.mxu0 0.0
        %6844 = vmatpush1.msra.mxu0 0.0
        %6845 = vmatprep.subr.mxu0 0.0
        %6846 = vmatpush1.msra.mxu0 0.0
        %6847 = vmatprep.subr.mxu0 0.0
        %6848 = vmatpush1.msra.mxu0 0.0
        %6849 = vmatprep.subr.mxu0 0.0
        %6850 = vmatpush1.msra.mxu0 0.0
        %6851 = vmatprep.subr.mxu0 0.0
        %6852 = vmatpush1.msra.mxu0 0.0
        %6853 = vmatprep.subr.mxu0 0.0
        %6854 = vmatpush1.msra.mxu0 0.0
        %6855 = vmatprep.subr.mxu0 0.0
        %6856 = vmatpush1.msra.mxu0 0.0
        %6857 = vmatprep.subr.mxu0 0.0
        %6858 = vmatpush1.msra.mxu0 0.0
        %6859 = vmatprep.subr.mxu0 0.0
        %6860 = vmatpush1.msra.mxu0 0.0
        %6861 = vmatprep.subr.mxu0 0.0
        %6862 = vmatpush1.msra.mxu0 0.0
        %6863 = vmatprep.subr.mxu0 0.0
        %6864 = vmatpush1.msra.mxu0 0.0
        %6865 = vmatprep.subr.mxu0 0.0
        %6866 = vmatpush1.msra.mxu0 0.0
        %6867 = vmatprep.subr.mxu0 0.0
        %6868 = vmatpush1.msra.mxu0 0.0
        %6869 = vmatprep.subr.mxu0 0.0
        %6870 = vmatpush1.msra.mxu0 0.0
        %6871 = vmatprep.subr.mxu0 0.0
        %6872 = vmatpush1.msra.mxu0 %v6834
        %6873 = vmatprep.subr.mxu0 0.0
        %6874 = vmatpush1.msra.mxu0 %v6832
        %6875 = vmatprep.subr.mxu0 0.0
        %6876 = vmatpush2.msra.mxu0 0.0
        %6877 = vmatprep.subr.mxu0 0.0
        %6878 = vmatpush2.msra.mxu0 0.0
        %6879 = vmatprep.subr.mxu0 0.0
        %6880 = vmatpush2.msra.mxu0 0.0
        %6881 = vmatprep.subr.mxu0 0.0
        %6882 = vmatpush2.msra.mxu0 0.0
        %6883 = vmatprep.subr.mxu0 0.0
        %6884 = vmatpush2.msra.mxu0 0.0
        %6885 = vmatprep.subr.mxu0 0.0
        %6886 = vmatpush2.msra.mxu0 0.0
        %6887 = vmatprep.subr.mxu0 0.0
        %6888 = vmatpush2.msra.mxu0 0.0
        %6889 = vmatprep.subr.mxu0 0.0
        %6890 = vmatpush2.msra.mxu0 0.0
        %6891 = vmatprep.subr.mxu0 0.0
        %6892 = vmatpush2.msra.mxu0 0.0
        %6893 = vmatprep.subr.mxu0 0.0
        %6894 = vmatpush2.msra.mxu0 0.0
        %6895 = vmatprep.subr.mxu0 0.0
        %6896 = vmatpush2.msra.mxu0 0.0
        %6897 = vmatprep.subr.mxu0 0.0
        %6898 = vmatpush2.msra.mxu0 0.0
        %6899 = vmatprep.subr.mxu0 0.0
        %6900 = vmatpush2.msra.mxu0 0.0
        %6901 = vmatprep.subr.mxu0 0.0
        %6902 = vmatpush2.msra.mxu0 0.0
        %6903 = vmatprep.subr.mxu0 0.0
        %6904 = vmatpush2.msra.mxu0 0.0
        %6905 = vmatprep.subr.mxu0 0.0
        %6906 = vmatpush2.msra.mxu0 0.0
        %6907 = vmatprep.mubr.f32.mxu0 0.0
        %6908 = vmatmul.mubr.f32.gmra.mxu0 %v6838
        %v6909 = vpop.f32.mrf.mxu0
        %v6910 = vadd.f32 0.0, %v6909
        %v6911 = vpop.f32.mrf.mxu0
        %6912 = vmatprep.mubr.f32.mxu0 0.0
        %6913 = vmatmul.mubr.f32.gmra.mxu0 %v6841
        %v6914 = vpop.f32.mrf.mxu0
        %v6915 = vadd.f32 0.0, %v6914
        %v6916 = vpop.f32.mrf.mxu0
        %6917 = vdwg.mxu0
        %v6918 = vadd.f32 %v6826, %v6910
        %v6919 = vadd.f32 %v6827, %v6915
        %s6920 = scalar_lea.vmem [#allocation6], 80
        %v6921 = vld [vmem:[%s6920] sm:$0xff]
        %v6922 = vld [vmem:[%s6920 + $0x8] sm:$0xff]
        %6923 = vrot.lane.b32.xlu0 %v6460, 116
        %v6924 = vpop.permute.xlu0 %6923
        %6925 = vrot.lane.b32.xlu0 %v6465, 116
        %v6926 = vpop.permute.xlu0 %6925
        %v6930 = vsel %vm6481, %v6921, 0
        %v6933 = vsel %vm6481, %v6922, 0
        %6935 = vmatprep.subr.mxu0 0.0
        %6936 = vmatpush1.msra.mxu0 0.0
        %6937 = vmatprep.subr.mxu0 0.0
        %6938 = vmatpush1.msra.mxu0 0.0
        %6939 = vmatprep.subr.mxu0 0.0
        %6940 = vmatpush1.msra.mxu0 0.0
        %6941 = vmatprep.subr.mxu0 0.0
        %6942 = vmatpush1.msra.mxu0 0.0
        %6943 = vmatprep.subr.mxu0 0.0
        %6944 = vmatpush1.msra.mxu0 0.0
        %6945 = vmatprep.subr.mxu0 0.0
        %6946 = vmatpush1.msra.mxu0 0.0
        %6947 = vmatprep.subr.mxu0 0.0
        %6948 = vmatpush1.msra.mxu0 0.0
        %6949 = vmatprep.subr.mxu0 0.0
        %6950 = vmatpush1.msra.mxu0 0.0
        %6951 = vmatprep.subr.mxu0 0.0
        %6952 = vmatpush1.msra.mxu0 0.0
        %6953 = vmatprep.subr.mxu0 0.0
        %6954 = vmatpush1.msra.mxu0 0.0
        %6955 = vmatprep.subr.mxu0 0.0
        %6956 = vmatpush1.msra.mxu0 0.0
        %6957 = vmatprep.subr.mxu0 0.0
        %6958 = vmatpush1.msra.mxu0 0.0
        %6959 = vmatprep.subr.mxu0 0.0
        %6960 = vmatpush1.msra.mxu0 0.0
        %6961 = vmatprep.subr.mxu0 0.0
        %6962 = vmatpush1.msra.mxu0 0.0
        %6963 = vmatprep.subr.mxu0 0.0
        %6964 = vmatpush1.msra.mxu0 %v6926
        %6965 = vmatprep.subr.mxu0 0.0
        %6966 = vmatpush1.msra.mxu0 %v6924
        %6967 = vmatprep.subr.mxu0 0.0
        %6968 = vmatpush2.msra.mxu0 0.0
        %6969 = vmatprep.subr.mxu0 0.0
        %6970 = vmatpush2.msra.mxu0 0.0
        %6971 = vmatprep.subr.mxu0 0.0
        %6972 = vmatpush2.msra.mxu0 0.0
        %6973 = vmatprep.subr.mxu0 0.0
        %6974 = vmatpush2.msra.mxu0 0.0
        %6975 = vmatprep.subr.mxu0 0.0
        %6976 = vmatpush2.msra.mxu0 0.0
        %6977 = vmatprep.subr.mxu0 0.0
        %6978 = vmatpush2.msra.mxu0 0.0
        %6979 = vmatprep.subr.mxu0 0.0
        %6980 = vmatpush2.msra.mxu0 0.0
        %6981 = vmatprep.subr.mxu0 0.0
        %6982 = vmatpush2.msra.mxu0 0.0
        %6983 = vmatprep.subr.mxu0 0.0
        %6984 = vmatpush2.msra.mxu0 0.0
        %6985 = vmatprep.subr.mxu0 0.0
        %6986 = vmatpush2.msra.mxu0 0.0
        %6987 = vmatprep.subr.mxu0 0.0
        %6988 = vmatpush2.msra.mxu0 0.0
        %6989 = vmatprep.subr.mxu0 0.0
        %6990 = vmatpush2.msra.mxu0 0.0
        %6991 = vmatprep.subr.mxu0 0.0
        %6992 = vmatpush2.msra.mxu0 0.0
        %6993 = vmatprep.subr.mxu0 0.0
        %6994 = vmatpush2.msra.mxu0 0.0
        %6995 = vmatprep.subr.mxu0 0.0
        %6996 = vmatpush2.msra.mxu0 0.0
        %6997 = vmatprep.subr.mxu0 0.0
        %6998 = vmatpush2.msra.mxu0 0.0
        %6999 = vmatprep.mubr.f32.mxu0 0.0
        %7000 = vmatmul.mubr.f32.gmra.mxu0 %v6930
        %v7001 = vpop.f32.mrf.mxu0
        %v7002 = vadd.f32 0.0, %v7001
        %v7003 = vpop.f32.mrf.mxu0
        %7004 = vmatprep.mubr.f32.mxu0 0.0
        %7005 = vmatmul.mubr.f32.gmra.mxu0 %v6933
        %v7006 = vpop.f32.mrf.mxu0
        %v7007 = vadd.f32 0.0, %v7006
        %v7008 = vpop.f32.mrf.mxu0
        %7009 = vdwg.mxu0
        %v7010 = vadd.f32 %v6918, %v7002
        %v7011 = vadd.f32 %v6919, %v7007
        %s7012 = scalar_lea.vmem [#allocation6], 96
        %v7013 = vld [vmem:[%s7012] sm:$0xff]
        %v7014 = vld [vmem:[%s7012 + $0x8] sm:$0xff]
        %7015 = vrot.lane.b32.xlu0 %v6460, 108
        %v7016 = vpop.permute.xlu0 %7015
        %7017 = vrot.lane.b32.xlu0 %v6465, 108
        %v7018 = vpop.permute.xlu0 %7017
        %v7022 = vsel %vm6481, %v7013, 0
        %v7025 = vsel %vm6481, %v7014, 0
        %7027 = vmatprep.subr.mxu0 0.0
        %7028 = vmatpush1.msra.mxu0 0.0
        %7029 = vmatprep.subr.mxu0 0.0
        %7030 = vmatpush1.msra.mxu0 0.0
        %7031 = vmatprep.subr.mxu0 0.0
        %7032 = vmatpush1.msra.mxu0 0.0
        %7033 = vmatprep.subr.mxu0 0.0
        %7034 = vmatpush1.msra.mxu0 0.0
        %7035 = vmatprep.subr.mxu0 0.0
        %7036 = vmatpush1.msra.mxu0 0.0
        %7037 = vmatprep.subr.mxu0 0.0
        %7038 = vmatpush1.msra.mxu0 0.0
        %7039 = vmatprep.subr.mxu0 0.0
        %7040 = vmatpush1.msra.mxu0 0.0
        %7041 = vmatprep.subr.mxu0 0.0
        %7042 = vmatpush1.msra.mxu0 0.0
        %7043 = vmatprep.subr.mxu0 0.0
        %7044 = vmatpush1.msra.mxu0 0.0
        %7045 = vmatprep.subr.mxu0 0.0
        %7046 = vmatpush1.msra.mxu0 0.0
        %7047 = vmatprep.subr.mxu0 0.0
        %7048 = vmatpush1.msra.mxu0 0.0
        %7049 = vmatprep.subr.mxu0 0.0
        %7050 = vmatpush1.msra.mxu0 0.0
        %7051 = vmatprep.subr.mxu0 0.0
        %7052 = vmatpush1.msra.mxu0 0.0
        %7053 = vmatprep.subr.mxu0 0.0
        %7054 = vmatpush1.msra.mxu0 0.0
        %7055 = vmatprep.subr.mxu0 0.0
        %7056 = vmatpush1.msra.mxu0 %v7018
        %7057 = vmatprep.subr.mxu0 0.0
        %7058 = vmatpush1.msra.mxu0 %v7016
        %7059 = vmatprep.subr.mxu0 0.0
        %7060 = vmatpush2.msra.mxu0 0.0
        %7061 = vmatprep.subr.mxu0 0.0
        %7062 = vmatpush2.msra.mxu0 0.0
        %7063 = vmatprep.subr.mxu0 0.0
        %7064 = vmatpush2.msra.mxu0 0.0
        %7065 = vmatprep.subr.mxu0 0.0
        %7066 = vmatpush2.msra.mxu0 0.0
        %7067 = vmatprep.subr.mxu0 0.0
        %7068 = vmatpush2.msra.mxu0 0.0
        %7069 = vmatprep.subr.mxu0 0.0
        %7070 = vmatpush2.msra.mxu0 0.0
        %7071 = vmatprep.subr.mxu0 0.0
        %7072 = vmatpush2.msra.mxu0 0.0
        %7073 = vmatprep.subr.mxu0 0.0
        %7074 = vmatpush2.msra.mxu0 0.0
        %7075 = vmatprep.subr.mxu0 0.0
        %7076 = vmatpush2.msra.mxu0 0.0
        %7077 = vmatprep.subr.mxu0 0.0
        %7078 = vmatpush2.msra.mxu0 0.0
        %7079 = vmatprep.subr.mxu0 0.0
        %7080 = vmatpush2.msra.mxu0 0.0
        %7081 = vmatprep.subr.mxu0 0.0
        %7082 = vmatpush2.msra.mxu0 0.0
        %7083 = vmatprep.subr.mxu0 0.0
        %7084 = vmatpush2.msra.mxu0 0.0
        %7085 = vmatprep.subr.mxu0 0.0
        %7086 = vmatpush2.msra.mxu0 0.0
        %7087 = vmatprep.subr.mxu0 0.0
        %7088 = vmatpush2.msra.mxu0 0.0
        %7089 = vmatprep.subr.mxu0 0.0
        %7090 = vmatpush2.msra.mxu0 0.0
        %7091 = vmatprep.mubr.f32.mxu0 0.0
        %7092 = vmatmul.mubr.f32.gmra.mxu0 %v7022
        %v7093 = vpop.f32.mrf.mxu0
        %v7094 = vadd.f32 0.0, %v7093
        %v7095 = vpop.f32.mrf.mxu0
        %7096 = vmatprep.mubr.f32.mxu0 0.0
        %7097 = vmatmul.mubr.f32.gmra.mxu0 %v7025
        %v7098 = vpop.f32.mrf.mxu0
        %v7099 = vadd.f32 0.0, %v7098
        %v7100 = vpop.f32.mrf.mxu0
        %7101 = vdwg.mxu0
        %v7102 = vadd.f32 %v7010, %v7094
        %v7103 = vadd.f32 %v7011, %v7099
        %s7104 = scalar_lea.vmem [#allocation6], 112
        %v7105 = vld [vmem:[%s7104] sm:$0xff]
        %v7106 = vld [vmem:[%s7104 + $0x8] sm:$0xff]
        %7107 = vrot.lane.b32.xlu0 %v6460, 107
        %v7108 = vpop.permute.xlu0 %7107
        %7109 = vrot.lane.b32.xlu0 %v6465, 107
        %v7110 = vpop.permute.xlu0 %7109
        %v7114 = vsel %vm6481, %v7105, 0
        %v7117 = vsel %vm6481, %v7106, 0
        %7119 = vmatprep.subr.mxu0 0.0
        %7120 = vmatpush1.msra.mxu0 0.0
        %7121 = vmatprep.subr.mxu0 0.0
        %7122 = vmatpush1.msra.mxu0 0.0
        %7123 = vmatprep.subr.mxu0 0.0
        %7124 = vmatpush1.msra.mxu0 0.0
        %7125 = vmatprep.subr.mxu0 0.0
        %7126 = vmatpush1.msra.mxu0 0.0
        %7127 = vmatprep.subr.mxu0 0.0
        %7128 = vmatpush1.msra.mxu0 0.0
        %7129 = vmatprep.subr.mxu0 0.0
        %7130 = vmatpush1.msra.mxu0 0.0
        %7131 = vmatprep.subr.mxu0 0.0
        %7132 = vmatpush1.msra.mxu0 0.0
        %7133 = vmatprep.subr.mxu0 0.0
        %7134 = vmatpush1.msra.mxu0 0.0
        %7135 = vmatprep.subr.mxu0 0.0
        %7136 = vmatpush1.msra.mxu0 0.0
        %7137 = vmatprep.subr.mxu0 0.0
        %7138 = vmatpush1.msra.mxu0 0.0
        %7139 = vmatprep.subr.mxu0 0.0
        %7140 = vmatpush1.msra.mxu0 0.0
        %7141 = vmatprep.subr.mxu0 0.0
        %7142 = vmatpush1.msra.mxu0 0.0
        %7143 = vmatprep.subr.mxu0 0.0
        %7144 = vmatpush1.msra.mxu0 0.0
        %7145 = vmatprep.subr.mxu0 0.0
        %7146 = vmatpush1.msra.mxu0 0.0
        %7147 = vmatprep.subr.mxu0 0.0
        %7148 = vmatpush1.msra.mxu0 %v7110
        %7149 = vmatprep.subr.mxu0 0.0
        %7150 = vmatpush1.msra.mxu0 %v7108
        %7151 = vmatprep.subr.mxu0 0.0
        %7152 = vmatpush2.msra.mxu0 0.0
        %7153 = vmatprep.subr.mxu0 0.0
        %7154 = vmatpush2.msra.mxu0 0.0
        %7155 = vmatprep.subr.mxu0 0.0
        %7156 = vmatpush2.msra.mxu0 0.0
        %7157 = vmatprep.subr.mxu0 0.0
        %7158 = vmatpush2.msra.mxu0 0.0
        %7159 = vmatprep.subr.mxu0 0.0
        %7160 = vmatpush2.msra.mxu0 0.0
        %7161 = vmatprep.subr.mxu0 0.0
        %7162 = vmatpush2.msra.mxu0 0.0
        %7163 = vmatprep.subr.mxu0 0.0
        %7164 = vmatpush2.msra.mxu0 0.0
        %7165 = vmatprep.subr.mxu0 0.0
        %7166 = vmatpush2.msra.mxu0 0.0
        %7167 = vmatprep.subr.mxu0 0.0
        %7168 = vmatpush2.msra.mxu0 0.0
        %7169 = vmatprep.subr.mxu0 0.0
        %7170 = vmatpush2.msra.mxu0 0.0
        %7171 = vmatprep.subr.mxu0 0.0
        %7172 = vmatpush2.msra.mxu0 0.0
        %7173 = vmatprep.subr.mxu0 0.0
        %7174 = vmatpush2.msra.mxu0 0.0
        %7175 = vmatprep.subr.mxu0 0.0
        %7176 = vmatpush2.msra.mxu0 0.0
        %7177 = vmatprep.subr.mxu0 0.0
        %7178 = vmatpush2.msra.mxu0 0.0
        %7179 = vmatprep.subr.mxu0 0.0
        %7180 = vmatpush2.msra.mxu0 0.0
        %7181 = vmatprep.subr.mxu0 0.0
        %7182 = vmatpush2.msra.mxu0 0.0
        %7183 = vmatprep.mubr.f32.mxu0 0.0
        %7184 = vmatmul.mubr.f32.gmra.mxu0 %v7114
        %v7185 = vpop.f32.mrf.mxu0
        %v7186 = vadd.f32 0.0, %v7185
        %v7187 = vpop.f32.mrf.mxu0
        %7188 = vmatprep.mubr.f32.mxu0 0.0
        %7189 = vmatmul.mubr.f32.gmra.mxu0 %v7117
        %v7190 = vpop.f32.mrf.mxu0
        %v7191 = vadd.f32 0.0, %v7190
        %v7192 = vpop.f32.mrf.mxu0
        %7193 = vdwg.mxu0
        %v7194 = vadd.f32 %v7102, %v7186
        %v7195 = vadd.f32 %v7103, %v7191
        %s7196 = scalar_lea.vmem [#allocation6], 128
        %v7197 = vld [vmem:[%s7196] sm:$0xff]
        %v7198 = vld [vmem:[%s7196 + $0x8] sm:$0xff]
        %7199 = vrot.lane.b32.xlu0 %v6460, 106
        %v7200 = vpop.permute.xlu0 %7199
        %7201 = vrot.lane.b32.xlu0 %v6465, 106
        %v7202 = vpop.permute.xlu0 %7201
        %v7206 = vsel %vm6481, %v7197, 0
        %v7209 = vsel %vm6481, %v7198, 0
        %7211 = vmatprep.subr.mxu0 0.0
        %7212 = vmatpush1.msra.mxu0 0.0
        %7213 = vmatprep.subr.mxu0 0.0
        %7214 = vmatpush1.msra.mxu0 0.0
        %7215 = vmatprep.subr.mxu0 0.0
        %7216 = vmatpush1.msra.mxu0 0.0
        %7217 = vmatprep.subr.mxu0 0.0
        %7218 = vmatpush1.msra.mxu0 0.0
        %7219 = vmatprep.subr.mxu0 0.0
        %7220 = vmatpush1.msra.mxu0 0.0
        %7221 = vmatprep.subr.mxu0 0.0
        %7222 = vmatpush1.msra.mxu0 0.0
        %7223 = vmatprep.subr.mxu0 0.0
        %7224 = vmatpush1.msra.mxu0 0.0
        %7225 = vmatprep.subr.mxu0 0.0
        %7226 = vmatpush1.msra.mxu0 0.0
        %7227 = vmatprep.subr.mxu0 0.0
        %7228 = vmatpush1.msra.mxu0 0.0
        %7229 = vmatprep.subr.mxu0 0.0
        %7230 = vmatpush1.msra.mxu0 0.0
        %7231 = vmatprep.subr.mxu0 0.0
        %7232 = vmatpush1.msra.mxu0 0.0
        %7233 = vmatprep.subr.mxu0 0.0
        %7234 = vmatpush1.msra.mxu0 0.0
        %7235 = vmatprep.subr.mxu0 0.0
        %7236 = vmatpush1.msra.mxu0 0.0
        %7237 = vmatprep.subr.mxu0 0.0
        %7238 = vmatpush1.msra.mxu0 0.0
        %7239 = vmatprep.subr.mxu0 0.0
        %7240 = vmatpush1.msra.mxu0 %v7202
        %7241 = vmatprep.subr.mxu0 0.0
        %7242 = vmatpush1.msra.mxu0 %v7200
        %7243 = vmatprep.subr.mxu0 0.0
        %7244 = vmatpush2.msra.mxu0 0.0
        %7245 = vmatprep.subr.mxu0 0.0
        %7246 = vmatpush2.msra.mxu0 0.0
        %7247 = vmatprep.subr.mxu0 0.0
        %7248 = vmatpush2.msra.mxu0 0.0
        %7249 = vmatprep.subr.mxu0 0.0
        %7250 = vmatpush2.msra.mxu0 0.0
        %7251 = vmatprep.subr.mxu0 0.0
        %7252 = vmatpush2.msra.mxu0 0.0
        %7253 = vmatprep.subr.mxu0 0.0
        %7254 = vmatpush2.msra.mxu0 0.0
        %7255 = vmatprep.subr.mxu0 0.0
        %7256 = vmatpush2.msra.mxu0 0.0
        %7257 = vmatprep.subr.mxu0 0.0
        %7258 = vmatpush2.msra.mxu0 0.0
        %7259 = vmatprep.subr.mxu0 0.0
        %7260 = vmatpush2.msra.mxu0 0.0
        %7261 = vmatprep.subr.mxu0 0.0
        %7262 = vmatpush2.msra.mxu0 0.0
        %7263 = vmatprep.subr.mxu0 0.0
        %7264 = vmatpush2.msra.mxu0 0.0
        %7265 = vmatprep.subr.mxu0 0.0
        %7266 = vmatpush2.msra.mxu0 0.0
        %7267 = vmatprep.subr.mxu0 0.0
        %7268 = vmatpush2.msra.mxu0 0.0
        %7269 = vmatprep.subr.mxu0 0.0
        %7270 = vmatpush2.msra.mxu0 0.0
        %7271 = vmatprep.subr.mxu0 0.0
        %7272 = vmatpush2.msra.mxu0 0.0
        %7273 = vmatprep.subr.mxu0 0.0
        %7274 = vmatpush2.msra.mxu0 0.0
        %7275 = vmatprep.mubr.f32.mxu0 0.0
        %7276 = vmatmul.mubr.f32.gmra.mxu0 %v7206
        %v7277 = vpop.f32.mrf.mxu0
        %v7278 = vadd.f32 0.0, %v7277
        %v7279 = vpop.f32.mrf.mxu0
        %7280 = vmatprep.mubr.f32.mxu0 0.0
        %7281 = vmatmul.mubr.f32.gmra.mxu0 %v7209
        %v7282 = vpop.f32.mrf.mxu0
        %v7283 = vadd.f32 0.0, %v7282
        %v7284 = vpop.f32.mrf.mxu0
        %7285 = vdwg.mxu0
        %v7286 = vadd.f32 %v7194, %v7278
        %v7287 = vadd.f32 %v7195, %v7283
        %s7288 = sld [smem:[#allocation2 + $0x3]]
        %vm7289 = vcmp.ge.f32.partialorder %v7286, 0.0
        %vm7290 = vcmp.ge.f32.partialorder %v7287, 0.0
        %v7291 = vstv %s7288
        %v7292 = vmul.f32 %v7291, %v7286
        %v7293 = vmul.f32 %v7291, %v7287
        %v7294 = vsel %vm7289, %v7286, %v7292
        %v7295 = vsel %vm7290, %v7287, %v7293
        %v7296 = vld [vmem:[%s12] sm:$0xff]
        %v7297 = vld [vmem:[%s12 + $0x8] sm:$0xff]
        %v7298 = vld [vmem:[%s12 + $0x10] sm:$0xff]
        %v7299 = vld [vmem:[%s12 + $0x18] sm:$0xff]
        %v7300 = vld [vmem:[%s12 + $0x20] sm:$0xff]
        %v7301 = vld [vmem:[%s12 + $0x28] sm:$0xff]
        %v7302 = vld [vmem:[%s12 + $0x30] sm:$0xff]
        %v7303 = vld [vmem:[%s12 + $0x38] sm:$0xff]
        %v7304 = vld [vmem:[%s12 + $0x40] sm:$0xff]
        %v7305 = vld [vmem:[%s12 + $0x48] sm:$0xff]
        %v7306 = vld [vmem:[%s12 + $0x50] sm:$0xff]
        %v7307 = vld [vmem:[%s12 + $0x58] sm:$0xff]
        %v7308 = vld [vmem:[%s12 + $0x60] sm:$0xf]
        %vm7309 = vcmask 818176
        %v7311 = vsel %vm7309, %v7294, 0
        %v7314 = vsel %vm7309, %v7295, 0
        %v7317 = vsel %vm2289, %v7308, 0
        %7319 = vmatprep.subr.mxu0 0.0
        %7320 = vmatpush1.msra.mxu0 0.0
        %7321 = vmatprep.subr.mxu0 0.0
        %7322 = vmatpush1.msra.mxu0 0.0
        %7323 = vmatprep.subr.mxu0 0.0
        %7324 = vmatpush1.msra.mxu0 0.0
        %7325 = vmatprep.subr.mxu0 0.0
        %7326 = vmatpush1.msra.mxu0 %v7317
        %7327 = vmatprep.subr.mxu0 0.0
        %7328 = vmatpush1.msra.mxu0 %v7307
        %7329 = vmatprep.subr.mxu0 0.0
        %7330 = vmatpush1.msra.mxu0 %v7306
        %7331 = vmatprep.subr.mxu0 0.0
        %7332 = vmatpush1.msra.mxu0 %v7305
        %7333 = vmatprep.subr.mxu0 0.0
        %7334 = vmatpush1.msra.mxu0 %v7304
        %7335 = vmatprep.subr.mxu0 0.0
        %7336 = vmatpush1.msra.mxu0 %v7303
        %7337 = vmatprep.subr.mxu0 0.0
        %7338 = vmatpush1.msra.mxu0 %v7302
        %7339 = vmatprep.subr.mxu0 0.0
        %7340 = vmatpush1.msra.mxu0 %v7301
        %7341 = vmatprep.subr.mxu0 0.0
        %7342 = vmatpush1.msra.mxu0 %v7300
        %7343 = vmatprep.subr.mxu0 0.0
        %7344 = vmatpush1.msra.mxu0 %v7299
        %7345 = vmatprep.subr.mxu0 0.0
        %7346 = vmatpush1.msra.mxu0 %v7298
        %7347 = vmatprep.subr.mxu0 0.0
        %7348 = vmatpush1.msra.mxu0 %v7297
        %7349 = vmatprep.subr.mxu0 0.0
        %7350 = vmatpush1.msra.mxu0 %v7296
        %7351 = vmatprep.subr.mxu0 0.0
        %7352 = vmatpush2.msra.mxu0 0.0
        %7353 = vmatprep.subr.mxu0 0.0
        %7354 = vmatpush2.msra.mxu0 0.0
        %7355 = vmatprep.subr.mxu0 0.0
        %7356 = vmatpush2.msra.mxu0 0.0
        %7357 = vmatprep.subr.mxu0 0.0
        %7358 = vmatpush2.msra.mxu0 0.0
        %7359 = vmatprep.subr.mxu0 0.0
        %7360 = vmatpush2.msra.mxu0 0.0
        %7361 = vmatprep.subr.mxu0 0.0
        %7362 = vmatpush2.msra.mxu0 0.0
        %7363 = vmatprep.subr.mxu0 0.0
        %7364 = vmatpush2.msra.mxu0 0.0
        %7365 = vmatprep.subr.mxu0 0.0
        %7366 = vmatpush2.msra.mxu0 0.0
        %7367 = vmatprep.subr.mxu0 0.0
        %7368 = vmatpush2.msra.mxu0 0.0
        %7369 = vmatprep.subr.mxu0 0.0
        %7370 = vmatpush2.msra.mxu0 0.0
        %7371 = vmatprep.subr.mxu0 0.0
        %7372 = vmatpush2.msra.mxu0 0.0
        %7373 = vmatprep.subr.mxu0 0.0
        %7374 = vmatpush2.msra.mxu0 0.0
        %7375 = vmatprep.subr.mxu0 0.0
        %7376 = vmatpush2.msra.mxu0 0.0
        %7377 = vmatprep.subr.mxu0 0.0
        %7378 = vmatpush2.msra.mxu0 0.0
        %7379 = vmatprep.subr.mxu0 0.0
        %7380 = vmatpush2.msra.mxu0 0.0
        %7381 = vmatprep.subr.mxu0 0.0
        %7382 = vmatpush2.msra.mxu0 0.0
        %7383 = vmatprep.mubr.f32.mxu0 0.0
        %7384 = vmatmul.mubr.f32.gmra.mxu0 %v7311
        %v7385 = vpop.f32.mrf.mxu0
        %v7386 = vadd.f32 0.0, %v7385
        %v7387 = vpop.f32.mrf.mxu0
        %7388 = vmatprep.mubr.f32.mxu0 0.0
        %7389 = vmatmul.mubr.f32.gmra.mxu0 %v7314
        %v7390 = vpop.f32.mrf.mxu0
        %v7391 = vadd.f32 0.0, %v7390
        %v7392 = vpop.f32.mrf.mxu0
        %7393 = vdwg.mxu0
        %vm7394 = vcmask 523264
        %7395 = vst.msk [vmem:[%s666] sm:$0xff] %vm7394, %v7386
        %7396 = vst.msk [vmem:[%s666 + $0x8] sm:$0xff] %vm7394, %v7391
        %v7397 = vld [vmem:[#allocation12] sm:$0xff]
        %v7398 = vld [vmem:[#allocation12 + $0x8] sm:$0xff]
        %v7399 = vld [vmem:[#allocation12 + $0x10] sm:$0xff]
        %v7400 = vld [vmem:[#allocation12 + $0x18] sm:$0xff]
        %v7401 = vld [vmem:[#allocation12 + $0x20] sm:$0xff]
        %v7402 = vld [vmem:[#allocation12 + $0x28] sm:$0xff]
        %v7403 = vld [vmem:[#allocation12 + $0x30] sm:$0xff]
        %v7404 = vld [vmem:[#allocation12 + $0x38] sm:$0xff]
        %v7405 = vld [vmem:[#allocation12 + $0x40] sm:$0xff]
        %v7406 = vld [vmem:[#allocation12 + $0x48] sm:$0xff]
        %v7407 = vld [vmem:[#allocation12 + $0x50] sm:$0xff]
        %v7408 = vld [vmem:[#allocation12 + $0x58] sm:$0xff]
        %v7409 = vld [vmem:[#allocation12 + $0x60] sm:$0xf]
        %v7411 = vsel %vm2289, %v7409, 0
        %7413 = vmatprep.subr.mxu0 0.0
        %7414 = vmatpush1.msra.mxu0 0.0
        %7415 = vmatprep.subr.mxu0 0.0
        %7416 = vmatpush1.msra.mxu0 0.0
        %7417 = vmatprep.subr.mxu0 0.0
        %7418 = vmatpush1.msra.mxu0 0.0
        %7419 = vmatprep.subr.mxu0 0.0
        %7420 = vmatpush1.msra.mxu0 %v7411
        %7421 = vmatprep.subr.mxu0 0.0
        %7422 = vmatpush1.msra.mxu0 %v7408
        %7423 = vmatprep.subr.mxu0 0.0
        %7424 = vmatpush1.msra.mxu0 %v7407
        %7425 = vmatprep.subr.mxu0 0.0
        %7426 = vmatpush1.msra.mxu0 %v7406
        %7427 = vmatprep.subr.mxu0 0.0
        %7428 = vmatpush1.msra.mxu0 %v7405
        %7429 = vmatprep.subr.mxu0 0.0
        %7430 = vmatpush1.msra.mxu0 %v7404
        %7431 = vmatprep.subr.mxu0 0.0
        %7432 = vmatpush1.msra.mxu0 %v7403
        %7433 = vmatprep.subr.mxu0 0.0
        %7434 = vmatpush1.msra.mxu0 %v7402
        %7435 = vmatprep.subr.mxu0 0.0
        %7436 = vmatpush1.msra.mxu0 %v7401
        %7437 = vmatprep.subr.mxu0 0.0
        %7438 = vmatpush1.msra.mxu0 %v7400
        %7439 = vmatprep.subr.mxu0 0.0
        %7440 = vmatpush1.msra.mxu0 %v7399
        %7441 = vmatprep.subr.mxu0 0.0
        %7442 = vmatpush1.msra.mxu0 %v7398
        %7443 = vmatprep.subr.mxu0 0.0
        %7444 = vmatpush1.msra.mxu0 %v7397
        %7445 = vmatprep.subr.mxu0 0.0
        %7446 = vmatpush2.msra.mxu0 0.0
        %7447 = vmatprep.subr.mxu0 0.0
        %7448 = vmatpush2.msra.mxu0 0.0
        %7449 = vmatprep.subr.mxu0 0.0
        %7450 = vmatpush2.msra.mxu0 0.0
        %7451 = vmatprep.subr.mxu0 0.0
        %7452 = vmatpush2.msra.mxu0 0.0
        %7453 = vmatprep.subr.mxu0 0.0
        %7454 = vmatpush2.msra.mxu0 0.0
        %7455 = vmatprep.subr.mxu0 0.0
        %7456 = vmatpush2.msra.mxu0 0.0
        %7457 = vmatprep.subr.mxu0 0.0
        %7458 = vmatpush2.msra.mxu0 0.0
        %7459 = vmatprep.subr.mxu0 0.0
        %7460 = vmatpush2.msra.mxu0 0.0
        %7461 = vmatprep.subr.mxu0 0.0
        %7462 = vmatpush2.msra.mxu0 0.0
        %7463 = vmatprep.subr.mxu0 0.0
        %7464 = vmatpush2.msra.mxu0 0.0
        %7465 = vmatprep.subr.mxu0 0.0
        %7466 = vmatpush2.msra.mxu0 0.0
        %7467 = vmatprep.subr.mxu0 0.0
        %7468 = vmatpush2.msra.mxu0 0.0
        %7469 = vmatprep.subr.mxu0 0.0
        %7470 = vmatpush2.msra.mxu0 0.0
        %7471 = vmatprep.subr.mxu0 0.0
        %7472 = vmatpush2.msra.mxu0 0.0
        %7473 = vmatprep.subr.mxu0 0.0
        %7474 = vmatpush2.msra.mxu0 0.0
        %7475 = vmatprep.subr.mxu0 0.0
        %7476 = vmatpush2.msra.mxu0 0.0
        %7477 = vmatprep.mubr.f32.mxu0 0.0
        %7478 = vmatmul.mubr.f32.gmra.mxu0 %v7311
        %v7479 = vpop.f32.mrf.mxu0
        %v7480 = vadd.f32 0.0, %v7479
        %v7481 = vpop.f32.mrf.mxu0
        %7482 = vmatprep.mubr.f32.mxu0 0.0
        %7483 = vmatmul.mubr.f32.gmra.mxu0 %v7314
        %v7484 = vpop.f32.mrf.mxu0
        %v7485 = vadd.f32 0.0, %v7484
        %v7486 = vpop.f32.mrf.mxu0
        %7487 = vdwg.mxu0
        %v7488 = vld [vmem:[%s6] sm:$0xff]
        %v7489 = vld [vmem:[%s6 + $0x8] sm:$0xff]
        %v7490 = vld [vmem:[%s6 + $0x10] sm:$0xff]
        %v7491 = vld [vmem:[%s6 + $0x18] sm:$0xff]
        %s7492 = scalar_lea.vmem %s6, 32
        %v7493 = vld [vmem:[%s7492] sm:$0xff]
        %v7494 = vld [vmem:[%s7492 + $0x8] sm:$0xff]
        %v7495 = vld [vmem:[%s7492 + $0x10] sm:$0xff]
        %v7496 = vld [vmem:[%s7492 + $0x18] sm:$0xff]
        %7499 = vrot.lane.b32.xlu0 %v7480, 127
        %v7500 = vpop.permute.xlu0 %7499
        %7501 = vrot.lane.b32.xlu0 %v7485, 127
        %v7502 = vpop.permute.xlu0 %7501
        %v7506 = vsel %vm6481, %v7493, 0
        %v7509 = vsel %vm6481, %v7494, 0
        %v7512 = vsel %vm6481, %v7495, 0
        %v7515 = vsel %vm6481, %v7496, 0
        %7517 = vmatprep.subr.mxu0 0.0
        %7518 = vmatpush1.msra.mxu0 0.0
        %7519 = vmatprep.subr.mxu0 0.0
        %7520 = vmatpush1.msra.mxu0 0.0
        %7521 = vmatprep.subr.mxu0 0.0
        %7522 = vmatpush1.msra.mxu0 0.0
        %7523 = vmatprep.subr.mxu0 0.0
        %7524 = vmatpush1.msra.mxu0 0.0
        %7525 = vmatprep.subr.mxu0 0.0
        %7526 = vmatpush1.msra.mxu0 0.0
        %7527 = vmatprep.subr.mxu0 0.0
        %7528 = vmatpush1.msra.mxu0 0.0
        %7529 = vmatprep.subr.mxu0 0.0
        %7530 = vmatpush1.msra.mxu0 0.0
        %7531 = vmatprep.subr.mxu0 0.0
        %7532 = vmatpush1.msra.mxu0 0.0
        %7533 = vmatprep.subr.mxu0 0.0
        %7534 = vmatpush1.msra.mxu0 0.0
        %7535 = vmatprep.subr.mxu0 0.0
        %7536 = vmatpush1.msra.mxu0 0.0
        %7537 = vmatprep.subr.mxu0 0.0
        %7538 = vmatpush1.msra.mxu0 0.0
        %7539 = vmatprep.subr.mxu0 0.0
        %7540 = vmatpush1.msra.mxu0 0.0
        %7541 = vmatprep.subr.mxu0 0.0
        %7542 = vmatpush1.msra.mxu0 0.0
        %7543 = vmatprep.subr.mxu0 0.0
        %7544 = vmatpush1.msra.mxu0 0.0
        %7545 = vmatprep.subr.mxu0 0.0
        %7546 = vmatpush1.msra.mxu0 %v7502
        %7547 = vmatprep.subr.mxu0 0.0
        %7548 = vmatpush1.msra.mxu0 %v7500
        %7549 = vmatprep.subr.mxu0 0.0
        %7550 = vmatpush2.msra.mxu0 0.0
        %7551 = vmatprep.subr.mxu0 0.0
        %7552 = vmatpush2.msra.mxu0 0.0
        %7553 = vmatprep.subr.mxu0 0.0
        %7554 = vmatpush2.msra.mxu0 0.0
        %7555 = vmatprep.subr.mxu0 0.0
        %7556 = vmatpush2.msra.mxu0 0.0
        %7557 = vmatprep.subr.mxu0 0.0
        %7558 = vmatpush2.msra.mxu0 0.0
        %7559 = vmatprep.subr.mxu0 0.0
        %7560 = vmatpush2.msra.mxu0 0.0
        %7561 = vmatprep.subr.mxu0 0.0
        %7562 = vmatpush2.msra.mxu0 0.0
        %7563 = vmatprep.subr.mxu0 0.0
        %7564 = vmatpush2.msra.mxu0 0.0
        %7565 = vmatprep.subr.mxu0 0.0
        %7566 = vmatpush2.msra.mxu0 0.0
        %7567 = vmatprep.subr.mxu0 0.0
        %7568 = vmatpush2.msra.mxu0 0.0
        %7569 = vmatprep.subr.mxu0 0.0
        %7570 = vmatpush2.msra.mxu0 0.0
        %7571 = vmatprep.subr.mxu0 0.0
        %7572 = vmatpush2.msra.mxu0 0.0
        %7573 = vmatprep.subr.mxu0 0.0
        %7574 = vmatpush2.msra.mxu0 0.0
        %7575 = vmatprep.subr.mxu0 0.0
        %7576 = vmatpush2.msra.mxu0 0.0
        %7577 = vmatprep.subr.mxu0 0.0
        %7578 = vmatpush2.msra.mxu0 0.0
        %7579 = vmatprep.subr.mxu0 0.0
        %7580 = vmatpush2.msra.mxu0 0.0
        %7581 = vmatprep.mubr.f32.mxu0 0.0
        %7582 = vmatmul.mubr.f32.gmra.mxu0 %v7506
        %v7583 = vpop.f32.mrf.mxu0
        %v7584 = vadd.f32 0.0, %v7583
        %v7585 = vpop.f32.mrf.mxu0
        %7586 = vmatprep.mubr.f32.mxu0 0.0
        %7587 = vmatmul.mubr.f32.gmra.mxu0 %v7509
        %v7588 = vpop.f32.mrf.mxu0
        %v7589 = vadd.f32 0.0, %v7588
        %v7590 = vpop.f32.mrf.mxu0
        %7591 = vmatprep.mubr.f32.mxu0 0.0
        %7592 = vmatmul.mubr.f32.gmra.mxu0 %v7512
        %v7593 = vpop.f32.mrf.mxu0
        %v7594 = vadd.f32 0.0, %v7593
        %v7595 = vpop.f32.mrf.mxu0
        %7596 = vmatprep.mubr.f32.mxu0 0.0
        %7597 = vmatmul.mubr.f32.gmra.mxu0 %v7515
        %v7598 = vpop.f32.mrf.mxu0
        %v7599 = vadd.f32 0.0, %v7598
        %v7600 = vpop.f32.mrf.mxu0
        %7601 = vdwg.mxu0
        %v7603 = vsel %vm6481, %v7488, 0
        %v7606 = vsel %vm6481, %v7489, 0
        %v7609 = vsel %vm6481, %v7490, 0
        %v7612 = vsel %vm6481, %v7491, 0
        %7614 = vmatprep.subr.mxu0 0.0
        %7615 = vmatpush1.msra.mxu0 0.0
        %7616 = vmatprep.subr.mxu0 0.0
        %7617 = vmatpush1.msra.mxu0 0.0
        %7618 = vmatprep.subr.mxu0 0.0
        %7619 = vmatpush1.msra.mxu0 0.0
        %7620 = vmatprep.subr.mxu0 0.0
        %7621 = vmatpush1.msra.mxu0 0.0
        %7622 = vmatprep.subr.mxu0 0.0
        %7623 = vmatpush1.msra.mxu0 0.0
        %7624 = vmatprep.subr.mxu0 0.0
        %7625 = vmatpush1.msra.mxu0 0.0
        %7626 = vmatprep.subr.mxu0 0.0
        %7627 = vmatpush1.msra.mxu0 0.0
        %7628 = vmatprep.subr.mxu0 0.0
        %7629 = vmatpush1.msra.mxu0 0.0
        %7630 = vmatprep.subr.mxu0 0.0
        %7631 = vmatpush1.msra.mxu0 0.0
        %7632 = vmatprep.subr.mxu0 0.0
        %7633 = vmatpush1.msra.mxu0 0.0
        %7634 = vmatprep.subr.mxu0 0.0
        %7635 = vmatpush1.msra.mxu0 0.0
        %7636 = vmatprep.subr.mxu0 0.0
        %7637 = vmatpush1.msra.mxu0 0.0
        %7638 = vmatprep.subr.mxu0 0.0
        %7639 = vmatpush1.msra.mxu0 0.0
        %7640 = vmatprep.subr.mxu0 0.0
        %7641 = vmatpush1.msra.mxu0 0.0
        %7642 = vmatprep.subr.mxu0 0.0
        %7643 = vmatpush1.msra.mxu0 %v7485
        %7644 = vmatprep.subr.mxu0 0.0
        %7645 = vmatpush1.msra.mxu0 %v7480
        %7646 = vmatprep.subr.mxu0 0.0
        %7647 = vmatpush2.msra.mxu0 0.0
        %7648 = vmatprep.subr.mxu0 0.0
        %7649 = vmatpush2.msra.mxu0 0.0
        %7650 = vmatprep.subr.mxu0 0.0
        %7651 = vmatpush2.msra.mxu0 0.0
        %7652 = vmatprep.subr.mxu0 0.0
        %7653 = vmatpush2.msra.mxu0 0.0
        %7654 = vmatprep.subr.mxu0 0.0
        %7655 = vmatpush2.msra.mxu0 0.0
        %7656 = vmatprep.subr.mxu0 0.0
        %7657 = vmatpush2.msra.mxu0 0.0
        %7658 = vmatprep.subr.mxu0 0.0
        %7659 = vmatpush2.msra.mxu0 0.0
        %7660 = vmatprep.subr.mxu0 0.0
        %7661 = vmatpush2.msra.mxu0 0.0
        %7662 = vmatprep.subr.mxu0 0.0
        %7663 = vmatpush2.msra.mxu0 0.0
        %7664 = vmatprep.subr.mxu0 0.0
        %7665 = vmatpush2.msra.mxu0 0.0
        %7666 = vmatprep.subr.mxu0 0.0
        %7667 = vmatpush2.msra.mxu0 0.0
        %7668 = vmatprep.subr.mxu0 0.0
        %7669 = vmatpush2.msra.mxu0 0.0
        %7670 = vmatprep.subr.mxu0 0.0
        %7671 = vmatpush2.msra.mxu0 0.0
        %7672 = vmatprep.subr.mxu0 0.0
        %7673 = vmatpush2.msra.mxu0 0.0
        %7674 = vmatprep.subr.mxu0 0.0
        %7675 = vmatpush2.msra.mxu0 0.0
        %7676 = vmatprep.subr.mxu0 0.0
        %7677 = vmatpush2.msra.mxu0 0.0
        %7678 = vmatprep.mubr.f32.mxu0 0.0
        %7679 = vmatmul.mubr.f32.gmra.mxu0 %v7603
        %v7680 = vpop.f32.mrf.mxu0
        %v7681 = vadd.f32 %v7584, %v7680
        %v7682 = vpop.f32.mrf.mxu0
        %7683 = vmatprep.mubr.f32.mxu0 0.0
        %7684 = vmatmul.mubr.f32.gmra.mxu0 %v7606
        %v7685 = vpop.f32.mrf.mxu0
        %v7686 = vadd.f32 %v7589, %v7685
        %v7687 = vpop.f32.mrf.mxu0
        %7688 = vmatprep.mubr.f32.mxu0 0.0
        %7689 = vmatmul.mubr.f32.gmra.mxu0 %v7609
        %v7690 = vpop.f32.mrf.mxu0
        %v7691 = vadd.f32 %v7594, %v7690
        %v7692 = vpop.f32.mrf.mxu0
        %7693 = vmatprep.mubr.f32.mxu0 0.0
        %7694 = vmatmul.mubr.f32.gmra.mxu0 %v7612
        %v7695 = vpop.f32.mrf.mxu0
        %v7696 = vadd.f32 %v7599, %v7695
        %v7697 = vpop.f32.mrf.mxu0
        %7698 = vdwg.mxu0
        %s7699 = scalar_lea.vmem %s6, 64
        %v7700 = vld [vmem:[%s7699] sm:$0xff]
        %v7701 = vld [vmem:[%s7699 + $0x8] sm:$0xff]
        %v7702 = vld [vmem:[%s7699 + $0x10] sm:$0xff]
        %v7703 = vld [vmem:[%s7699 + $0x18] sm:$0xff]
        %7704 = vrot.lane.b32.xlu0 %v7480, 126
        %v7705 = vpop.permute.xlu0 %7704
        %7706 = vrot.lane.b32.xlu0 %v7485, 126
        %v7707 = vpop.permute.xlu0 %7706
        %v7711 = vsel %vm6481, %v7700, 0
        %v7714 = vsel %vm6481, %v7701, 0
        %v7717 = vsel %vm6481, %v7702, 0
        %v7720 = vsel %vm6481, %v7703, 0
        %7722 = vmatprep.subr.mxu0 0.0
        %7723 = vmatpush1.msra.mxu0 0.0
        %7724 = vmatprep.subr.mxu0 0.0
        %7725 = vmatpush1.msra.mxu0 0.0
        %7726 = vmatprep.subr.mxu0 0.0
        %7727 = vmatpush1.msra.mxu0 0.0
        %7728 = vmatprep.subr.mxu0 0.0
        %7729 = vmatpush1.msra.mxu0 0.0
        %7730 = vmatprep.subr.mxu0 0.0
        %7731 = vmatpush1.msra.mxu0 0.0
        %7732 = vmatprep.subr.mxu0 0.0
        %7733 = vmatpush1.msra.mxu0 0.0
        %7734 = vmatprep.subr.mxu0 0.0
        %7735 = vmatpush1.msra.mxu0 0.0
        %7736 = vmatprep.subr.mxu0 0.0
        %7737 = vmatpush1.msra.mxu0 0.0
        %7738 = vmatprep.subr.mxu0 0.0
        %7739 = vmatpush1.msra.mxu0 0.0
        %7740 = vmatprep.subr.mxu0 0.0
        %7741 = vmatpush1.msra.mxu0 0.0
        %7742 = vmatprep.subr.mxu0 0.0
        %7743 = vmatpush1.msra.mxu0 0.0
        %7744 = vmatprep.subr.mxu0 0.0
        %7745 = vmatpush1.msra.mxu0 0.0
        %7746 = vmatprep.subr.mxu0 0.0
        %7747 = vmatpush1.msra.mxu0 0.0
        %7748 = vmatprep.subr.mxu0 0.0
        %7749 = vmatpush1.msra.mxu0 0.0
        %7750 = vmatprep.subr.mxu0 0.0
        %7751 = vmatpush1.msra.mxu0 %v7707
        %7752 = vmatprep.subr.mxu0 0.0
        %7753 = vmatpush1.msra.mxu0 %v7705
        %7754 = vmatprep.subr.mxu0 0.0
        %7755 = vmatpush2.msra.mxu0 0.0
        %7756 = vmatprep.subr.mxu0 0.0
        %7757 = vmatpush2.msra.mxu0 0.0
        %7758 = vmatprep.subr.mxu0 0.0
        %7759 = vmatpush2.msra.mxu0 0.0
        %7760 = vmatprep.subr.mxu0 0.0
        %7761 = vmatpush2.msra.mxu0 0.0
        %7762 = vmatprep.subr.mxu0 0.0
        %7763 = vmatpush2.msra.mxu0 0.0
        %7764 = vmatprep.subr.mxu0 0.0
        %7765 = vmatpush2.msra.mxu0 0.0
        %7766 = vmatprep.subr.mxu0 0.0
        %7767 = vmatpush2.msra.mxu0 0.0
        %7768 = vmatprep.subr.mxu0 0.0
        %7769 = vmatpush2.msra.mxu0 0.0
        %7770 = vmatprep.subr.mxu0 0.0
        %7771 = vmatpush2.msra.mxu0 0.0
        %7772 = vmatprep.subr.mxu0 0.0
        %7773 = vmatpush2.msra.mxu0 0.0
        %7774 = vmatprep.subr.mxu0 0.0
        %7775 = vmatpush2.msra.mxu0 0.0
        %7776 = vmatprep.subr.mxu0 0.0
        %7777 = vmatpush2.msra.mxu0 0.0
        %7778 = vmatprep.subr.mxu0 0.0
        %7779 = vmatpush2.msra.mxu0 0.0
        %7780 = vmatprep.subr.mxu0 0.0
        %7781 = vmatpush2.msra.mxu0 0.0
        %7782 = vmatprep.subr.mxu0 0.0
        %7783 = vmatpush2.msra.mxu0 0.0
        %7784 = vmatprep.subr.mxu0 0.0
        %7785 = vmatpush2.msra.mxu0 0.0
        %7786 = vmatprep.mubr.f32.mxu0 0.0
        %7787 = vmatmul.mubr.f32.gmra.mxu0 %v7711
        %v7788 = vpop.f32.mrf.mxu0
        %v7789 = vadd.f32 0.0, %v7788
        %v7790 = vpop.f32.mrf.mxu0
        %7791 = vmatprep.mubr.f32.mxu0 0.0
        %7792 = vmatmul.mubr.f32.gmra.mxu0 %v7714
        %v7793 = vpop.f32.mrf.mxu0
        %v7794 = vadd.f32 0.0, %v7793
        %v7795 = vpop.f32.mrf.mxu0
        %7796 = vmatprep.mubr.f32.mxu0 0.0
        %7797 = vmatmul.mubr.f32.gmra.mxu0 %v7717
        %v7798 = vpop.f32.mrf.mxu0
        %v7799 = vadd.f32 0.0, %v7798
        %v7800 = vpop.f32.mrf.mxu0
        %7801 = vmatprep.mubr.f32.mxu0 0.0
        %7802 = vmatmul.mubr.f32.gmra.mxu0 %v7720
        %v7803 = vpop.f32.mrf.mxu0
        %v7804 = vadd.f32 0.0, %v7803
        %v7805 = vpop.f32.mrf.mxu0
        %7806 = vdwg.mxu0
        %v7807 = vadd.f32 %v7681, %v7789
        %v7808 = vadd.f32 %v7686, %v7794
        %v7809 = vadd.f32 %v7691, %v7799
        %v7810 = vadd.f32 %v7696, %v7804
        %s7811 = scalar_lea.vmem %s6, 96
        %v7812 = vld [vmem:[%s7811] sm:$0xff]
        %v7813 = vld [vmem:[%s7811 + $0x8] sm:$0xff]
        %v7814 = vld [vmem:[%s7811 + $0x10] sm:$0xff]
        %v7815 = vld [vmem:[%s7811 + $0x18] sm:$0xff]
        %7816 = vrot.lane.b32.xlu0 %v7480, 118
        %v7817 = vpop.permute.xlu0 %7816
        %7818 = vrot.lane.b32.xlu0 %v7485, 118
        %v7819 = vpop.permute.xlu0 %7818
        %v7823 = vsel %vm6481, %v7812, 0
        %v7826 = vsel %vm6481, %v7813, 0
        %v7829 = vsel %vm6481, %v7814, 0
        %v7832 = vsel %vm6481, %v7815, 0
        %7834 = vmatprep.subr.mxu0 0.0
        %7835 = vmatpush1.msra.mxu0 0.0
        %7836 = vmatprep.subr.mxu0 0.0
        %7837 = vmatpush1.msra.mxu0 0.0
        %7838 = vmatprep.subr.mxu0 0.0
        %7839 = vmatpush1.msra.mxu0 0.0
        %7840 = vmatprep.subr.mxu0 0.0
        %7841 = vmatpush1.msra.mxu0 0.0
        %7842 = vmatprep.subr.mxu0 0.0
        %7843 = vmatpush1.msra.mxu0 0.0
        %7844 = vmatprep.subr.mxu0 0.0
        %7845 = vmatpush1.msra.mxu0 0.0
        %7846 = vmatprep.subr.mxu0 0.0
        %7847 = vmatpush1.msra.mxu0 0.0
        %7848 = vmatprep.subr.mxu0 0.0
        %7849 = vmatpush1.msra.mxu0 0.0
        %7850 = vmatprep.subr.mxu0 0.0
        %7851 = vmatpush1.msra.mxu0 0.0
        %7852 = vmatprep.subr.mxu0 0.0
        %7853 = vmatpush1.msra.mxu0 0.0
        %7854 = vmatprep.subr.mxu0 0.0
        %7855 = vmatpush1.msra.mxu0 0.0
        %7856 = vmatprep.subr.mxu0 0.0
        %7857 = vmatpush1.msra.mxu0 0.0
        %7858 = vmatprep.subr.mxu0 0.0
        %7859 = vmatpush1.msra.mxu0 0.0
        %7860 = vmatprep.subr.mxu0 0.0
        %7861 = vmatpush1.msra.mxu0 0.0
        %7862 = vmatprep.subr.mxu0 0.0
        %7863 = vmatpush1.msra.mxu0 %v7819
        %7864 = vmatprep.subr.mxu0 0.0
        %7865 = vmatpush1.msra.mxu0 %v7817
        %7866 = vmatprep.subr.mxu0 0.0
        %7867 = vmatpush2.msra.mxu0 0.0
        %7868 = vmatprep.subr.mxu0 0.0
        %7869 = vmatpush2.msra.mxu0 0.0
        %7870 = vmatprep.subr.mxu0 0.0
        %7871 = vmatpush2.msra.mxu0 0.0
        %7872 = vmatprep.subr.mxu0 0.0
        %7873 = vmatpush2.msra.mxu0 0.0
        %7874 = vmatprep.subr.mxu0 0.0
        %7875 = vmatpush2.msra.mxu0 0.0
        %7876 = vmatprep.subr.mxu0 0.0
        %7877 = vmatpush2.msra.mxu0 0.0
        %7878 = vmatprep.subr.mxu0 0.0
        %7879 = vmatpush2.msra.mxu0 0.0
        %7880 = vmatprep.subr.mxu0 0.0
        %7881 = vmatpush2.msra.mxu0 0.0
        %7882 = vmatprep.subr.mxu0 0.0
        %7883 = vmatpush2.msra.mxu0 0.0
        %7884 = vmatprep.subr.mxu0 0.0
        %7885 = vmatpush2.msra.mxu0 0.0
        %7886 = vmatprep.subr.mxu0 0.0
        %7887 = vmatpush2.msra.mxu0 0.0
        %7888 = vmatprep.subr.mxu0 0.0
        %7889 = vmatpush2.msra.mxu0 0.0
        %7890 = vmatprep.subr.mxu0 0.0
        %7891 = vmatpush2.msra.mxu0 0.0
        %7892 = vmatprep.subr.mxu0 0.0
        %7893 = vmatpush2.msra.mxu0 0.0
        %7894 = vmatprep.subr.mxu0 0.0
        %7895 = vmatpush2.msra.mxu0 0.0
        %7896 = vmatprep.subr.mxu0 0.0
        %7897 = vmatpush2.msra.mxu0 0.0
        %7898 = vmatprep.mubr.f32.mxu0 0.0
        %7899 = vmatmul.mubr.f32.gmra.mxu0 %v7823
        %v7900 = vpop.f32.mrf.mxu0
        %v7901 = vadd.f32 0.0, %v7900
        %v7902 = vpop.f32.mrf.mxu0
        %7903 = vmatprep.mubr.f32.mxu0 0.0
        %7904 = vmatmul.mubr.f32.gmra.mxu0 %v7826
        %v7905 = vpop.f32.mrf.mxu0
        %v7906 = vadd.f32 0.0, %v7905
        %v7907 = vpop.f32.mrf.mxu0
        %7908 = vmatprep.mubr.f32.mxu0 0.0
        %7909 = vmatmul.mubr.f32.gmra.mxu0 %v7829
        %v7910 = vpop.f32.mrf.mxu0
        %v7911 = vadd.f32 0.0, %v7910
        %v7912 = vpop.f32.mrf.mxu0
        %7913 = vmatprep.mubr.f32.mxu0 0.0
        %7914 = vmatmul.mubr.f32.gmra.mxu0 %v7832
        %v7915 = vpop.f32.mrf.mxu0
        %v7916 = vadd.f32 0.0, %v7915
        %v7917 = vpop.f32.mrf.mxu0
        %7918 = vdwg.mxu0
        %v7919 = vadd.f32 %v7807, %v7901
        %v7920 = vadd.f32 %v7808, %v7906
        %v7921 = vadd.f32 %v7809, %v7911
        %v7922 = vadd.f32 %v7810, %v7916
        %s7923 = scalar_lea.vmem %s6, 128
        %v7924 = vld [vmem:[%s7923] sm:$0xff]
        %v7925 = vld [vmem:[%s7923 + $0x8] sm:$0xff]
        %v7926 = vld [vmem:[%s7923 + $0x10] sm:$0xff]
        %v7927 = vld [vmem:[%s7923 + $0x18] sm:$0xff]
        %7928 = vrot.lane.b32.xlu0 %v7480, 117
        %v7929 = vpop.permute.xlu0 %7928
        %7930 = vrot.lane.b32.xlu0 %v7485, 117
        %v7931 = vpop.permute.xlu0 %7930
        %v7935 = vsel %vm6481, %v7924, 0
        %v7938 = vsel %vm6481, %v7925, 0
        %v7941 = vsel %vm6481, %v7926, 0
        %v7944 = vsel %vm6481, %v7927, 0
        %7946 = vmatprep.subr.mxu0 0.0
        %7947 = vmatpush1.msra.mxu0 0.0
        %7948 = vmatprep.subr.mxu0 0.0
        %7949 = vmatpush1.msra.mxu0 0.0
        %7950 = vmatprep.subr.mxu0 0.0
        %7951 = vmatpush1.msra.mxu0 0.0
        %7952 = vmatprep.subr.mxu0 0.0
        %7953 = vmatpush1.msra.mxu0 0.0
        %7954 = vmatprep.subr.mxu0 0.0
        %7955 = vmatpush1.msra.mxu0 0.0
        %7956 = vmatprep.subr.mxu0 0.0
        %7957 = vmatpush1.msra.mxu0 0.0
        %7958 = vmatprep.subr.mxu0 0.0
        %7959 = vmatpush1.msra.mxu0 0.0
        %7960 = vmatprep.subr.mxu0 0.0
        %7961 = vmatpush1.msra.mxu0 0.0
        %7962 = vmatprep.subr.mxu0 0.0
        %7963 = vmatpush1.msra.mxu0 0.0
        %7964 = vmatprep.subr.mxu0 0.0
        %7965 = vmatpush1.msra.mxu0 0.0
        %7966 = vmatprep.subr.mxu0 0.0
        %7967 = vmatpush1.msra.mxu0 0.0
        %7968 = vmatprep.subr.mxu0 0.0
        %7969 = vmatpush1.msra.mxu0 0.0
        %7970 = vmatprep.subr.mxu0 0.0
        %7971 = vmatpush1.msra.mxu0 0.0
        %7972 = vmatprep.subr.mxu0 0.0
        %7973 = vmatpush1.msra.mxu0 0.0
        %7974 = vmatprep.subr.mxu0 0.0
        %7975 = vmatpush1.msra.mxu0 %v7931
        %7976 = vmatprep.subr.mxu0 0.0
        %7977 = vmatpush1.msra.mxu0 %v7929
        %7978 = vmatprep.subr.mxu0 0.0
        %7979 = vmatpush2.msra.mxu0 0.0
        %7980 = vmatprep.subr.mxu0 0.0
        %7981 = vmatpush2.msra.mxu0 0.0
        %7982 = vmatprep.subr.mxu0 0.0
        %7983 = vmatpush2.msra.mxu0 0.0
        %7984 = vmatprep.subr.mxu0 0.0
        %7985 = vmatpush2.msra.mxu0 0.0
        %7986 = vmatprep.subr.mxu0 0.0
        %7987 = vmatpush2.msra.mxu0 0.0
        %7988 = vmatprep.subr.mxu0 0.0
        %7989 = vmatpush2.msra.mxu0 0.0
        %7990 = vmatprep.subr.mxu0 0.0
        %7991 = vmatpush2.msra.mxu0 0.0
        %7992 = vmatprep.subr.mxu0 0.0
        %7993 = vmatpush2.msra.mxu0 0.0
        %7994 = vmatprep.subr.mxu0 0.0
        %7995 = vmatpush2.msra.mxu0 0.0
        %7996 = vmatprep.subr.mxu0 0.0
        %7997 = vmatpush2.msra.mxu0 0.0
        %7998 = vmatprep.subr.mxu0 0.0
        %7999 = vmatpush2.msra.mxu0 0.0
        %8000 = vmatprep.subr.mxu0 0.0
        %8001 = vmatpush2.msra.mxu0 0.0
        %8002 = vmatprep.subr.mxu0 0.0
        %8003 = vmatpush2.msra.mxu0 0.0
        %8004 = vmatprep.subr.mxu0 0.0
        %8005 = vmatpush2.msra.mxu0 0.0
        %8006 = vmatprep.subr.mxu0 0.0
        %8007 = vmatpush2.msra.mxu0 0.0
        %8008 = vmatprep.subr.mxu0 0.0
        %8009 = vmatpush2.msra.mxu0 0.0
        %8010 = vmatprep.mubr.f32.mxu0 0.0
        %8011 = vmatmul.mubr.f32.gmra.mxu0 %v7935
        %v8012 = vpop.f32.mrf.mxu0
        %v8013 = vadd.f32 0.0, %v8012
        %v8014 = vpop.f32.mrf.mxu0
        %8015 = vmatprep.mubr.f32.mxu0 0.0
        %8016 = vmatmul.mubr.f32.gmra.mxu0 %v7938
        %v8017 = vpop.f32.mrf.mxu0
        %v8018 = vadd.f32 0.0, %v8017
        %v8019 = vpop.f32.mrf.mxu0
        %8020 = vmatprep.mubr.f32.mxu0 0.0
        %8021 = vmatmul.mubr.f32.gmra.mxu0 %v7941
        %v8022 = vpop.f32.mrf.mxu0
        %v8023 = vadd.f32 0.0, %v8022
        %v8024 = vpop.f32.mrf.mxu0
        %8025 = vmatprep.mubr.f32.mxu0 0.0
        %8026 = vmatmul.mubr.f32.gmra.mxu0 %v7944
        %v8027 = vpop.f32.mrf.mxu0
        %v8028 = vadd.f32 0.0, %v8027
        %v8029 = vpop.f32.mrf.mxu0
        %8030 = vdwg.mxu0
        %v8031 = vadd.f32 %v7919, %v8013
        %v8032 = vadd.f32 %v7920, %v8018
        %v8033 = vadd.f32 %v7921, %v8023
        %v8034 = vadd.f32 %v7922, %v8028
        %s8035 = scalar_lea.vmem %s6, 160
        %v8036 = vld [vmem:[%s8035] sm:$0xff]
        %v8037 = vld [vmem:[%s8035 + $0x8] sm:$0xff]
        %v8038 = vld [vmem:[%s8035 + $0x10] sm:$0xff]
        %v8039 = vld [vmem:[%s8035 + $0x18] sm:$0xff]
        %8040 = vrot.lane.b32.xlu0 %v7480, 116
        %v8041 = vpop.permute.xlu0 %8040
        %8042 = vrot.lane.b32.xlu0 %v7485, 116
        %v8043 = vpop.permute.xlu0 %8042
        %v8047 = vsel %vm6481, %v8036, 0
        %v8050 = vsel %vm6481, %v8037, 0
        %v8053 = vsel %vm6481, %v8038, 0
        %v8056 = vsel %vm6481, %v8039, 0
        %8058 = vmatprep.subr.mxu0 0.0
        %8059 = vmatpush1.msra.mxu0 0.0
        %8060 = vmatprep.subr.mxu0 0.0
        %8061 = vmatpush1.msra.mxu0 0.0
        %8062 = vmatprep.subr.mxu0 0.0
        %8063 = vmatpush1.msra.mxu0 0.0
        %8064 = vmatprep.subr.mxu0 0.0
        %8065 = vmatpush1.msra.mxu0 0.0
        %8066 = vmatprep.subr.mxu0 0.0
        %8067 = vmatpush1.msra.mxu0 0.0
        %8068 = vmatprep.subr.mxu0 0.0
        %8069 = vmatpush1.msra.mxu0 0.0
        %8070 = vmatprep.subr.mxu0 0.0
        %8071 = vmatpush1.msra.mxu0 0.0
        %8072 = vmatprep.subr.mxu0 0.0
        %8073 = vmatpush1.msra.mxu0 0.0
        %8074 = vmatprep.subr.mxu0 0.0
        %8075 = vmatpush1.msra.mxu0 0.0
        %8076 = vmatprep.subr.mxu0 0.0
        %8077 = vmatpush1.msra.mxu0 0.0
        %8078 = vmatprep.subr.mxu0 0.0
        %8079 = vmatpush1.msra.mxu0 0.0
        %8080 = vmatprep.subr.mxu0 0.0
        %8081 = vmatpush1.msra.mxu0 0.0
        %8082 = vmatprep.subr.mxu0 0.0
        %8083 = vmatpush1.msra.mxu0 0.0
        %8084 = vmatprep.subr.mxu0 0.0
        %8085 = vmatpush1.msra.mxu0 0.0
        %8086 = vmatprep.subr.mxu0 0.0
        %8087 = vmatpush1.msra.mxu0 %v8043
        %8088 = vmatprep.subr.mxu0 0.0
        %8089 = vmatpush1.msra.mxu0 %v8041
        %8090 = vmatprep.subr.mxu0 0.0
        %8091 = vmatpush2.msra.mxu0 0.0
        %8092 = vmatprep.subr.mxu0 0.0
        %8093 = vmatpush2.msra.mxu0 0.0
        %8094 = vmatprep.subr.mxu0 0.0
        %8095 = vmatpush2.msra.mxu0 0.0
        %8096 = vmatprep.subr.mxu0 0.0
        %8097 = vmatpush2.msra.mxu0 0.0
        %8098 = vmatprep.subr.mxu0 0.0
        %8099 = vmatpush2.msra.mxu0 0.0
        %8100 = vmatprep.subr.mxu0 0.0
        %8101 = vmatpush2.msra.mxu0 0.0
        %8102 = vmatprep.subr.mxu0 0.0
        %8103 = vmatpush2.msra.mxu0 0.0
        %8104 = vmatprep.subr.mxu0 0.0
        %8105 = vmatpush2.msra.mxu0 0.0
        %8106 = vmatprep.subr.mxu0 0.0
        %8107 = vmatpush2.msra.mxu0 0.0
        %8108 = vmatprep.subr.mxu0 0.0
        %8109 = vmatpush2.msra.mxu0 0.0
        %8110 = vmatprep.subr.mxu0 0.0
        %8111 = vmatpush2.msra.mxu0 0.0
        %8112 = vmatprep.subr.mxu0 0.0
        %8113 = vmatpush2.msra.mxu0 0.0
        %8114 = vmatprep.subr.mxu0 0.0
        %8115 = vmatpush2.msra.mxu0 0.0
        %8116 = vmatprep.subr.mxu0 0.0
        %8117 = vmatpush2.msra.mxu0 0.0
        %8118 = vmatprep.subr.mxu0 0.0
        %8119 = vmatpush2.msra.mxu0 0.0
        %8120 = vmatprep.subr.mxu0 0.0
        %8121 = vmatpush2.msra.mxu0 0.0
        %8122 = vmatprep.mubr.f32.mxu0 0.0
        %8123 = vmatmul.mubr.f32.gmra.mxu0 %v8047
        %v8124 = vpop.f32.mrf.mxu0
        %v8125 = vadd.f32 0.0, %v8124
        %v8126 = vpop.f32.mrf.mxu0
        %8127 = vmatprep.mubr.f32.mxu0 0.0
        %8128 = vmatmul.mubr.f32.gmra.mxu0 %v8050
        %v8129 = vpop.f32.mrf.mxu0
        %v8130 = vadd.f32 0.0, %v8129
        %v8131 = vpop.f32.mrf.mxu0
        %8132 = vmatprep.mubr.f32.mxu0 0.0
        %8133 = vmatmul.mubr.f32.gmra.mxu0 %v8053
        %v8134 = vpop.f32.mrf.mxu0
        %v8135 = vadd.f32 0.0, %v8134
        %v8136 = vpop.f32.mrf.mxu0
        %8137 = vmatprep.mubr.f32.mxu0 0.0
        %8138 = vmatmul.mubr.f32.gmra.mxu0 %v8056
        %v8139 = vpop.f32.mrf.mxu0
        %v8140 = vadd.f32 0.0, %v8139
        %v8141 = vpop.f32.mrf.mxu0
        %8142 = vdwg.mxu0
        %v8143 = vadd.f32 %v8031, %v8125
        %v8144 = vadd.f32 %v8032, %v8130
        %v8145 = vadd.f32 %v8033, %v8135
        %v8146 = vadd.f32 %v8034, %v8140
        %s8147 = scalar_lea.vmem %s6, 192
        %v8148 = vld [vmem:[%s8147] sm:$0xff]
        %v8149 = vld [vmem:[%s8147 + $0x8] sm:$0xff]
        %v8150 = vld [vmem:[%s8147 + $0x10] sm:$0xff]
        %v8151 = vld [vmem:[%s8147 + $0x18] sm:$0xff]
        %8152 = vrot.lane.b32.xlu0 %v7480, 108
        %v8153 = vpop.permute.xlu0 %8152
        %8154 = vrot.lane.b32.xlu0 %v7485, 108
        %v8155 = vpop.permute.xlu0 %8154
        %v8159 = vsel %vm6481, %v8148, 0
        %v8162 = vsel %vm6481, %v8149, 0
        %v8165 = vsel %vm6481, %v8150, 0
        %v8168 = vsel %vm6481, %v8151, 0
        %8170 = vmatprep.subr.mxu0 0.0
        %8171 = vmatpush1.msra.mxu0 0.0
        %8172 = vmatprep.subr.mxu0 0.0
        %8173 = vmatpush1.msra.mxu0 0.0
        %8174 = vmatprep.subr.mxu0 0.0
        %8175 = vmatpush1.msra.mxu0 0.0
        %8176 = vmatprep.subr.mxu0 0.0
        %8177 = vmatpush1.msra.mxu0 0.0
        %8178 = vmatprep.subr.mxu0 0.0
        %8179 = vmatpush1.msra.mxu0 0.0
        %8180 = vmatprep.subr.mxu0 0.0
        %8181 = vmatpush1.msra.mxu0 0.0
        %8182 = vmatprep.subr.mxu0 0.0
        %8183 = vmatpush1.msra.mxu0 0.0
        %8184 = vmatprep.subr.mxu0 0.0
        %8185 = vmatpush1.msra.mxu0 0.0
        %8186 = vmatprep.subr.mxu0 0.0
        %8187 = vmatpush1.msra.mxu0 0.0
        %8188 = vmatprep.subr.mxu0 0.0
        %8189 = vmatpush1.msra.mxu0 0.0
        %8190 = vmatprep.subr.mxu0 0.0
        %8191 = vmatpush1.msra.mxu0 0.0
        %8192 = vmatprep.subr.mxu0 0.0
        %8193 = vmatpush1.msra.mxu0 0.0
        %8194 = vmatprep.subr.mxu0 0.0
        %8195 = vmatpush1.msra.mxu0 0.0
        %8196 = vmatprep.subr.mxu0 0.0
        %8197 = vmatpush1.msra.mxu0 0.0
        %8198 = vmatprep.subr.mxu0 0.0
        %8199 = vmatpush1.msra.mxu0 %v8155
        %8200 = vmatprep.subr.mxu0 0.0
        %8201 = vmatpush1.msra.mxu0 %v8153
        %8202 = vmatprep.subr.mxu0 0.0
        %8203 = vmatpush2.msra.mxu0 0.0
        %8204 = vmatprep.subr.mxu0 0.0
        %8205 = vmatpush2.msra.mxu0 0.0
        %8206 = vmatprep.subr.mxu0 0.0
        %8207 = vmatpush2.msra.mxu0 0.0
        %8208 = vmatprep.subr.mxu0 0.0
        %8209 = vmatpush2.msra.mxu0 0.0
        %8210 = vmatprep.subr.mxu0 0.0
        %8211 = vmatpush2.msra.mxu0 0.0
        %8212 = vmatprep.subr.mxu0 0.0
        %8213 = vmatpush2.msra.mxu0 0.0
        %8214 = vmatprep.subr.mxu0 0.0
        %8215 = vmatpush2.msra.mxu0 0.0
        %8216 = vmatprep.subr.mxu0 0.0
        %8217 = vmatpush2.msra.mxu0 0.0
        %8218 = vmatprep.subr.mxu0 0.0
        %8219 = vmatpush2.msra.mxu0 0.0
        %8220 = vmatprep.subr.mxu0 0.0
        %8221 = vmatpush2.msra.mxu0 0.0
        %8222 = vmatprep.subr.mxu0 0.0
        %8223 = vmatpush2.msra.mxu0 0.0
        %8224 = vmatprep.subr.mxu0 0.0
        %8225 = vmatpush2.msra.mxu0 0.0
        %8226 = vmatprep.subr.mxu0 0.0
        %8227 = vmatpush2.msra.mxu0 0.0
        %8228 = vmatprep.subr.mxu0 0.0
        %8229 = vmatpush2.msra.mxu0 0.0
        %8230 = vmatprep.subr.mxu0 0.0
        %8231 = vmatpush2.msra.mxu0 0.0
        %8232 = vmatprep.subr.mxu0 0.0
        %8233 = vmatpush2.msra.mxu0 0.0
        %8234 = vmatprep.mubr.f32.mxu0 0.0
        %8235 = vmatmul.mubr.f32.gmra.mxu0 %v8159
        %v8236 = vpop.f32.mrf.mxu0
        %v8237 = vadd.f32 0.0, %v8236
        %v8238 = vpop.f32.mrf.mxu0
        %8239 = vmatprep.mubr.f32.mxu0 0.0
        %8240 = vmatmul.mubr.f32.gmra.mxu0 %v8162
        %v8241 = vpop.f32.mrf.mxu0
        %v8242 = vadd.f32 0.0, %v8241
        %v8243 = vpop.f32.mrf.mxu0
        %8244 = vmatprep.mubr.f32.mxu0 0.0
        %8245 = vmatmul.mubr.f32.gmra.mxu0 %v8165
        %v8246 = vpop.f32.mrf.mxu0
        %v8247 = vadd.f32 0.0, %v8246
        %v8248 = vpop.f32.mrf.mxu0
        %8249 = vmatprep.mubr.f32.mxu0 0.0
        %8250 = vmatmul.mubr.f32.gmra.mxu0 %v8168
        %v8251 = vpop.f32.mrf.mxu0
        %v8252 = vadd.f32 0.0, %v8251
        %v8253 = vpop.f32.mrf.mxu0
        %8254 = vdwg.mxu0
        %v8255 = vadd.f32 %v8143, %v8237
        %v8256 = vadd.f32 %v8144, %v8242
        %v8257 = vadd.f32 %v8145, %v8247
        %v8258 = vadd.f32 %v8146, %v8252
        %s8259 = scalar_lea.vmem %s6, 224
        %v8260 = vld [vmem:[%s8259] sm:$0xff]
        %v8261 = vld [vmem:[%s8259 + $0x8] sm:$0xff]
        %v8262 = vld [vmem:[%s8259 + $0x10] sm:$0xff]
        %v8263 = vld [vmem:[%s8259 + $0x18] sm:$0xff]
        %8264 = vrot.lane.b32.xlu0 %v7480, 107
        %v8265 = vpop.permute.xlu0 %8264
        %8266 = vrot.lane.b32.xlu0 %v7485, 107
        %v8267 = vpop.permute.xlu0 %8266
        %v8271 = vsel %vm6481, %v8260, 0
        %v8274 = vsel %vm6481, %v8261, 0
        %v8277 = vsel %vm6481, %v8262, 0
        %v8280 = vsel %vm6481, %v8263, 0
        %8282 = vmatprep.subr.mxu0 0.0
        %8283 = vmatpush1.msra.mxu0 0.0
        %8284 = vmatprep.subr.mxu0 0.0
        %8285 = vmatpush1.msra.mxu0 0.0
        %8286 = vmatprep.subr.mxu0 0.0
        %8287 = vmatpush1.msra.mxu0 0.0
        %8288 = vmatprep.subr.mxu0 0.0
        %8289 = vmatpush1.msra.mxu0 0.0
        %8290 = vmatprep.subr.mxu0 0.0
        %8291 = vmatpush1.msra.mxu0 0.0
        %8292 = vmatprep.subr.mxu0 0.0
        %8293 = vmatpush1.msra.mxu0 0.0
        %8294 = vmatprep.subr.mxu0 0.0
        %8295 = vmatpush1.msra.mxu0 0.0
        %8296 = vmatprep.subr.mxu0 0.0
        %8297 = vmatpush1.msra.mxu0 0.0
        %8298 = vmatprep.subr.mxu0 0.0
        %8299 = vmatpush1.msra.mxu0 0.0
        %8300 = vmatprep.subr.mxu0 0.0
        %8301 = vmatpush1.msra.mxu0 0.0
        %8302 = vmatprep.subr.mxu0 0.0
        %8303 = vmatpush1.msra.mxu0 0.0
        %8304 = vmatprep.subr.mxu0 0.0
        %8305 = vmatpush1.msra.mxu0 0.0
        %8306 = vmatprep.subr.mxu0 0.0
        %8307 = vmatpush1.msra.mxu0 0.0
        %8308 = vmatprep.subr.mxu0 0.0
        %8309 = vmatpush1.msra.mxu0 0.0
        %8310 = vmatprep.subr.mxu0 0.0
        %8311 = vmatpush1.msra.mxu0 %v8267
        %8312 = vmatprep.subr.mxu0 0.0
        %8313 = vmatpush1.msra.mxu0 %v8265
        %8314 = vmatprep.subr.mxu0 0.0
        %8315 = vmatpush2.msra.mxu0 0.0
        %8316 = vmatprep.subr.mxu0 0.0
        %8317 = vmatpush2.msra.mxu0 0.0
        %8318 = vmatprep.subr.mxu0 0.0
        %8319 = vmatpush2.msra.mxu0 0.0
        %8320 = vmatprep.subr.mxu0 0.0
        %8321 = vmatpush2.msra.mxu0 0.0
        %8322 = vmatprep.subr.mxu0 0.0
        %8323 = vmatpush2.msra.mxu0 0.0
        %8324 = vmatprep.subr.mxu0 0.0
        %8325 = vmatpush2.msra.mxu0 0.0
        %8326 = vmatprep.subr.mxu0 0.0
        %8327 = vmatpush2.msra.mxu0 0.0
        %8328 = vmatprep.subr.mxu0 0.0
        %8329 = vmatpush2.msra.mxu0 0.0
        %8330 = vmatprep.subr.mxu0 0.0
        %8331 = vmatpush2.msra.mxu0 0.0
        %8332 = vmatprep.subr.mxu0 0.0
        %8333 = vmatpush2.msra.mxu0 0.0
        %8334 = vmatprep.subr.mxu0 0.0
        %8335 = vmatpush2.msra.mxu0 0.0
        %8336 = vmatprep.subr.mxu0 0.0
        %8337 = vmatpush2.msra.mxu0 0.0
        %8338 = vmatprep.subr.mxu0 0.0
        %8339 = vmatpush2.msra.mxu0 0.0
        %8340 = vmatprep.subr.mxu0 0.0
        %8341 = vmatpush2.msra.mxu0 0.0
        %8342 = vmatprep.subr.mxu0 0.0
        %8343 = vmatpush2.msra.mxu0 0.0
        %8344 = vmatprep.subr.mxu0 0.0
        %8345 = vmatpush2.msra.mxu0 0.0
        %8346 = vmatprep.mubr.f32.mxu0 0.0
        %8347 = vmatmul.mubr.f32.gmra.mxu0 %v8271
        %v8348 = vpop.f32.mrf.mxu0
        %v8349 = vadd.f32 0.0, %v8348
        %v8350 = vpop.f32.mrf.mxu0
        %8351 = vmatprep.mubr.f32.mxu0 0.0
        %8352 = vmatmul.mubr.f32.gmra.mxu0 %v8274
        %v8353 = vpop.f32.mrf.mxu0
        %v8354 = vadd.f32 0.0, %v8353
        %v8355 = vpop.f32.mrf.mxu0
        %8356 = vmatprep.mubr.f32.mxu0 0.0
        %8357 = vmatmul.mubr.f32.gmra.mxu0 %v8277
        %v8358 = vpop.f32.mrf.mxu0
        %v8359 = vadd.f32 0.0, %v8358
        %v8360 = vpop.f32.mrf.mxu0
        %8361 = vmatprep.mubr.f32.mxu0 0.0
        %8362 = vmatmul.mubr.f32.gmra.mxu0 %v8280
        %v8363 = vpop.f32.mrf.mxu0
        %v8364 = vadd.f32 0.0, %v8363
        %v8365 = vpop.f32.mrf.mxu0
        %8366 = vdwg.mxu0
        %v8367 = vadd.f32 %v8255, %v8349
        %v8368 = vadd.f32 %v8256, %v8354
        %v8369 = vadd.f32 %v8257, %v8359
        %v8370 = vadd.f32 %v8258, %v8364
        %s8371 = scalar_lea.vmem %s6, 256
        %v8372 = vld [vmem:[%s8371] sm:$0xff]
        %v8373 = vld [vmem:[%s8371 + $0x8] sm:$0xff]
        %v8374 = vld [vmem:[%s8371 + $0x10] sm:$0xff]
        %v8375 = vld [vmem:[%s8371 + $0x18] sm:$0xff]
        %8376 = vrot.lane.b32.xlu0 %v7480, 106
        %v8377 = vpop.permute.xlu0 %8376
        %8378 = vrot.lane.b32.xlu0 %v7485, 106
        %v8379 = vpop.permute.xlu0 %8378
        %v8383 = vsel %vm6481, %v8372, 0
        %v8386 = vsel %vm6481, %v8373, 0
        %v8389 = vsel %vm6481, %v8374, 0
        %v8392 = vsel %vm6481, %v8375, 0
        %8394 = vmatprep.subr.mxu0 0.0
        %8395 = vmatpush1.msra.mxu0 0.0
        %8396 = vmatprep.subr.mxu0 0.0
        %8397 = vmatpush1.msra.mxu0 0.0
        %8398 = vmatprep.subr.mxu0 0.0
        %8399 = vmatpush1.msra.mxu0 0.0
        %8400 = vmatprep.subr.mxu0 0.0
        %8401 = vmatpush1.msra.mxu0 0.0
        %8402 = vmatprep.subr.mxu0 0.0
        %8403 = vmatpush1.msra.mxu0 0.0
        %8404 = vmatprep.subr.mxu0 0.0
        %8405 = vmatpush1.msra.mxu0 0.0
        %8406 = vmatprep.subr.mxu0 0.0
        %8407 = vmatpush1.msra.mxu0 0.0
        %8408 = vmatprep.subr.mxu0 0.0
        %8409 = vmatpush1.msra.mxu0 0.0
        %8410 = vmatprep.subr.mxu0 0.0
        %8411 = vmatpush1.msra.mxu0 0.0
        %8412 = vmatprep.subr.mxu0 0.0
        %8413 = vmatpush1.msra.mxu0 0.0
        %8414 = vmatprep.subr.mxu0 0.0
        %8415 = vmatpush1.msra.mxu0 0.0
        %8416 = vmatprep.subr.mxu0 0.0
        %8417 = vmatpush1.msra.mxu0 0.0
        %8418 = vmatprep.subr.mxu0 0.0
        %8419 = vmatpush1.msra.mxu0 0.0
        %8420 = vmatprep.subr.mxu0 0.0
        %8421 = vmatpush1.msra.mxu0 0.0
        %8422 = vmatprep.subr.mxu0 0.0
        %8423 = vmatpush1.msra.mxu0 %v8379
        %8424 = vmatprep.subr.mxu0 0.0
        %8425 = vmatpush1.msra.mxu0 %v8377
        %8426 = vmatprep.subr.mxu0 0.0
        %8427 = vmatpush2.msra.mxu0 0.0
        %8428 = vmatprep.subr.mxu0 0.0
        %8429 = vmatpush2.msra.mxu0 0.0
        %8430 = vmatprep.subr.mxu0 0.0
        %8431 = vmatpush2.msra.mxu0 0.0
        %8432 = vmatprep.subr.mxu0 0.0
        %8433 = vmatpush2.msra.mxu0 0.0
        %8434 = vmatprep.subr.mxu0 0.0
        %8435 = vmatpush2.msra.mxu0 0.0
        %8436 = vmatprep.subr.mxu0 0.0
        %8437 = vmatpush2.msra.mxu0 0.0
        %8438 = vmatprep.subr.mxu0 0.0
        %8439 = vmatpush2.msra.mxu0 0.0
        %8440 = vmatprep.subr.mxu0 0.0
        %8441 = vmatpush2.msra.mxu0 0.0
        %8442 = vmatprep.subr.mxu0 0.0
        %8443 = vmatpush2.msra.mxu0 0.0
        %8444 = vmatprep.subr.mxu0 0.0
        %8445 = vmatpush2.msra.mxu0 0.0
        %8446 = vmatprep.subr.mxu0 0.0
        %8447 = vmatpush2.msra.mxu0 0.0
        %8448 = vmatprep.subr.mxu0 0.0
        %8449 = vmatpush2.msra.mxu0 0.0
        %8450 = vmatprep.subr.mxu0 0.0
        %8451 = vmatpush2.msra.mxu0 0.0
        %8452 = vmatprep.subr.mxu0 0.0
        %8453 = vmatpush2.msra.mxu0 0.0
        %8454 = vmatprep.subr.mxu0 0.0
        %8455 = vmatpush2.msra.mxu0 0.0
        %8456 = vmatprep.subr.mxu0 0.0
        %8457 = vmatpush2.msra.mxu0 0.0
        %8458 = vmatprep.mubr.f32.mxu0 0.0
        %8459 = vmatmul.mubr.f32.gmra.mxu0 %v8383
        %v8460 = vpop.f32.mrf.mxu0
        %v8461 = vadd.f32 0.0, %v8460
        %v8462 = vpop.f32.mrf.mxu0
        %8463 = vmatprep.mubr.f32.mxu0 0.0
        %8464 = vmatmul.mubr.f32.gmra.mxu0 %v8386
        %v8465 = vpop.f32.mrf.mxu0
        %v8466 = vadd.f32 0.0, %v8465
        %v8467 = vpop.f32.mrf.mxu0
        %8468 = vmatprep.mubr.f32.mxu0 0.0
        %8469 = vmatmul.mubr.f32.gmra.mxu0 %v8389
        %v8470 = vpop.f32.mrf.mxu0
        %v8471 = vadd.f32 0.0, %v8470
        %v8472 = vpop.f32.mrf.mxu0
        %8473 = vmatprep.mubr.f32.mxu0 0.0
        %8474 = vmatmul.mubr.f32.gmra.mxu0 %v8392
        %v8475 = vpop.f32.mrf.mxu0
        %v8476 = vadd.f32 0.0, %v8475
        %v8477 = vpop.f32.mrf.mxu0
        %8478 = vdwg.mxu0
        %v8479 = vadd.f32 %v8367, %v8461
        %v8480 = vadd.f32 %v8368, %v8466
        %v8481 = vadd.f32 %v8369, %v8471
        %v8482 = vadd.f32 %v8370, %v8476
        %s8483 = sld [smem:[#allocation2 + $0x4]]
        %vm8484 = vcmp.ge.f32.partialorder %v8479, 0.0
        %vm8485 = vcmp.ge.f32.partialorder %v8480, 0.0
        %vm8486 = vcmp.ge.f32.partialorder %v8481, 0.0
        %vm8487 = vcmp.ge.f32.partialorder %v8482, 0.0
        %v8488 = vstv %s8483
        %v8489 = vmul.f32 %v8488, %v8479
        %v8490 = vmul.f32 %v8488, %v8480
        %v8491 = vmul.f32 %v8488, %v8481
        %v8492 = vmul.f32 %v8488, %v8482
        %v8493 = vsel %vm8484, %v8479, %v8489
        %v8494 = vsel %vm8485, %v8480, %v8490
        %v8495 = vsel %vm8486, %v8481, %v8491
        %v8496 = vsel %vm8487, %v8482, %v8492
        %v8497 = vld [vmem:[%s14] sm:$0xff]
        %v8498 = vld [vmem:[%s14 + $0x8] sm:$0xff]
        %v8499 = vld [vmem:[%s14 + $0x10] sm:$0xff]
        %v8500 = vld [vmem:[%s14 + $0x18] sm:$0xff]
        %v8501 = vld [vmem:[%s14 + $0x20] sm:$0xff]
        %v8502 = vld [vmem:[%s14 + $0x28] sm:$0xff]
        %v8503 = vld [vmem:[%s14 + $0x30] sm:$0xff]
        %v8504 = vld [vmem:[%s14 + $0x38] sm:$0xff]
        %v8505 = vld [vmem:[%s14 + $0x40] sm:$0xff]
        %v8506 = vld [vmem:[%s14 + $0x48] sm:$0xff]
        %v8507 = vld [vmem:[%s14 + $0x50] sm:$0xff]
        %v8508 = vld [vmem:[%s14 + $0x58] sm:$0xff]
        %v8509 = vld [vmem:[%s14 + $0x60] sm:$0xf]
        %v8511 = vsel %vm7309, %v8493, 0
        %v8514 = vsel %vm7309, %v8494, 0
        %v8517 = vsel %vm7309, %v8495, 0
        %v8520 = vsel %vm7309, %v8496, 0
        %v8523 = vsel %vm2289, %v8509, 0
        %8525 = vmatprep.subr.mxu0 0.0
        %8526 = vmatpush1.msra.mxu0 0.0
        %8527 = vmatprep.subr.mxu0 0.0
        %8528 = vmatpush1.msra.mxu0 0.0
        %8529 = vmatprep.subr.mxu0 0.0
        %8530 = vmatpush1.msra.mxu0 0.0
        %8531 = vmatprep.subr.mxu0 0.0
        %8532 = vmatpush1.msra.mxu0 %v8523
        %8533 = vmatprep.subr.mxu0 0.0
        %8534 = vmatpush1.msra.mxu0 %v8508
        %8535 = vmatprep.subr.mxu0 0.0
        %8536 = vmatpush1.msra.mxu0 %v8507
        %8537 = vmatprep.subr.mxu0 0.0
        %8538 = vmatpush1.msra.mxu0 %v8506
        %8539 = vmatprep.subr.mxu0 0.0
        %8540 = vmatpush1.msra.mxu0 %v8505
        %8541 = vmatprep.subr.mxu0 0.0
        %8542 = vmatpush1.msra.mxu0 %v8504
        %8543 = vmatprep.subr.mxu0 0.0
        %8544 = vmatpush1.msra.mxu0 %v8503
        %8545 = vmatprep.subr.mxu0 0.0
        %8546 = vmatpush1.msra.mxu0 %v8502
        %8547 = vmatprep.subr.mxu0 0.0
        %8548 = vmatpush1.msra.mxu0 %v8501
        %8549 = vmatprep.subr.mxu0 0.0
        %8550 = vmatpush1.msra.mxu0 %v8500
        %8551 = vmatprep.subr.mxu0 0.0
        %8552 = vmatpush1.msra.mxu0 %v8499
        %8553 = vmatprep.subr.mxu0 0.0
        %8554 = vmatpush1.msra.mxu0 %v8498
        %8555 = vmatprep.subr.mxu0 0.0
        %8556 = vmatpush1.msra.mxu0 %v8497
        %8557 = vmatprep.subr.mxu0 0.0
        %8558 = vmatpush2.msra.mxu0 0.0
        %8559 = vmatprep.subr.mxu0 0.0
        %8560 = vmatpush2.msra.mxu0 0.0
        %8561 = vmatprep.subr.mxu0 0.0
        %8562 = vmatpush2.msra.mxu0 0.0
        %8563 = vmatprep.subr.mxu0 0.0
        %8564 = vmatpush2.msra.mxu0 0.0
        %8565 = vmatprep.subr.mxu0 0.0
        %8566 = vmatpush2.msra.mxu0 0.0
        %8567 = vmatprep.subr.mxu0 0.0
        %8568 = vmatpush2.msra.mxu0 0.0
        %8569 = vmatprep.subr.mxu0 0.0
        %8570 = vmatpush2.msra.mxu0 0.0
        %8571 = vmatprep.subr.mxu0 0.0
        %8572 = vmatpush2.msra.mxu0 0.0
        %8573 = vmatprep.subr.mxu0 0.0
        %8574 = vmatpush2.msra.mxu0 0.0
        %8575 = vmatprep.subr.mxu0 0.0
        %8576 = vmatpush2.msra.mxu0 0.0
        %8577 = vmatprep.subr.mxu0 0.0
        %8578 = vmatpush2.msra.mxu0 0.0
        %8579 = vmatprep.subr.mxu0 0.0
        %8580 = vmatpush2.msra.mxu0 0.0
        %8581 = vmatprep.subr.mxu0 0.0
        %8582 = vmatpush2.msra.mxu0 0.0
        %8583 = vmatprep.subr.mxu0 0.0
        %8584 = vmatpush2.msra.mxu0 0.0
        %8585 = vmatprep.subr.mxu0 0.0
        %8586 = vmatpush2.msra.mxu0 0.0
        %8587 = vmatprep.subr.mxu0 0.0
        %8588 = vmatpush2.msra.mxu0 0.0
        %8589 = vmatprep.mubr.f32.mxu0 0.0
        %8590 = vmatmul.mubr.f32.gmra.mxu0 %v8511
        %v8591 = vpop.f32.mrf.mxu0
        %v8592 = vadd.f32 0.0, %v8591
        %v8593 = vpop.f32.mrf.mxu0
        %8594 = vmatprep.mubr.f32.mxu0 0.0
        %8595 = vmatmul.mubr.f32.gmra.mxu0 %v8514
        %v8596 = vpop.f32.mrf.mxu0
        %v8597 = vadd.f32 0.0, %v8596
        %v8598 = vpop.f32.mrf.mxu0
        %8599 = vmatprep.mubr.f32.mxu0 0.0
        %8600 = vmatmul.mubr.f32.gmra.mxu0 %v8517
        %v8601 = vpop.f32.mrf.mxu0
        %v8602 = vadd.f32 0.0, %v8601
        %v8603 = vpop.f32.mrf.mxu0
        %8604 = vmatprep.mubr.f32.mxu0 0.0
        %8605 = vmatmul.mubr.f32.gmra.mxu0 %v8520
        %v8606 = vpop.f32.mrf.mxu0
        %v8607 = vadd.f32 0.0, %v8606
        %v8608 = vpop.f32.mrf.mxu0
        %8609 = vdwg.mxu0
        %v8610 = vld [vmem:[#allocation7] sm:$0xff]
        %v8611 = vld [vmem:[#allocation7 + $0x8] sm:$0xff]
        %v8612 = vld [vmem:[#allocation7 + $0x10] sm:$0xff]
        %v8613 = vld [vmem:[#allocation7 + $0x18] sm:$0xff]
        %s8614 = scalar_lea.vmem [#allocation7], 32
        %v8615 = vld [vmem:[%s8614] sm:$0xff]
        %v8616 = vld [vmem:[%s8614 + $0x8] sm:$0xff]
        %v8617 = vld [vmem:[%s8614 + $0x10] sm:$0xff]
        %v8618 = vld [vmem:[%s8614 + $0x18] sm:$0xff]
        %8623 = vrot.lane.b32.xlu0 %v8592, 127
        %v8624 = vpop.permute.xlu0 %8623
        %8625 = vrot.lane.b32.xlu0 %v8597, 127
        %v8626 = vpop.permute.xlu0 %8625
        %8627 = vrot.lane.b32.xlu0 %v8602, 127
        %v8628 = vpop.permute.xlu0 %8627
        %8629 = vrot.lane.b32.xlu0 %v8607, 127
        %v8630 = vpop.permute.xlu0 %8629
        %vm8635 = vcmask 261120
        %v8637 = vsel %vm8635, %v8615, 0
        %v8640 = vsel %vm8635, %v8616, 0
        %v8643 = vsel %vm8635, %v8617, 0
        %v8646 = vsel %vm8635, %v8618, 0
        %8648 = vmatprep.subr.mxu0 0.0
        %8649 = vmatpush1.msra.mxu0 0.0
        %8650 = vmatprep.subr.mxu0 0.0
        %8651 = vmatpush1.msra.mxu0 0.0
        %8652 = vmatprep.subr.mxu0 0.0
        %8653 = vmatpush1.msra.mxu0 0.0
        %8654 = vmatprep.subr.mxu0 0.0
        %8655 = vmatpush1.msra.mxu0 0.0
        %8656 = vmatprep.subr.mxu0 0.0
        %8657 = vmatpush1.msra.mxu0 0.0
        %8658 = vmatprep.subr.mxu0 0.0
        %8659 = vmatpush1.msra.mxu0 0.0
        %8660 = vmatprep.subr.mxu0 0.0
        %8661 = vmatpush1.msra.mxu0 0.0
        %8662 = vmatprep.subr.mxu0 0.0
        %8663 = vmatpush1.msra.mxu0 0.0
        %8664 = vmatprep.subr.mxu0 0.0
        %8665 = vmatpush1.msra.mxu0 0.0
        %8666 = vmatprep.subr.mxu0 0.0
        %8667 = vmatpush1.msra.mxu0 0.0
        %8668 = vmatprep.subr.mxu0 0.0
        %8669 = vmatpush1.msra.mxu0 0.0
        %8670 = vmatprep.subr.mxu0 0.0
        %8671 = vmatpush1.msra.mxu0 0.0
        %8672 = vmatprep.subr.mxu0 0.0
        %8673 = vmatpush1.msra.mxu0 %v8630
        %8674 = vmatprep.subr.mxu0 0.0
        %8675 = vmatpush1.msra.mxu0 %v8628
        %8676 = vmatprep.subr.mxu0 0.0
        %8677 = vmatpush1.msra.mxu0 %v8626
        %8678 = vmatprep.subr.mxu0 0.0
        %8679 = vmatpush1.msra.mxu0 %v8624
        %8680 = vmatprep.subr.mxu0 0.0
        %8681 = vmatpush2.msra.mxu0 0.0
        %8682 = vmatprep.subr.mxu0 0.0
        %8683 = vmatpush2.msra.mxu0 0.0
        %8684 = vmatprep.subr.mxu0 0.0
        %8685 = vmatpush2.msra.mxu0 0.0
        %8686 = vmatprep.subr.mxu0 0.0
        %8687 = vmatpush2.msra.mxu0 0.0
        %8688 = vmatprep.subr.mxu0 0.0
        %8689 = vmatpush2.msra.mxu0 0.0
        %8690 = vmatprep.subr.mxu0 0.0
        %8691 = vmatpush2.msra.mxu0 0.0
        %8692 = vmatprep.subr.mxu0 0.0
        %8693 = vmatpush2.msra.mxu0 0.0
        %8694 = vmatprep.subr.mxu0 0.0
        %8695 = vmatpush2.msra.mxu0 0.0
        %8696 = vmatprep.subr.mxu0 0.0
        %8697 = vmatpush2.msra.mxu0 0.0
        %8698 = vmatprep.subr.mxu0 0.0
        %8699 = vmatpush2.msra.mxu0 0.0
        %8700 = vmatprep.subr.mxu0 0.0
        %8701 = vmatpush2.msra.mxu0 0.0
        %8702 = vmatprep.subr.mxu0 0.0
        %8703 = vmatpush2.msra.mxu0 0.0
        %8704 = vmatprep.subr.mxu0 0.0
        %8705 = vmatpush2.msra.mxu0 0.0
        %8706 = vmatprep.subr.mxu0 0.0
        %8707 = vmatpush2.msra.mxu0 0.0
        %8708 = vmatprep.subr.mxu0 0.0
        %8709 = vmatpush2.msra.mxu0 0.0
        %8710 = vmatprep.subr.mxu0 0.0
        %8711 = vmatpush2.msra.mxu0 0.0
        %8712 = vmatprep.mubr.f32.mxu0 0.0
        %8713 = vmatmul.mubr.f32.gmra.mxu0 %v8637
        %v8714 = vpop.f32.mrf.mxu0
        %v8715 = vadd.f32 0.0, %v8714
        %v8716 = vpop.f32.mrf.mxu0
        %8717 = vmatprep.mubr.f32.mxu0 0.0
        %8718 = vmatmul.mubr.f32.gmra.mxu0 %v8640
        %v8719 = vpop.f32.mrf.mxu0
        %v8720 = vadd.f32 0.0, %v8719
        %v8721 = vpop.f32.mrf.mxu0
        %8722 = vmatprep.mubr.f32.mxu0 0.0
        %8723 = vmatmul.mubr.f32.gmra.mxu0 %v8643
        %v8724 = vpop.f32.mrf.mxu0
        %v8725 = vadd.f32 0.0, %v8724
        %v8726 = vpop.f32.mrf.mxu0
        %8727 = vmatprep.mubr.f32.mxu0 0.0
        %8728 = vmatmul.mubr.f32.gmra.mxu0 %v8646
        %v8729 = vpop.f32.mrf.mxu0
        %v8730 = vadd.f32 0.0, %v8729
        %v8731 = vpop.f32.mrf.mxu0
        %8732 = vdwg.mxu0
        %v8734 = vsel %vm8635, %v8610, 0
        %v8737 = vsel %vm8635, %v8611, 0
        %v8740 = vsel %vm8635, %v8612, 0
        %v8743 = vsel %vm8635, %v8613, 0
        %8745 = vmatprep.subr.mxu0 0.0
        %8746 = vmatpush1.msra.mxu0 0.0
        %8747 = vmatprep.subr.mxu0 0.0
        %8748 = vmatpush1.msra.mxu0 0.0
        %8749 = vmatprep.subr.mxu0 0.0
        %8750 = vmatpush1.msra.mxu0 0.0
        %8751 = vmatprep.subr.mxu0 0.0
        %8752 = vmatpush1.msra.mxu0 0.0
        %8753 = vmatprep.subr.mxu0 0.0
        %8754 = vmatpush1.msra.mxu0 0.0
        %8755 = vmatprep.subr.mxu0 0.0
        %8756 = vmatpush1.msra.mxu0 0.0
        %8757 = vmatprep.subr.mxu0 0.0
        %8758 = vmatpush1.msra.mxu0 0.0
        %8759 = vmatprep.subr.mxu0 0.0
        %8760 = vmatpush1.msra.mxu0 0.0
        %8761 = vmatprep.subr.mxu0 0.0
        %8762 = vmatpush1.msra.mxu0 0.0
        %8763 = vmatprep.subr.mxu0 0.0
        %8764 = vmatpush1.msra.mxu0 0.0
        %8765 = vmatprep.subr.mxu0 0.0
        %8766 = vmatpush1.msra.mxu0 0.0
        %8767 = vmatprep.subr.mxu0 0.0
        %8768 = vmatpush1.msra.mxu0 0.0
        %8769 = vmatprep.subr.mxu0 0.0
        %8770 = vmatpush1.msra.mxu0 %v8607
        %8771 = vmatprep.subr.mxu0 0.0
        %8772 = vmatpush1.msra.mxu0 %v8602
        %8773 = vmatprep.subr.mxu0 0.0
        %8774 = vmatpush1.msra.mxu0 %v8597
        %8775 = vmatprep.subr.mxu0 0.0
        %8776 = vmatpush1.msra.mxu0 %v8592
        %8777 = vmatprep.subr.mxu0 0.0
        %8778 = vmatpush2.msra.mxu0 0.0
        %8779 = vmatprep.subr.mxu0 0.0
        %8780 = vmatpush2.msra.mxu0 0.0
        %8781 = vmatprep.subr.mxu0 0.0
        %8782 = vmatpush2.msra.mxu0 0.0
        %8783 = vmatprep.subr.mxu0 0.0
        %8784 = vmatpush2.msra.mxu0 0.0
        %8785 = vmatprep.subr.mxu0 0.0
        %8786 = vmatpush2.msra.mxu0 0.0
        %8787 = vmatprep.subr.mxu0 0.0
        %8788 = vmatpush2.msra.mxu0 0.0
        %8789 = vmatprep.subr.mxu0 0.0
        %8790 = vmatpush2.msra.mxu0 0.0
        %8791 = vmatprep.subr.mxu0 0.0
        %8792 = vmatpush2.msra.mxu0 0.0
        %8793 = vmatprep.subr.mxu0 0.0
        %8794 = vmatpush2.msra.mxu0 0.0
        %8795 = vmatprep.subr.mxu0 0.0
        %8796 = vmatpush2.msra.mxu0 0.0
        %8797 = vmatprep.subr.mxu0 0.0
        %8798 = vmatpush2.msra.mxu0 0.0
        %8799 = vmatprep.subr.mxu0 0.0
        %8800 = vmatpush2.msra.mxu0 0.0
        %8801 = vmatprep.subr.mxu0 0.0
        %8802 = vmatpush2.msra.mxu0 0.0
        %8803 = vmatprep.subr.mxu0 0.0
        %8804 = vmatpush2.msra.mxu0 0.0
        %8805 = vmatprep.subr.mxu0 0.0
        %8806 = vmatpush2.msra.mxu0 0.0
        %8807 = vmatprep.subr.mxu0 0.0
        %8808 = vmatpush2.msra.mxu0 0.0
        %8809 = vmatprep.mubr.f32.mxu0 0.0
        %8810 = vmatmul.mubr.f32.gmra.mxu0 %v8734
        %v8811 = vpop.f32.mrf.mxu0
        %v8812 = vadd.f32 %v8715, %v8811
        %v8813 = vpop.f32.mrf.mxu0
        %8814 = vmatprep.mubr.f32.mxu0 0.0
        %8815 = vmatmul.mubr.f32.gmra.mxu0 %v8737
        %v8816 = vpop.f32.mrf.mxu0
        %v8817 = vadd.f32 %v8720, %v8816
        %v8818 = vpop.f32.mrf.mxu0
        %8819 = vmatprep.mubr.f32.mxu0 0.0
        %8820 = vmatmul.mubr.f32.gmra.mxu0 %v8740
        %v8821 = vpop.f32.mrf.mxu0
        %v8822 = vadd.f32 %v8725, %v8821
        %v8823 = vpop.f32.mrf.mxu0
        %8824 = vmatprep.mubr.f32.mxu0 0.0
        %8825 = vmatmul.mubr.f32.gmra.mxu0 %v8743
        %v8826 = vpop.f32.mrf.mxu0
        %v8827 = vadd.f32 %v8730, %v8826
        %v8828 = vpop.f32.mrf.mxu0
        %8829 = vdwg.mxu0
        %s8830 = scalar_lea.vmem [#allocation7], 64
        %v8831 = vld [vmem:[%s8830] sm:$0xff]
        %v8832 = vld [vmem:[%s8830 + $0x8] sm:$0xff]
        %v8833 = vld [vmem:[%s8830 + $0x10] sm:$0xff]
        %v8834 = vld [vmem:[%s8830 + $0x18] sm:$0xff]
        %8835 = vrot.lane.b32.xlu0 %v8592, 126
        %v8836 = vpop.permute.xlu0 %8835
        %8837 = vrot.lane.b32.xlu0 %v8597, 126
        %v8838 = vpop.permute.xlu0 %8837
        %8839 = vrot.lane.b32.xlu0 %v8602, 126
        %v8840 = vpop.permute.xlu0 %8839
        %8841 = vrot.lane.b32.xlu0 %v8607, 126
        %v8842 = vpop.permute.xlu0 %8841
        %v8848 = vsel %vm8635, %v8831, 0
        %v8851 = vsel %vm8635, %v8832, 0
        %v8854 = vsel %vm8635, %v8833, 0
        %v8857 = vsel %vm8635, %v8834, 0
        %8859 = vmatprep.subr.mxu0 0.0
        %8860 = vmatpush1.msra.mxu0 0.0
        %8861 = vmatprep.subr.mxu0 0.0
        %8862 = vmatpush1.msra.mxu0 0.0
        %8863 = vmatprep.subr.mxu0 0.0
        %8864 = vmatpush1.msra.mxu0 0.0
        %8865 = vmatprep.subr.mxu0 0.0
        %8866 = vmatpush1.msra.mxu0 0.0
        %8867 = vmatprep.subr.mxu0 0.0
        %8868 = vmatpush1.msra.mxu0 0.0
        %8869 = vmatprep.subr.mxu0 0.0
        %8870 = vmatpush1.msra.mxu0 0.0
        %8871 = vmatprep.subr.mxu0 0.0
        %8872 = vmatpush1.msra.mxu0 0.0
        %8873 = vmatprep.subr.mxu0 0.0
        %8874 = vmatpush1.msra.mxu0 0.0
        %8875 = vmatprep.subr.mxu0 0.0
        %8876 = vmatpush1.msra.mxu0 0.0
        %8877 = vmatprep.subr.mxu0 0.0
        %8878 = vmatpush1.msra.mxu0 0.0
        %8879 = vmatprep.subr.mxu0 0.0
        %8880 = vmatpush1.msra.mxu0 0.0
        %8881 = vmatprep.subr.mxu0 0.0
        %8882 = vmatpush1.msra.mxu0 0.0
        %8883 = vmatprep.subr.mxu0 0.0
        %8884 = vmatpush1.msra.mxu0 %v8842
        %8885 = vmatprep.subr.mxu0 0.0
        %8886 = vmatpush1.msra.mxu0 %v8840
        %8887 = vmatprep.subr.mxu0 0.0
        %8888 = vmatpush1.msra.mxu0 %v8838
        %8889 = vmatprep.subr.mxu0 0.0
        %8890 = vmatpush1.msra.mxu0 %v8836
        %8891 = vmatprep.subr.mxu0 0.0
        %8892 = vmatpush2.msra.mxu0 0.0
        %8893 = vmatprep.subr.mxu0 0.0
        %8894 = vmatpush2.msra.mxu0 0.0
        %8895 = vmatprep.subr.mxu0 0.0
        %8896 = vmatpush2.msra.mxu0 0.0
        %8897 = vmatprep.subr.mxu0 0.0
        %8898 = vmatpush2.msra.mxu0 0.0
        %8899 = vmatprep.subr.mxu0 0.0
        %8900 = vmatpush2.msra.mxu0 0.0
        %8901 = vmatprep.subr.mxu0 0.0
        %8902 = vmatpush2.msra.mxu0 0.0
        %8903 = vmatprep.subr.mxu0 0.0
        %8904 = vmatpush2.msra.mxu0 0.0
        %8905 = vmatprep.subr.mxu0 0.0
        %8906 = vmatpush2.msra.mxu0 0.0
        %8907 = vmatprep.subr.mxu0 0.0
        %8908 = vmatpush2.msra.mxu0 0.0
        %8909 = vmatprep.subr.mxu0 0.0
        %8910 = vmatpush2.msra.mxu0 0.0
        %8911 = vmatprep.subr.mxu0 0.0
        %8912 = vmatpush2.msra.mxu0 0.0
        %8913 = vmatprep.subr.mxu0 0.0
        %8914 = vmatpush2.msra.mxu0 0.0
        %8915 = vmatprep.subr.mxu0 0.0
        %8916 = vmatpush2.msra.mxu0 0.0
        %8917 = vmatprep.subr.mxu0 0.0
        %8918 = vmatpush2.msra.mxu0 0.0
        %8919 = vmatprep.subr.mxu0 0.0
        %8920 = vmatpush2.msra.mxu0 0.0
        %8921 = vmatprep.subr.mxu0 0.0
        %8922 = vmatpush2.msra.mxu0 0.0
        %8923 = vmatprep.mubr.f32.mxu0 0.0
        %8924 = vmatmul.mubr.f32.gmra.mxu0 %v8848
        %v8925 = vpop.f32.mrf.mxu0
        %v8926 = vadd.f32 0.0, %v8925
        %v8927 = vpop.f32.mrf.mxu0
        %8928 = vmatprep.mubr.f32.mxu0 0.0
        %8929 = vmatmul.mubr.f32.gmra.mxu0 %v8851
        %v8930 = vpop.f32.mrf.mxu0
        %v8931 = vadd.f32 0.0, %v8930
        %v8932 = vpop.f32.mrf.mxu0
        %8933 = vmatprep.mubr.f32.mxu0 0.0
        %8934 = vmatmul.mubr.f32.gmra.mxu0 %v8854
        %v8935 = vpop.f32.mrf.mxu0
        %v8936 = vadd.f32 0.0, %v8935
        %v8937 = vpop.f32.mrf.mxu0
        %8938 = vmatprep.mubr.f32.mxu0 0.0
        %8939 = vmatmul.mubr.f32.gmra.mxu0 %v8857
        %v8940 = vpop.f32.mrf.mxu0
        %v8941 = vadd.f32 0.0, %v8940
        %v8942 = vpop.f32.mrf.mxu0
        %8943 = vdwg.mxu0
        %v8944 = vadd.f32 %v8812, %v8926
        %v8945 = vadd.f32 %v8817, %v8931
        %v8946 = vadd.f32 %v8822, %v8936
        %v8947 = vadd.f32 %v8827, %v8941
        %s8948 = scalar_lea.vmem [#allocation7], 96
        %v8949 = vld [vmem:[%s8948] sm:$0xff]
        %v8950 = vld [vmem:[%s8948 + $0x8] sm:$0xff]
        %v8951 = vld [vmem:[%s8948 + $0x10] sm:$0xff]
        %v8952 = vld [vmem:[%s8948 + $0x18] sm:$0xff]
        %8953 = vrot.lane.b32.xlu0 %v8592, 122
        %v8954 = vpop.permute.xlu0 %8953
        %8955 = vrot.lane.b32.xlu0 %v8597, 122
        %v8956 = vpop.permute.xlu0 %8955
        %8957 = vrot.lane.b32.xlu0 %v8602, 122
        %v8958 = vpop.permute.xlu0 %8957
        %8959 = vrot.lane.b32.xlu0 %v8607, 122
        %v8960 = vpop.permute.xlu0 %8959
        %v8966 = vsel %vm8635, %v8949, 0
        %v8969 = vsel %vm8635, %v8950, 0
        %v8972 = vsel %vm8635, %v8951, 0
        %v8975 = vsel %vm8635, %v8952, 0
        %8977 = vmatprep.subr.mxu0 0.0
        %8978 = vmatpush1.msra.mxu0 0.0
        %8979 = vmatprep.subr.mxu0 0.0
        %8980 = vmatpush1.msra.mxu0 0.0
        %8981 = vmatprep.subr.mxu0 0.0
        %8982 = vmatpush1.msra.mxu0 0.0
        %8983 = vmatprep.subr.mxu0 0.0
        %8984 = vmatpush1.msra.mxu0 0.0
        %8985 = vmatprep.subr.mxu0 0.0
        %8986 = vmatpush1.msra.mxu0 0.0
        %8987 = vmatprep.subr.mxu0 0.0
        %8988 = vmatpush1.msra.mxu0 0.0
        %8989 = vmatprep.subr.mxu0 0.0
        %8990 = vmatpush1.msra.mxu0 0.0
        %8991 = vmatprep.subr.mxu0 0.0
        %8992 = vmatpush1.msra.mxu0 0.0
        %8993 = vmatprep.subr.mxu0 0.0
        %8994 = vmatpush1.msra.mxu0 0.0
        %8995 = vmatprep.subr.mxu0 0.0
        %8996 = vmatpush1.msra.mxu0 0.0
        %8997 = vmatprep.subr.mxu0 0.0
        %8998 = vmatpush1.msra.mxu0 0.0
        %8999 = vmatprep.subr.mxu0 0.0
        %9000 = vmatpush1.msra.mxu0 0.0
        %9001 = vmatprep.subr.mxu0 0.0
        %9002 = vmatpush1.msra.mxu0 %v8960
        %9003 = vmatprep.subr.mxu0 0.0
        %9004 = vmatpush1.msra.mxu0 %v8958
        %9005 = vmatprep.subr.mxu0 0.0
        %9006 = vmatpush1.msra.mxu0 %v8956
        %9007 = vmatprep.subr.mxu0 0.0
        %9008 = vmatpush1.msra.mxu0 %v8954
        %9009 = vmatprep.subr.mxu0 0.0
        %9010 = vmatpush2.msra.mxu0 0.0
        %9011 = vmatprep.subr.mxu0 0.0
        %9012 = vmatpush2.msra.mxu0 0.0
        %9013 = vmatprep.subr.mxu0 0.0
        %9014 = vmatpush2.msra.mxu0 0.0
        %9015 = vmatprep.subr.mxu0 0.0
        %9016 = vmatpush2.msra.mxu0 0.0
        %9017 = vmatprep.subr.mxu0 0.0
        %9018 = vmatpush2.msra.mxu0 0.0
        %9019 = vmatprep.subr.mxu0 0.0
        %9020 = vmatpush2.msra.mxu0 0.0
        %9021 = vmatprep.subr.mxu0 0.0
        %9022 = vmatpush2.msra.mxu0 0.0
        %9023 = vmatprep.subr.mxu0 0.0
        %9024 = vmatpush2.msra.mxu0 0.0
        %9025 = vmatprep.subr.mxu0 0.0
        %9026 = vmatpush2.msra.mxu0 0.0
        %9027 = vmatprep.subr.mxu0 0.0
        %9028 = vmatpush2.msra.mxu0 0.0
        %9029 = vmatprep.subr.mxu0 0.0
        %9030 = vmatpush2.msra.mxu0 0.0
        %9031 = vmatprep.subr.mxu0 0.0
        %9032 = vmatpush2.msra.mxu0 0.0
        %9033 = vmatprep.subr.mxu0 0.0
        %9034 = vmatpush2.msra.mxu0 0.0
        %9035 = vmatprep.subr.mxu0 0.0
        %9036 = vmatpush2.msra.mxu0 0.0
        %9037 = vmatprep.subr.mxu0 0.0
        %9038 = vmatpush2.msra.mxu0 0.0
        %9039 = vmatprep.subr.mxu0 0.0
        %9040 = vmatpush2.msra.mxu0 0.0
        %9041 = vmatprep.mubr.f32.mxu0 0.0
        %9042 = vmatmul.mubr.f32.gmra.mxu0 %v8966
        %v9043 = vpop.f32.mrf.mxu0
        %v9044 = vadd.f32 0.0, %v9043
        %v9045 = vpop.f32.mrf.mxu0
        %9046 = vmatprep.mubr.f32.mxu0 0.0
        %9047 = vmatmul.mubr.f32.gmra.mxu0 %v8969
        %v9048 = vpop.f32.mrf.mxu0
        %v9049 = vadd.f32 0.0, %v9048
        %v9050 = vpop.f32.mrf.mxu0
        %9051 = vmatprep.mubr.f32.mxu0 0.0
        %9052 = vmatmul.mubr.f32.gmra.mxu0 %v8972
        %v9053 = vpop.f32.mrf.mxu0
        %v9054 = vadd.f32 0.0, %v9053
        %v9055 = vpop.f32.mrf.mxu0
        %9056 = vmatprep.mubr.f32.mxu0 0.0
        %9057 = vmatmul.mubr.f32.gmra.mxu0 %v8975
        %v9058 = vpop.f32.mrf.mxu0
        %v9059 = vadd.f32 0.0, %v9058
        %v9060 = vpop.f32.mrf.mxu0
        %9061 = vdwg.mxu0
        %v9062 = vadd.f32 %v8944, %v9044
        %v9063 = vadd.f32 %v8945, %v9049
        %v9064 = vadd.f32 %v8946, %v9054
        %v9065 = vadd.f32 %v8947, %v9059
        %s9066 = scalar_lea.vmem [#allocation7], 128
        %v9067 = vld [vmem:[%s9066] sm:$0xff]
        %v9068 = vld [vmem:[%s9066 + $0x8] sm:$0xff]
        %v9069 = vld [vmem:[%s9066 + $0x10] sm:$0xff]
        %v9070 = vld [vmem:[%s9066 + $0x18] sm:$0xff]
        %9071 = vrot.lane.b32.xlu0 %v8592, 121
        %v9072 = vpop.permute.xlu0 %9071
        %9073 = vrot.lane.b32.xlu0 %v8597, 121
        %v9074 = vpop.permute.xlu0 %9073
        %9075 = vrot.lane.b32.xlu0 %v8602, 121
        %v9076 = vpop.permute.xlu0 %9075
        %9077 = vrot.lane.b32.xlu0 %v8607, 121
        %v9078 = vpop.permute.xlu0 %9077
        %v9084 = vsel %vm8635, %v9067, 0
        %v9087 = vsel %vm8635, %v9068, 0
        %v9090 = vsel %vm8635, %v9069, 0
        %v9093 = vsel %vm8635, %v9070, 0
        %9095 = vmatprep.subr.mxu0 0.0
        %9096 = vmatpush1.msra.mxu0 0.0
        %9097 = vmatprep.subr.mxu0 0.0
        %9098 = vmatpush1.msra.mxu0 0.0
        %9099 = vmatprep.subr.mxu0 0.0
        %9100 = vmatpush1.msra.mxu0 0.0
        %9101 = vmatprep.subr.mxu0 0.0
        %9102 = vmatpush1.msra.mxu0 0.0
        %9103 = vmatprep.subr.mxu0 0.0
        %9104 = vmatpush1.msra.mxu0 0.0
        %9105 = vmatprep.subr.mxu0 0.0
        %9106 = vmatpush1.msra.mxu0 0.0
        %9107 = vmatprep.subr.mxu0 0.0
        %9108 = vmatpush1.msra.mxu0 0.0
        %9109 = vmatprep.subr.mxu0 0.0
        %9110 = vmatpush1.msra.mxu0 0.0
        %9111 = vmatprep.subr.mxu0 0.0
        %9112 = vmatpush1.msra.mxu0 0.0
        %9113 = vmatprep.subr.mxu0 0.0
        %9114 = vmatpush1.msra.mxu0 0.0
        %9115 = vmatprep.subr.mxu0 0.0
        %9116 = vmatpush1.msra.mxu0 0.0
        %9117 = vmatprep.subr.mxu0 0.0
        %9118 = vmatpush1.msra.mxu0 0.0
        %9119 = vmatprep.subr.mxu0 0.0
        %9120 = vmatpush1.msra.mxu0 %v9078
        %9121 = vmatprep.subr.mxu0 0.0
        %9122 = vmatpush1.msra.mxu0 %v9076
        %9123 = vmatprep.subr.mxu0 0.0
        %9124 = vmatpush1.msra.mxu0 %v9074
        %9125 = vmatprep.subr.mxu0 0.0
        %9126 = vmatpush1.msra.mxu0 %v9072
        %9127 = vmatprep.subr.mxu0 0.0
        %9128 = vmatpush2.msra.mxu0 0.0
        %9129 = vmatprep.subr.mxu0 0.0
        %9130 = vmatpush2.msra.mxu0 0.0
        %9131 = vmatprep.subr.mxu0 0.0
        %9132 = vmatpush2.msra.mxu0 0.0
        %9133 = vmatprep.subr.mxu0 0.0
        %9134 = vmatpush2.msra.mxu0 0.0
        %9135 = vmatprep.subr.mxu0 0.0
        %9136 = vmatpush2.msra.mxu0 0.0
        %9137 = vmatprep.subr.mxu0 0.0
        %9138 = vmatpush2.msra.mxu0 0.0
        %9139 = vmatprep.subr.mxu0 0.0
        %9140 = vmatpush2.msra.mxu0 0.0
        %9141 = vmatprep.subr.mxu0 0.0
        %9142 = vmatpush2.msra.mxu0 0.0
        %9143 = vmatprep.subr.mxu0 0.0
        %9144 = vmatpush2.msra.mxu0 0.0
        %9145 = vmatprep.subr.mxu0 0.0
        %9146 = vmatpush2.msra.mxu0 0.0
        %9147 = vmatprep.subr.mxu0 0.0
        %9148 = vmatpush2.msra.mxu0 0.0
        %9149 = vmatprep.subr.mxu0 0.0
        %9150 = vmatpush2.msra.mxu0 0.0
        %9151 = vmatprep.subr.mxu0 0.0
        %9152 = vmatpush2.msra.mxu0 0.0
        %9153 = vmatprep.subr.mxu0 0.0
        %9154 = vmatpush2.msra.mxu0 0.0
        %9155 = vmatprep.subr.mxu0 0.0
        %9156 = vmatpush2.msra.mxu0 0.0
        %9157 = vmatprep.subr.mxu0 0.0
        %9158 = vmatpush2.msra.mxu0 0.0
        %9159 = vmatprep.mubr.f32.mxu0 0.0
        %9160 = vmatmul.mubr.f32.gmra.mxu0 %v9084
        %v9161 = vpop.f32.mrf.mxu0
        %v9162 = vadd.f32 0.0, %v9161
        %v9163 = vpop.f32.mrf.mxu0
        %9164 = vmatprep.mubr.f32.mxu0 0.0
        %9165 = vmatmul.mubr.f32.gmra.mxu0 %v9087
        %v9166 = vpop.f32.mrf.mxu0
        %v9167 = vadd.f32 0.0, %v9166
        %v9168 = vpop.f32.mrf.mxu0
        %9169 = vmatprep.mubr.f32.mxu0 0.0
        %9170 = vmatmul.mubr.f32.gmra.mxu0 %v9090
        %v9171 = vpop.f32.mrf.mxu0
        %v9172 = vadd.f32 0.0, %v9171
        %v9173 = vpop.f32.mrf.mxu0
        %9174 = vmatprep.mubr.f32.mxu0 0.0
        %9175 = vmatmul.mubr.f32.gmra.mxu0 %v9093
        %v9176 = vpop.f32.mrf.mxu0
        %v9177 = vadd.f32 0.0, %v9176
        %v9178 = vpop.f32.mrf.mxu0
        %9179 = vdwg.mxu0
        %v9180 = vadd.f32 %v9062, %v9162
        %v9181 = vadd.f32 %v9063, %v9167
        %v9182 = vadd.f32 %v9064, %v9172
        %v9183 = vadd.f32 %v9065, %v9177
        %s9184 = scalar_lea.vmem [#allocation7], 160
        %v9185 = vld [vmem:[%s9184] sm:$0xff]
        %v9186 = vld [vmem:[%s9184 + $0x8] sm:$0xff]
        %v9187 = vld [vmem:[%s9184 + $0x10] sm:$0xff]
        %v9188 = vld [vmem:[%s9184 + $0x18] sm:$0xff]
        %9189 = vrot.lane.b32.xlu0 %v8592, 120
        %v9190 = vpop.permute.xlu0 %9189
        %9191 = vrot.lane.b32.xlu0 %v8597, 120
        %v9192 = vpop.permute.xlu0 %9191
        %9193 = vrot.lane.b32.xlu0 %v8602, 120
        %v9194 = vpop.permute.xlu0 %9193
        %9195 = vrot.lane.b32.xlu0 %v8607, 120
        %v9196 = vpop.permute.xlu0 %9195
        %v9202 = vsel %vm8635, %v9185, 0
        %v9205 = vsel %vm8635, %v9186, 0
        %v9208 = vsel %vm8635, %v9187, 0
        %v9211 = vsel %vm8635, %v9188, 0
        %9213 = vmatprep.subr.mxu0 0.0
        %9214 = vmatpush1.msra.mxu0 0.0
        %9215 = vmatprep.subr.mxu0 0.0
        %9216 = vmatpush1.msra.mxu0 0.0
        %9217 = vmatprep.subr.mxu0 0.0
        %9218 = vmatpush1.msra.mxu0 0.0
        %9219 = vmatprep.subr.mxu0 0.0
        %9220 = vmatpush1.msra.mxu0 0.0
        %9221 = vmatprep.subr.mxu0 0.0
        %9222 = vmatpush1.msra.mxu0 0.0
        %9223 = vmatprep.subr.mxu0 0.0
        %9224 = vmatpush1.msra.mxu0 0.0
        %9225 = vmatprep.subr.mxu0 0.0
        %9226 = vmatpush1.msra.mxu0 0.0
        %9227 = vmatprep.subr.mxu0 0.0
        %9228 = vmatpush1.msra.mxu0 0.0
        %9229 = vmatprep.subr.mxu0 0.0
        %9230 = vmatpush1.msra.mxu0 0.0
        %9231 = vmatprep.subr.mxu0 0.0
        %9232 = vmatpush1.msra.mxu0 0.0
        %9233 = vmatprep.subr.mxu0 0.0
        %9234 = vmatpush1.msra.mxu0 0.0
        %9235 = vmatprep.subr.mxu0 0.0
        %9236 = vmatpush1.msra.mxu0 0.0
        %9237 = vmatprep.subr.mxu0 0.0
        %9238 = vmatpush1.msra.mxu0 %v9196
        %9239 = vmatprep.subr.mxu0 0.0
        %9240 = vmatpush1.msra.mxu0 %v9194
        %9241 = vmatprep.subr.mxu0 0.0
        %9242 = vmatpush1.msra.mxu0 %v9192
        %9243 = vmatprep.subr.mxu0 0.0
        %9244 = vmatpush1.msra.mxu0 %v9190
        %9245 = vmatprep.subr.mxu0 0.0
        %9246 = vmatpush2.msra.mxu0 0.0
        %9247 = vmatprep.subr.mxu0 0.0
        %9248 = vmatpush2.msra.mxu0 0.0
        %9249 = vmatprep.subr.mxu0 0.0
        %9250 = vmatpush2.msra.mxu0 0.0
        %9251 = vmatprep.subr.mxu0 0.0
        %9252 = vmatpush2.msra.mxu0 0.0
        %9253 = vmatprep.subr.mxu0 0.0
        %9254 = vmatpush2.msra.mxu0 0.0
        %9255 = vmatprep.subr.mxu0 0.0
        %9256 = vmatpush2.msra.mxu0 0.0
        %9257 = vmatprep.subr.mxu0 0.0
        %9258 = vmatpush2.msra.mxu0 0.0
        %9259 = vmatprep.subr.mxu0 0.0
        %9260 = vmatpush2.msra.mxu0 0.0
        %9261 = vmatprep.subr.mxu0 0.0
        %9262 = vmatpush2.msra.mxu0 0.0
        %9263 = vmatprep.subr.mxu0 0.0
        %9264 = vmatpush2.msra.mxu0 0.0
        %9265 = vmatprep.subr.mxu0 0.0
        %9266 = vmatpush2.msra.mxu0 0.0
        %9267 = vmatprep.subr.mxu0 0.0
        %9268 = vmatpush2.msra.mxu0 0.0
        %9269 = vmatprep.subr.mxu0 0.0
        %9270 = vmatpush2.msra.mxu0 0.0
        %9271 = vmatprep.subr.mxu0 0.0
        %9272 = vmatpush2.msra.mxu0 0.0
        %9273 = vmatprep.subr.mxu0 0.0
        %9274 = vmatpush2.msra.mxu0 0.0
        %9275 = vmatprep.subr.mxu0 0.0
        %9276 = vmatpush2.msra.mxu0 0.0
        %9277 = vmatprep.mubr.f32.mxu0 0.0
        %9278 = vmatmul.mubr.f32.gmra.mxu0 %v9202
        %v9279 = vpop.f32.mrf.mxu0
        %v9280 = vadd.f32 0.0, %v9279
        %v9281 = vpop.f32.mrf.mxu0
        %9282 = vmatprep.mubr.f32.mxu0 0.0
        %9283 = vmatmul.mubr.f32.gmra.mxu0 %v9205
        %v9284 = vpop.f32.mrf.mxu0
        %v9285 = vadd.f32 0.0, %v9284
        %v9286 = vpop.f32.mrf.mxu0
        %9287 = vmatprep.mubr.f32.mxu0 0.0
        %9288 = vmatmul.mubr.f32.gmra.mxu0 %v9208
        %v9289 = vpop.f32.mrf.mxu0
        %v9290 = vadd.f32 0.0, %v9289
        %v9291 = vpop.f32.mrf.mxu0
        %9292 = vmatprep.mubr.f32.mxu0 0.0
        %9293 = vmatmul.mubr.f32.gmra.mxu0 %v9211
        %v9294 = vpop.f32.mrf.mxu0
        %v9295 = vadd.f32 0.0, %v9294
        %v9296 = vpop.f32.mrf.mxu0
        %9297 = vdwg.mxu0
        %v9298 = vadd.f32 %v9180, %v9280
        %v9299 = vadd.f32 %v9181, %v9285
        %v9300 = vadd.f32 %v9182, %v9290
        %v9301 = vadd.f32 %v9183, %v9295
        %s9302 = scalar_lea.vmem [#allocation7], 192
        %v9303 = vld [vmem:[%s9302] sm:$0xff]
        %v9304 = vld [vmem:[%s9302 + $0x8] sm:$0xff]
        %v9305 = vld [vmem:[%s9302 + $0x10] sm:$0xff]
        %v9306 = vld [vmem:[%s9302 + $0x18] sm:$0xff]
        %9307 = vrot.lane.b32.xlu0 %v8592, 116
        %v9308 = vpop.permute.xlu0 %9307
        %9309 = vrot.lane.b32.xlu0 %v8597, 116
        %v9310 = vpop.permute.xlu0 %9309
        %9311 = vrot.lane.b32.xlu0 %v8602, 116
        %v9312 = vpop.permute.xlu0 %9311
        %9313 = vrot.lane.b32.xlu0 %v8607, 116
        %v9314 = vpop.permute.xlu0 %9313
        %v9320 = vsel %vm8635, %v9303, 0
        %v9323 = vsel %vm8635, %v9304, 0
        %v9326 = vsel %vm8635, %v9305, 0
        %v9329 = vsel %vm8635, %v9306, 0
        %9331 = vmatprep.subr.mxu0 0.0
        %9332 = vmatpush1.msra.mxu0 0.0
        %9333 = vmatprep.subr.mxu0 0.0
        %9334 = vmatpush1.msra.mxu0 0.0
        %9335 = vmatprep.subr.mxu0 0.0
        %9336 = vmatpush1.msra.mxu0 0.0
        %9337 = vmatprep.subr.mxu0 0.0
        %9338 = vmatpush1.msra.mxu0 0.0
        %9339 = vmatprep.subr.mxu0 0.0
        %9340 = vmatpush1.msra.mxu0 0.0
        %9341 = vmatprep.subr.mxu0 0.0
        %9342 = vmatpush1.msra.mxu0 0.0
        %9343 = vmatprep.subr.mxu0 0.0
        %9344 = vmatpush1.msra.mxu0 0.0
        %9345 = vmatprep.subr.mxu0 0.0
        %9346 = vmatpush1.msra.mxu0 0.0
        %9347 = vmatprep.subr.mxu0 0.0
        %9348 = vmatpush1.msra.mxu0 0.0
        %9349 = vmatprep.subr.mxu0 0.0
        %9350 = vmatpush1.msra.mxu0 0.0
        %9351 = vmatprep.subr.mxu0 0.0
        %9352 = vmatpush1.msra.mxu0 0.0
        %9353 = vmatprep.subr.mxu0 0.0
        %9354 = vmatpush1.msra.mxu0 0.0
        %9355 = vmatprep.subr.mxu0 0.0
        %9356 = vmatpush1.msra.mxu0 %v9314
        %9357 = vmatprep.subr.mxu0 0.0
        %9358 = vmatpush1.msra.mxu0 %v9312
        %9359 = vmatprep.subr.mxu0 0.0
        %9360 = vmatpush1.msra.mxu0 %v9310
        %9361 = vmatprep.subr.mxu0 0.0
        %9362 = vmatpush1.msra.mxu0 %v9308
        %9363 = vmatprep.subr.mxu0 0.0
        %9364 = vmatpush2.msra.mxu0 0.0
        %9365 = vmatprep.subr.mxu0 0.0
        %9366 = vmatpush2.msra.mxu0 0.0
        %9367 = vmatprep.subr.mxu0 0.0
        %9368 = vmatpush2.msra.mxu0 0.0
        %9369 = vmatprep.subr.mxu0 0.0
        %9370 = vmatpush2.msra.mxu0 0.0
        %9371 = vmatprep.subr.mxu0 0.0
        %9372 = vmatpush2.msra.mxu0 0.0
        %9373 = vmatprep.subr.mxu0 0.0
        %9374 = vmatpush2.msra.mxu0 0.0
        %9375 = vmatprep.subr.mxu0 0.0
        %9376 = vmatpush2.msra.mxu0 0.0
        %9377 = vmatprep.subr.mxu0 0.0
        %9378 = vmatpush2.msra.mxu0 0.0
        %9379 = vmatprep.subr.mxu0 0.0
        %9380 = vmatpush2.msra.mxu0 0.0
        %9381 = vmatprep.subr.mxu0 0.0
        %9382 = vmatpush2.msra.mxu0 0.0
        %9383 = vmatprep.subr.mxu0 0.0
        %9384 = vmatpush2.msra.mxu0 0.0
        %9385 = vmatprep.subr.mxu0 0.0
        %9386 = vmatpush2.msra.mxu0 0.0
        %9387 = vmatprep.subr.mxu0 0.0
        %9388 = vmatpush2.msra.mxu0 0.0
        %9389 = vmatprep.subr.mxu0 0.0
        %9390 = vmatpush2.msra.mxu0 0.0
        %9391 = vmatprep.subr.mxu0 0.0
        %9392 = vmatpush2.msra.mxu0 0.0
        %9393 = vmatprep.subr.mxu0 0.0
        %9394 = vmatpush2.msra.mxu0 0.0
        %9395 = vmatprep.mubr.f32.mxu0 0.0
        %9396 = vmatmul.mubr.f32.gmra.mxu0 %v9320
        %v9397 = vpop.f32.mrf.mxu0
        %v9398 = vadd.f32 0.0, %v9397
        %v9399 = vpop.f32.mrf.mxu0
        %9400 = vmatprep.mubr.f32.mxu0 0.0
        %9401 = vmatmul.mubr.f32.gmra.mxu0 %v9323
        %v9402 = vpop.f32.mrf.mxu0
        %v9403 = vadd.f32 0.0, %v9402
        %v9404 = vpop.f32.mrf.mxu0
        %9405 = vmatprep.mubr.f32.mxu0 0.0
        %9406 = vmatmul.mubr.f32.gmra.mxu0 %v9326
        %v9407 = vpop.f32.mrf.mxu0
        %v9408 = vadd.f32 0.0, %v9407
        %v9409 = vpop.f32.mrf.mxu0
        %9410 = vmatprep.mubr.f32.mxu0 0.0
        %9411 = vmatmul.mubr.f32.gmra.mxu0 %v9329
        %v9412 = vpop.f32.mrf.mxu0
        %v9413 = vadd.f32 0.0, %v9412
        %v9414 = vpop.f32.mrf.mxu0
        %9415 = vdwg.mxu0
        %v9416 = vadd.f32 %v9298, %v9398
        %v9417 = vadd.f32 %v9299, %v9403
        %v9418 = vadd.f32 %v9300, %v9408
        %v9419 = vadd.f32 %v9301, %v9413
        %s9420 = scalar_lea.vmem [#allocation7], 224
        %v9421 = vld [vmem:[%s9420] sm:$0xff]
        %v9422 = vld [vmem:[%s9420 + $0x8] sm:$0xff]
        %v9423 = vld [vmem:[%s9420 + $0x10] sm:$0xff]
        %v9424 = vld [vmem:[%s9420 + $0x18] sm:$0xff]
        %9425 = vrot.lane.b32.xlu0 %v8592, 115
        %v9426 = vpop.permute.xlu0 %9425
        %9427 = vrot.lane.b32.xlu0 %v8597, 115
        %v9428 = vpop.permute.xlu0 %9427
        %9429 = vrot.lane.b32.xlu0 %v8602, 115
        %v9430 = vpop.permute.xlu0 %9429
        %9431 = vrot.lane.b32.xlu0 %v8607, 115
        %v9432 = vpop.permute.xlu0 %9431
        %v9438 = vsel %vm8635, %v9421, 0
        %v9441 = vsel %vm8635, %v9422, 0
        %v9444 = vsel %vm8635, %v9423, 0
        %v9447 = vsel %vm8635, %v9424, 0
        %9449 = vmatprep.subr.mxu0 0.0
        %9450 = vmatpush1.msra.mxu0 0.0
        %9451 = vmatprep.subr.mxu0 0.0
        %9452 = vmatpush1.msra.mxu0 0.0
        %9453 = vmatprep.subr.mxu0 0.0
        %9454 = vmatpush1.msra.mxu0 0.0
        %9455 = vmatprep.subr.mxu0 0.0
        %9456 = vmatpush1.msra.mxu0 0.0
        %9457 = vmatprep.subr.mxu0 0.0
        %9458 = vmatpush1.msra.mxu0 0.0
        %9459 = vmatprep.subr.mxu0 0.0
        %9460 = vmatpush1.msra.mxu0 0.0
        %9461 = vmatprep.subr.mxu0 0.0
        %9462 = vmatpush1.msra.mxu0 0.0
        %9463 = vmatprep.subr.mxu0 0.0
        %9464 = vmatpush1.msra.mxu0 0.0
        %9465 = vmatprep.subr.mxu0 0.0
        %9466 = vmatpush1.msra.mxu0 0.0
        %9467 = vmatprep.subr.mxu0 0.0
        %9468 = vmatpush1.msra.mxu0 0.0
        %9469 = vmatprep.subr.mxu0 0.0
        %9470 = vmatpush1.msra.mxu0 0.0
        %9471 = vmatprep.subr.mxu0 0.0
        %9472 = vmatpush1.msra.mxu0 0.0
        %9473 = vmatprep.subr.mxu0 0.0
        %9474 = vmatpush1.msra.mxu0 %v9432
        %9475 = vmatprep.subr.mxu0 0.0
        %9476 = vmatpush1.msra.mxu0 %v9430
        %9477 = vmatprep.subr.mxu0 0.0
        %9478 = vmatpush1.msra.mxu0 %v9428
        %9479 = vmatprep.subr.mxu0 0.0
        %9480 = vmatpush1.msra.mxu0 %v9426
        %9481 = vmatprep.subr.mxu0 0.0
        %9482 = vmatpush2.msra.mxu0 0.0
        %9483 = vmatprep.subr.mxu0 0.0
        %9484 = vmatpush2.msra.mxu0 0.0
        %9485 = vmatprep.subr.mxu0 0.0
        %9486 = vmatpush2.msra.mxu0 0.0
        %9487 = vmatprep.subr.mxu0 0.0
        %9488 = vmatpush2.msra.mxu0 0.0
        %9489 = vmatprep.subr.mxu0 0.0
        %9490 = vmatpush2.msra.mxu0 0.0
        %9491 = vmatprep.subr.mxu0 0.0
        %9492 = vmatpush2.msra.mxu0 0.0
        %9493 = vmatprep.subr.mxu0 0.0
        %9494 = vmatpush2.msra.mxu0 0.0
        %9495 = vmatprep.subr.mxu0 0.0
        %9496 = vmatpush2.msra.mxu0 0.0
        %9497 = vmatprep.subr.mxu0 0.0
        %9498 = vmatpush2.msra.mxu0 0.0
        %9499 = vmatprep.subr.mxu0 0.0
        %9500 = vmatpush2.msra.mxu0 0.0
        %9501 = vmatprep.subr.mxu0 0.0
        %9502 = vmatpush2.msra.mxu0 0.0
        %9503 = vmatprep.subr.mxu0 0.0
        %9504 = vmatpush2.msra.mxu0 0.0
        %9505 = vmatprep.subr.mxu0 0.0
        %9506 = vmatpush2.msra.mxu0 0.0
        %9507 = vmatprep.subr.mxu0 0.0
        %9508 = vmatpush2.msra.mxu0 0.0
        %9509 = vmatprep.subr.mxu0 0.0
        %9510 = vmatpush2.msra.mxu0 0.0
        %9511 = vmatprep.subr.mxu0 0.0
        %9512 = vmatpush2.msra.mxu0 0.0
        %9513 = vmatprep.mubr.f32.mxu0 0.0
        %9514 = vmatmul.mubr.f32.gmra.mxu0 %v9438
        %v9515 = vpop.f32.mrf.mxu0
        %v9516 = vadd.f32 0.0, %v9515
        %v9517 = vpop.f32.mrf.mxu0
        %9518 = vmatprep.mubr.f32.mxu0 0.0
        %9519 = vmatmul.mubr.f32.gmra.mxu0 %v9441
        %v9520 = vpop.f32.mrf.mxu0
        %v9521 = vadd.f32 0.0, %v9520
        %v9522 = vpop.f32.mrf.mxu0
        %9523 = vmatprep.mubr.f32.mxu0 0.0
        %9524 = vmatmul.mubr.f32.gmra.mxu0 %v9444
        %v9525 = vpop.f32.mrf.mxu0
        %v9526 = vadd.f32 0.0, %v9525
        %v9527 = vpop.f32.mrf.mxu0
        %9528 = vmatprep.mubr.f32.mxu0 0.0
        %9529 = vmatmul.mubr.f32.gmra.mxu0 %v9447
        %v9530 = vpop.f32.mrf.mxu0
        %v9531 = vadd.f32 0.0, %v9530
        %v9532 = vpop.f32.mrf.mxu0
        %9533 = vdwg.mxu0
        %v9534 = vadd.f32 %v9416, %v9516
        %v9535 = vadd.f32 %v9417, %v9521
        %v9536 = vadd.f32 %v9418, %v9526
        %v9537 = vadd.f32 %v9419, %v9531
        %s9538 = scalar_lea.vmem [#allocation7], 256
        %v9539 = vld [vmem:[%s9538] sm:$0xff]
        %v9540 = vld [vmem:[%s9538 + $0x8] sm:$0xff]
        %v9541 = vld [vmem:[%s9538 + $0x10] sm:$0xff]
        %v9542 = vld [vmem:[%s9538 + $0x18] sm:$0xff]
        %9543 = vrot.lane.b32.xlu0 %v8592, 114
        %v9544 = vpop.permute.xlu0 %9543
        %9545 = vrot.lane.b32.xlu0 %v8597, 114
        %v9546 = vpop.permute.xlu0 %9545
        %9547 = vrot.lane.b32.xlu0 %v8602, 114
        %v9548 = vpop.permute.xlu0 %9547
        %9549 = vrot.lane.b32.xlu0 %v8607, 114
        %v9550 = vpop.permute.xlu0 %9549
        %v9556 = vsel %vm8635, %v9539, 0
        %v9559 = vsel %vm8635, %v9540, 0
        %v9562 = vsel %vm8635, %v9541, 0
        %v9565 = vsel %vm8635, %v9542, 0
        %9567 = vmatprep.subr.mxu0 0.0
        %9568 = vmatpush1.msra.mxu0 0.0
        %9569 = vmatprep.subr.mxu0 0.0
        %9570 = vmatpush1.msra.mxu0 0.0
        %9571 = vmatprep.subr.mxu0 0.0
        %9572 = vmatpush1.msra.mxu0 0.0
        %9573 = vmatprep.subr.mxu0 0.0
        %9574 = vmatpush1.msra.mxu0 0.0
        %9575 = vmatprep.subr.mxu0 0.0
        %9576 = vmatpush1.msra.mxu0 0.0
        %9577 = vmatprep.subr.mxu0 0.0
        %9578 = vmatpush1.msra.mxu0 0.0
        %9579 = vmatprep.subr.mxu0 0.0
        %9580 = vmatpush1.msra.mxu0 0.0
        %9581 = vmatprep.subr.mxu0 0.0
        %9582 = vmatpush1.msra.mxu0 0.0
        %9583 = vmatprep.subr.mxu0 0.0
        %9584 = vmatpush1.msra.mxu0 0.0
        %9585 = vmatprep.subr.mxu0 0.0
        %9586 = vmatpush1.msra.mxu0 0.0
        %9587 = vmatprep.subr.mxu0 0.0
        %9588 = vmatpush1.msra.mxu0 0.0
        %9589 = vmatprep.subr.mxu0 0.0
        %9590 = vmatpush1.msra.mxu0 0.0
        %9591 = vmatprep.subr.mxu0 0.0
        %9592 = vmatpush1.msra.mxu0 %v9550
        %9593 = vmatprep.subr.mxu0 0.0
        %9594 = vmatpush1.msra.mxu0 %v9548
        %9595 = vmatprep.subr.mxu0 0.0
        %9596 = vmatpush1.msra.mxu0 %v9546
        %9597 = vmatprep.subr.mxu0 0.0
        %9598 = vmatpush1.msra.mxu0 %v9544
        %9599 = vmatprep.subr.mxu0 0.0
        %9600 = vmatpush2.msra.mxu0 0.0
        %9601 = vmatprep.subr.mxu0 0.0
        %9602 = vmatpush2.msra.mxu0 0.0
        %9603 = vmatprep.subr.mxu0 0.0
        %9604 = vmatpush2.msra.mxu0 0.0
        %9605 = vmatprep.subr.mxu0 0.0
        %9606 = vmatpush2.msra.mxu0 0.0
        %9607 = vmatprep.subr.mxu0 0.0
        %9608 = vmatpush2.msra.mxu0 0.0
        %9609 = vmatprep.subr.mxu0 0.0
        %9610 = vmatpush2.msra.mxu0 0.0
        %9611 = vmatprep.subr.mxu0 0.0
        %9612 = vmatpush2.msra.mxu0 0.0
        %9613 = vmatprep.subr.mxu0 0.0
        %9614 = vmatpush2.msra.mxu0 0.0
        %9615 = vmatprep.subr.mxu0 0.0
        %9616 = vmatpush2.msra.mxu0 0.0
        %9617 = vmatprep.subr.mxu0 0.0
        %9618 = vmatpush2.msra.mxu0 0.0
        %9619 = vmatprep.subr.mxu0 0.0
        %9620 = vmatpush2.msra.mxu0 0.0
        %9621 = vmatprep.subr.mxu0 0.0
        %9622 = vmatpush2.msra.mxu0 0.0
        %9623 = vmatprep.subr.mxu0 0.0
        %9624 = vmatpush2.msra.mxu0 0.0
        %9625 = vmatprep.subr.mxu0 0.0
        %9626 = vmatpush2.msra.mxu0 0.0
        %9627 = vmatprep.subr.mxu0 0.0
        %9628 = vmatpush2.msra.mxu0 0.0
        %9629 = vmatprep.subr.mxu0 0.0
        %9630 = vmatpush2.msra.mxu0 0.0
        %9631 = vmatprep.mubr.f32.mxu0 0.0
        %9632 = vmatmul.mubr.f32.gmra.mxu0 %v9556
        %v9633 = vpop.f32.mrf.mxu0
        %v9634 = vadd.f32 0.0, %v9633
        %v9635 = vpop.f32.mrf.mxu0
        %9636 = vmatprep.mubr.f32.mxu0 0.0
        %9637 = vmatmul.mubr.f32.gmra.mxu0 %v9559
        %v9638 = vpop.f32.mrf.mxu0
        %v9639 = vadd.f32 0.0, %v9638
        %v9640 = vpop.f32.mrf.mxu0
        %9641 = vmatprep.mubr.f32.mxu0 0.0
        %9642 = vmatmul.mubr.f32.gmra.mxu0 %v9562
        %v9643 = vpop.f32.mrf.mxu0
        %v9644 = vadd.f32 0.0, %v9643
        %v9645 = vpop.f32.mrf.mxu0
        %9646 = vmatprep.mubr.f32.mxu0 0.0
        %9647 = vmatmul.mubr.f32.gmra.mxu0 %v9565
        %v9648 = vpop.f32.mrf.mxu0
        %v9649 = vadd.f32 0.0, %v9648
        %v9650 = vpop.f32.mrf.mxu0
        %9651 = vdwg.mxu0
        %v9652 = vadd.f32 %v9534, %v9634
        %v9653 = vadd.f32 %v9535, %v9639
        %v9654 = vadd.f32 %v9536, %v9644
        %v9655 = vadd.f32 %v9537, %v9649
        %s9656 = sld [smem:[#allocation2 + $0x5]]
        %vm9657 = vcmp.ge.f32.partialorder %v9652, 0.0
        %vm9658 = vcmp.ge.f32.partialorder %v9653, 0.0
        %vm9659 = vcmp.ge.f32.partialorder %v9654, 0.0
        %vm9660 = vcmp.ge.f32.partialorder %v9655, 0.0
        %v9661 = vstv %s9656
        %v9662 = vmul.f32 %v9661, %v9652
        %v9663 = vmul.f32 %v9661, %v9653
        %v9664 = vmul.f32 %v9661, %v9654
        %v9665 = vmul.f32 %v9661, %v9655
        %v9666 = vsel %vm9657, %v9652, %v9662
        %v9667 = vsel %vm9658, %v9653, %v9663
        %v9668 = vsel %vm9659, %v9654, %v9664
        %v9669 = vsel %vm9660, %v9655, %v9665
        %v9670 = vld [vmem:[%s15] sm:$0xff]
        %v9671 = vld [vmem:[%s15 + $0x8] sm:$0xff]
        %v9672 = vld [vmem:[%s15 + $0x10] sm:$0xff]
        %v9673 = vld [vmem:[%s15 + $0x18] sm:$0xff]
        %v9674 = vld [vmem:[%s15 + $0x20] sm:$0xf]
        %vm9675 = vcmask 293888
        %v9677 = vsel %vm9675, %v9666, 0
        %v9680 = vsel %vm9675, %v9667, 0
        %v9683 = vsel %vm9675, %v9668, 0
        %v9686 = vsel %vm9675, %v9669, 0
        %v9689 = vsel %vm2289, %v9674, 0
        %9691 = vmatprep.subr.mxu0 0.0
        %9692 = vmatpush1.msra.mxu0 0.0
        %9693 = vmatprep.subr.mxu0 0.0
        %9694 = vmatpush1.msra.mxu0 0.0
        %9695 = vmatprep.subr.mxu0 0.0
        %9696 = vmatpush1.msra.mxu0 0.0
        %9697 = vmatprep.subr.mxu0 0.0
        %9698 = vmatpush1.msra.mxu0 0.0
        %9699 = vmatprep.subr.mxu0 0.0
        %9700 = vmatpush1.msra.mxu0 0.0
        %9701 = vmatprep.subr.mxu0 0.0
        %9702 = vmatpush1.msra.mxu0 0.0
        %9703 = vmatprep.subr.mxu0 0.0
        %9704 = vmatpush1.msra.mxu0 0.0
        %9705 = vmatprep.subr.mxu0 0.0
        %9706 = vmatpush1.msra.mxu0 0.0
        %9707 = vmatprep.subr.mxu0 0.0
        %9708 = vmatpush1.msra.mxu0 0.0
        %9709 = vmatprep.subr.mxu0 0.0
        %9710 = vmatpush1.msra.mxu0 0.0
        %9711 = vmatprep.subr.mxu0 0.0
        %9712 = vmatpush1.msra.mxu0 0.0
        %9713 = vmatprep.subr.mxu0 0.0
        %9714 = vmatpush1.msra.mxu0 %v9689
        %9715 = vmatprep.subr.mxu0 0.0
        %9716 = vmatpush1.msra.mxu0 %v9673
        %9717 = vmatprep.subr.mxu0 0.0
        %9718 = vmatpush1.msra.mxu0 %v9672
        %9719 = vmatprep.subr.mxu0 0.0
        %9720 = vmatpush1.msra.mxu0 %v9671
        %9721 = vmatprep.subr.mxu0 0.0
        %9722 = vmatpush1.msra.mxu0 %v9670
        %9723 = vmatprep.subr.mxu0 0.0
        %9724 = vmatpush2.msra.mxu0 0.0
        %9725 = vmatprep.subr.mxu0 0.0
        %9726 = vmatpush2.msra.mxu0 0.0
        %9727 = vmatprep.subr.mxu0 0.0
        %9728 = vmatpush2.msra.mxu0 0.0
        %9729 = vmatprep.subr.mxu0 0.0
        %9730 = vmatpush2.msra.mxu0 0.0
        %9731 = vmatprep.subr.mxu0 0.0
        %9732 = vmatpush2.msra.mxu0 0.0
        %9733 = vmatprep.subr.mxu0 0.0
        %9734 = vmatpush2.msra.mxu0 0.0
        %9735 = vmatprep.subr.mxu0 0.0
        %9736 = vmatpush2.msra.mxu0 0.0
        %9737 = vmatprep.subr.mxu0 0.0
        %9738 = vmatpush2.msra.mxu0 0.0
        %9739 = vmatprep.subr.mxu0 0.0
        %9740 = vmatpush2.msra.mxu0 0.0
        %9741 = vmatprep.subr.mxu0 0.0
        %9742 = vmatpush2.msra.mxu0 0.0
        %9743 = vmatprep.subr.mxu0 0.0
        %9744 = vmatpush2.msra.mxu0 0.0
        %9745 = vmatprep.subr.mxu0 0.0
        %9746 = vmatpush2.msra.mxu0 0.0
        %9747 = vmatprep.subr.mxu0 0.0
        %9748 = vmatpush2.msra.mxu0 0.0
        %9749 = vmatprep.subr.mxu0 0.0
        %9750 = vmatpush2.msra.mxu0 0.0
        %9751 = vmatprep.subr.mxu0 0.0
        %9752 = vmatpush2.msra.mxu0 0.0
        %9753 = vmatprep.subr.mxu0 0.0
        %9754 = vmatpush2.msra.mxu0 0.0
        %9755 = vmatprep.mubr.f32.mxu0 0.0
        %9756 = vmatmul.mubr.f32.gmra.mxu0 %v9677
        %v9757 = vpop.f32.mrf.mxu0
        %v9758 = vadd.f32 0.0, %v9757
        %v9759 = vpop.f32.mrf.mxu0
        %9760 = vmatprep.mubr.f32.mxu0 0.0
        %9761 = vmatmul.mubr.f32.gmra.mxu0 %v9680
        %v9762 = vpop.f32.mrf.mxu0
        %v9763 = vadd.f32 0.0, %v9762
        %v9764 = vpop.f32.mrf.mxu0
        %9765 = vmatprep.mubr.f32.mxu0 0.0
        %9766 = vmatmul.mubr.f32.gmra.mxu0 %v9683
        %v9767 = vpop.f32.mrf.mxu0
        %v9768 = vadd.f32 0.0, %v9767
        %v9769 = vpop.f32.mrf.mxu0
        %9770 = vmatprep.mubr.f32.mxu0 0.0
        %9771 = vmatmul.mubr.f32.gmra.mxu0 %v9686
        %v9772 = vpop.f32.mrf.mxu0
        %v9773 = vadd.f32 0.0, %v9772
        %v9774 = vpop.f32.mrf.mxu0
        %9775 = vdwg.mxu0
        %9776 = vst.msk [vmem:[%s683] sm:$0xff] %vm6481, %v9758
        %9777 = vst.msk [vmem:[%s683 + $0x8] sm:$0xff] %vm6481, %v9763
        %9778 = vst.msk [vmem:[%s683 + $0x10] sm:$0xff] %vm6481, %v9768
        %9779 = vst.msk [vmem:[%s683 + $0x18] sm:$0xff] %vm6481, %v9773
        %s9780 = sand.u32 %s389, 1
        %s9781 = scalar_lea.sflag [#allocation4], %s9780
        %s9782 = sand.u32 %s389, 1
        %s9783 = smul.addr %s9782, 16
        %s9784 = scalar_lea.vmem [#allocation13], %s9783
        %s9785 = sand.u32 %s415, 1
        %s9786 = scalar_lea.sflag [#allocation15], %s9785
        %s9787 = sand.u32 %s415, 1
        %s9788 = smul.addr %s9787, 16
        %s9789 = scalar_lea.vmem [#allocation14], %s9788
        %p9790 = scmp.lt.s32.totalorder %s40, 1
        %s9791 = scalar_select %p9790, %s40, 1
        %s9792 = smul.addr %s9791, 4
        %s9793 = smul.addr %s9792, 8
        %s9794 = scalar_lea.vmem %s18, %s9793
        // Predicated region
        $region109: #{tpu_custom_call.1} parent=83 // pred_check
          %p9795 = pneg %p399
        $region110: #{tpu_custom_call.1} parent=83 // pred_check_branch
          %9797 = sbr.rel (%p9795) target = $region112
        $region111: #{tpu_custom_call.1} parent=83 // pred_region
          %s9799 = ssub.s32 256, 256
          %9800 = vsyncadd %s9781, %s9799
          %s9801 = smul.addr %s40, 2
          %s9802 = smul.addr %s9801, 128
          %s9803 = scalar_lea.hbm %s16, %s9802
          %s9805 = sshll.u32 %s9784, 4
          %s9806 = int_to_ptr.vmem [resolvable:$true] %s9805
          %9808 = dma.vmem_to_hbm [thread:$0]  %s9806, 256, %s9803, %s9781
        $region112: #{tpu_custom_call.1} parent=83 // pred_fallthru
          _
        // Predicated region
        $region113: #{tpu_custom_call.1} parent=83 // pred_check
          %p9809 = pneg %p425
        $region114: #{tpu_custom_call.1} parent=83 // pred_check_branch
          %9811 = sbr.rel (%p9809) target = $region116
        $region115: #{tpu_custom_call.1} parent=83 // pred_region
          %s9813 = ssub.s32 256, 256
          %9814 = vsyncadd %s9786, %s9813
          %s9815 = smul.addr %s40, 2
          %s9816 = smul.addr %s9815, 128
          %s9817 = scalar_lea.hbm %s17, %s9816
          %s9818 = sshll.u32 %s9789, 4
          %s9819 = int_to_ptr.vmem [resolvable:$true] %s9818
          %9824 = dma.vmem_to_hbm [thread:$0]  %s9819, 256, %s9817, %s9786, 128, 128, 8
        $region116: #{tpu_custom_call.1} parent=83 // pred_fallthru
          _
        // Predicated region
        $region117: #{tpu_custom_call.1} parent=83 // pred_check
          %p9825 = pneg %p451
        $region118: #{tpu_custom_call.1} parent=83 // pred_check_branch
          %9827 = sbr.rel (%p9825) target = $region120
        $region119: #{tpu_custom_call.1} parent=83 // pred_region
          _
        $region120: #{tpu_custom_call.1} parent=83 // pred_fallthru
          _
      $region84: #{tpu_custom_call.1} parent=5 // pred_fallthru
        _
      %p9828 = scmp.le.s32.totalorder 2, %s35
      // Predicated region
      $region121: #{tpu_custom_call.1} parent=5 // pred_check
        %p9829 = pneg %p9828
      $region122: #{tpu_custom_call.1} parent=5 // pred_check_branch
        %9831 = sbr.rel (%p9829) target = $region124
      $region123: #{tpu_custom_call.1} parent=5 // pred_region
        %s9832 = ssub.s32 %s35, 2
        // Predicated region
        $region125: #{tpu_custom_call.1} parent=123 // pred_check
          %p9833 = pneg %p405
        $region126: #{tpu_custom_call.1} parent=123 // pred_check_branch
          %9835 = sbr.rel (%p9833) target = $region128
        $region127: #{tpu_custom_call.1} parent=123 // pred_region
          %s9836 = sand.u32 %s390, 1
          %s9837 = scalar_lea.sflag [#allocation4], %s9836
          %s9838 = sand.u32 %s390, 1
          %s9839 = smul.addr %s9838, 16
          %s9840 = scalar_lea.vmem [#allocation13], %s9839
          %9841 = dma.done %s9837, 256
        $region128: #{tpu_custom_call.1} parent=123 // pred_fallthru
          _
        // Predicated region
        $region129: #{tpu_custom_call.1} parent=123 // pred_check
          %p9842 = pneg %p431
        $region130: #{tpu_custom_call.1} parent=123 // pred_check_branch
          %9844 = sbr.rel (%p9842) target = $region132
        $region131: #{tpu_custom_call.1} parent=123 // pred_region
          %s9845 = sand.u32 %s416, 1
          %s9846 = scalar_lea.sflag [#allocation15], %s9845
          %s9847 = sand.u32 %s416, 1
          %s9848 = smul.addr %s9847, 16
          %s9849 = scalar_lea.vmem [#allocation14], %s9848
          %9850 = dma.done %s9846, 256
        $region132: #{tpu_custom_call.1} parent=123 // pred_fallthru
          _
        // Predicated region
        $region133: #{tpu_custom_call.1} parent=123 // pred_check
          %p9851 = pneg %p457
        $region134: #{tpu_custom_call.1} parent=123 // pred_check_branch
          %9853 = sbr.rel (%p9851) target = $region136
        $region135: #{tpu_custom_call.1} parent=123 // pred_region
          %p9854 = scmp.lt.s32.totalorder %s41, 1
          %s9855 = scalar_select %p9854, %s41, 1
          %s9856 = smul.addr %s9855, 4
          %s9857 = smul.addr %s9856, 8
          %s9858 = scalar_lea.vmem %s18, %s9857
        $region136: #{tpu_custom_call.1} parent=123 // pred_fallthru
          _
      $region124: #{tpu_custom_call.1} parent=5 // pred_fallthru
        _
    $region6: #{tpu_custom_call.1} parent=1 // loop_footer
      %s39 = sadd.s32 1, %s35
    $region7: #{tpu_custom_call.1} parent=1 // loop_footer_branch
      %34 = sbr.rel target = $region3
    $region8: #{tpu_custom_call.1} parent=1 // loop_exit
      _
    %9859 = vsyncpa [#allocation3], 1
    %s9860 = scalar_lea.sflag [#allocation3], 1
    %9861 = vsyncpa %s9860, 1
    %9862 = vsyncpa [#allocation8], 1
    %9863 = vsyncpa [#allocation11], 1
    %9864 = vsyncpa [#allocation4], 1
    %s9865 = scalar_lea.sflag [#allocation4], 1
    %9866 = vsyncpa %s9865, 1
    %9867 = vsyncpa [#allocation15], 1
    %s9868 = scalar_lea.sflag [#allocation15], 1
    %9869 = vsyncpa %s9868, 1
    %9870 = vsyncpa [#allocation5], 1
    %s9871 = scalar_lea.sflag [#allocation5], 1
    %9872 = vsyncpa %s9871, 1

</llo_original>
